<compile_context>
chip_gen: v6e
topology: v6e:2x2x1
jax: 0.10.0
libtpu: 0.0.40
codegen_flags: <defaults>
</compile_context>

<pallas_src>
import functools
import math

import numpy as np
import jax
import jax.numpy as jnp
from jax import lax
from jax.experimental import pallas as pl
from jax.experimental.pallas import tpu as pltpu


# Matmul operand dtype.  Keep f32 for the accuracy check; set to jnp.bfloat16
# on v5e/v6e/v7x for real workloads (accumulation stays f32 either way).
MATMUL_DTYPE = jnp.float32


def _mm(a, b):
    return jnp.dot(a.astype(MATMUL_DTYPE), b.astype(MATMUL_DTYPE),
                   preferred_element_type=jnp.float32)


# --------------------------------------------------------------------------
# VMEM sizing: derive limits from the device (v5e/v6e: 128 MiB, v7x: 64 MiB/TC)
# --------------------------------------------------------------------------
@functools.lru_cache(maxsize=None)
def _tpu_vmem_bytes():
    try:
        return int(pltpu.get_tpu_info().vmem_capacity_bytes)
    except Exception:  # interpret mode / old jax: assume the smallest (v7x)
        return 64 * 1024 * 1024


def _vmem_budget():
    return _tpu_vmem_bytes() // 3


def _vmem_limit():
    return (_tpu_vmem_bytes() * 3) // 4


def _cparams(sem):
    return pltpu.CompilerParams(dimension_semantics=sem,
                                vmem_limit_bytes=_vmem_limit())


def _pick_pixel_tile(P, cin, cout, budget_bytes):
    """Whole-image pixel block if it fits VMEM, else a power-of-two multiple of
    128 (cdiv grid + masked tail block handles the remainder)."""
    def fits(tp):
        return 4 * (2 * tp * (cin + cout) + cin * cout + cout) <= budget_bytes
    if fits(P):
        return P
    tp = 128
    while tp * 2 < P and fits(tp * 2):
        tp *= 2
    return tp


def _pick_window_block(Bw, L, C, budget_bytes):
    """Windows per K2 grid step: small capped constant (bounds the static unroll
    / vreg pressure), VMEM-checked, >=2 grid steps so both v7x cores get work."""
    wb = max(1, min(4, Bw))
    per_win = 4 * (4 * L * C + 3 * L * C + 2 * L * L)
    wgt = 4 * (3 * C * C + 3 * C)
    while wb > 1 and wb * per_win + wgt > budget_bytes:
        wb -= 1
    if Bw > 1:
        wb = min(wb, -(-Bw // 2))
    return wb


# --------------------------------------------------------------------------
# K1: fused cv1 + cv2 (1x1 conv + folded BN + SiLU), NCHW consumed directly,
#     two separate outputs (no channel-split copies downstream).
# --------------------------------------------------------------------------
def _pw12_kernel(x_ref, w_ref, b_ref, y1_ref, y2_ref, *, c_):
    x = x_ref[0]                                            # (c1, tp) channel-major
    w = w_ref[...]                                          # (c1, 2c_)
    y = lax.dot_general(x.astype(MATMUL_DTYPE), w.astype(MATMUL_DTYPE),
                        (((0,), (0,)), ((), ())),           # contract c1 (trans-LHS)
                        preferred_element_type=jnp.float32)
    y = y + b_ref[...].astype(jnp.float32)
    y = y * jax.nn.sigmoid(y)                               # SiLU
    y1_ref[0] = y[:, :c_].astype(y1_ref.dtype)
    y2_ref[0] = y[:, c_:].astype(y2_ref.dtype)


def pw12_pallas(x_cm, w12, b12, c_):
    """x_cm: (B, c1, P) channel-major view of the NCHW input."""
    B, c1, P = x_cm.shape
    ctot = w12.shape[1]
    tp = _pick_pixel_tile(P, c1, ctot, _vmem_budget())
    grid = (B, pl.cdiv(P, tp))
    return pl.pallas_call(
        functools.partial(_pw12_kernel, c_=c_),
        out_shape=(jax.ShapeDtypeStruct((B, P, c_), x_cm.dtype),
                   jax.ShapeDtypeStruct((B, P, c_), x_cm.dtype)),
        grid=grid,
        in_specs=[
            pl.BlockSpec((1, c1, tp), lambda b, t: (b, 0, t)),
            pl.BlockSpec((c1, ctot), lambda b, t: (0, 0)),
            pl.BlockSpec((1, ctot), lambda b, t: (0, 0)),
        ],
        out_specs=(pl.BlockSpec((1, tp, c_), lambda b, t: (b, t, 0)),
                   pl.BlockSpec((1, tp, c_), lambda b, t: (b, t, 0))),
        compiler_params=_cparams(("parallel", "parallel")),
    )(x_cm, w12, b12.reshape(1, ctot))


# --------------------------------------------------------------------------
# K2: fused windowed attention: qkv projection (iRMB input-BN folded in) +
#     per-head softmax attention + head merge, a few windows per grid step.
# --------------------------------------------------------------------------
def _win_attn_kernel(xw_ref, w_ref, b_ref, o_ref, *, num_head, dim_head, scale):
    w = w_ref[...]                                          # (C, 3C)
    b = b_ref[...].astype(jnp.float32)                      # (1, 3C)
    wb, L, C = o_ref.shape
    col = lax.broadcasted_iota(jnp.int32, (1, C), 1)
    masks = [((col >= h * dim_head) & (col < (h + 1) * dim_head)).astype(jnp.float32)
             for h in range(num_head)]
    for wi in range(wb):                                    # wb is a small constant
        x = xw_ref[wi]                                      # (L, C)
        qkv = _mm(x, w) + b
        q = qkv[:, :C]
        k = qkv[:, C:2 * C]
        v = jnp.maximum(qkv[:, 2 * C:], 0.0)                # iRMB v-branch ReLU
        o = jnp.zeros((L, C), jnp.float32)
        for m in masks:
            # (q*m) . k^T contracts only this head's channels.
            s = lax.dot_general((q * m).astype(MATMUL_DTYPE), k.astype(MATMUL_DTYPE),
                                (((1,), (1,)), ((), ())),
                                preferred_element_type=jnp.float32) * scale
            s = s - jnp.max(s, axis=-1, keepdims=True)
            e = jnp.exp(s)
            p = e / jnp.sum(e, axis=-1, keepdims=True)      # exact softmax
            o = o + _mm(p, v * m)                           # this head's output lanes
        o_ref[wi] = o.astype(o_ref.dtype)


def win_attn_pallas(xw, wqkv, bqkv, *, num_head, dim_head):
    Bw, L, C = xw.shape
    scale = float(dim_head) ** -0.5
    wb = _pick_window_block(Bw, L, C, _vmem_budget())
    steps = pl.cdiv(Bw, wb)
    return pl.pallas_call(
        functools.partial(_win_attn_kernel, num_head=num_head,
                          dim_head=dim_head, scale=scale),
        out_shape=jax.ShapeDtypeStruct((Bw, L, C), xw.dtype),
        grid=(steps,),
        in_specs=[
            pl.BlockSpec((wb, L, C), lambda i: (i, 0, 0)),
            pl.BlockSpec((C, 3 * C), lambda i: (0, 0)),
            pl.BlockSpec((1, 3 * C), lambda i: (0, 0)),
        ],
        out_specs=pl.BlockSpec((wb, L, C), lambda i: (i, 0, 0)),
        compiler_params=_cparams(("parallel",)),
    )(xw, wqkv, bqkv.reshape(1, 3 * C))


# --------------------------------------------------------------------------
# K3+K4 fused tail: depthwise 3x3 + BN + SiLU + residual, iRMB proj + outer
# shortcut, cv3 (SiLU), cv4 on concat(y1, y2) via split weight rows.
# Output is written channel-major (c2, pixels) -> lane-dense stores, no host
# NHWC->NCHW transpose.
# --------------------------------------------------------------------------
def _dw_tap_masks(H, W):
    """(P, 9) edge-validity masks for the 9 flat-pixel-axis shifts of a 3x3
    'SAME' depthwise conv (precomputed host constant)."""
    p = np.arange(H * W)
    row, col = p // W, p % W
    cols = []
    for dy in (-1, 0, 1):
        for dx in (-1, 0, 1):
            m = ((row + dy >= 0) & (row + dy < H) &
                 (col + dx >= 0) & (col + dx < W))
            cols.append(m.astype(np.float32))
    return np.stack(cols, axis=1)


def _dw_tail_kernel(xo_ref, sc_ref, y2_ref, mask_ref, dww_ref, dwb_ref,
                    pjw_ref, c3w_ref, c3b_ref, w4a_ref, w4b_ref, c4b_ref,
                    o_ref, pad_ref, *, H, W):
    P, C = xo_ref.shape[1], xo_ref.shape[2]
    halo = W + 1
    x = xo_ref[0].astype(jnp.float32)                       # (P, C) attention output

    # ---- depthwise 3x3 'SAME': halo scratch on the flat pixel axis; only the
    #      two halo strips are zeroed, interior stored once, 9 shifted slices.
    pad_ref[0:halo, :] = jnp.zeros((halo, C), jnp.float32)
    pad_ref[halo + P:halo + P + halo, :] = jnp.zeros((halo, C), jnp.float32)
    pad_ref[halo:halo + P, :] = x
    xp = pad_ref[...]
    masks = mask_ref[...].astype(jnp.float32)               # (P, 9)
    dww = dww_ref[...].astype(jnp.float32)                  # (9, C), BN folded
    acc = jnp.zeros((P, C), jnp.float32)
    k = 0
    for dy in (-1, 0, 1):
        for dx in (-1, 0, 1):
            s = dy * W + dx
            tap = xp[halo + s:halo + s + P, :]              # static shifted slice
            acc = acc + (tap * masks[:, k:k + 1]) * dww[k:k + 1, :]
            k += 1
    y = acc + dwb_ref[...].astype(jnp.float32)
    y = y * jax.nn.sigmoid(y)                               # conv_local BN + SiLU
    x2 = x + y                                              # conv_local residual

    # ---- iRMB 1x1 proj (bias-free) + outer shortcut ----
    r = sc_ref[0].astype(jnp.float32) + _mm(x2, pjw_ref[...])
    # ---- cv3: 1x1 + folded BN + SiLU ----
    y1 = _mm(r, c3w_ref[...]) + c3b_ref[...].astype(jnp.float32)
    y1 = y1 * jax.nn.sigmoid(y1)
    # ---- cv4 on concat([y1, y2]): split weight rows instead of a concat ----
    out = (_mm(y1, w4a_ref[...]) + _mm(y2_ref[0].astype(jnp.float32), w4b_ref[...])
           + c4b_ref[...].astype(jnp.float32))
    out = out * jax.nn.sigmoid(out)                         # cv4 SiLU
    # channel-major store: (c2, P) with >=128 active lanes
    o_ref[0] = out.T.astype(o_ref.dtype)


def dw_tail_pallas(xo, y1, y2, f, H, W):
    B, P, C = xo.shape
    c2 = f["cv4_b"].shape[0]
    halo = W + 1
    masks = jnp.asarray(_dw_tap_masks(H, W))
    row = lambda b: (b, 0, 0)
    rep = lambda b: (0, 0)
    # TODO(synk): for very large H*W on v7x (64 MiB/TC), tile this kernel over
    # row bands with a 1-row halo instead of whole images.
    return pl.pallas_call(
        functools.partial(_dw_tail_kernel, H=H, W=W),
        out_shape=jax.ShapeDtypeStruct((B, c2, P), xo.dtype),
        grid=(B,),
        in_specs=[
            pl.BlockSpec((1, P, C), row),      # attention output
            pl.BlockSpec((1, P, C), row),      # iRMB shortcut (cv1 out)
            pl.BlockSpec((1, P, C), row),      # cv2 out
            pl.BlockSpec((P, 9), rep),         # dw edge masks
            pl.BlockSpec((9, C), rep),         # dw weights
            pl.BlockSpec((1, C), rep),         # dw bias
            pl.BlockSpec((C, C), rep),         # proj
            pl.BlockSpec((C, C), rep),         # cv3 w
            pl.BlockSpec((1, C), rep),         # cv3 b
            pl.BlockSpec((C, c2), rep),        # cv4 w (y1 rows)
            pl.BlockSpec((C, c2), rep),        # cv4 w (y2 rows)
            pl.BlockSpec((1, c2), rep),        # cv4 b
        ],
        out_specs=pl.BlockSpec((1, c2, P), row),
        scratch_shapes=[pltpu.VMEM((P + 2 * halo, C), jnp.float32)],
        compiler_params=_cparams(("parallel",)),
    )(xo, y1, y2, masks, f["dw_w9"], f["dw_b"].reshape(1, C),
      f["proj_w"], f["cv3_w"], f["cv3_b"].reshape(1, C),
      f["cv4_wa"], f["cv4_wb"], f["cv4_b"].reshape(1, c2))


# --------------------------------------------------------------------------
# Fused Pallas forward (3 pallas_call launches)
# --------------------------------------------------------------------------
def csrmbc_pallas(x_nchw, f, dim_head, ws=7):
    B, c1, H, W = x_nchw.shape
    P = H * W
    c_ = f["cv3_b"].shape[0]
    c2 = f["cv4_b"].shape[0]
    num_head = c_ // dim_head

    # K1: cv1 + cv2 fused, NCHW consumed directly (free view), two outputs.
    x_cm = x_nchw.reshape(B, c1, P).astype(jnp.float32)
    y1, y2 = pw12_pallas(x_cm, f["w12"], f["b12"], c_)

    # EMO dilated 7x7 windowing ('(h1 n1)(w1 n2)') -- single XLA repack each way.
    a4 = y1.reshape(B, H, W, c_)
    pad_b, pad_r = (-H) % ws, (-W) % ws
    Hp, Wp = H + pad_b, W + pad_r
    ap = a4
    if pad_b or pad_r:
        # PyTorch zero-pads the *normalised* tensor; BN is folded into wqkv, so
        # pad the raw tensor with the pre-norm image of zero (-t/s).
        fill = f["pad_fill"].astype(ap.dtype)
        if pad_b:
            ap = jnp.concatenate(
                [ap, jnp.broadcast_to(fill, (B, pad_b, W, c_))], axis=1)
        if pad_r:
            ap = jnp.concatenate(
                [ap, jnp.broadcast_to(fill, (B, Hp, pad_r, c_))], axis=2)
    n1, n2 = Hp // ws, Wp // ws
    xw = (ap.reshape(B, ws, n1, ws, n2, c_)
            .transpose(0, 2, 4, 1, 3, 5)
            .reshape(B * n1 * n2, ws * ws, c_))

    # K2: qkv projection (folded BN) + multi-head window attention.
    o = win_attn_pallas(xw, f["wqkv"], f["bqkv"],
                        num_head=num_head, dim_head=dim_head)

    xo = (o.reshape(B, n1, n2, ws, ws, c_)
           .transpose(0, 3, 1, 4, 2, 5)
           .reshape(B, Hp, Wp, c_))
    if pad_b or pad_r:
        xo = xo[:, :H, :W, :]
    xo = xo.reshape(B, P, c_)

    # K3+K4 fused tail -> channel-major (B, c2, P), free reshape to NCHW.
    out_cm = dw_tail_pallas(xo, y1, y2, f, H, W)
    return out_cm.reshape(B, c2, H, W)


# --------------------------------------------------------------------------
# Pure-JAX reference (unfused, mirrors the PyTorch graph) for verification
# --------------------------------------------------------------------------
def _pw_ref(x, w, b, act):
    y = x @ w + b
    if act == "relu":
        y = jnp.maximum(y, 0.0)
    elif act == "silu":
        y = y * jax.nn.sigmoid(y)
    return y


def _attn_ref(q, k, v, scale):
    s = jnp.einsum("gld,gmd->glm", q, k) * scale
    p = jax.nn.softmax(s, axis=-1)
    return jnp.einsum("glm,gmd->gld", p, v)


def _dw_ref(x, w, b):
    c = x.shape[-1]
    y = lax.conv_general_dilated(
        x, w.reshape(3, 3, 1, c), (1, 1), "SAME",
        dimension_numbers=("NHWC", "HWIO", "NHWC"), feature_group_count=c)
    y = y + b
    y = y * jax.nn.sigmoid(y)
    return x + y


def _irmb_ref(x, p, dim_head, ws=7):
    B, H, W, C = x.shape
    num_head = C // dim_head
    scale = dim_head ** (-0.5)
    shortcut = x
    xn = x * p["norm_s"] + p["norm_t"]
    pad_b, pad_r = (-H) % ws, (-W) % ws
    xp = jnp.pad(xn, ((0, 0), (0, pad_b), (0, pad_r), (0, 0)))
    Hp, Wp = H + pad_b, W + pad_r
    n1, n2 = Hp // ws, Wp // ws
    xw = (xp.reshape(B, ws, n1, ws, n2, C).transpose(0, 2, 4, 1, 3, 5)
            .reshape(B * n1 * n2, ws * ws, C))
    Bw, L = B * n1 * n2, ws * ws
    qk = _pw_ref(xw, p["qk_w"], p["qk_b"], "none")
    v = _pw_ref(xw, p["v_w"], p["v_b"], "relu")
    q, k = qk[..., :C], qk[..., C:]

    def heads(t):
        return (t.reshape(Bw, L, num_head, dim_head).transpose(0, 2, 1, 3)
                 .reshape(Bw * num_head, L, dim_head))

    o = _attn_ref(heads(q), heads(k), heads(v), scale)
    o = (o.reshape(Bw, num_head, L, dim_head).transpose(0, 2, 1, 3)
          .reshape(Bw, L, C))
    xo = (o.reshape(B, n1, n2, ws, ws, C).transpose(0, 3, 1, 4, 2, 5)
           .reshape(B, Hp, Wp, C))[:, :H, :W, :]
    x2 = _dw_ref(xo, p["dw_w"], p["dw_b"])
    x3 = _pw_ref(x2, p["proj_w"], p["proj_b"], "none")
    return shortcut + x3


def csrmbc_reference(x_nchw, p, dim_head):
    x = jnp.transpose(x_nchw, (0, 2, 3, 1)).astype(jnp.float32)
    y1 = _pw_ref(x, p["cv1_w"], p["cv1_b"], "silu")
    y1 = _irmb_ref(y1, p, dim_head)
    y1 = _pw_ref(y1, p["cv3_w"], p["cv3_b"], "silu")
    y2 = _pw_ref(x, p["cv2_w"], p["cv2_b"], "silu")
    y = jnp.concatenate([y1, y2], axis=-1)
    y = _pw_ref(y, p["cv4_w"], p["cv4_b"], "silu")
    return jnp.transpose(y, (0, 3, 1, 2))


# --------------------------------------------------------------------------
# Deterministic parameters (BatchNorm folded, inference mode) + fusion folding
# --------------------------------------------------------------------------
def _bn_fold(g, b, m, v, eps):
    s = g / jnp.sqrt(v + eps)
    return s, b - m * s


def make_params(key, c1, c2, dim_head, e=0.5):
    c_ = int(c2 * e)
    keys = iter(jax.random.split(key, 48))

    def conv_w(cin, cout):
        return jax.random.normal(next(keys), (cin, cout), jnp.float32) / math.sqrt(cin)

    def bn(c):
        g = 1.0 + 0.1 * jax.random.normal(next(keys), (c,), jnp.float32)
        b = 0.1 * jax.random.normal(next(keys), (c,), jnp.float32)
        m = 0.1 * jax.random.normal(next(keys), (c,), jnp.float32)
        v = 1.0 + 0.1 * jnp.abs(jax.random.normal(next(keys), (c,), jnp.float32))
        return g, b, m, v

    p = {}
    # cv1..cv4 : Conv = 1x1 conv(bias=False) + BN(eps=1e-5) + SiLU  (BN folded)
    for name, cin, cout in [("cv1", c1, c_), ("cv2", c1, c_),
                            ("cv3", c_, c_), ("cv4", 2 * c_, c2)]:
        w = conv_w(cin, cout)
        s, t = _bn_fold(*bn(cout), 1e-5)
        p[name + "_w"] = w * s[None, :]
        p[name + "_b"] = t

    # iRMB input BatchNorm2d (eps=1e-6) as explicit scale/shift
    p["norm_s"], p["norm_t"] = _bn_fold(*bn(c_), 1e-6)

    # qk / v / proj : 1x1 convs, bias=False, no norm
    p["qk_w"], p["qk_b"] = conv_w(c_, 2 * c_), jnp.zeros((2 * c_,), jnp.float32)
    p["v_w"], p["v_b"] = conv_w(c_, c_), jnp.zeros((c_,), jnp.float32)
    p["proj_w"], p["proj_b"] = conv_w(c_, c_), jnp.zeros((c_,), jnp.float32)

    # conv_local : depthwise 3x3 + BN(eps=1e-6) + SiLU  (BN folded)
    dw = jax.random.normal(next(keys), (3, 3, c_), jnp.float32) / 3.0
    s, t = _bn_fold(*bn(c_), 1e-6)
    p["dw_w"] = dw * s[None, None, :]
    p["dw_b"] = t
    return p


def fuse_params(p):
    """Fold / concatenate raw parameters for the fused Pallas path."""
    f = {}
    # cv1 + cv2 share the same input -> one (c1, 2c_) matmul, two outputs
    f["w12"] = jnp.concatenate([p["cv1_w"], p["cv2_w"]], axis=1)
    f["b12"] = jnp.concatenate([p["cv1_b"], p["cv2_b"]], axis=0)
    # qk + v share the same (normalised) input -> one (c_, 3c_) matmul with the
    # iRMB input BN (x*s + t) folded into the weights/bias.
    wqkv = jnp.concatenate([p["qk_w"], p["v_w"]], axis=1)
    bqkv = jnp.concatenate([p["qk_b"], p["v_b"]], axis=0)
    f["wqkv"] = p["norm_s"][:, None] * wqkv
    f["bqkv"] = p["norm_t"] @ wqkv + bqkv
    f["pad_fill"] = -p["norm_t"] / p["norm_s"]     # pre-norm image of zero
    f["dw_w9"] = p["dw_w"].reshape(9, -1)          # (3,3,C) -> (9,C): tap-major
    f["dw_b"] = p["dw_b"]
    f["proj_w"] = p["proj_w"]
    f["cv3_w"], f["cv3_b"] = p["cv3_w"], p["cv3_b"]
    c_ = p["cv3_b"].shape[0]
    f["cv4_wa"] = p["cv4_w"][:c_]                  # rows multiplying y1
    f["cv4_wb"] = p["cv4_w"][c_:]                  # rows multiplying y2
    f["cv4_b"] = p["cv4_b"]
    return f


# --------------------------------------------------------------------------
if __name__ == "__main__":
    # c_ = c2*e divisible by dim_head; H, W multiples of window_size=7
    # (generic padded path kept for other sizes).
    B, c1, c2, H, W = 2, 16, 32, 14, 14
    dim_head = 8

    key = jax.random.PRNGKey(0)
    kx, kp = jax.random.split(key)
    x = jax.random.normal(kx, (B, c1, H, W), jnp.float32)
    p = make_params(kp, c1, c2, dim_head)
    f = fuse_params(p)

    pallas_fn = jax.jit(functools.partial(csrmbc_pallas, dim_head=dim_head))
    ref_fn = jax.jit(functools.partial(csrmbc_reference, dim_head=dim_head))

    out = jax.block_until_ready(pallas_fn(x, f))
    ref = jax.block_until_ready(ref_fn(x, p))

    assert out.shape == (B, c2, H, W)
    err = float(jnp.max(jnp.abs(out - ref)))
    assert jnp.allclose(out, ref, rtol=2e-2, atol=2e-2), f"max abs diff {err}"
    print("KERNEL_OK")
</pallas_src>

<mosaic_0001>
module attributes {stable_mosaic.version = 11 : i64} {
  func.func @_pw12_kernel(%arg0: i32, %arg1: i32, %arg2: memref<1x16x196xf32, #tpu.memory_space<vmem>>, %arg3: memref<16x32xf32, #tpu.memory_space<vmem>>, %arg4: memref<1x32xf32, #tpu.memory_space<vmem>>, %arg5: memref<1x196x16xf32, #tpu.memory_space<vmem>>, %arg6: memref<1x196x16xf32, #tpu.memory_space<vmem>>) attributes {dimension_semantics = [#tpu.dimension_semantics<parallel>, #tpu.dimension_semantics<parallel>], iteration_bounds = array<i64: 2, 1>, scalar_prefetch = 0 : i64, scratch_operands = 0 : i64, tpu.core_type = #tpu.core_type<tc>, window_params = [{transform_indices = @transform_0, window_bounds = array<i64: 1, 16, 196>}, {pipeline_mode = #tpu.pipeline_mode<synchronous>, transform_indices = @transform_1, window_bounds = array<i64: 16, 32>}, {pipeline_mode = #tpu.pipeline_mode<synchronous>, transform_indices = @transform_2, window_bounds = array<i64: 1, 32>}, {transform_indices = @transform_3, window_bounds = array<i64: 1, 196, 16>}, {transform_indices = @transform_4, window_bounds = array<i64: 1, 196, 16>}]} {
    %c0 = arith.constant 0 : index
    %c0_0 = arith.constant 0 : index
    %c0_1 = arith.constant 0 : index
    %0 = vector.load %arg2[%c0, %c0_0, %c0_1] : memref<1x16x196xf32, #tpu.memory_space<vmem>>, vector<1x16x196xf32>
    %1 = vector.shape_cast %0 : vector<1x16x196xf32> to vector<16x196xf32>
    %c0_2 = arith.constant 0 : index
    %c0_3 = arith.constant 0 : index
    %2 = vector.load %arg3[%c0_2, %c0_3] : memref<16x32xf32, #tpu.memory_space<vmem>>, vector<16x32xf32>
    %cst = arith.constant dense<0.000000e+00> : vector<196x32xf32>
    %3 = tpu.matmul %1, %2, %cst {dimension_numbers = #tpu.dot_dimension_numbers<[0], [0], [1], [1], [0, 1, 1, 1], [], []>} : vector<16x196xf32>, vector<16x32xf32>, vector<196x32xf32> -> vector<196x32xf32>
    %c0_4 = arith.constant 0 : index
    %c0_5 = arith.constant 0 : index
    %4 = vector.load %arg4[%c0_4, %c0_5] : memref<1x32xf32, #tpu.memory_space<vmem>>, vector<1x32xf32>
    %5 = vector.broadcast %4 : vector<1x32xf32> to vector<196x32xf32>
    %6 = arith.addf %3, %5 : vector<196x32xf32>
    %7 = arith.negf %6 : vector<196x32xf32>
    %8 = math.exp %7 : vector<196x32xf32>
    %cst_6 = arith.constant 1.000000e+00 : f32
    %9 = vector.broadcast %cst_6 : f32 to vector<196x32xf32>
    %10 = arith.addf %9, %8 : vector<196x32xf32>
    %11 = arith.divf %9, %10 : vector<196x32xf32>
    %12 = arith.mulf %6, %11 : vector<196x32xf32>
    %13 = vector.extract_strided_slice %12 {offsets = [0, 0], sizes = [196, 16], strides = [1, 1]} : vector<196x32xf32> to vector<196x16xf32>
    %c0_7 = arith.constant 0 : index
    %c0_8 = arith.constant 0 : index
    %c0_9 = arith.constant 0 : index
    %14 = vector.load %arg5[%c0_7, %c0_8, %c0_9] : memref<1x196x16xf32, #tpu.memory_space<vmem>>, vector<1x196x16xf32>
    %15 = vector.shape_cast %14 : vector<1x196x16xf32> to vector<196x16xf32>
    %16 = vector.shape_cast %13 : vector<196x16xf32> to vector<1x196x16xf32>
    tpu.vector_store %arg5[%c0_7, %c0_8, %c0_9], %16 {strides = array<i32>} : memref<1x196x16xf32, #tpu.memory_space<vmem>>, vector<1x196x16xf32>,
    %17 = vector.extract_strided_slice %12 {offsets = [0, 16], sizes = [196, 16], strides = [1, 1]} : vector<196x32xf32> to vector<196x16xf32>
    %c0_10 = arith.constant 0 : index
    %c0_11 = arith.constant 0 : index
    %c0_12 = arith.constant 0 : index
    %18 = vector.load %arg6[%c0_10, %c0_11, %c0_12] : memref<1x196x16xf32, #tpu.memory_space<vmem>>, vector<1x196x16xf32>
    %19 = vector.shape_cast %18 : vector<1x196x16xf32> to vector<196x16xf32>
    %20 = vector.shape_cast %17 : vector<196x16xf32> to vector<1x196x16xf32>
    tpu.vector_store %arg6[%c0_10, %c0_11, %c0_12], %20 {strides = array<i32>} : memref<1x196x16xf32, #tpu.memory_space<vmem>>, vector<1x196x16xf32>,
    return
  }
  func.func @transform_0(%arg0: i32, %arg1: i32) -> (i32, i32, i32) {
    %c0_i32 = arith.constant 0 : i32
    %c0_i32_0 = arith.constant 0 : i32
    return %arg0, %c0_i32, %arg1 : i32, i32, i32
  }
  func.func @transform_1(%arg0: i32, %arg1: i32) -> (i32, i32) {
    %c0_i32 = arith.constant 0 : i32
    %c0_i32_0 = arith.constant 0 : i32
    %c0_i32_1 = arith.constant 0 : i32
    return %c0_i32, %c0_i32_0 : i32, i32
  }
  func.func @transform_2(%arg0: i32, %arg1: i32) -> (i32, i32) {
    %c0_i32 = arith.constant 0 : i32
    %c0_i32_0 = arith.constant 0 : i32
    %c0_i32_1 = arith.constant 0 : i32
    return %c0_i32, %c0_i32_0 : i32, i32
  }
  func.func @transform_3(%arg0: i32, %arg1: i32) -> (i32, i32, i32) {
    %c0_i32 = arith.constant 0 : i32
    %c0_i32_0 = arith.constant 0 : i32
    return %arg0, %arg1, %c0_i32 : i32, i32, i32
  }
  func.func @transform_4(%arg0: i32, %arg1: i32) -> (i32, i32, i32) {
    %c0_i32 = arith.constant 0 : i32
    %c0_i32_0 = arith.constant 0 : i32
    return %arg0, %arg1, %c0_i32 : i32, i32, i32
  }
}

module attributes {stable_mosaic.version = 11 : i64} {
  func.func @_win_attn_kernel(%arg0: i32, %arg1: memref<4x49x16xf32, #tpu.memory_space<vmem>>, %arg2: memref<16x48xf32, #tpu.memory_space<vmem>>, %arg3: memref<1x48xf32, #tpu.memory_space<vmem>>, %arg4: memref<4x49x16xf32, #tpu.memory_space<vmem>>) attributes {dimension_semantics = [#tpu.dimension_semantics<parallel>], iteration_bounds = array<i64: 2>, scalar_prefetch = 0 : i64, scratch_operands = 0 : i64, tpu.core_type = #tpu.core_type<tc>, window_params = [{transform_indices = @transform_0, window_bounds = array<i64: 4, 49, 16>}, {pipeline_mode = #tpu.pipeline_mode<synchronous>, transform_indices = @transform_1, window_bounds = array<i64: 16, 48>}, {pipeline_mode = #tpu.pipeline_mode<synchronous>, transform_indices = @transform_2, window_bounds = array<i64: 1, 48>}, {transform_indices = @transform_3, window_bounds = array<i64: 4, 49, 16>}]} {
    %c0 = arith.constant 0 : index
    %c0_0 = arith.constant 0 : index
    %0 = vector.load %arg2[%c0, %c0_0] : memref<16x48xf32, #tpu.memory_space<vmem>>, vector<16x48xf32>
    %c0_1 = arith.constant 0 : index
    %c0_2 = arith.constant 0 : index
    %1 = vector.load %arg3[%c0_1, %c0_2] : memref<1x48xf32, #tpu.memory_space<vmem>>, vector<1x48xf32>
    %2 = tpu.iota {dimensions = array<i32: 1>} : vector<1x16xi32>
    %c0_i32 = arith.constant 0 : i32
    %3 = vector.broadcast %c0_i32 : i32 to vector<1x16xi32>
    %4 = arith.cmpi sge, %2, %3 : vector<1x16xi32>
    %c8_i32 = arith.constant 8 : i32
    %5 = vector.broadcast %c8_i32 : i32 to vector<1x16xi32>
    %6 = arith.cmpi slt, %2, %5 : vector<1x16xi32>
    %7 = arith.andi %4, %6 : vector<1x16xi1>
    %8 = arith.extui %7 : vector<1x16xi1> to vector<1x16xi32>
    %9 = arith.sitofp %8 : vector<1x16xi32> to vector<1x16xf32>
    %c8_i32_3 = arith.constant 8 : i32
    %10 = vector.broadcast %c8_i32_3 : i32 to vector<1x16xi32>
    %11 = arith.cmpi sge, %2, %10 : vector<1x16xi32>
    %c16_i32 = arith.constant 16 : i32
    %12 = vector.broadcast %c16_i32 : i32 to vector<1x16xi32>
    %13 = arith.cmpi slt, %2, %12 : vector<1x16xi32>
    %14 = arith.andi %11, %13 : vector<1x16xi1>
    %15 = arith.extui %14 : vector<1x16xi1> to vector<1x16xi32>
    %16 = arith.sitofp %15 : vector<1x16xi32> to vector<1x16xf32>
    %c0_4 = arith.constant 0 : index
    %c0_5 = arith.constant 0 : index
    %c0_6 = arith.constant 0 : index
    %17 = vector.load %arg1[%c0_4, %c0_5, %c0_6] : memref<4x49x16xf32, #tpu.memory_space<vmem>>, vector<1x49x16xf32>
    %18 = vector.shape_cast %17 : vector<1x49x16xf32> to vector<49x16xf32>
    %cst = arith.constant dense<0.000000e+00> : vector<49x48xf32>
    %19 = tpu.matmul %18, %0, %cst {dimension_numbers = #tpu.dot_dimension_numbers<[1], [0], [0], [1], [0, 0, 1, 1], [], []>} : vector<49x16xf32>, vector<16x48xf32>, vector<49x48xf32> -> vector<49x48xf32>
    %20 = vector.broadcast %1 : vector<1x48xf32> to vector<49x48xf32>
    %21 = arith.addf %19, %20 : vector<49x48xf32>
    %22 = vector.extract_strided_slice %21 {offsets = [0, 0], sizes = [49, 16], strides = [1, 1]} : vector<49x48xf32> to vector<49x16xf32>
    %23 = vector.extract_strided_slice %21 {offsets = [0, 16], sizes = [49, 16], strides = [1, 1]} : vector<49x48xf32> to vector<49x16xf32>
    %24 = vector.extract_strided_slice %21 {offsets = [0, 32], sizes = [49, 16], strides = [1, 1]} : vector<49x48xf32> to vector<49x16xf32>
    %cst_7 = arith.constant 0.000000e+00 : f32
    %25 = vector.broadcast %cst_7 : f32 to vector<49x16xf32>
    %26 = arith.maximumf %24, %25 : vector<49x16xf32>
    %cst_8 = arith.constant 0.000000e+00 : f32
    %27 = vector.broadcast %cst_8 : f32 to vector<49x16xf32>
    %28 = vector.broadcast %9 : vector<1x16xf32> to vector<49x16xf32>
    %29 = arith.mulf %22, %28 : vector<49x16xf32>
    %cst_9 = arith.constant dense<0.000000e+00> : vector<49x49xf32>
    %30 = tpu.matmul %29, %23, %cst_9 {dimension_numbers = #tpu.dot_dimension_numbers<[1], [1], [0], [0], [0, 0, 1, 0], [], []>} : vector<49x16xf32>, vector<49x16xf32>, vector<49x49xf32> -> vector<49x49xf32>
    %cst_10 = arith.constant 0.353553385 : f32
    %31 = vector.broadcast %cst_10 : f32 to vector<49x49xf32>
    %32 = arith.mulf %30, %31 : vector<49x49xf32>
    %cst_11 = arith.constant dense<0xFF800000> : vector<49xf32>
    %33 = vector.multi_reduction <maximumf>, %32, %cst_11 [1] : vector<49x49xf32> to vector<49xf32>
    %34 = vector.shape_cast %33 : vector<49xf32> to vector<49x1xf32>
    %35 = vector.broadcast %34 : vector<49x1xf32> to vector<49x49xf32>
    %36 = arith.subf %32, %35 : vector<49x49xf32>
    %37 = math.exp %36 : vector<49x49xf32>
    %cst_12 = arith.constant dense<0.000000e+00> : vector<49xf32>
    %38 = vector.multi_reduction <add>, %37, %cst_12 [1] : vector<49x49xf32> to vector<49xf32>
    %39 = vector.shape_cast %38 : vector<49xf32> to vector<49x1xf32>
    %40 = vector.broadcast %39 : vector<49x1xf32> to vector<49x49xf32>
    %41 = arith.divf %37, %40 : vector<49x49xf32>
    %42 = vector.broadcast %9 : vector<1x16xf32> to vector<49x16xf32>
    %43 = arith.mulf %26, %42 : vector<49x16xf32>
    %cst_13 = arith.constant dense<0.000000e+00> : vector<49x16xf32>
    %44 = tpu.matmul %41, %43, %cst_13 {dimension_numbers = #tpu.dot_dimension_numbers<[1], [0], [0], [1], [0, 0, 1, 1], [], []>} : vector<49x49xf32>, vector<49x16xf32>, vector<49x16xf32> -> vector<49x16xf32>
    %45 = arith.addf %27, %44 : vector<49x16xf32>
    %46 = vector.broadcast %16 : vector<1x16xf32> to vector<49x16xf32>
    %47 = arith.mulf %22, %46 : vector<49x16xf32>
    %cst_14 = arith.constant dense<0.000000e+00> : vector<49x49xf32>
    %48 = tpu.matmul %47, %23, %cst_14 {dimension_numbers = #tpu.dot_dimension_numbers<[1], [1], [0], [0], [0, 0, 1, 0], [], []>} : vector<49x16xf32>, vector<49x16xf32>, vector<49x49xf32> -> vector<49x49xf32>
    %cst_15 = arith.constant 0.353553385 : f32
    %49 = vector.broadcast %cst_15 : f32 to vector<49x49xf32>
    %50 = arith.mulf %48, %49 : vector<49x49xf32>
    %cst_16 = arith.constant dense<0xFF800000> : vector<49xf32>
    %51 = vector.multi_reduction <maximumf>, %50, %cst_16 [1] : vector<49x49xf32> to vector<49xf32>
    %52 = vector.shape_cast %51 : vector<49xf32> to vector<49x1xf32>
    %53 = vector.broadcast %52 : vector<49x1xf32> to vector<49x49xf32>
    %54 = arith.subf %50, %53 : vector<49x49xf32>
    %55 = math.exp %54 : vector<49x49xf32>
    %cst_17 = arith.constant dense<0.000000e+00> : vector<49xf32>
    %56 = vector.multi_reduction <add>, %55, %cst_17 [1] : vector<49x49xf32> to vector<49xf32>
    %57 = vector.shape_cast %56 : vector<49xf32> to vector<49x1xf32>
    %58 = vector.broadcast %57 : vector<49x1xf32> to vector<49x49xf32>
    %59 = arith.divf %55, %58 : vector<49x49xf32>
    %60 = vector.broadcast %16 : vector<1x16xf32> to vector<49x16xf32>
    %61 = arith.mulf %26, %60 : vector<49x16xf32>
    %cst_18 = arith.constant dense<0.000000e+00> : vector<49x16xf32>
    %62 = tpu.matmul %59, %61, %cst_18 {dimension_numbers = #tpu.dot_dimension_numbers<[1], [0], [0], [1], [0, 0, 1, 1], [], []>} : vector<49x49xf32>, vector<49x16xf32>, vector<49x16xf32> -> vector<49x16xf32>
    %63 = arith.addf %45, %62 : vector<49x16xf32>
    %c0_19 = arith.constant 0 : index
    %c0_20 = arith.constant 0 : index
    %c0_21 = arith.constant 0 : index
    %64 = vector.load %arg4[%c0_19, %c0_20, %c0_21] : memref<4x49x16xf32, #tpu.memory_space<vmem>>, vector<1x49x16xf32>
    %65 = vector.shape_cast %64 : vector<1x49x16xf32> to vector<49x16xf32>
    %66 = vector.shape_cast %63 : vector<49x16xf32> to vector<1x49x16xf32>
    tpu.vector_store %arg4[%c0_19, %c0_20, %c0_21], %66 {strides = array<i32>} : memref<4x49x16xf32, #tpu.memory_space<vmem>>, vector<1x49x16xf32>,
    %c1 = arith.constant 1 : index
    %c0_22 = arith.constant 0 : index
    %c0_23 = arith.constant 0 : index
    %67 = vector.load %arg1[%c1, %c0_22, %c0_23] : memref<4x49x16xf32, #tpu.memory_space<vmem>>, vector<1x49x16xf32>
    %68 = vector.shape_cast %67 : vector<1x49x16xf32> to vector<49x16xf32>
    %cst_24 = arith.constant dense<0.000000e+00> : vector<49x48xf32>
    %69 = tpu.matmul %68, %0, %cst_24 {dimension_numbers = #tpu.dot_dimension_numbers<[1], [0], [0], [1], [0, 0, 1, 1], [], []>} : vector<49x16xf32>, vector<16x48xf32>, vector<49x48xf32> -> vector<49x48xf32>
    %70 = vector.broadcast %1 : vector<1x48xf32> to vector<49x48xf32>
    %71 = arith.addf %69, %70 : vector<49x48xf32>
    %72 = vector.extract_strided_slice %71 {offsets = [0, 0], sizes = [49, 16], strides = [1, 1]} : vector<49x48xf32> to vector<49x16xf32>
    %73 = vector.extract_strided_slice %71 {offsets = [0, 16], sizes = [49, 16], strides = [1, 1]} : vector<49x48xf32> to vector<49x16xf32>
    %74 = vector.extract_strided_slice %71 {offsets = [0, 32], sizes = [49, 16], strides = [1, 1]} : vector<49x48xf32> to vector<49x16xf32>
    %cst_25 = arith.constant 0.000000e+00 : f32
    %75 = vector.broadcast %cst_25 : f32 to vector<49x16xf32>
    %76 = arith.maximumf %74, %75 : vector<49x16xf32>
    %cst_26 = arith.constant 0.000000e+00 : f32
    %77 = vector.broadcast %cst_26 : f32 to vector<49x16xf32>
    %78 = vector.broadcast %9 : vector<1x16xf32> to vector<49x16xf32>
    %79 = arith.mulf %72, %78 : vector<49x16xf32>
    %cst_27 = arith.constant dense<0.000000e+00> : vector<49x49xf32>
    %80 = tpu.matmul %79, %73, %cst_27 {dimension_numbers = #tpu.dot_dimension_numbers<[1], [1], [0], [0], [0, 0, 1, 0], [], []>} : vector<49x16xf32>, vector<49x16xf32>, vector<49x49xf32> -> vector<49x49xf32>
    %cst_28 = arith.constant 0.353553385 : f32
    %81 = vector.broadcast %cst_28 : f32 to vector<49x49xf32>
    %82 = arith.mulf %80, %81 : vector<49x49xf32>
    %cst_29 = arith.constant dense<0xFF800000> : vector<49xf32>
    %83 = vector.multi_reduction <maximumf>, %82, %cst_29 [1] : vector<49x49xf32> to vector<49xf32>
    %84 = vector.shape_cast %83 : vector<49xf32> to vector<49x1xf32>
    %85 = vector.broadcast %84 : vector<49x1xf32> to vector<49x49xf32>
    %86 = arith.subf %82, %85 : vector<49x49xf32>
    %87 = math.exp %86 : vector<49x49xf32>
    %cst_30 = arith.constant dense<0.000000e+00> : vector<49xf32>
    %88 = vector.multi_reduction <add>, %87, %cst_30 [1] : vector<49x49xf32> to vector<49xf32>
    %89 = vector.shape_cast %88 : vector<49xf32> to vector<49x1xf32>
    %90 = vector.broadcast %89 : vector<49x1xf32> to vector<49x49xf32>
    %91 = arith.divf %87, %90 : vector<49x49xf32>
    %92 = vector.broadcast %9 : vector<1x16xf32> to vector<49x16xf32>
    %93 = arith.mulf %76, %92 : vector<49x16xf32>
    %cst_31 = arith.constant dense<0.000000e+00> : vector<49x16xf32>
    %94 = tpu.matmul %91, %93, %cst_31 {dimension_numbers = #tpu.dot_dimension_numbers<[1], [0], [0], [1], [0, 0, 1, 1], [], []>} : vector<49x49xf32>, vector<49x16xf32>, vector<49x16xf32> -> vector<49x16xf32>
    %95 = arith.addf %77, %94 : vector<49x16xf32>
    %96 = vector.broadcast %16 : vector<1x16xf32> to vector<49x16xf32>
    %97 = arith.mulf %72, %96 : vector<49x16xf32>
    %cst_32 = arith.constant dense<0.000000e+00> : vector<49x49xf32>
    %98 = tpu.matmul %97, %73, %cst_32 {dimension_numbers = #tpu.dot_dimension_numbers<[1], [1], [0], [0], [0, 0, 1, 0], [], []>} : vector<49x16xf32>, vector<49x16xf32>, vector<49x49xf32> -> vector<49x49xf32>
    %cst_33 = arith.constant 0.353553385 : f32
    %99 = vector.broadcast %cst_33 : f32 to vector<49x49xf32>
    %100 = arith.mulf %98, %99 : vector<49x49xf32>
    %cst_34 = arith.constant dense<0xFF800000> : vector<49xf32>
    %101 = vector.multi_reduction <maximumf>, %100, %cst_34 [1] : vector<49x49xf32> to vector<49xf32>
    %102 = vector.shape_cast %101 : vector<49xf32> to vector<49x1xf32>
    %103 = vector.broadcast %102 : vector<49x1xf32> to vector<49x49xf32>
    %104 = arith.subf %100, %103 : vector<49x49xf32>
    %105 = math.exp %104 : vector<49x49xf32>
    %cst_35 = arith.constant dense<0.000000e+00> : vector<49xf32>
    %106 = vector.multi_reduction <add>, %105, %cst_35 [1] : vector<49x49xf32> to vector<49xf32>
    %107 = vector.shape_cast %106 : vector<49xf32> to vector<49x1xf32>
    %108 = vector.broadcast %107 : vector<49x1xf32> to vector<49x49xf32>
    %109 = arith.divf %105, %108 : vector<49x49xf32>
    %110 = vector.broadcast %16 : vector<1x16xf32> to vector<49x16xf32>
    %111 = arith.mulf %76, %110 : vector<49x16xf32>
    %cst_36 = arith.constant dense<0.000000e+00> : vector<49x16xf32>
    %112 = tpu.matmul %109, %111, %cst_36 {dimension_numbers = #tpu.dot_dimension_numbers<[1], [0], [0], [1], [0, 0, 1, 1], [], []>} : vector<49x49xf32>, vector<49x16xf32>, vector<49x16xf32> -> vector<49x16xf32>
    %113 = arith.addf %95, %112 : vector<49x16xf32>
    %c1_37 = arith.constant 1 : index
    %c0_38 = arith.constant 0 : index
    %c0_39 = arith.constant 0 : index
    %114 = vector.load %arg4[%c1_37, %c0_38, %c0_39] : memref<4x49x16xf32, #tpu.memory_space<vmem>>, vector<1x49x16xf32>
    %115 = vector.shape_cast %114 : vector<1x49x16xf32> to vector<49x16xf32>
    %116 = vector.shape_cast %113 : vector<49x16xf32> to vector<1x49x16xf32>
    tpu.vector_store %arg4[%c1_37, %c0_38, %c0_39], %116 {strides = array<i32>} : memref<4x49x16xf32, #tpu.memory_space<vmem>>, vector<1x49x16xf32>,
    %c2 = arith.constant 2 : index
    %c0_40 = arith.constant 0 : index
    %c0_41 = arith.constant 0 : index
    %117 = vector.load %arg1[%c2, %c0_40, %c0_41] : memref<4x49x16xf32, #tpu.memory_space<vmem>>, vector<1x49x16xf32>
    %118 = vector.shape_cast %117 : vector<1x49x16xf32> to vector<49x16xf32>
    %cst_42 = arith.constant dense<0.000000e+00> : vector<49x48xf32>
    %119 = tpu.matmul %118, %0, %cst_42 {dimension_numbers = #tpu.dot_dimension_numbers<[1], [0], [0], [1], [0, 0, 1, 1], [], []>} : vector<49x16xf32>, vector<16x48xf32>, vector<49x48xf32> -> vector<49x48xf32>
    %120 = vector.broadcast %1 : vector<1x48xf32> to vector<49x48xf32>
    %121 = arith.addf %119, %120 : vector<49x48xf32>
    %122 = vector.extract_strided_slice %121 {offsets = [0, 0], sizes = [49, 16], strides = [1, 1]} : vector<49x48xf32> to vector<49x16xf32>
    %123 = vector.extract_strided_slice %121 {offsets = [0, 16], sizes = [49, 16], strides = [1, 1]} : vector<49x48xf32> to vector<49x16xf32>
    %124 = vector.extract_strided_slice %121 {offsets = [0, 32], sizes = [49, 16], strides = [1, 1]} : vector<49x48xf32> to vector<49x16xf32>
    %cst_43 = arith.constant 0.000000e+00 : f32
    %125 = vector.broadcast %cst_43 : f32 to vector<49x16xf32>
    %126 = arith.maximumf %124, %125 : vector<49x16xf32>
    %cst_44 = arith.constant 0.000000e+00 : f32
    %127 = vector.broadcast %cst_44 : f32 to vector<49x16xf32>
    %128 = vector.broadcast %9 : vector<1x16xf32> to vector<49x16xf32>
    %129 = arith.mulf %122, %128 : vector<49x16xf32>
    %cst_45 = arith.constant dense<0.000000e+00> : vector<49x49xf32>
    %130 = tpu.matmul %129, %123, %cst_45 {dimension_numbers = #tpu.dot_dimension_numbers<[1], [1], [0], [0], [0, 0, 1, 0], [], []>} : vector<49x16xf32>, vector<49x16xf32>, vector<49x49xf32> -> vector<49x49xf32>
    %cst_46 = arith.constant 0.353553385 : f32
    %131 = vector.broadcast %cst_46 : f32 to vector<49x49xf32>
    %132 = arith.mulf %130, %131 : vector<49x49xf32>
    %cst_47 = arith.constant dense<0xFF800000> : vector<49xf32>
    %133 = vector.multi_reduction <maximumf>, %132, %cst_47 [1] : vector<49x49xf32> to vector<49xf32>
    %134 = vector.shape_cast %133 : vector<49xf32> to vector<49x1xf32>
    %135 = vector.broadcast %134 : vector<49x1xf32> to vector<49x49xf32>
    %136 = arith.subf %132, %135 : vector<49x49xf32>
    %137 = math.exp %136 : vector<49x49xf32>
    %cst_48 = arith.constant dense<0.000000e+00> : vector<49xf32>
    %138 = vector.multi_reduction <add>, %137, %cst_48 [1] : vector<49x49xf32> to vector<49xf32>
    %139 = vector.shape_cast %138 : vector<49xf32> to vector<49x1xf32>
    %140 = vector.broadcast %139 : vector<49x1xf32> to vector<49x49xf32>
    %141 = arith.divf %137, %140 : vector<49x49xf32>
    %142 = vector.broadcast %9 : vector<1x16xf32> to vector<49x16xf32>
    %143 = arith.mulf %126, %142 : vector<49x16xf32>
    %cst_49 = arith.constant dense<0.000000e+00> : vector<49x16xf32>
    %144 = tpu.matmul %141, %143, %cst_49 {dimension_numbers = #tpu.dot_dimension_numbers<[1], [0], [0], [1], [0, 0, 1, 1], [], []>} : vector<49x49xf32>, vector<49x16xf32>, vector<49x16xf32> -> vector<49x16xf32>
    %145 = arith.addf %127, %144 : vector<49x16xf32>
    %146 = vector.broadcast %16 : vector<1x16xf32> to vector<49x16xf32>
    %147 = arith.mulf %122, %146 : vector<49x16xf32>
    %cst_50 = arith.constant dense<0.000000e+00> : vector<49x49xf32>
    %148 = tpu.matmul %147, %123, %cst_50 {dimension_numbers = #tpu.dot_dimension_numbers<[1], [1], [0], [0], [0, 0, 1, 0], [], []>} : vector<49x16xf32>, vector<49x16xf32>, vector<49x49xf32> -> vector<49x49xf32>
    %cst_51 = arith.constant 0.353553385 : f32
    %149 = vector.broadcast %cst_51 : f32 to vector<49x49xf32>
    %150 = arith.mulf %148, %149 : vector<49x49xf32>
    %cst_52 = arith.constant dense<0xFF800000> : vector<49xf32>
    %151 = vector.multi_reduction <maximumf>, %150, %cst_52 [1] : vector<49x49xf32> to vector<49xf32>
    %152 = vector.shape_cast %151 : vector<49xf32> to vector<49x1xf32>
    %153 = vector.broadcast %152 : vector<49x1xf32> to vector<49x49xf32>
    %154 = arith.subf %150, %153 : vector<49x49xf32>
    %155 = math.exp %154 : vector<49x49xf32>
    %cst_53 = arith.constant dense<0.000000e+00> : vector<49xf32>
    %156 = vector.multi_reduction <add>, %155, %cst_53 [1] : vector<49x49xf32> to vector<49xf32>
    %157 = vector.shape_cast %156 : vector<49xf32> to vector<49x1xf32>
    %158 = vector.broadcast %157 : vector<49x1xf32> to vector<49x49xf32>
    %159 = arith.divf %155, %158 : vector<49x49xf32>
    %160 = vector.broadcast %16 : vector<1x16xf32> to vector<49x16xf32>
    %161 = arith.mulf %126, %160 : vector<49x16xf32>
    %cst_54 = arith.constant dense<0.000000e+00> : vector<49x16xf32>
    %162 = tpu.matmul %159, %161, %cst_54 {dimension_numbers = #tpu.dot_dimension_numbers<[1], [0], [0], [1], [0, 0, 1, 1], [], []>} : vector<49x49xf32>, vector<49x16xf32>, vector<49x16xf32> -> vector<49x16xf32>
    %163 = arith.addf %145, %162 : vector<49x16xf32>
    %c2_55 = arith.constant 2 : index
    %c0_56 = arith.constant 0 : index
    %c0_57 = arith.constant 0 : index
    %164 = vector.load %arg4[%c2_55, %c0_56, %c0_57] : memref<4x49x16xf32, #tpu.memory_space<vmem>>, vector<1x49x16xf32>
    %165 = vector.shape_cast %164 : vector<1x49x16xf32> to vector<49x16xf32>
    %166 = vector.shape_cast %163 : vector<49x16xf32> to vector<1x49x16xf32>
    tpu.vector_store %arg4[%c2_55, %c0_56, %c0_57], %166 {strides = array<i32>} : memref<4x49x16xf32, #tpu.memory_space<vmem>>, vector<1x49x16xf32>,
    %c3 = arith.constant 3 : index
    %c0_58 = arith.constant 0 : index
    %c0_59 = arith.constant 0 : index
    %167 = vector.load %arg1[%c3, %c0_58, %c0_59] : memref<4x49x16xf32, #tpu.memory_space<vmem>>, vector<1x49x16xf32>
    %168 = vector.shape_cast %167 : vector<1x49x16xf32> to vector<49x16xf32>
    %cst_60 = arith.constant dense<0.000000e+00> : vector<49x48xf32>
    %169 = tpu.matmul %168, %0, %cst_60 {dimension_numbers = #tpu.dot_dimension_numbers<[1], [0], [0], [1], [0, 0, 1, 1], [], []>} : vector<49x16xf32>, vector<16x48xf32>, vector<49x48xf32> -> vector<49x48xf32>
    %170 = vector.broadcast %1 : vector<1x48xf32> to vector<49x48xf32>
    %171 = arith.addf %169, %170 : vector<49x48xf32>
    %172 = vector.extract_strided_slice %171 {offsets = [0, 0], sizes = [49, 16], strides = [1, 1]} : vector<49x48xf32> to vector<49x16xf32>
    %173 = vector.extract_strided_slice %171 {offsets = [0, 16], sizes = [49, 16], strides = [1, 1]} : vector<49x48xf32> to vector<49x16xf32>
    %174 = vector.extract_strided_slice %171 {offsets = [0, 32], sizes = [49, 16], strides = [1, 1]} : vector<49x48xf32> to vector<49x16xf32>
    %cst_61 = arith.constant 0.000000e+00 : f32
    %175 = vector.broadcast %cst_61 : f32 to vector<49x16xf32>
    %176 = arith.maximumf %174, %175 : vector<49x16xf32>
    %cst_62 = arith.constant 0.000000e+00 : f32
    %177 = vector.broadcast %cst_62 : f32 to vector<49x16xf32>
    %178 = vector.broadcast %9 : vector<1x16xf32> to vector<49x16xf32>
    %179 = arith.mulf %172, %178 : vector<49x16xf32>
    %cst_63 = arith.constant dense<0.000000e+00> : vector<49x49xf32>
    %180 = tpu.matmul %179, %173, %cst_63 {dimension_numbers = #tpu.dot_dimension_numbers<[1], [1], [0], [0], [0, 0, 1, 0], [], []>} : vector<49x16xf32>, vector<49x16xf32>, vector<49x49xf32> -> vector<49x49xf32>
    %cst_64 = arith.constant 0.353553385 : f32
    %181 = vector.broadcast %cst_64 : f32 to vector<49x49xf32>
    %182 = arith.mulf %180, %181 : vector<49x49xf32>
    %cst_65 = arith.constant dense<0xFF800000> : vector<49xf32>
    %183 = vector.multi_reduction <maximumf>, %182, %cst_65 [1] : vector<49x49xf32> to vector<49xf32>
    %184 = vector.shape_cast %183 : vector<49xf32> to vector<49x1xf32>
    %185 = vector.broadcast %184 : vector<49x1xf32> to vector<49x49xf32>
    %186 = arith.subf %182, %185 : vector<49x49xf32>
    %187 = math.exp %186 : vector<49x49xf32>
    %cst_66 = arith.constant dense<0.000000e+00> : vector<49xf32>
    %188 = vector.multi_reduction <add>, %187, %cst_66 [1] : vector<49x49xf32> to vector<49xf32>
    %189 = vector.shape_cast %188 : vector<49xf32> to vector<49x1xf32>
    %190 = vector.broadcast %189 : vector<49x1xf32> to vector<49x49xf32>
    %191 = arith.divf %187, %190 : vector<49x49xf32>
    %192 = vector.broadcast %9 : vector<1x16xf32> to vector<49x16xf32>
    %193 = arith.mulf %176, %192 : vector<49x16xf32>
    %cst_67 = arith.constant dense<0.000000e+00> : vector<49x16xf32>
    %194 = tpu.matmul %191, %193, %cst_67 {dimension_numbers = #tpu.dot_dimension_numbers<[1], [0], [0], [1], [0, 0, 1, 1], [], []>} : vector<49x49xf32>, vector<49x16xf32>, vector<49x16xf32> -> vector<49x16xf32>
    %195 = arith.addf %177, %194 : vector<49x16xf32>
    %196 = vector.broadcast %16 : vector<1x16xf32> to vector<49x16xf32>
    %197 = arith.mulf %172, %196 : vector<49x16xf32>
    %cst_68 = arith.constant dense<0.000000e+00> : vector<49x49xf32>
    %198 = tpu.matmul %197, %173, %cst_68 {dimension_numbers = #tpu.dot_dimension_numbers<[1], [1], [0], [0], [0, 0, 1, 0], [], []>} : vector<49x16xf32>, vector<49x16xf32>, vector<49x49xf32> -> vector<49x49xf32>
    %cst_69 = arith.constant 0.353553385 : f32
    %199 = vector.broadcast %cst_69 : f32 to vector<49x49xf32>
    %200 = arith.mulf %198, %199 : vector<49x49xf32>
    %cst_70 = arith.constant dense<0xFF800000> : vector<49xf32>
    %201 = vector.multi_reduction <maximumf>, %200, %cst_70 [1] : vector<49x49xf32> to vector<49xf32>
    %202 = vector.shape_cast %201 : vector<49xf32> to vector<49x1xf32>
    %203 = vector.broadcast %202 : vector<49x1xf32> to vector<49x49xf32>
    %204 = arith.subf %200, %203 : vector<49x49xf32>
    %205 = math.exp %204 : vector<49x49xf32>
    %cst_71 = arith.constant dense<0.000000e+00> : vector<49xf32>
    %206 = vector.multi_reduction <add>, %205, %cst_71 [1] : vector<49x49xf32> to vector<49xf32>
    %207 = vector.shape_cast %206 : vector<49xf32> to vector<49x1xf32>
    %208 = vector.broadcast %207 : vector<49x1xf32> to vector<49x49xf32>
    %209 = arith.divf %205, %208 : vector<49x49xf32>
    %210 = vector.broadcast %16 : vector<1x16xf32> to vector<49x16xf32>
    %211 = arith.mulf %176, %210 : vector<49x16xf32>
    %cst_72 = arith.constant dense<0.000000e+00> : vector<49x16xf32>
    %212 = tpu.matmul %209, %211, %cst_72 {dimension_numbers = #tpu.dot_dimension_numbers<[1], [0], [0], [1], [0, 0, 1, 1], [], []>} : vector<49x49xf32>, vector<49x16xf32>, vector<49x16xf32> -> vector<49x16xf32>
    %213 = arith.addf %195, %212 : vector<49x16xf32>
    %c3_73 = arith.constant 3 : index
    %c0_74 = arith.constant 0 : index
    %c0_75 = arith.constant 0 : index
    %214 = vector.load %arg4[%c3_73, %c0_74, %c0_75] : memref<4x49x16xf32, #tpu.memory_space<vmem>>, vector<1x49x16xf32>
    %215 = vector.shape_cast %214 : vector<1x49x16xf32> to vector<49x16xf32>
    %216 = vector.shape_cast %213 : vector<49x16xf32> to vector<1x49x16xf32>
    tpu.vector_store %arg4[%c3_73, %c0_74, %c0_75], %216 {strides = array<i32>} : memref<4x49x16xf32, #tpu.memory_space<vmem>>, vector<1x49x16xf32>,
    return
  }
  func.func @transform_0(%arg0: i32) -> (i32, i32, i32) {
    %c0_i32 = arith.constant 0 : i32
    %c0_i32_0 = arith.constant 0 : i32
    %c0_i32_1 = arith.constant 0 : i32
    return %arg0, %c0_i32, %c0_i32_0 : i32, i32, i32
  }
  func.func @transform_1(%arg0: i32) -> (i32, i32) {
    %c0_i32 = arith.constant 0 : i32
    %c0_i32_0 = arith.constant 0 : i32
    %c0_i32_1 = arith.constant 0 : i32
    return %c0_i32, %c0_i32_0 : i32, i32
  }
  func.func @transform_2(%arg0: i32) -> (i32, i32) {
    %c0_i32 = arith.constant 0 : i32
    %c0_i32_0 = arith.constant 0 : i32
    %c0_i32_1 = arith.constant 0 : i32
    return %c0_i32, %c0_i32_0 : i32, i32
  }
  func.func @transform_3(%arg0: i32) -> (i32, i32, i32) {
    %c0_i32 = arith.constant 0 : i32
    %c0_i32_0 = arith.constant 0 : i32
    %c0_i32_1 = arith.constant 0 : i32
    return %arg0, %c0_i32, %c0_i32_0 : i32, i32, i32
  }
}

module attributes {stable_mosaic.version = 11 : i64} {
  func.func @_dw_tail_kernel(%arg0: i32, %arg1: memref<1x196x16xf32, #tpu.memory_space<vmem>>, %arg2: memref<1x196x16xf32, #tpu.memory_space<vmem>>, %arg3: memref<1x196x16xf32, #tpu.memory_space<vmem>>, %arg4: memref<196x9xf32, #tpu.memory_space<vmem>>, %arg5: memref<9x16xf32, #tpu.memory_space<vmem>>, %arg6: memref<1x16xf32, #tpu.memory_space<vmem>>, %arg7: memref<16x16xf32, #tpu.memory_space<vmem>>, %arg8: memref<16x16xf32, #tpu.memory_space<vmem>>, %arg9: memref<1x16xf32, #tpu.memory_space<vmem>>, %arg10: memref<16x32xf32, #tpu.memory_space<vmem>>, %arg11: memref<16x32xf32, #tpu.memory_space<vmem>>, %arg12: memref<1x32xf32, #tpu.memory_space<vmem>>, %arg13: memref<1x32x196xf32, #tpu.memory_space<vmem>>, %arg14: memref<226x16xf32, #tpu.memory_space<vmem>>) attributes {dimension_semantics = [#tpu.dimension_semantics<parallel>], iteration_bounds = array<i64: 2>, scalar_prefetch = 0 : i64, scratch_operands = 1 : i64, tpu.core_type = #tpu.core_type<tc>, window_params = [{transform_indices = @transform_0, window_bounds = array<i64: 1, 196, 16>}, {transform_indices = @transform_1, window_bounds = array<i64: 1, 196, 16>}, {transform_indices = @transform_2, window_bounds = array<i64: 1, 196, 16>}, {pipeline_mode = #tpu.pipeline_mode<synchronous>, transform_indices = @transform_3, window_bounds = array<i64: 196, 9>}, {pipeline_mode = #tpu.pipeline_mode<synchronous>, transform_indices = @transform_4, window_bounds = array<i64: 9, 16>}, {pipeline_mode = #tpu.pipeline_mode<synchronous>, transform_indices = @transform_5, window_bounds = array<i64: 1, 16>}, {pipeline_mode = #tpu.pipeline_mode<synchronous>, transform_indices = @transform_6, window_bounds = array<i64: 16, 16>}, {pipeline_mode = #tpu.pipeline_mode<synchronous>, transform_indices = @transform_7, window_bounds = array<i64: 16, 16>}, {pipeline_mode = #tpu.pipeline_mode<synchronous>, transform_indices = @transform_8, window_bounds = array<i64: 1, 16>}, {pipeline_mode = #tpu.pipeline_mode<synchronous>, transform_indices = @transform_9, window_bounds = array<i64: 16, 32>}, {pipeline_mode = #tpu.pipeline_mode<synchronous>, transform_indices = @transform_10, window_bounds = array<i64: 16, 32>}, {pipeline_mode = #tpu.pipeline_mode<synchronous>, transform_indices = @transform_11, window_bounds = array<i64: 1, 32>}, {transform_indices = @transform_12, window_bounds = array<i64: 1, 32, 196>}]} {
    %c0 = arith.constant 0 : index
    %c0_0 = arith.constant 0 : index
    %c0_1 = arith.constant 0 : index
    %0 = vector.load %arg1[%c0, %c0_0, %c0_1] : memref<1x196x16xf32, #tpu.memory_space<vmem>>, vector<1x196x16xf32>
    %1 = vector.shape_cast %0 : vector<1x196x16xf32> to vector<196x16xf32>
    %cst = arith.constant 0.000000e+00 : f32
    %2 = vector.broadcast %cst : f32 to vector<15x16xf32>
    %c0_2 = arith.constant 0 : index
    %c0_3 = arith.constant 0 : index
    %3 = vector.load %arg14[%c0_2, %c0_3] : memref<226x16xf32, #tpu.memory_space<vmem>>, vector<15x16xf32>
    tpu.vector_store %arg14[%c0_2, %c0_3], %2 {strides = array<i32>} : memref<226x16xf32, #tpu.memory_space<vmem>>, vector<15x16xf32>,
    %cst_4 = arith.constant 0.000000e+00 : f32
    %4 = vector.broadcast %cst_4 : f32 to vector<15x16xf32>
    %c211 = arith.constant 211 : index
    %c0_5 = arith.constant 0 : index
    %5 = vector.load %arg14[%c211, %c0_5] : memref<226x16xf32, #tpu.memory_space<vmem>>, vector<15x16xf32>
    tpu.vector_store %arg14[%c211, %c0_5], %4 {strides = array<i32>} : memref<226x16xf32, #tpu.memory_space<vmem>>, vector<15x16xf32>,
    %c15 = arith.constant 15 : index
    %c0_6 = arith.constant 0 : index
    %6 = vector.load %arg14[%c15, %c0_6] : memref<226x16xf32, #tpu.memory_space<vmem>>, vector<196x16xf32>
    tpu.vector_store %arg14[%c15, %c0_6], %1 {strides = array<i32>} : memref<226x16xf32, #tpu.memory_space<vmem>>, vector<196x16xf32>,
    %c0_7 = arith.constant 0 : index
    %c0_8 = arith.constant 0 : index
    %7 = vector.load %arg14[%c0_7, %c0_8] : memref<226x16xf32, #tpu.memory_space<vmem>>, vector<226x16xf32>
    %c0_9 = arith.constant 0 : index
    %c0_10 = arith.constant 0 : index
    %8 = vector.load %arg4[%c0_9, %c0_10] : memref<196x9xf32, #tpu.memory_space<vmem>>, vector<196x9xf32>
    %c0_11 = arith.constant 0 : index
    %c0_12 = arith.constant 0 : index
    %9 = vector.load %arg5[%c0_11, %c0_12] : memref<9x16xf32, #tpu.memory_space<vmem>>, vector<9x16xf32>
    %cst_13 = arith.constant 0.000000e+00 : f32
    %10 = vector.broadcast %cst_13 : f32 to vector<196x16xf32>
    %11 = vector.extract_strided_slice %7 {offsets = [0, 0], sizes = [196, 16], strides = [1, 1]} : vector<226x16xf32> to vector<196x16xf32>
    %12 = vector.extract_strided_slice %8 {offsets = [0, 0], sizes = [196, 1], strides = [1, 1]} : vector<196x9xf32> to vector<196x1xf32>
    %13 = vector.broadcast %12 : vector<196x1xf32> to vector<196x16xf32>
    %14 = arith.mulf %11, %13 : vector<196x16xf32>
    %15 = vector.extract_strided_slice %9 {offsets = [0, 0], sizes = [1, 16], strides = [1, 1]} : vector<9x16xf32> to vector<1x16xf32>
    %16 = vector.broadcast %15 : vector<1x16xf32> to vector<196x16xf32>
    %17 = arith.mulf %14, %16 : vector<196x16xf32>
    %18 = arith.addf %10, %17 : vector<196x16xf32>
    %19 = vector.extract_strided_slice %7 {offsets = [1, 0], sizes = [196, 16], strides = [1, 1]} : vector<226x16xf32> to vector<196x16xf32>
    %20 = vector.extract_strided_slice %8 {offsets = [0, 1], sizes = [196, 1], strides = [1, 1]} : vector<196x9xf32> to vector<196x1xf32>
    %21 = vector.broadcast %20 : vector<196x1xf32> to vector<196x16xf32>
    %22 = arith.mulf %19, %21 : vector<196x16xf32>
    %23 = vector.extract_strided_slice %9 {offsets = [1, 0], sizes = [1, 16], strides = [1, 1]} : vector<9x16xf32> to vector<1x16xf32>
    %24 = vector.broadcast %23 : vector<1x16xf32> to vector<196x16xf32>
    %25 = arith.mulf %22, %24 : vector<196x16xf32>
    %26 = arith.addf %18, %25 : vector<196x16xf32>
    %27 = vector.extract_strided_slice %7 {offsets = [2, 0], sizes = [196, 16], strides = [1, 1]} : vector<226x16xf32> to vector<196x16xf32>
    %28 = vector.extract_strided_slice %8 {offsets = [0, 2], sizes = [196, 1], strides = [1, 1]} : vector<196x9xf32> to vector<196x1xf32>
    %29 = vector.broadcast %28 : vector<196x1xf32> to vector<196x16xf32>
    %30 = arith.mulf %27, %29 : vector<196x16xf32>
    %31 = vector.extract_strided_slice %9 {offsets = [2, 0], sizes = [1, 16], strides = [1, 1]} : vector<9x16xf32> to vector<1x16xf32>
    %32 = vector.broadcast %31 : vector<1x16xf32> to vector<196x16xf32>
    %33 = arith.mulf %30, %32 : vector<196x16xf32>
    %34 = arith.addf %26, %33 : vector<196x16xf32>
    %35 = vector.extract_strided_slice %7 {offsets = [14, 0], sizes = [196, 16], strides = [1, 1]} : vector<226x16xf32> to vector<196x16xf32>
    %36 = vector.extract_strided_slice %8 {offsets = [0, 3], sizes = [196, 1], strides = [1, 1]} : vector<196x9xf32> to vector<196x1xf32>
    %37 = vector.broadcast %36 : vector<196x1xf32> to vector<196x16xf32>
    %38 = arith.mulf %35, %37 : vector<196x16xf32>
    %39 = vector.extract_strided_slice %9 {offsets = [3, 0], sizes = [1, 16], strides = [1, 1]} : vector<9x16xf32> to vector<1x16xf32>
    %40 = vector.broadcast %39 : vector<1x16xf32> to vector<196x16xf32>
    %41 = arith.mulf %38, %40 : vector<196x16xf32>
    %42 = arith.addf %34, %41 : vector<196x16xf32>
    %43 = vector.extract_strided_slice %7 {offsets = [15, 0], sizes = [196, 16], strides = [1, 1]} : vector<226x16xf32> to vector<196x16xf32>
    %44 = vector.extract_strided_slice %8 {offsets = [0, 4], sizes = [196, 1], strides = [1, 1]} : vector<196x9xf32> to vector<196x1xf32>
    %45 = vector.broadcast %44 : vector<196x1xf32> to vector<196x16xf32>
    %46 = arith.mulf %43, %45 : vector<196x16xf32>
    %47 = vector.extract_strided_slice %9 {offsets = [4, 0], sizes = [1, 16], strides = [1, 1]} : vector<9x16xf32> to vector<1x16xf32>
    %48 = vector.broadcast %47 : vector<1x16xf32> to vector<196x16xf32>
    %49 = arith.mulf %46, %48 : vector<196x16xf32>
    %50 = arith.addf %42, %49 : vector<196x16xf32>
    %51 = vector.extract_strided_slice %7 {offsets = [16, 0], sizes = [196, 16], strides = [1, 1]} : vector<226x16xf32> to vector<196x16xf32>
    %52 = vector.extract_strided_slice %8 {offsets = [0, 5], sizes = [196, 1], strides = [1, 1]} : vector<196x9xf32> to vector<196x1xf32>
    %53 = vector.broadcast %52 : vector<196x1xf32> to vector<196x16xf32>
    %54 = arith.mulf %51, %53 : vector<196x16xf32>
    %55 = vector.extract_strided_slice %9 {offsets = [5, 0], sizes = [1, 16], strides = [1, 1]} : vector<9x16xf32> to vector<1x16xf32>
    %56 = vector.broadcast %55 : vector<1x16xf32> to vector<196x16xf32>
    %57 = arith.mulf %54, %56 : vector<196x16xf32>
    %58 = arith.addf %50, %57 : vector<196x16xf32>
    %59 = vector.extract_strided_slice %7 {offsets = [28, 0], sizes = [196, 16], strides = [1, 1]} : vector<226x16xf32> to vector<196x16xf32>
    %60 = vector.extract_strided_slice %8 {offsets = [0, 6], sizes = [196, 1], strides = [1, 1]} : vector<196x9xf32> to vector<196x1xf32>
    %61 = vector.broadcast %60 : vector<196x1xf32> to vector<196x16xf32>
    %62 = arith.mulf %59, %61 : vector<196x16xf32>
    %63 = vector.extract_strided_slice %9 {offsets = [6, 0], sizes = [1, 16], strides = [1, 1]} : vector<9x16xf32> to vector<1x16xf32>
    %64 = vector.broadcast %63 : vector<1x16xf32> to vector<196x16xf32>
    %65 = arith.mulf %62, %64 : vector<196x16xf32>
    %66 = arith.addf %58, %65 : vector<196x16xf32>
    %67 = vector.extract_strided_slice %7 {offsets = [29, 0], sizes = [196, 16], strides = [1, 1]} : vector<226x16xf32> to vector<196x16xf32>
    %68 = vector.extract_strided_slice %8 {offsets = [0, 7], sizes = [196, 1], strides = [1, 1]} : vector<196x9xf32> to vector<196x1xf32>
    %69 = vector.broadcast %68 : vector<196x1xf32> to vector<196x16xf32>
    %70 = arith.mulf %67, %69 : vector<196x16xf32>
    %71 = vector.extract_strided_slice %9 {offsets = [7, 0], sizes = [1, 16], strides = [1, 1]} : vector<9x16xf32> to vector<1x16xf32>
    %72 = vector.broadcast %71 : vector<1x16xf32> to vector<196x16xf32>
    %73 = arith.mulf %70, %72 : vector<196x16xf32>
    %74 = arith.addf %66, %73 : vector<196x16xf32>
    %75 = vector.extract_strided_slice %7 {offsets = [30, 0], sizes = [196, 16], strides = [1, 1]} : vector<226x16xf32> to vector<196x16xf32>
    %76 = vector.extract_strided_slice %8 {offsets = [0, 8], sizes = [196, 1], strides = [1, 1]} : vector<196x9xf32> to vector<196x1xf32>
    %77 = vector.broadcast %76 : vector<196x1xf32> to vector<196x16xf32>
    %78 = arith.mulf %75, %77 : vector<196x16xf32>
    %79 = vector.extract_strided_slice %9 {offsets = [8, 0], sizes = [1, 16], strides = [1, 1]} : vector<9x16xf32> to vector<1x16xf32>
    %80 = vector.broadcast %79 : vector<1x16xf32> to vector<196x16xf32>
    %81 = arith.mulf %78, %80 : vector<196x16xf32>
    %82 = arith.addf %74, %81 : vector<196x16xf32>
    %c0_14 = arith.constant 0 : index
    %c0_15 = arith.constant 0 : index
    %83 = vector.load %arg6[%c0_14, %c0_15] : memref<1x16xf32, #tpu.memory_space<vmem>>, vector<1x16xf32>
    %84 = vector.broadcast %83 : vector<1x16xf32> to vector<196x16xf32>
    %85 = arith.addf %82, %84 : vector<196x16xf32>
    %86 = arith.negf %85 : vector<196x16xf32>
    %87 = math.exp %86 : vector<196x16xf32>
    %cst_16 = arith.constant 1.000000e+00 : f32
    %88 = vector.broadcast %cst_16 : f32 to vector<196x16xf32>
    %89 = arith.addf %88, %87 : vector<196x16xf32>
    %90 = arith.divf %88, %89 : vector<196x16xf32>
    %91 = arith.mulf %85, %90 : vector<196x16xf32>
    %92 = arith.addf %1, %91 : vector<196x16xf32>
    %c0_17 = arith.constant 0 : index
    %c0_18 = arith.constant 0 : index
    %c0_19 = arith.constant 0 : index
    %93 = vector.load %arg2[%c0_17, %c0_18, %c0_19] : memref<1x196x16xf32, #tpu.memory_space<vmem>>, vector<1x196x16xf32>
    %94 = vector.shape_cast %93 : vector<1x196x16xf32> to vector<196x16xf32>
    %c0_20 = arith.constant 0 : index
    %c0_21 = arith.constant 0 : index
    %95 = vector.load %arg7[%c0_20, %c0_21] : memref<16x16xf32, #tpu.memory_space<vmem>>, vector<16x16xf32>
    %cst_22 = arith.constant dense<0.000000e+00> : vector<196x16xf32>
    %96 = tpu.matmul %92, %95, %cst_22 {dimension_numbers = #tpu.dot_dimension_numbers<[1], [0], [0], [1], [0, 0, 1, 1], [], []>} : vector<196x16xf32>, vector<16x16xf32>, vector<196x16xf32> -> vector<196x16xf32>
    %97 = arith.addf %94, %96 : vector<196x16xf32>
    %c0_23 = arith.constant 0 : index
    %c0_24 = arith.constant 0 : index
    %98 = vector.load %arg8[%c0_23, %c0_24] : memref<16x16xf32, #tpu.memory_space<vmem>>, vector<16x16xf32>
    %cst_25 = arith.constant dense<0.000000e+00> : vector<196x16xf32>
    %99 = tpu.matmul %97, %98, %cst_25 {dimension_numbers = #tpu.dot_dimension_numbers<[1], [0], [0], [1], [0, 0, 1, 1], [], []>} : vector<196x16xf32>, vector<16x16xf32>, vector<196x16xf32> -> vector<196x16xf32>
    %c0_26 = arith.constant 0 : index
    %c0_27 = arith.constant 0 : index
    %100 = vector.load %arg9[%c0_26, %c0_27] : memref<1x16xf32, #tpu.memory_space<vmem>>, vector<1x16xf32>
    %101 = vector.broadcast %100 : vector<1x16xf32> to vector<196x16xf32>
    %102 = arith.addf %99, %101 : vector<196x16xf32>
    %103 = arith.negf %102 : vector<196x16xf32>
    %104 = math.exp %103 : vector<196x16xf32>
    %cst_28 = arith.constant 1.000000e+00 : f32
    %105 = vector.broadcast %cst_28 : f32 to vector<196x16xf32>
    %106 = arith.addf %105, %104 : vector<196x16xf32>
    %107 = arith.divf %105, %106 : vector<196x16xf32>
    %108 = arith.mulf %102, %107 : vector<196x16xf32>
    %c0_29 = arith.constant 0 : index
    %c0_30 = arith.constant 0 : index
    %109 = vector.load %arg10[%c0_29, %c0_30] : memref<16x32xf32, #tpu.memory_space<vmem>>, vector<16x32xf32>
    %cst_31 = arith.constant dense<0.000000e+00> : vector<196x32xf32>
    %110 = tpu.matmul %108, %109, %cst_31 {dimension_numbers = #tpu.dot_dimension_numbers<[1], [0], [0], [1], [0, 0, 1, 1], [], []>} : vector<196x16xf32>, vector<16x32xf32>, vector<196x32xf32> -> vector<196x32xf32>
    %c0_32 = arith.constant 0 : index
    %c0_33 = arith.constant 0 : index
    %c0_34 = arith.constant 0 : index
    %111 = vector.load %arg3[%c0_32, %c0_33, %c0_34] : memref<1x196x16xf32, #tpu.memory_space<vmem>>, vector<1x196x16xf32>
    %112 = vector.shape_cast %111 : vector<1x196x16xf32> to vector<196x16xf32>
    %c0_35 = arith.constant 0 : index
    %c0_36 = arith.constant 0 : index
    %113 = vector.load %arg11[%c0_35, %c0_36] : memref<16x32xf32, #tpu.memory_space<vmem>>, vector<16x32xf32>
    %cst_37 = arith.constant dense<0.000000e+00> : vector<196x32xf32>
    %114 = tpu.matmul %112, %113, %cst_37 {dimension_numbers = #tpu.dot_dimension_numbers<[1], [0], [0], [1], [0, 0, 1, 1], [], []>} : vector<196x16xf32>, vector<16x32xf32>, vector<196x32xf32> -> vector<196x32xf32>
    %115 = arith.addf %110, %114 : vector<196x32xf32>
    %c0_38 = arith.constant 0 : index
    %c0_39 = arith.constant 0 : index
    %116 = vector.load %arg12[%c0_38, %c0_39] : memref<1x32xf32, #tpu.memory_space<vmem>>, vector<1x32xf32>
    %117 = vector.broadcast %116 : vector<1x32xf32> to vector<196x32xf32>
    %118 = arith.addf %115, %117 : vector<196x32xf32>
    %119 = arith.negf %118 : vector<196x32xf32>
    %120 = math.exp %119 : vector<196x32xf32>
    %cst_40 = arith.constant 1.000000e+00 : f32
    %121 = vector.broadcast %cst_40 : f32 to vector<196x32xf32>
    %122 = arith.addf %121, %120 : vector<196x32xf32>
    %123 = arith.divf %121, %122 : vector<196x32xf32>
    %124 = arith.mulf %118, %123 : vector<196x32xf32>
    %125 = tpu.transpose %124, [1, 0] : vector<196x32xf32> -> vector<32x196xf32>
    %c0_41 = arith.constant 0 : index
    %c0_42 = arith.constant 0 : index
    %c0_43 = arith.constant 0 : index
    %126 = vector.load %arg13[%c0_41, %c0_42, %c0_43] : memref<1x32x196xf32, #tpu.memory_space<vmem>>, vector<1x32x196xf32>
    %127 = vector.shape_cast %126 : vector<1x32x196xf32> to vector<32x196xf32>
    %128 = vector.shape_cast %125 : vector<32x196xf32> to vector<1x32x196xf32>
    tpu.vector_store %arg13[%c0_41, %c0_42, %c0_43], %128 {strides = array<i32>} : memref<1x32x196xf32, #tpu.memory_space<vmem>>, vector<1x32x196xf32>,
    return
  }
  func.func @transform_0(%arg0: i32) -> (i32, i32, i32) {
    %c0_i32 = arith.constant 0 : i32
    %c0_i32_0 = arith.constant 0 : i32
    %c0_i32_1 = arith.constant 0 : i32
    return %arg0, %c0_i32, %c0_i32_0 : i32, i32, i32
  }
  func.func @transform_1(%arg0: i32) -> (i32, i32, i32) {
    %c0_i32 = arith.constant 0 : i32
    %c0_i32_0 = arith.constant 0 : i32
    %c0_i32_1 = arith.constant 0 : i32
    return %arg0, %c0_i32, %c0_i32_0 : i32, i32, i32
  }
  func.func @transform_2(%arg0: i32) -> (i32, i32, i32) {
    %c0_i32 = arith.constant 0 : i32
    %c0_i32_0 = arith.constant 0 : i32
    %c0_i32_1 = arith.constant 0 : i32
    return %arg0, %c0_i32, %c0_i32_0 : i32, i32, i32
  }
  func.func @transform_3(%arg0: i32) -> (i32, i32) {
    %c0_i32 = arith.constant 0 : i32
    %c0_i32_0 = arith.constant 0 : i32
    %c0_i32_1 = arith.constant 0 : i32
    return %c0_i32, %c0_i32_0 : i32, i32
  }
  func.func @transform_4(%arg0: i32) -> (i32, i32) {
    %c0_i32 = arith.constant 0 : i32
    %c0_i32_0 = arith.constant 0 : i32
    %c0_i32_1 = arith.constant 0 : i32
    return %c0_i32, %c0_i32_0 : i32, i32
  }
  func.func @transform_5(%arg0: i32) -> (i32, i32) {
    %c0_i32 = arith.constant 0 : i32
    %c0_i32_0 = arith.constant 0 : i32
    %c0_i32_1 = arith.constant 0 : i32
    return %c0_i32, %c0_i32_0 : i32, i32
  }
  func.func @transform_6(%arg0: i32) -> (i32, i32) {
    %c0_i32 = arith.constant 0 : i32
    %c0_i32_0 = arith.constant 0 : i32
    %c0_i32_1 = arith.constant 0 : i32
    return %c0_i32, %c0_i32_0 : i32, i32
  }
  func.func @transform_7(%arg0: i32) -> (i32, i32) {
    %c0_i32 = arith.constant 0 : i32
    %c0_i32_0 = arith.constant 0 : i32
    %c0_i32_1 = arith.constant 0 : i32
    return %c0_i32, %c0_i32_0 : i32, i32
  }
  func.func @transform_8(%arg0: i32) -> (i32, i32) {
    %c0_i32 = arith.constant 0 : i32
    %c0_i32_0 = arith.constant 0 : i32
    %c0_i32_1 = arith.constant 0 : i32
    return %c0_i32, %c0_i32_0 : i32, i32
  }
  func.func @transform_9(%arg0: i32) -> (i32, i32) {
    %c0_i32 = arith.constant 0 : i32
    %c0_i32_0 = arith.constant 0 : i32
    %c0_i32_1 = arith.constant 0 : i32
    return %c0_i32, %c0_i32_0 : i32, i32
  }
  func.func @transform_10(%arg0: i32) -> (i32, i32) {
    %c0_i32 = arith.constant 0 : i32
    %c0_i32_0 = arith.constant 0 : i32
    %c0_i32_1 = arith.constant 0 : i32
    return %c0_i32, %c0_i32_0 : i32, i32
  }
  func.func @transform_11(%arg0: i32) -> (i32, i32) {
    %c0_i32 = arith.constant 0 : i32
    %c0_i32_0 = arith.constant 0 : i32
    %c0_i32_1 = arith.constant 0 : i32
    return %c0_i32, %c0_i32_0 : i32, i32
  }
  func.func @transform_12(%arg0: i32) -> (i32, i32, i32) {
    %c0_i32 = arith.constant 0 : i32
    %c0_i32_0 = arith.constant 0 : i32
    %c0_i32_1 = arith.constant 0 : i32
    return %arg0, %c0_i32, %c0_i32_0 : i32, i32, i32
  }
}

</mosaic_0001>

<llo_original>
// kernel: csrmbc_pallas.3
$region0: #{csrmbc_pallas.3}
  #allocation0 [shape = 'u32[]', space=smem, size = 0x4, offset = 0x4, fixed_abs, tag = 'smem constant byte address 0x4 - core index']
  #allocation1 [shape = 'u32[144,128]{1,0:T(1,128)}', space=vmem, size = 0x12000, scoped, tag = 'internal scratch']
  %s0 = inlined_call_operand.vmem [shape: f32[2,16,196], index: 0, kind: input, shape index: {}]
  %s1 = inlined_call_operand.vmem [shape: f32[16,32], index: 1, kind: input, shape index: {}]
  %s2 = inlined_call_operand.vmem [shape: f32[1,32], index: 2, kind: input, shape index: {}]
  %s3 = inlined_call_operand.vmem [shape: f32[2,196,16], index: 3, kind: output, shape index: {0}]
  %s4 = inlined_call_operand.vmem [shape: f32[2,196,16], index: 4, kind: output, shape index: {1}]
  %5 = xla_tuple %s3, %s4
  %s6 = sld [smem:[#allocation0]]
  $region53: #{csrmbc_pallas.3} parent=0
    _
  %s8 = ssub.s32 1, %s6
  %s9 = scalar_select 0, %s8, %s6
  loop: start=0, step=1, limit=4
  $region2: #{csrmbc_pallas.3} parent=0 // loop_pre_header
    _
  $region3: #{csrmbc_pallas.3} parent=0 // loop_header
    %s11 = sphi 0, %s15
    %p12 = scmp.ge.s32.totalorder %s11, 4
    %s18 = sphi 0, %s30
    %s19 = sphi 0, %s26
    %s20 = sphi 0, %s18
    %s21 = sphi 0, %s19
    %s22 = sphi 0, %s20
    %s23 = sphi 0, %s21
    %s35 = sphi 0, %s37
    %s38 = sphi 0, %s35
    %s39 = sphi 0, %s38
    %s55 = sphi 0, %s39
    %s59 = sphi 0, %s59
    %s61 = sphi 0, %s59
    %s62 = sphi 0, %s61
    %s76 = sphi 0, %s62
    %s80 = sphi 0, %s80
    %s82 = sphi 0, %s80
    %s83 = sphi 0, %s82
    %s97 = sphi 0, %s83
    %s105 = sphi 0, %s107
    %s108 = sphi 0, %s105
    %s109 = sphi 0, %s108
    %s125 = sphi 0, %s109
    %s133 = sphi 0, %s135
    %s136 = sphi 0, %s133
    %s137 = sphi 0, %s136
    %s153 = sphi 0, %s137
  $region4: #{csrmbc_pallas.3} parent=0 // loop_header_branch
    %14 = sbr.rel (%p12) target = $region8
  $region5: #{csrmbc_pallas.3} parent=0 // loop_body
    %s16 = ssub.s32 %s11, 1
    %s17 = ssub.s32 %s11, 2
    %s24 = sadd.s32 1, %s19
    %p25 = scmp.ge.s32.totalorder %s24, 1
    %s26 = scalar_select %p25, 0, %s24
    %s27 = sadd.s32 1, %s18
    %s28 = scalar_select %p25, %s27, %s18
    %p29 = scmp.ge.s32.totalorder %s28, 2
    %s30 = scalar_select %p29, 0, %s28
    %s31 = ssub.s32 %s18, %s30
    %s32 = ssub.s32 %s19, %s26
    %s33 = sor.u32 %s31, %s32
    %p34 = scmp.eq.s32.totalorder %s33, 0
    %s36 = sadd.s32 %s35, 1
    %s37 = scalar_select %p34, %s35, %s36
    %p40 = pneg %p34
    %p41 = scmp.eq.s32.totalorder %s11, 1
    %p42 = por %p40, %p41
    %p43 = scmp.ne.s32.totalorder %s35, %s38
    %p44 = scmp.eq.s32.totalorder %s11, 0
    %p45 = por %p43, %p44
    %p46 = scmp.ne.s32.totalorder %s35, %s38
    %p47 = scmp.eq.s32.totalorder %s16, 1
    %p48 = por %p46, %p47
    %p49 = scmp.ne.s32.totalorder %s38, %s39
    %p50 = scmp.eq.s32.totalorder %s16, 0
    %p51 = por %p49, %p50
    %p52 = scmp.ne.s32.totalorder %s38, %s39
    %p53 = scmp.eq.s32.totalorder %s17, 1
    %p54 = por %p52, %p53
    %p56 = scmp.ne.s32.totalorder %s39, %s55
    %p57 = scmp.eq.s32.totalorder %s17, 0
    %p58 = por %p56, %p57
    %s60 = sadd.s32 %s59, 1
    %p63 = scmp.eq.s32.totalorder %s11, 1
    %p64 = scmp.ne.s32.totalorder %s59, %s61
    %p65 = scmp.eq.s32.totalorder %s11, 0
    %p66 = por %p64, %p65
    %p67 = scmp.ne.s32.totalorder %s59, %s61
    %p68 = scmp.eq.s32.totalorder %s16, 1
    %p69 = por %p67, %p68
    %p70 = scmp.ne.s32.totalorder %s61, %s62
    %p71 = scmp.eq.s32.totalorder %s16, 0
    %p72 = por %p70, %p71
    %p73 = scmp.ne.s32.totalorder %s61, %s62
    %p74 = scmp.eq.s32.totalorder %s17, 1
    %p75 = por %p73, %p74
    %p77 = scmp.ne.s32.totalorder %s62, %s76
    %p78 = scmp.eq.s32.totalorder %s17, 0
    %p79 = por %p77, %p78
    %s81 = sadd.s32 %s80, 1
    %p84 = scmp.eq.s32.totalorder %s11, 1
    %p85 = scmp.ne.s32.totalorder %s80, %s82
    %p86 = scmp.eq.s32.totalorder %s11, 0
    %p87 = por %p85, %p86
    %p88 = scmp.ne.s32.totalorder %s80, %s82
    %p89 = scmp.eq.s32.totalorder %s16, 1
    %p90 = por %p88, %p89
    %p91 = scmp.ne.s32.totalorder %s82, %s83
    %p92 = scmp.eq.s32.totalorder %s16, 0
    %p93 = por %p91, %p92
    %p94 = scmp.ne.s32.totalorder %s82, %s83
    %p95 = scmp.eq.s32.totalorder %s17, 1
    %p96 = por %p94, %p95
    %p98 = scmp.ne.s32.totalorder %s83, %s97
    %p99 = scmp.eq.s32.totalorder %s17, 0
    %p100 = por %p98, %p99
    %s101 = ssub.s32 %s18, %s30
    %s102 = ssub.s32 %s19, %s26
    %s103 = sor.u32 %s101, %s102
    %p104 = scmp.eq.s32.totalorder %s103, 0
    %s106 = sadd.s32 %s105, 1
    %s107 = scalar_select %p104, %s105, %s106
    %p110 = pneg %p104
    %p111 = scmp.eq.s32.totalorder %s11, 1
    %p112 = por %p110, %p111
    %p113 = scmp.ne.s32.totalorder %s105, %s108
    %p114 = scmp.eq.s32.totalorder %s11, 0
    %p115 = por %p113, %p114
    %p116 = scmp.ne.s32.totalorder %s105, %s108
    %p117 = scmp.eq.s32.totalorder %s16, 1
    %p118 = por %p116, %p117
    %p119 = scmp.ne.s32.totalorder %s108, %s109
    %p120 = scmp.eq.s32.totalorder %s16, 0
    %p121 = por %p119, %p120
    %p122 = scmp.ne.s32.totalorder %s108, %s109
    %p123 = scmp.eq.s32.totalorder %s17, 1
    %p124 = por %p122, %p123
    %p126 = scmp.ne.s32.totalorder %s109, %s125
    %p127 = scmp.eq.s32.totalorder %s17, 0
    %p128 = por %p126, %p127
    %s129 = ssub.s32 %s18, %s30
    %s130 = ssub.s32 %s19, %s26
    %s131 = sor.u32 %s129, %s130
    %p132 = scmp.eq.s32.totalorder %s131, 0
    %s134 = sadd.s32 %s133, 1
    %s135 = scalar_select %p132, %s133, %s134
    %p138 = pneg %p132
    %p139 = scmp.eq.s32.totalorder %s11, 1
    %p140 = por %p138, %p139
    %p141 = scmp.ne.s32.totalorder %s133, %s136
    %p142 = scmp.eq.s32.totalorder %s11, 0
    %p143 = por %p141, %p142
    %p144 = scmp.ne.s32.totalorder %s133, %s136
    %p145 = scmp.eq.s32.totalorder %s16, 1
    %p146 = por %p144, %p145
    %p147 = scmp.ne.s32.totalorder %s136, %s137
    %p148 = scmp.eq.s32.totalorder %s16, 0
    %p149 = por %p147, %p148
    %p150 = scmp.ne.s32.totalorder %s136, %s137
    %p151 = scmp.eq.s32.totalorder %s17, 1
    %p152 = por %p150, %p151
    %p154 = scmp.ne.s32.totalorder %s137, %s153
    %p155 = scmp.eq.s32.totalorder %s17, 0
    %p156 = por %p154, %p155
    %p157 = scmp.le.s32.totalorder 1, %s11
    %p158 = scmp.lt.s32.totalorder %s11, 3
    %p159 = pnand %p157, %p158
    %p160 = pneg %p159
    // Predicated region
    $region9: #{csrmbc_pallas.3} parent=5 // pred_check
      _
    $region10: #{csrmbc_pallas.3} parent=5 // pred_check_branch
      %162 = sbr.rel (%p159) target = $region12
    $region11: #{csrmbc_pallas.3} parent=5 // pred_region
      %s163 = ssub.s32 %s11, 1
      // Predicated region
      $region13: #{csrmbc_pallas.3} parent=11 // pred_check
        %p164 = pneg %p72
      $region14: #{csrmbc_pallas.3} parent=11 // pred_check_branch
        %166 = sbr.rel (%p164) target = $region16
      $region15: #{csrmbc_pallas.3} parent=11 // pred_region
        _
      $region16: #{csrmbc_pallas.3} parent=11 // pred_fallthru
        _
      // Predicated region
      $region17: #{csrmbc_pallas.3} parent=11 // pred_check
        %p167 = pneg %p93
      $region18: #{csrmbc_pallas.3} parent=11 // pred_check_branch
        %169 = sbr.rel (%p167) target = $region20
      $region19: #{csrmbc_pallas.3} parent=11 // pred_region
        _
      $region20: #{csrmbc_pallas.3} parent=11 // pred_fallthru
        _
    $region12: #{csrmbc_pallas.3} parent=5 // pred_fallthru
      _
    %p170 = scmp.lt.s32.totalorder %s11, 2
    // Predicated region
    $region21: #{csrmbc_pallas.3} parent=5 // pred_check
      %p171 = pneg %p170
    $region22: #{csrmbc_pallas.3} parent=5 // pred_check_branch
      %173 = sbr.rel (%p171) target = $region24
    $region23: #{csrmbc_pallas.3} parent=5 // pred_region
      // Predicated region
      $region25: #{csrmbc_pallas.3} parent=23 // pred_check
        %p174 = pneg %p45
      $region26: #{csrmbc_pallas.3} parent=23 // pred_check_branch
        %176 = sbr.rel (%p174) target = $region28
      $region27: #{csrmbc_pallas.3} parent=23 // pred_region
        %s177 = smul.u32 2, %s19
        %p178 = scmp.lt.s32.totalorder %s18, 1
        %s179 = scalar_select %p178, %s18, 1
        %p180 = scmp.lt.s32.totalorder %s177, 1
        %s181 = scalar_select %p180, %s177, 1
        %s182 = smul.addr %s179, 4
        %s183 = sadd.s32 %s181, %s182
        %s184 = smul.addr %s183, 8
        %s185 = scalar_lea.vmem %s0, %s184
        %s186 = smul.u32 2, %s19
      $region28: #{csrmbc_pallas.3} parent=23 // pred_fallthru
        _
    $region24: #{csrmbc_pallas.3} parent=5 // pred_fallthru
      _
    %p187 = scmp.le.s32.totalorder 1, %s11
    %p188 = scmp.lt.s32.totalorder %s11, 3
    %p189 = pnand %p187, %p188
    %p190 = pneg %p189
    // Predicated region
    $region29: #{csrmbc_pallas.3} parent=5 // pred_check
      _
    $region30: #{csrmbc_pallas.3} parent=5 // pred_check_branch
      %192 = sbr.rel (%p189) target = $region32
    $region31: #{csrmbc_pallas.3} parent=5 // pred_region
      %s193 = ssub.s32 %s11, 1
      %s194 = smul.u32 2, %s21
      %p195 = scmp.lt.s32.totalorder %s20, 1
      %s196 = scalar_select %p195, %s20, 1
      %p197 = scmp.lt.s32.totalorder %s194, 1
      %s198 = scalar_select %p197, %s194, 1
      %s199 = smul.addr %s196, 4
      %s200 = sadd.s32 %s198, %s199
      %s201 = smul.addr %s200, 8
      %s202 = scalar_lea.vmem %s0, %s201
      %p203 = pneg %p51
      %p204 = pneg %p48
      %p205 = pneg %p72
      %p206 = pneg %p69
      %p207 = pneg %p93
      %p208 = pneg %p90
      %p209 = pneg %p121
      %p210 = pneg %p118
      %s211 = smul.u32 25, %s21
      %p212 = scmp.lt.s32.totalorder %s20, 1
      %s213 = scalar_select %p212, %s20, 1
      %p214 = scmp.lt.s32.totalorder %s211, 24
      %s215 = scalar_select %p214, %s211, 24
      %s216 = smul.addr %s213, 25
      %s217 = sadd.s32 %s215, %s216
      %s218 = smul.addr %s217, 8
      %s219 = scalar_lea.vmem %s3, %s218
      %p220 = pneg %p149
      %p221 = pneg %p146
      %s222 = smul.u32 25, %s21
      %p223 = scmp.lt.s32.totalorder %s20, 1
      %s224 = scalar_select %p223, %s20, 1
      %p225 = scmp.lt.s32.totalorder %s222, 24
      %s226 = scalar_select %p225, %s222, 24
      %s227 = smul.addr %s224, 25
      %s228 = sadd.s32 %s226, %s227
      %s229 = smul.addr %s228, 8
      %s230 = scalar_lea.vmem %s4, %s229
      %s231 = smul.u32 2, %s21
      %p232 = scmp.lt.s32.totalorder %s20, 1
      %s233 = scalar_select %p232, %s20, 1
      %p234 = scmp.lt.s32.totalorder %s231, 1
      %s235 = scalar_select %p234, %s231, 1
      %s236 = smul.addr %s233, 4
      %s237 = sadd.s32 %s235, %s236
      %s238 = smul.addr %s237, 8
      %s239 = scalar_lea.vmem %s0, %s238
      %s240 = smul.u32 2, %s21
      %s241 = smul.u32 25, %s21
      %p242 = scmp.lt.s32.totalorder %s20, 1
      %s243 = scalar_select %p242, %s20, 1
      %p244 = scmp.lt.s32.totalorder %s241, 24
      %s245 = scalar_select %p244, %s241, 24
      %s246 = smul.addr %s243, 25
      %s247 = sadd.s32 %s245, %s246
      %s248 = smul.addr %s247, 8
      %s249 = scalar_lea.vmem %s3, %s248
      %s250 = smul.u32 25, %s21
      %s251 = smul.u32 25, %s21
      %p252 = scmp.lt.s32.totalorder %s20, 1
      %s253 = scalar_select %p252, %s20, 1
      %p254 = scmp.lt.s32.totalorder %s251, 24
      %s255 = scalar_select %p254, %s251, 24
      %s256 = smul.addr %s253, 25
      %s257 = sadd.s32 %s255, %s256
      %s258 = smul.addr %s257, 8
      %s259 = scalar_lea.vmem %s4, %s258
      %s260 = smul.u32 25, %s21
      %v261 = vld [vmem:[%s239] sm:$0xff]
      %v262 = vld [vmem:[%s239 + $0x8] sm:$0xff]
      %v263 = vld [vmem:[%s239 + $0x10] sm:$0xff]
      %v264 = vld [vmem:[%s239 + $0x18] sm:$0xff]
      %v265 = vld [vmem:[%s1] sm:$0xff]
      %v266 = vld [vmem:[%s1 + $0x8] sm:$0xff]
      %v267 = vld [vmem:[%s2] sm:$0x1]
      %v269 = vlaneseq
      %v270 = vshrl.u32 %v269, 7
      %v271 = vsub.s32 0, %v270
      %v272 = vrot.slane %v267, %v271
      %274 = vxpose.xlu0.b32.start [1/16] %v261, 128
      %275 = vxpose.xlu0.b32.cont [2/16] %v263, 128
      %276 = vxpose.xlu0.b32.cont [3/16] 0.0, 128
      %277 = vxpose.xlu0.b32.cont [4/16] 0.0, 128
      %278 = vxpose.xlu0.b32.cont [5/16] 0.0, 128
      %279 = vxpose.xlu0.b32.cont [6/16] 0.0, 128
      %280 = vxpose.xlu0.b32.cont [7/16] 0.0, 128
      %281 = vxpose.xlu0.b32.cont [8/16] 0.0, 128
      %282 = vxpose.xlu0.b32.cont [9/16] 0.0, 128
      %283 = vxpose.xlu0.b32.cont [10/16] 0.0, 128
      %284 = vxpose.xlu0.b32.cont [11/16] 0.0, 128
      %285 = vxpose.xlu0.b32.cont [12/16] 0.0, 128
      %286 = vxpose.xlu0.b32.cont [13/16] 0.0, 128
      %287 = vxpose.xlu0.b32.cont [14/16] 0.0, 128
      %288 = vxpose.xlu0.b32.cont [15/16] 0.0, 128
      %289 = vxpose.xlu0.b32.end [16/16] 0.0, 128
      %v290 = vpop.trf.xlu0
      %v291 = vpop.trf.xlu0
      %v292 = vpop.trf.xlu0
      %v293 = vpop.trf.xlu0
      %v294 = vpop.trf.xlu0
      %v295 = vpop.trf.xlu0
      %v296 = vpop.trf.xlu0
      %v297 = vpop.trf.xlu0
      %v298 = vpop.trf.xlu0
      %v299 = vpop.trf.xlu0
      %v300 = vpop.trf.xlu0
      %v301 = vpop.trf.xlu0
      %v302 = vpop.trf.xlu0
      %v303 = vpop.trf.xlu0
      %v304 = vpop.trf.xlu0
      %v305 = vpop.trf.xlu0
      %306 = vxpose.xlu0.b32.start [1/16] %v262, 128
      %307 = vxpose.xlu0.b32.cont [2/16] %v264, 128
      %308 = vxpose.xlu0.b32.cont [3/16] 0.0, 128
      %309 = vxpose.xlu0.b32.cont [4/16] 0.0, 128
      %310 = vxpose.xlu0.b32.cont [5/16] 0.0, 128
      %311 = vxpose.xlu0.b32.cont [6/16] 0.0, 128
      %312 = vxpose.xlu0.b32.cont [7/16] 0.0, 128
      %313 = vxpose.xlu0.b32.cont [8/16] 0.0, 128
      %314 = vxpose.xlu0.b32.cont [9/16] 0.0, 128
      %315 = vxpose.xlu0.b32.cont [10/16] 0.0, 128
      %316 = vxpose.xlu0.b32.cont [11/16] 0.0, 128
      %317 = vxpose.xlu0.b32.cont [12/16] 0.0, 128
      %318 = vxpose.xlu0.b32.cont [13/16] 0.0, 128
      %319 = vxpose.xlu0.b32.cont [14/16] 0.0, 128
      %320 = vxpose.xlu0.b32.cont [15/16] 0.0, 128
      %321 = vxpose.xlu0.b32.end [16/16] 0.0, 128
      %v322 = vpop.trf.xlu0
      %v323 = vpop.trf.xlu0
      %v324 = vpop.trf.xlu0
      %v325 = vpop.trf.xlu0
      %v326 = vpop.trf.xlu0
      %v327 = vpop.trf.xlu0
      %v328 = vpop.trf.xlu0
      %v329 = vpop.trf.xlu0
      %v330 = vpop.trf.xlu0
      %v331 = vpop.trf.xlu0
      %v332 = vpop.trf.xlu0
      %v333 = vpop.trf.xlu0
      %v334 = vpop.trf.xlu0
      %v335 = vpop.trf.xlu0
      %v336 = vpop.trf.xlu0
      %v337 = vpop.trf.xlu0
      %vm338 = vcmask 130048
      %v340 = vsel %vm338, %v290, 0
      %v343 = vsel %vm338, %v291, 0
      %v346 = vsel %vm338, %v292, 0
      %v349 = vsel %vm338, %v293, 0
      %v352 = vsel %vm338, %v294, 0
      %v355 = vsel %vm338, %v295, 0
      %v358 = vsel %vm338, %v296, 0
      %v361 = vsel %vm338, %v297, 0
      %v364 = vsel %vm338, %v298, 0
      %v367 = vsel %vm338, %v299, 0
      %v370 = vsel %vm338, %v300, 0
      %v373 = vsel %vm338, %v301, 0
      %v376 = vsel %vm338, %v302, 0
      %v379 = vsel %vm338, %v303, 0
      %v382 = vsel %vm338, %v304, 0
      %v385 = vsel %vm338, %v305, 0
      %v388 = vsel %vm338, %v322, 0
      %v391 = vsel %vm338, %v323, 0
      %v394 = vsel %vm338, %v324, 0
      %v397 = vsel %vm338, %v325, 0
      %v400 = vsel %vm338, %v326, 0
      %v403 = vsel %vm338, %v327, 0
      %v406 = vsel %vm338, %v328, 0
      %v409 = vsel %vm338, %v329, 0
      %v412 = vsel %vm338, %v330, 0
      %414 = vmatprep.subr.mxu0 0.0
      %415 = vmatpush1.msra.mxu0 0.0
      %416 = vmatprep.subr.mxu0 0.0
      %417 = vmatpush1.msra.mxu0 0.0
      %418 = vmatprep.subr.mxu0 0.0
      %419 = vmatpush1.msra.mxu0 0.0
      %420 = vmatprep.subr.mxu0 0.0
      %421 = vmatpush1.msra.mxu0 0.0
      %422 = vmatprep.subr.mxu0 0.0
      %423 = vmatpush1.msra.mxu0 0.0
      %424 = vmatprep.subr.mxu0 0.0
      %425 = vmatpush1.msra.mxu0 0.0
      %426 = vmatprep.subr.mxu0 0.0
      %427 = vmatpush1.msra.mxu0 0.0
      %428 = vmatprep.subr.mxu0 0.0
      %429 = vmatpush1.msra.mxu0 0.0
      %430 = vmatprep.subr.mxu0 0.0
      %431 = vmatpush1.msra.mxu0 0.0
      %432 = vmatprep.subr.mxu0 0.0
      %433 = vmatpush1.msra.mxu0 0.0
      %434 = vmatprep.subr.mxu0 0.0
      %435 = vmatpush1.msra.mxu0 0.0
      %436 = vmatprep.subr.mxu0 0.0
      %437 = vmatpush1.msra.mxu0 0.0
      %438 = vmatprep.subr.mxu0 0.0
      %439 = vmatpush1.msra.mxu0 0.0
      %440 = vmatprep.subr.mxu0 0.0
      %441 = vmatpush1.msra.mxu0 0.0
      %442 = vmatprep.subr.mxu0 0.0
      %443 = vmatpush1.msra.mxu0 %v266
      %444 = vmatprep.subr.mxu0 0.0
      %445 = vmatpush1.msra.mxu0 %v265
      %446 = vmatprep.subr.mxu0 0.0
      %447 = vmatpush2.msra.mxu0 0.0
      %448 = vmatprep.subr.mxu0 0.0
      %449 = vmatpush2.msra.mxu0 0.0
      %450 = vmatprep.subr.mxu0 0.0
      %451 = vmatpush2.msra.mxu0 0.0
      %452 = vmatprep.subr.mxu0 0.0
      %453 = vmatpush2.msra.mxu0 0.0
      %454 = vmatprep.subr.mxu0 0.0
      %455 = vmatpush2.msra.mxu0 0.0
      %456 = vmatprep.subr.mxu0 0.0
      %457 = vmatpush2.msra.mxu0 0.0
      %458 = vmatprep.subr.mxu0 0.0
      %459 = vmatpush2.msra.mxu0 0.0
      %460 = vmatprep.subr.mxu0 0.0
      %461 = vmatpush2.msra.mxu0 0.0
      %462 = vmatprep.subr.mxu0 0.0
      %463 = vmatpush2.msra.mxu0 0.0
      %464 = vmatprep.subr.mxu0 0.0
      %465 = vmatpush2.msra.mxu0 0.0
      %466 = vmatprep.subr.mxu0 0.0
      %467 = vmatpush2.msra.mxu0 0.0
      %468 = vmatprep.subr.mxu0 0.0
      %469 = vmatpush2.msra.mxu0 0.0
      %470 = vmatprep.subr.mxu0 0.0
      %471 = vmatpush2.msra.mxu0 0.0
      %472 = vmatprep.subr.mxu0 0.0
      %473 = vmatpush2.msra.mxu0 0.0
      %474 = vmatprep.subr.mxu0 0.0
      %475 = vmatpush2.msra.mxu0 0.0
      %476 = vmatprep.subr.mxu0 0.0
      %477 = vmatpush2.msra.mxu0 0.0
      %478 = vmatprep.mubr.f32.mxu0 0.0
      %479 = vmatmul.mubr.f32.gmra.mxu0 %v340
      %v480 = vpop.f32.mrf.mxu0
      %v481 = vadd.f32 %v272, %v480
      %v482 = vpop.f32.mrf.mxu0
      %483 = vmatprep.mubr.f32.mxu0 0.0
      %484 = vmatmul.mubr.f32.gmra.mxu0 %v343
      %v485 = vpop.f32.mrf.mxu0
      %v486 = vadd.f32 %v272, %v485
      %v487 = vpop.f32.mrf.mxu0
      %488 = vmatprep.mubr.f32.mxu0 0.0
      %489 = vmatmul.mubr.f32.gmra.mxu0 %v346
      %v490 = vpop.f32.mrf.mxu0
      %v491 = vadd.f32 %v272, %v490
      %v492 = vpop.f32.mrf.mxu0
      %493 = vmatprep.mubr.f32.mxu0 0.0
      %494 = vmatmul.mubr.f32.gmra.mxu0 %v349
      %v495 = vpop.f32.mrf.mxu0
      %v496 = vadd.f32 %v272, %v495
      %v497 = vpop.f32.mrf.mxu0
      %498 = vmatprep.mubr.f32.mxu0 0.0
      %499 = vmatmul.mubr.f32.gmra.mxu0 %v352
      %v500 = vpop.f32.mrf.mxu0
      %v501 = vadd.f32 %v272, %v500
      %v502 = vpop.f32.mrf.mxu0
      %503 = vmatprep.mubr.f32.mxu0 0.0
      %504 = vmatmul.mubr.f32.gmra.mxu0 %v355
      %v505 = vpop.f32.mrf.mxu0
      %v506 = vadd.f32 %v272, %v505
      %v507 = vpop.f32.mrf.mxu0
      %508 = vmatprep.mubr.f32.mxu0 0.0
      %509 = vmatmul.mubr.f32.gmra.mxu0 %v358
      %v510 = vpop.f32.mrf.mxu0
      %v511 = vadd.f32 %v272, %v510
      %v512 = vpop.f32.mrf.mxu0
      %513 = vmatprep.mubr.f32.mxu0 0.0
      %514 = vmatmul.mubr.f32.gmra.mxu0 %v361
      %v515 = vpop.f32.mrf.mxu0
      %v516 = vadd.f32 %v272, %v515
      %v517 = vpop.f32.mrf.mxu0
      %518 = vmatprep.mubr.f32.mxu0 0.0
      %519 = vmatmul.mubr.f32.gmra.mxu0 %v364
      %v520 = vpop.f32.mrf.mxu0
      %v521 = vadd.f32 %v272, %v520
      %v522 = vpop.f32.mrf.mxu0
      %523 = vmatprep.mubr.f32.mxu0 0.0
      %524 = vmatmul.mubr.f32.gmra.mxu0 %v367
      %v525 = vpop.f32.mrf.mxu0
      %v526 = vadd.f32 %v272, %v525
      %v527 = vpop.f32.mrf.mxu0
      %528 = vmatprep.mubr.f32.mxu0 0.0
      %529 = vmatmul.mubr.f32.gmra.mxu0 %v370
      %v530 = vpop.f32.mrf.mxu0
      %v531 = vadd.f32 %v272, %v530
      %v532 = vpop.f32.mrf.mxu0
      %533 = vmatprep.mubr.f32.mxu0 0.0
      %534 = vmatmul.mubr.f32.gmra.mxu0 %v373
      %v535 = vpop.f32.mrf.mxu0
      %v536 = vadd.f32 %v272, %v535
      %v537 = vpop.f32.mrf.mxu0
      %538 = vmatprep.mubr.f32.mxu0 0.0
      %539 = vmatmul.mubr.f32.gmra.mxu0 %v376
      %v540 = vpop.f32.mrf.mxu0
      %v541 = vadd.f32 %v272, %v540
      %v542 = vpop.f32.mrf.mxu0
      %543 = vmatprep.mubr.f32.mxu0 0.0
      %544 = vmatmul.mubr.f32.gmra.mxu0 %v379
      %v545 = vpop.f32.mrf.mxu0
      %v546 = vadd.f32 %v272, %v545
      %v547 = vpop.f32.mrf.mxu0
      %548 = vmatprep.mubr.f32.mxu0 0.0
      %549 = vmatmul.mubr.f32.gmra.mxu0 %v382
      %v550 = vpop.f32.mrf.mxu0
      %v551 = vadd.f32 %v272, %v550
      %v552 = vpop.f32.mrf.mxu0
      %553 = vmatprep.mubr.f32.mxu0 0.0
      %554 = vmatmul.mubr.f32.gmra.mxu0 %v385
      %v555 = vpop.f32.mrf.mxu0
      %v556 = vadd.f32 %v272, %v555
      %v557 = vpop.f32.mrf.mxu0
      %558 = vmatprep.mubr.f32.mxu0 0.0
      %559 = vmatmul.mubr.f32.gmra.mxu0 %v388
      %v560 = vpop.f32.mrf.mxu0
      %v561 = vadd.f32 %v272, %v560
      %v562 = vpop.f32.mrf.mxu0
      %563 = vmatprep.mubr.f32.mxu0 0.0
      %564 = vmatmul.mubr.f32.gmra.mxu0 %v391
      %v565 = vpop.f32.mrf.mxu0
      %v566 = vadd.f32 %v272, %v565
      %v567 = vpop.f32.mrf.mxu0
      %568 = vmatprep.mubr.f32.mxu0 0.0
      %569 = vmatmul.mubr.f32.gmra.mxu0 %v394
      %v570 = vpop.f32.mrf.mxu0
      %v571 = vadd.f32 %v272, %v570
      %v572 = vpop.f32.mrf.mxu0
      %573 = vmatprep.mubr.f32.mxu0 0.0
      %574 = vmatmul.mubr.f32.gmra.mxu0 %v397
      %v575 = vpop.f32.mrf.mxu0
      %v576 = vadd.f32 %v272, %v575
      %v577 = vpop.f32.mrf.mxu0
      %578 = vmatprep.mubr.f32.mxu0 0.0
      %579 = vmatmul.mubr.f32.gmra.mxu0 %v400
      %v580 = vpop.f32.mrf.mxu0
      %v581 = vadd.f32 %v272, %v580
      %v582 = vpop.f32.mrf.mxu0
      %583 = vmatprep.mubr.f32.mxu0 0.0
      %584 = vmatmul.mubr.f32.gmra.mxu0 %v403
      %v585 = vpop.f32.mrf.mxu0
      %v586 = vadd.f32 %v272, %v585
      %v587 = vpop.f32.mrf.mxu0
      %588 = vmatprep.mubr.f32.mxu0 0.0
      %589 = vmatmul.mubr.f32.gmra.mxu0 %v406
      %v590 = vpop.f32.mrf.mxu0
      %v591 = vadd.f32 %v272, %v590
      %v592 = vpop.f32.mrf.mxu0
      %593 = vmatprep.mubr.f32.mxu0 0.0
      %594 = vmatmul.mubr.f32.gmra.mxu0 %v409
      %v595 = vpop.f32.mrf.mxu0
      %v596 = vadd.f32 %v272, %v595
      %v597 = vpop.f32.mrf.mxu0
      %598 = vmatprep.mubr.f32.mxu0 0.0
      %599 = vmatmul.mubr.f32.gmra.mxu0 %v412
      %v600 = vpop.f32.mrf.mxu0
      %v601 = vadd.f32 %v272, %v600
      %v602 = vpop.f32.mrf.mxu0
      %603 = vdwg.mxu0
      %v604 = vxor.u32 %v481, 2147483648
      %v605 = vxor.u32 %v486, 2147483648
      %v606 = vxor.u32 %v491, 2147483648
      %v607 = vxor.u32 %v496, 2147483648
      %v608 = vxor.u32 %v501, 2147483648
      %v609 = vxor.u32 %v506, 2147483648
      %v610 = vxor.u32 %v511, 2147483648
      %v611 = vxor.u32 %v516, 2147483648
      %v612 = vxor.u32 %v521, 2147483648
      %v613 = vxor.u32 %v526, 2147483648
      %v614 = vxor.u32 %v531, 2147483648
      %v615 = vxor.u32 %v536, 2147483648
      %v616 = vxor.u32 %v541, 2147483648
      %v617 = vxor.u32 %v546, 2147483648
      %v618 = vxor.u32 %v551, 2147483648
      %v619 = vxor.u32 %v556, 2147483648
      %v620 = vxor.u32 %v561, 2147483648
      %v621 = vxor.u32 %v566, 2147483648
      %v622 = vxor.u32 %v571, 2147483648
      %v623 = vxor.u32 %v576, 2147483648
      %v624 = vxor.u32 %v581, 2147483648
      %v625 = vxor.u32 %v586, 2147483648
      %v626 = vxor.u32 %v591, 2147483648
      %v627 = vxor.u32 %v596, 2147483648
      %v628 = vxor.u32 %v601, 2147483648
      %v629 = vmul.f32 %v604, 1.442695
      %v630 = vpow.pop %v629
      %v631 = vmul.f32 %v605, 1.442695
      %v632 = vpow.pop %v631
      %v633 = vmul.f32 %v606, 1.442695
      %v634 = vpow.pop %v633
      %v635 = vmul.f32 %v607, 1.442695
      %v636 = vpow.pop %v635
      %v637 = vmul.f32 %v608, 1.442695
      %v638 = vpow.pop %v637
      %v639 = vmul.f32 %v609, 1.442695
      %v640 = vpow.pop %v639
      %v641 = vmul.f32 %v610, 1.442695
      %v642 = vpow.pop %v641
      %v643 = vmul.f32 %v611, 1.442695
      %v644 = vpow.pop %v643
      %v645 = vmul.f32 %v612, 1.442695
      %v646 = vpow.pop %v645
      %v647 = vmul.f32 %v613, 1.442695
      %v648 = vpow.pop %v647
      %v649 = vmul.f32 %v614, 1.442695
      %v650 = vpow.pop %v649
      %v651 = vmul.f32 %v615, 1.442695
      %v652 = vpow.pop %v651
      %v653 = vmul.f32 %v616, 1.442695
      %v654 = vpow.pop %v653
      %v655 = vmul.f32 %v617, 1.442695
      %v656 = vpow.pop %v655
      %v657 = vmul.f32 %v618, 1.442695
      %v658 = vpow.pop %v657
      %v659 = vmul.f32 %v619, 1.442695
      %v660 = vpow.pop %v659
      %v661 = vmul.f32 %v620, 1.442695
      %v662 = vpow.pop %v661
      %v663 = vmul.f32 %v621, 1.442695
      %v664 = vpow.pop %v663
      %v665 = vmul.f32 %v622, 1.442695
      %v666 = vpow.pop %v665
      %v667 = vmul.f32 %v623, 1.442695
      %v668 = vpow.pop %v667
      %v669 = vmul.f32 %v624, 1.442695
      %v670 = vpow.pop %v669
      %v671 = vmul.f32 %v625, 1.442695
      %v672 = vpow.pop %v671
      %v673 = vmul.f32 %v626, 1.442695
      %v674 = vpow.pop %v673
      %v675 = vmul.f32 %v627, 1.442695
      %v676 = vpow.pop %v675
      %v677 = vmul.f32 %v628, 1.442695
      %v678 = vpow.pop %v677
      %v679 = vadd.f32 %v630, 1.0
      %v680 = vadd.f32 %v632, 1.0
      %v681 = vadd.f32 %v634, 1.0
      %v682 = vadd.f32 %v636, 1.0
      %v683 = vadd.f32 %v638, 1.0
      %v684 = vadd.f32 %v640, 1.0
      %v685 = vadd.f32 %v642, 1.0
      %v686 = vadd.f32 %v644, 1.0
      %v687 = vadd.f32 %v646, 1.0
      %v688 = vadd.f32 %v648, 1.0
      %v689 = vadd.f32 %v650, 1.0
      %v690 = vadd.f32 %v652, 1.0
      %v691 = vadd.f32 %v654, 1.0
      %v692 = vadd.f32 %v656, 1.0
      %v693 = vadd.f32 %v658, 1.0
      %v694 = vadd.f32 %v660, 1.0
      %v695 = vadd.f32 %v662, 1.0
      %v696 = vadd.f32 %v664, 1.0
      %v697 = vadd.f32 %v666, 1.0
      %v698 = vadd.f32 %v668, 1.0
      %v699 = vadd.f32 %v670, 1.0
      %v700 = vadd.f32 %v672, 1.0
      %v701 = vadd.f32 %v674, 1.0
      %v702 = vadd.f32 %v676, 1.0
      %v703 = vadd.f32 %v678, 1.0
      %v704 = vrcp.pop %v679
      %v705 = vmul.f32 1.0, %v704
      %v706 = vrcp.pop %v680
      %v707 = vmul.f32 1.0, %v706
      %v708 = vrcp.pop %v681
      %v709 = vmul.f32 1.0, %v708
      %v710 = vrcp.pop %v682
      %v711 = vmul.f32 1.0, %v710
      %v712 = vrcp.pop %v683
      %v713 = vmul.f32 1.0, %v712
      %v714 = vrcp.pop %v684
      %v715 = vmul.f32 1.0, %v714
      %v716 = vrcp.pop %v685
      %v717 = vmul.f32 1.0, %v716
      %v718 = vrcp.pop %v686
      %v719 = vmul.f32 1.0, %v718
      %v720 = vrcp.pop %v687
      %v721 = vmul.f32 1.0, %v720
      %v722 = vrcp.pop %v688
      %v723 = vmul.f32 1.0, %v722
      %v724 = vrcp.pop %v689
      %v725 = vmul.f32 1.0, %v724
      %v726 = vrcp.pop %v690
      %v727 = vmul.f32 1.0, %v726
      %v728 = vrcp.pop %v691
      %v729 = vmul.f32 1.0, %v728
      %v730 = vrcp.pop %v692
      %v731 = vmul.f32 1.0, %v730
      %v732 = vrcp.pop %v693
      %v733 = vmul.f32 1.0, %v732
      %v734 = vrcp.pop %v694
      %v735 = vmul.f32 1.0, %v734
      %v736 = vrcp.pop %v695
      %v737 = vmul.f32 1.0, %v736
      %v738 = vrcp.pop %v696
      %v739 = vmul.f32 1.0, %v738
      %v740 = vrcp.pop %v697
      %v741 = vmul.f32 1.0, %v740
      %v742 = vrcp.pop %v698
      %v743 = vmul.f32 1.0, %v742
      %v744 = vrcp.pop %v699
      %v745 = vmul.f32 1.0, %v744
      %v746 = vrcp.pop %v700
      %v747 = vmul.f32 1.0, %v746
      %v748 = vrcp.pop %v701
      %v749 = vmul.f32 1.0, %v748
      %v750 = vrcp.pop %v702
      %v751 = vmul.f32 1.0, %v750
      %v752 = vrcp.pop %v703
      %v753 = vmul.f32 1.0, %v752
      %v754 = vmul.f32 %v481, %v705
      %v755 = vmul.f32 %v486, %v707
      %v756 = vmul.f32 %v491, %v709
      %v757 = vmul.f32 %v496, %v711
      %v758 = vmul.f32 %v501, %v713
      %v759 = vmul.f32 %v506, %v715
      %v760 = vmul.f32 %v511, %v717
      %v761 = vmul.f32 %v516, %v719
      %v762 = vmul.f32 %v521, %v721
      %v763 = vmul.f32 %v526, %v723
      %v764 = vmul.f32 %v531, %v725
      %v765 = vmul.f32 %v536, %v727
      %v766 = vmul.f32 %v541, %v729
      %v767 = vmul.f32 %v546, %v731
      %v768 = vmul.f32 %v551, %v733
      %v769 = vmul.f32 %v556, %v735
      %v770 = vmul.f32 %v561, %v737
      %v771 = vmul.f32 %v566, %v739
      %v772 = vmul.f32 %v571, %v741
      %v773 = vmul.f32 %v576, %v743
      %v774 = vmul.f32 %v581, %v745
      %v775 = vmul.f32 %v586, %v747
      %v776 = vmul.f32 %v591, %v749
      %v777 = vmul.f32 %v596, %v751
      %v778 = vmul.f32 %v601, %v753
      %779 = vst.msk [vmem:[%s249] sm:$0xff] %vm338, %v754
      %780 = vst.msk [vmem:[%s249 + $0x8] sm:$0xff] %vm338, %v755
      %781 = vst.msk [vmem:[%s249 + $0x10] sm:$0xff] %vm338, %v756
      %782 = vst.msk [vmem:[%s249 + $0x18] sm:$0xff] %vm338, %v757
      %783 = vst.msk [vmem:[%s249 + $0x20] sm:$0xff] %vm338, %v758
      %784 = vst.msk [vmem:[%s249 + $0x28] sm:$0xff] %vm338, %v759
      %785 = vst.msk [vmem:[%s249 + $0x30] sm:$0xff] %vm338, %v760
      %786 = vst.msk [vmem:[%s249 + $0x38] sm:$0xff] %vm338, %v761
      %787 = vst.msk [vmem:[%s249 + $0x40] sm:$0xff] %vm338, %v762
      %788 = vst.msk [vmem:[%s249 + $0x48] sm:$0xff] %vm338, %v763
      %789 = vst.msk [vmem:[%s249 + $0x50] sm:$0xff] %vm338, %v764
      %790 = vst.msk [vmem:[%s249 + $0x58] sm:$0xff] %vm338, %v765
      %791 = vst.msk [vmem:[%s249 + $0x60] sm:$0xff] %vm338, %v766
      %792 = vst.msk [vmem:[%s249 + $0x68] sm:$0xff] %vm338, %v767
      %793 = vst.msk [vmem:[%s249 + $0x70] sm:$0xff] %vm338, %v768
      %794 = vst.msk [vmem:[%s249 + $0x78] sm:$0xff] %vm338, %v769
      %795 = vst.msk [vmem:[%s249 + $0x80] sm:$0xff] %vm338, %v770
      %796 = vst.msk [vmem:[%s249 + $0x88] sm:$0xff] %vm338, %v771
      %797 = vst.msk [vmem:[%s249 + $0x90] sm:$0xff] %vm338, %v772
      %798 = vst.msk [vmem:[%s249 + $0x98] sm:$0xff] %vm338, %v773
      %799 = vst.msk [vmem:[%s249 + $0xa0] sm:$0xff] %vm338, %v774
      %800 = vst.msk [vmem:[%s249 + $0xa8] sm:$0xff] %vm338, %v775
      %801 = vst.msk [vmem:[%s249 + $0xb0] sm:$0xff] %vm338, %v776
      %802 = vst.msk [vmem:[%s249 + $0xb8] sm:$0xff] %vm338, %v777
      %vm803 = vcmask 125952
      %804 = vst.msk [vmem:[%s249 + $0xc0] sm:$0xf] %vm803, %v778
      %830 = vrot.lane.b32.xlu0 %v754, 112
      %v831 = vpop.permute.xlu0 %830
      %832 = vrot.lane.b32.xlu0 %v755, 112
      %v833 = vpop.permute.xlu0 %832
      %834 = vrot.lane.b32.xlu0 %v756, 112
      %v835 = vpop.permute.xlu0 %834
      %836 = vrot.lane.b32.xlu0 %v757, 112
      %v837 = vpop.permute.xlu0 %836
      %838 = vrot.lane.b32.xlu0 %v758, 112
      %v839 = vpop.permute.xlu0 %838
      %840 = vrot.lane.b32.xlu0 %v759, 112
      %v841 = vpop.permute.xlu0 %840
      %842 = vrot.lane.b32.xlu0 %v760, 112
      %v843 = vpop.permute.xlu0 %842
      %844 = vrot.lane.b32.xlu0 %v761, 112
      %v845 = vpop.permute.xlu0 %844
      %846 = vrot.lane.b32.xlu0 %v762, 112
      %v847 = vpop.permute.xlu0 %846
      %848 = vrot.lane.b32.xlu0 %v763, 112
      %v849 = vpop.permute.xlu0 %848
      %850 = vrot.lane.b32.xlu0 %v764, 112
      %v851 = vpop.permute.xlu0 %850
      %852 = vrot.lane.b32.xlu0 %v765, 112
      %v853 = vpop.permute.xlu0 %852
      %854 = vrot.lane.b32.xlu0 %v766, 112
      %v855 = vpop.permute.xlu0 %854
      %856 = vrot.lane.b32.xlu0 %v767, 112
      %v857 = vpop.permute.xlu0 %856
      %858 = vrot.lane.b32.xlu0 %v768, 112
      %v859 = vpop.permute.xlu0 %858
      %860 = vrot.lane.b32.xlu0 %v769, 112
      %v861 = vpop.permute.xlu0 %860
      %862 = vrot.lane.b32.xlu0 %v770, 112
      %v863 = vpop.permute.xlu0 %862
      %864 = vrot.lane.b32.xlu0 %v771, 112
      %v865 = vpop.permute.xlu0 %864
      %866 = vrot.lane.b32.xlu0 %v772, 112
      %v867 = vpop.permute.xlu0 %866
      %868 = vrot.lane.b32.xlu0 %v773, 112
      %v869 = vpop.permute.xlu0 %868
      %870 = vrot.lane.b32.xlu0 %v774, 112
      %v871 = vpop.permute.xlu0 %870
      %872 = vrot.lane.b32.xlu0 %v775, 112
      %v873 = vpop.permute.xlu0 %872
      %874 = vrot.lane.b32.xlu0 %v776, 112
      %v875 = vpop.permute.xlu0 %874
      %876 = vrot.lane.b32.xlu0 %v777, 112
      %v877 = vpop.permute.xlu0 %876
      %878 = vrot.lane.b32.xlu0 %v778, 112
      %v879 = vpop.permute.xlu0 %878
      %905 = vst.msk [vmem:[%s259] sm:$0xff] %vm338, %v831
      %906 = vst.msk [vmem:[%s259 + $0x8] sm:$0xff] %vm338, %v833
      %907 = vst.msk [vmem:[%s259 + $0x10] sm:$0xff] %vm338, %v835
      %908 = vst.msk [vmem:[%s259 + $0x18] sm:$0xff] %vm338, %v837
      %909 = vst.msk [vmem:[%s259 + $0x20] sm:$0xff] %vm338, %v839
      %910 = vst.msk [vmem:[%s259 + $0x28] sm:$0xff] %vm338, %v841
      %911 = vst.msk [vmem:[%s259 + $0x30] sm:$0xff] %vm338, %v843
      %912 = vst.msk [vmem:[%s259 + $0x38] sm:$0xff] %vm338, %v845
      %913 = vst.msk [vmem:[%s259 + $0x40] sm:$0xff] %vm338, %v847
      %914 = vst.msk [vmem:[%s259 + $0x48] sm:$0xff] %vm338, %v849
      %915 = vst.msk [vmem:[%s259 + $0x50] sm:$0xff] %vm338, %v851
      %916 = vst.msk [vmem:[%s259 + $0x58] sm:$0xff] %vm338, %v853
      %917 = vst.msk [vmem:[%s259 + $0x60] sm:$0xff] %vm338, %v855
      %918 = vst.msk [vmem:[%s259 + $0x68] sm:$0xff] %vm338, %v857
      %919 = vst.msk [vmem:[%s259 + $0x70] sm:$0xff] %vm338, %v859
      %920 = vst.msk [vmem:[%s259 + $0x78] sm:$0xff] %vm338, %v861
      %921 = vst.msk [vmem:[%s259 + $0x80] sm:$0xff] %vm338, %v863
      %922 = vst.msk [vmem:[%s259 + $0x88] sm:$0xff] %vm338, %v865
      %923 = vst.msk [vmem:[%s259 + $0x90] sm:$0xff] %vm338, %v867
      %924 = vst.msk [vmem:[%s259 + $0x98] sm:$0xff] %vm338, %v869
      %925 = vst.msk [vmem:[%s259 + $0xa0] sm:$0xff] %vm338, %v871
      %926 = vst.msk [vmem:[%s259 + $0xa8] sm:$0xff] %vm338, %v873
      %927 = vst.msk [vmem:[%s259 + $0xb0] sm:$0xff] %vm338, %v875
      %928 = vst.msk [vmem:[%s259 + $0xb8] sm:$0xff] %vm338, %v877
      %929 = vst.msk [vmem:[%s259 + $0xc0] sm:$0xf] %vm803, %v879
      %s930 = smul.u32 25, %s21
      %p931 = scmp.lt.s32.totalorder %s20, 1
      %s932 = scalar_select %p931, %s20, 1
      %p933 = scmp.lt.s32.totalorder %s930, 24
      %s934 = scalar_select %p933, %s930, 24
      %s935 = smul.addr %s932, 25
      %s936 = sadd.s32 %s934, %s935
      %s937 = smul.addr %s936, 8
      %s938 = scalar_lea.vmem %s3, %s937
      %s939 = smul.u32 25, %s21
      %p940 = scmp.lt.s32.totalorder %s20, 1
      %s941 = scalar_select %p940, %s20, 1
      %p942 = scmp.lt.s32.totalorder %s939, 24
      %s943 = scalar_select %p942, %s939, 24
      %s944 = smul.addr %s941, 25
      %s945 = sadd.s32 %s943, %s944
      %s946 = smul.addr %s945, 8
      %s947 = scalar_lea.vmem %s4, %s946
      // Predicated region
      $region33: #{csrmbc_pallas.3} parent=31 // pred_check
        %p948 = pneg %p118
      $region34: #{csrmbc_pallas.3} parent=31 // pred_check_branch
        %950 = sbr.rel (%p948) target = $region36
      $region35: #{csrmbc_pallas.3} parent=31 // pred_region
        %s951 = smul.u32 25, %s21
      $region36: #{csrmbc_pallas.3} parent=31 // pred_fallthru
        _
      // Predicated region
      $region37: #{csrmbc_pallas.3} parent=31 // pred_check
        %p952 = pneg %p146
      $region38: #{csrmbc_pallas.3} parent=31 // pred_check_branch
        %954 = sbr.rel (%p952) target = $region40
      $region39: #{csrmbc_pallas.3} parent=31 // pred_region
        %s955 = smul.u32 25, %s21
      $region40: #{csrmbc_pallas.3} parent=31 // pred_fallthru
        _
    $region32: #{csrmbc_pallas.3} parent=5 // pred_fallthru
      _
    %p956 = scmp.le.s32.totalorder 2, %s11
    // Predicated region
    $region41: #{csrmbc_pallas.3} parent=5 // pred_check
      %p957 = pneg %p956
    $region42: #{csrmbc_pallas.3} parent=5 // pred_check_branch
      %959 = sbr.rel (%p957) target = $region44
    $region43: #{csrmbc_pallas.3} parent=5 // pred_region
      %s960 = ssub.s32 %s11, 2
      // Predicated region
      $region45: #{csrmbc_pallas.3} parent=43 // pred_check
        %p961 = pneg %p124
      $region46: #{csrmbc_pallas.3} parent=43 // pred_check_branch
        %963 = sbr.rel (%p961) target = $region48
      $region47: #{csrmbc_pallas.3} parent=43 // pred_region
        %s964 = smul.u32 25, %s23
        %p965 = scmp.lt.s32.totalorder %s22, 1
        %s966 = scalar_select %p965, %s22, 1
        %p967 = scmp.lt.s32.totalorder %s964, 24
        %s968 = scalar_select %p967, %s964, 24
        %s969 = smul.addr %s966, 25
        %s970 = sadd.s32 %s968, %s969
        %s971 = smul.addr %s970, 8
        %s972 = scalar_lea.vmem %s3, %s971
      $region48: #{csrmbc_pallas.3} parent=43 // pred_fallthru
        _
      // Predicated region
      $region49: #{csrmbc_pallas.3} parent=43 // pred_check
        %p973 = pneg %p152
      $region50: #{csrmbc_pallas.3} parent=43 // pred_check_branch
        %975 = sbr.rel (%p973) target = $region52
      $region51: #{csrmbc_pallas.3} parent=43 // pred_region
        %s976 = smul.u32 25, %s23
        %p977 = scmp.lt.s32.totalorder %s22, 1
        %s978 = scalar_select %p977, %s22, 1
        %p979 = scmp.lt.s32.totalorder %s976, 24
        %s980 = scalar_select %p979, %s976, 24
        %s981 = smul.addr %s978, 25
        %s982 = sadd.s32 %s980, %s981
        %s983 = smul.addr %s982, 8
        %s984 = scalar_lea.vmem %s4, %s983
      $region52: #{csrmbc_pallas.3} parent=43 // pred_fallthru
        _
    $region44: #{csrmbc_pallas.3} parent=5 // pred_fallthru
      _
  $region6: #{csrmbc_pallas.3} parent=0 // loop_footer
    %s15 = sadd.s32 1, %s11
  $region7: #{csrmbc_pallas.3} parent=0 // loop_footer_branch
    %10 = sbr.rel target = $region3
  $region8: #{csrmbc_pallas.3} parent=0 // loop_exit
    _

// kernel: csrmbc_pallas.4
$region0: #{csrmbc_pallas.4}
  #allocation0 [shape = 'u32[]', space=smem, size = 0x4, offset = 0x4, fixed_abs, tag = 'smem constant byte address 0x4 - core index']
  #allocation1 [shape = 'u32[144,128]{1,0:T(1,128)}', space=vmem, size = 0x12000, scoped, tag = 'internal scratch']
  %s0 = inlined_call_operand.vmem [shape: f32[8,49,16], index: 0, kind: input, shape index: {}]
  %s1 = inlined_call_operand.vmem [shape: f32[16,48], index: 1, kind: input, shape index: {}]
  %s2 = inlined_call_operand.vmem [shape: f32[1,48], index: 2, kind: input, shape index: {}]
  %s3 = inlined_call_operand.vmem [shape: f32[8,49,16], index: 3, kind: output, shape index: {}]
  %s4 = sld [smem:[#allocation0]]
  $region45: #{csrmbc_pallas.4} parent=0
    _
  %s6 = ssub.s32 1, %s4
  %s7 = scalar_select 0, %s6, %s4
  loop: start=0, step=1, limit=4
  $region2: #{csrmbc_pallas.4} parent=0 // loop_pre_header
    _
  $region3: #{csrmbc_pallas.4} parent=0 // loop_header
    %s9 = sphi 0, %s13
    %p10 = scmp.ge.s32.totalorder %s9, 4
    %s19 = sphi 0, %s21
    %s22 = sphi 0, %s19
    %s23 = sphi 0, %s22
    %s39 = sphi 0, %s23
    %s43 = sphi 0, %s43
    %s45 = sphi 0, %s43
    %s46 = sphi 0, %s45
    %s60 = sphi 0, %s46
    %s64 = sphi 0, %s64
    %s66 = sphi 0, %s64
    %s67 = sphi 0, %s66
    %s81 = sphi 0, %s67
    %s87 = sphi 0, %s89
    %s90 = sphi 0, %s87
    %s91 = sphi 0, %s90
    %s107 = sphi 0, %s91
  $region4: #{csrmbc_pallas.4} parent=0 // loop_header_branch
    %12 = sbr.rel (%p10) target = $region8
  $region5: #{csrmbc_pallas.4} parent=0 // loop_body
    %s14 = ssub.s32 %s9, 1
    %s15 = ssub.s32 %s9, 2
    %s16 = sadd.s32 %s9, 1
    %s17 = ssub.s32 %s9, %s16
    %p18 = scmp.eq.s32.totalorder %s17, 0
    %s20 = sadd.s32 %s19, 1
    %s21 = scalar_select %p18, %s19, %s20
    %p24 = pneg %p18
    %p25 = scmp.eq.s32.totalorder %s9, 1
    %p26 = por %p24, %p25
    %p27 = scmp.ne.s32.totalorder %s19, %s22
    %p28 = scmp.eq.s32.totalorder %s9, 0
    %p29 = por %p27, %p28
    %p30 = scmp.ne.s32.totalorder %s19, %s22
    %p31 = scmp.eq.s32.totalorder %s14, 1
    %p32 = por %p30, %p31
    %p33 = scmp.ne.s32.totalorder %s22, %s23
    %p34 = scmp.eq.s32.totalorder %s14, 0
    %p35 = por %p33, %p34
    %p36 = scmp.ne.s32.totalorder %s22, %s23
    %p37 = scmp.eq.s32.totalorder %s15, 1
    %p38 = por %p36, %p37
    %p40 = scmp.ne.s32.totalorder %s23, %s39
    %p41 = scmp.eq.s32.totalorder %s15, 0
    %p42 = por %p40, %p41
    %s44 = sadd.s32 %s43, 1
    %p47 = scmp.eq.s32.totalorder %s9, 1
    %p48 = scmp.ne.s32.totalorder %s43, %s45
    %p49 = scmp.eq.s32.totalorder %s9, 0
    %p50 = por %p48, %p49
    %p51 = scmp.ne.s32.totalorder %s43, %s45
    %p52 = scmp.eq.s32.totalorder %s14, 1
    %p53 = por %p51, %p52
    %p54 = scmp.ne.s32.totalorder %s45, %s46
    %p55 = scmp.eq.s32.totalorder %s14, 0
    %p56 = por %p54, %p55
    %p57 = scmp.ne.s32.totalorder %s45, %s46
    %p58 = scmp.eq.s32.totalorder %s15, 1
    %p59 = por %p57, %p58
    %p61 = scmp.ne.s32.totalorder %s46, %s60
    %p62 = scmp.eq.s32.totalorder %s15, 0
    %p63 = por %p61, %p62
    %s65 = sadd.s32 %s64, 1
    %p68 = scmp.eq.s32.totalorder %s9, 1
    %p69 = scmp.ne.s32.totalorder %s64, %s66
    %p70 = scmp.eq.s32.totalorder %s9, 0
    %p71 = por %p69, %p70
    %p72 = scmp.ne.s32.totalorder %s64, %s66
    %p73 = scmp.eq.s32.totalorder %s14, 1
    %p74 = por %p72, %p73
    %p75 = scmp.ne.s32.totalorder %s66, %s67
    %p76 = scmp.eq.s32.totalorder %s14, 0
    %p77 = por %p75, %p76
    %p78 = scmp.ne.s32.totalorder %s66, %s67
    %p79 = scmp.eq.s32.totalorder %s15, 1
    %p80 = por %p78, %p79
    %p82 = scmp.ne.s32.totalorder %s67, %s81
    %p83 = scmp.eq.s32.totalorder %s15, 0
    %p84 = por %p82, %p83
    %s85 = ssub.s32 %s9, %s16
    %p86 = scmp.eq.s32.totalorder %s85, 0
    %s88 = sadd.s32 %s87, 1
    %s89 = scalar_select %p86, %s87, %s88
    %p92 = pneg %p86
    %p93 = scmp.eq.s32.totalorder %s9, 1
    %p94 = por %p92, %p93
    %p95 = scmp.ne.s32.totalorder %s87, %s90
    %p96 = scmp.eq.s32.totalorder %s9, 0
    %p97 = por %p95, %p96
    %p98 = scmp.ne.s32.totalorder %s87, %s90
    %p99 = scmp.eq.s32.totalorder %s14, 1
    %p100 = por %p98, %p99
    %p101 = scmp.ne.s32.totalorder %s90, %s91
    %p102 = scmp.eq.s32.totalorder %s14, 0
    %p103 = por %p101, %p102
    %p104 = scmp.ne.s32.totalorder %s90, %s91
    %p105 = scmp.eq.s32.totalorder %s15, 1
    %p106 = por %p104, %p105
    %p108 = scmp.ne.s32.totalorder %s91, %s107
    %p109 = scmp.eq.s32.totalorder %s15, 0
    %p110 = por %p108, %p109
    %p111 = scmp.le.s32.totalorder 1, %s9
    %p112 = scmp.lt.s32.totalorder %s9, 3
    %p113 = pnand %p111, %p112
    %p114 = pneg %p113
    // Predicated region
    $region9: #{csrmbc_pallas.4} parent=5 // pred_check
      _
    $region10: #{csrmbc_pallas.4} parent=5 // pred_check_branch
      %116 = sbr.rel (%p113) target = $region12
    $region11: #{csrmbc_pallas.4} parent=5 // pred_region
      %s117 = ssub.s32 %s9, 1
      // Predicated region
      $region13: #{csrmbc_pallas.4} parent=11 // pred_check
        %p118 = pneg %p56
      $region14: #{csrmbc_pallas.4} parent=11 // pred_check_branch
        %120 = sbr.rel (%p118) target = $region16
      $region15: #{csrmbc_pallas.4} parent=11 // pred_region
        _
      $region16: #{csrmbc_pallas.4} parent=11 // pred_fallthru
        _
      // Predicated region
      $region17: #{csrmbc_pallas.4} parent=11 // pred_check
        %p121 = pneg %p77
      $region18: #{csrmbc_pallas.4} parent=11 // pred_check_branch
        %123 = sbr.rel (%p121) target = $region20
      $region19: #{csrmbc_pallas.4} parent=11 // pred_region
        _
      $region20: #{csrmbc_pallas.4} parent=11 // pred_fallthru
        _
    $region12: #{csrmbc_pallas.4} parent=5 // pred_fallthru
      _
    %p124 = scmp.lt.s32.totalorder %s9, 2
    // Predicated region
    $region21: #{csrmbc_pallas.4} parent=5 // pred_check
      %p125 = pneg %p124
    $region22: #{csrmbc_pallas.4} parent=5 // pred_check_branch
      %127 = sbr.rel (%p125) target = $region24
    $region23: #{csrmbc_pallas.4} parent=5 // pred_region
      // Predicated region
      $region25: #{csrmbc_pallas.4} parent=23 // pred_check
        %p128 = pneg %p29
      $region26: #{csrmbc_pallas.4} parent=23 // pred_check_branch
        %130 = sbr.rel (%p128) target = $region28
      $region27: #{csrmbc_pallas.4} parent=23 // pred_region
        %s131 = smul.u32 4, %s9
        %p132 = scmp.lt.s32.totalorder %s131, 7
        %s133 = scalar_select %p132, %s131, 7
        %s134 = smul.addr %s133, 7
        %s135 = smul.addr %s134, 8
        %s136 = scalar_lea.vmem %s0, %s135
        %s137 = smul.u32 4, %s9
      $region28: #{csrmbc_pallas.4} parent=23 // pred_fallthru
        _
    $region24: #{csrmbc_pallas.4} parent=5 // pred_fallthru
      _
    %p138 = scmp.le.s32.totalorder 1, %s9
    %p139 = scmp.lt.s32.totalorder %s9, 3
    %p140 = pnand %p138, %p139
    %p141 = pneg %p140
    // Predicated region
    $region29: #{csrmbc_pallas.4} parent=5 // pred_check
      _
    $region30: #{csrmbc_pallas.4} parent=5 // pred_check_branch
      %143 = sbr.rel (%p140) target = $region32
    $region31: #{csrmbc_pallas.4} parent=5 // pred_region
      %s144 = ssub.s32 %s9, 1
      %s145 = smul.u32 4, %s14
      %p146 = scmp.lt.s32.totalorder %s145, 7
      %s147 = scalar_select %p146, %s145, 7
      %s148 = smul.addr %s147, 7
      %s149 = smul.addr %s148, 8
      %s150 = scalar_lea.vmem %s0, %s149
      %p151 = pneg %p35
      %p152 = pneg %p32
      %p153 = pneg %p56
      %p154 = pneg %p53
      %p155 = pneg %p77
      %p156 = pneg %p74
      %p157 = pneg %p103
      %p158 = pneg %p100
      %s159 = smul.u32 4, %s14
      %p160 = scmp.lt.s32.totalorder %s159, 7
      %s161 = scalar_select %p160, %s159, 7
      %s162 = smul.addr %s161, 7
      %s163 = smul.addr %s162, 8
      %s164 = scalar_lea.vmem %s3, %s163
      %s165 = smul.u32 4, %s14
      %p166 = scmp.lt.s32.totalorder %s165, 7
      %s167 = scalar_select %p166, %s165, 7
      %s168 = smul.addr %s167, 7
      %s169 = smul.addr %s168, 8
      %s170 = scalar_lea.vmem %s0, %s169
      %s171 = smul.u32 4, %s14
      %s172 = smul.u32 4, %s14
      %p173 = scmp.lt.s32.totalorder %s172, 7
      %s174 = scalar_select %p173, %s172, 7
      %s175 = smul.addr %s174, 7
      %s176 = smul.addr %s175, 8
      %s177 = scalar_lea.vmem %s3, %s176
      %s178 = smul.u32 4, %s14
      %v179 = vld [vmem:[%s1] sm:$0xff]
      %v180 = vld [vmem:[%s1 + $0x8] sm:$0xff]
      %v181 = vld [vmem:[%s2] sm:$0x1]
      %v182 = vlaneseq
      %v183 = vand.u32 %v182, 127
      %vm184 = vcmp.ge.s32.totalorder %v183, 0
      %vm185 = vcmp.lt.s32.totalorder %v183, 8
      %vm186 = vmand %vm184, %vm185
      %v187 = vsel %vm186, 1, 0
      %v188 = vcvt.s32.f32 %v187
      %vm189 = vcmp.ge.s32.totalorder %v183, 8
      %vm190 = vcmp.lt.s32.totalorder %v183, 16
      %vm191 = vmand %vm189, %vm190
      %v192 = vsel %vm191, 1, 0
      %v193 = vcvt.s32.f32 %v192
      %v194 = vld [vmem:[%s170] sm:$0xff]
      %v195 = vld [vmem:[%s170 + $0x8] sm:$0xff]
      %v196 = vld [vmem:[%s170 + $0x10] sm:$0xff]
      %v197 = vld [vmem:[%s170 + $0x18] sm:$0xff]
      %v198 = vld [vmem:[%s170 + $0x20] sm:$0xff]
      %v199 = vld [vmem:[%s170 + $0x28] sm:$0xff]
      %v200 = vld [vmem:[%s170 + $0x30] sm:$0x1]
      %v202 = vlaneseq
      %v203 = vshrl.u32 %v202, 7
      %v204 = vsub.s32 0, %v203
      %v205 = vrot.slane %v181, %v204
      %vm207 = vcmask 130048
      %v209 = vsel %vm207, %v194, 0
      %v212 = vsel %vm207, %v195, 0
      %v215 = vsel %vm207, %v196, 0
      %v218 = vsel %vm207, %v197, 0
      %v221 = vsel %vm207, %v198, 0
      %v224 = vsel %vm207, %v199, 0
      %v227 = vsel %vm207, %v200, 0
      %229 = vmatprep.subr.mxu0 0.0
      %230 = vmatpush1.msra.mxu0 0.0
      %231 = vmatprep.subr.mxu0 0.0
      %232 = vmatpush1.msra.mxu0 0.0
      %233 = vmatprep.subr.mxu0 0.0
      %234 = vmatpush1.msra.mxu0 0.0
      %235 = vmatprep.subr.mxu0 0.0
      %236 = vmatpush1.msra.mxu0 0.0
      %237 = vmatprep.subr.mxu0 0.0
      %238 = vmatpush1.msra.mxu0 0.0
      %239 = vmatprep.subr.mxu0 0.0
      %240 = vmatpush1.msra.mxu0 0.0
      %241 = vmatprep.subr.mxu0 0.0
      %242 = vmatpush1.msra.mxu0 0.0
      %243 = vmatprep.subr.mxu0 0.0
      %244 = vmatpush1.msra.mxu0 0.0
      %245 = vmatprep.subr.mxu0 0.0
      %246 = vmatpush1.msra.mxu0 0.0
      %247 = vmatprep.subr.mxu0 0.0
      %248 = vmatpush1.msra.mxu0 0.0
      %249 = vmatprep.subr.mxu0 0.0
      %250 = vmatpush1.msra.mxu0 0.0
      %251 = vmatprep.subr.mxu0 0.0
      %252 = vmatpush1.msra.mxu0 0.0
      %253 = vmatprep.subr.mxu0 0.0
      %254 = vmatpush1.msra.mxu0 0.0
      %255 = vmatprep.subr.mxu0 0.0
      %256 = vmatpush1.msra.mxu0 0.0
      %257 = vmatprep.subr.mxu0 0.0
      %258 = vmatpush1.msra.mxu0 %v180
      %259 = vmatprep.subr.mxu0 0.0
      %260 = vmatpush1.msra.mxu0 %v179
      %261 = vmatprep.subr.mxu0 0.0
      %262 = vmatpush2.msra.mxu0 0.0
      %263 = vmatprep.subr.mxu0 0.0
      %264 = vmatpush2.msra.mxu0 0.0
      %265 = vmatprep.subr.mxu0 0.0
      %266 = vmatpush2.msra.mxu0 0.0
      %267 = vmatprep.subr.mxu0 0.0
      %268 = vmatpush2.msra.mxu0 0.0
      %269 = vmatprep.subr.mxu0 0.0
      %270 = vmatpush2.msra.mxu0 0.0
      %271 = vmatprep.subr.mxu0 0.0
      %272 = vmatpush2.msra.mxu0 0.0
      %273 = vmatprep.subr.mxu0 0.0
      %274 = vmatpush2.msra.mxu0 0.0
      %275 = vmatprep.subr.mxu0 0.0
      %276 = vmatpush2.msra.mxu0 0.0
      %277 = vmatprep.subr.mxu0 0.0
      %278 = vmatpush2.msra.mxu0 0.0
      %279 = vmatprep.subr.mxu0 0.0
      %280 = vmatpush2.msra.mxu0 0.0
      %281 = vmatprep.subr.mxu0 0.0
      %282 = vmatpush2.msra.mxu0 0.0
      %283 = vmatprep.subr.mxu0 0.0
      %284 = vmatpush2.msra.mxu0 0.0
      %285 = vmatprep.subr.mxu0 0.0
      %286 = vmatpush2.msra.mxu0 0.0
      %287 = vmatprep.subr.mxu0 0.0
      %288 = vmatpush2.msra.mxu0 0.0
      %289 = vmatprep.subr.mxu0 0.0
      %290 = vmatpush2.msra.mxu0 0.0
      %291 = vmatprep.subr.mxu0 0.0
      %292 = vmatpush2.msra.mxu0 0.0
      %293 = vmatprep.mubr.f32.mxu0 0.0
      %294 = vmatmul.mubr.f32.gmra.mxu0 %v209
      %v295 = vpop.f32.mrf.mxu0
      %v296 = vadd.f32 %v205, %v295
      %v297 = vpop.f32.mrf.mxu0
      %298 = vmatprep.mubr.f32.mxu0 0.0
      %299 = vmatmul.mubr.f32.gmra.mxu0 %v212
      %v300 = vpop.f32.mrf.mxu0
      %v301 = vadd.f32 %v205, %v300
      %v302 = vpop.f32.mrf.mxu0
      %303 = vmatprep.mubr.f32.mxu0 0.0
      %304 = vmatmul.mubr.f32.gmra.mxu0 %v215
      %v305 = vpop.f32.mrf.mxu0
      %v306 = vadd.f32 %v205, %v305
      %v307 = vpop.f32.mrf.mxu0
      %308 = vmatprep.mubr.f32.mxu0 0.0
      %309 = vmatmul.mubr.f32.gmra.mxu0 %v218
      %v310 = vpop.f32.mrf.mxu0
      %v311 = vadd.f32 %v205, %v310
      %v312 = vpop.f32.mrf.mxu0
      %313 = vmatprep.mubr.f32.mxu0 0.0
      %314 = vmatmul.mubr.f32.gmra.mxu0 %v221
      %v315 = vpop.f32.mrf.mxu0
      %v316 = vadd.f32 %v205, %v315
      %v317 = vpop.f32.mrf.mxu0
      %318 = vmatprep.mubr.f32.mxu0 0.0
      %319 = vmatmul.mubr.f32.gmra.mxu0 %v224
      %v320 = vpop.f32.mrf.mxu0
      %v321 = vadd.f32 %v205, %v320
      %v322 = vpop.f32.mrf.mxu0
      %323 = vmatprep.mubr.f32.mxu0 0.0
      %324 = vmatmul.mubr.f32.gmra.mxu0 %v227
      %v325 = vpop.f32.mrf.mxu0
      %v326 = vadd.f32 %v205, %v325
      %v327 = vpop.f32.mrf.mxu0
      %328 = vdwg.mxu0
      %v329 = vmax.f32 %v296, 0.0
      %v330 = vmax.f32 %v301, 0.0
      %v331 = vmax.f32 %v306, 0.0
      %v332 = vmax.f32 %v311, 0.0
      %v333 = vmax.f32 %v316, 0.0
      %v334 = vmax.f32 %v321, 0.0
      %v335 = vmax.f32 %v326, 0.0
      %v336 = vmul.f32 %v296, %v188
      %v337 = vmul.f32 %v301, %v188
      %v338 = vmul.f32 %v306, %v188
      %v339 = vmul.f32 %v311, %v188
      %v340 = vmul.f32 %v316, %v188
      %v341 = vmul.f32 %v321, %v188
      %v342 = vmul.f32 %v326, %v188
      %350 = vrot.lane.b32.xlu0 %v296, 112
      %v351 = vpop.permute.xlu0 %350
      %352 = vrot.lane.b32.xlu0 %v301, 112
      %v353 = vpop.permute.xlu0 %352
      %354 = vrot.lane.b32.xlu0 %v306, 112
      %v355 = vpop.permute.xlu0 %354
      %356 = vrot.lane.b32.xlu0 %v311, 112
      %v357 = vpop.permute.xlu0 %356
      %358 = vrot.lane.b32.xlu0 %v316, 112
      %v359 = vpop.permute.xlu0 %358
      %360 = vrot.lane.b32.xlu0 %v321, 112
      %v361 = vpop.permute.xlu0 %360
      %362 = vrot.lane.b32.xlu0 %v326, 112
      %v363 = vpop.permute.xlu0 %362
      %v365 = vsel %vm207, %v336, 0
      %v368 = vsel %vm207, %v337, 0
      %v371 = vsel %vm207, %v338, 0
      %v374 = vsel %vm207, %v339, 0
      %v377 = vsel %vm207, %v340, 0
      %v380 = vsel %vm207, %v341, 0
      %v383 = vsel %vm207, %v342, 0
      %v385 = vsel %vm207, %v351, 0
      %v387 = vsel %vm207, %v353, 0
      %v389 = vsel %vm207, %v355, 0
      %v391 = vsel %vm207, %v357, 0
      %v393 = vsel %vm207, %v359, 0
      %v395 = vsel %vm207, %v361, 0
      %v397 = vsel %vm207, %v363, 0
      %399 = vmatprep.subr.mxu0 0.0
      %400 = vmatpush1.xpose.msra.mxu0 0.0
      %401 = vmatprep.subr.mxu0 0.0
      %402 = vmatpush1.xpose.msra.mxu0 0.0
      %403 = vmatprep.subr.mxu0 0.0
      %404 = vmatpush1.xpose.msra.mxu0 0.0
      %405 = vmatprep.subr.mxu0 0.0
      %406 = vmatpush1.xpose.msra.mxu0 0.0
      %407 = vmatprep.subr.mxu0 0.0
      %408 = vmatpush1.xpose.msra.mxu0 0.0
      %409 = vmatprep.subr.mxu0 0.0
      %410 = vmatpush1.xpose.msra.mxu0 0.0
      %411 = vmatprep.subr.mxu0 0.0
      %412 = vmatpush1.xpose.msra.mxu0 0.0
      %413 = vmatprep.subr.mxu0 0.0
      %414 = vmatpush1.xpose.msra.mxu0 0.0
      %415 = vmatprep.subr.mxu0 0.0
      %416 = vmatpush1.xpose.msra.mxu0 0.0
      %417 = vmatprep.subr.mxu0 0.0
      %418 = vmatpush1.xpose.msra.mxu0 %v397
      %419 = vmatprep.subr.mxu0 0.0
      %420 = vmatpush1.xpose.msra.mxu0 %v395
      %421 = vmatprep.subr.mxu0 0.0
      %422 = vmatpush1.xpose.msra.mxu0 %v393
      %423 = vmatprep.subr.mxu0 0.0
      %424 = vmatpush1.xpose.msra.mxu0 %v391
      %425 = vmatprep.subr.mxu0 0.0
      %426 = vmatpush1.xpose.msra.mxu0 %v389
      %427 = vmatprep.subr.mxu0 0.0
      %428 = vmatpush1.xpose.msra.mxu0 %v387
      %429 = vmatprep.subr.mxu0 0.0
      %430 = vmatpush1.xpose.msra.mxu0 %v385
      %431 = vmatprep.subr.mxu0 0.0
      %432 = vmatpush2.xpose.msra.mxu0 0.0
      %433 = vmatprep.subr.mxu0 0.0
      %434 = vmatpush2.xpose.msra.mxu0 0.0
      %435 = vmatprep.subr.mxu0 0.0
      %436 = vmatpush2.xpose.msra.mxu0 0.0
      %437 = vmatprep.subr.mxu0 0.0
      %438 = vmatpush2.xpose.msra.mxu0 0.0
      %439 = vmatprep.subr.mxu0 0.0
      %440 = vmatpush2.xpose.msra.mxu0 0.0
      %441 = vmatprep.subr.mxu0 0.0
      %442 = vmatpush2.xpose.msra.mxu0 0.0
      %443 = vmatprep.subr.mxu0 0.0
      %444 = vmatpush2.xpose.msra.mxu0 0.0
      %445 = vmatprep.subr.mxu0 0.0
      %446 = vmatpush2.xpose.msra.mxu0 0.0
      %447 = vmatprep.subr.mxu0 0.0
      %448 = vmatpush2.xpose.msra.mxu0 0.0
      %449 = vmatprep.subr.mxu0 0.0
      %450 = vmatpush2.xpose.msra.mxu0 0.0
      %451 = vmatprep.subr.mxu0 0.0
      %452 = vmatpush2.xpose.msra.mxu0 0.0
      %453 = vmatprep.subr.mxu0 0.0
      %454 = vmatpush2.xpose.msra.mxu0 0.0
      %455 = vmatprep.subr.mxu0 0.0
      %456 = vmatpush2.xpose.msra.mxu0 0.0
      %457 = vmatprep.subr.mxu0 0.0
      %458 = vmatpush2.xpose.msra.mxu0 0.0
      %459 = vmatprep.subr.mxu0 0.0
      %460 = vmatpush2.xpose.msra.mxu0 0.0
      %461 = vmatprep.subr.mxu0 0.0
      %462 = vmatpush2.xpose.msra.mxu0 0.0
      %463 = vmatprep.mubr.f32.mxu0 0.0
      %464 = vmatmul.mubr.f32.gmra.mxu0 %v365
      %v465 = vpop.f32.mrf.mxu0
      %v466 = vadd.f32 0.0, %v465
      %v467 = vpop.f32.mrf.mxu0
      %468 = vmatprep.mubr.f32.mxu0 0.0
      %469 = vmatmul.mubr.f32.gmra.mxu0 %v368
      %v470 = vpop.f32.mrf.mxu0
      %v471 = vadd.f32 0.0, %v470
      %v472 = vpop.f32.mrf.mxu0
      %473 = vmatprep.mubr.f32.mxu0 0.0
      %474 = vmatmul.mubr.f32.gmra.mxu0 %v371
      %v475 = vpop.f32.mrf.mxu0
      %v476 = vadd.f32 0.0, %v475
      %v477 = vpop.f32.mrf.mxu0
      %478 = vmatprep.mubr.f32.mxu0 0.0
      %479 = vmatmul.mubr.f32.gmra.mxu0 %v374
      %v480 = vpop.f32.mrf.mxu0
      %v481 = vadd.f32 0.0, %v480
      %v482 = vpop.f32.mrf.mxu0
      %483 = vmatprep.mubr.f32.mxu0 0.0
      %484 = vmatmul.mubr.f32.gmra.mxu0 %v377
      %v485 = vpop.f32.mrf.mxu0
      %v486 = vadd.f32 0.0, %v485
      %v487 = vpop.f32.mrf.mxu0
      %488 = vmatprep.mubr.f32.mxu0 0.0
      %489 = vmatmul.mubr.f32.gmra.mxu0 %v380
      %v490 = vpop.f32.mrf.mxu0
      %v491 = vadd.f32 0.0, %v490
      %v492 = vpop.f32.mrf.mxu0
      %493 = vmatprep.mubr.f32.mxu0 0.0
      %494 = vmatmul.mubr.f32.gmra.mxu0 %v383
      %v495 = vpop.f32.mrf.mxu0
      %v496 = vadd.f32 0.0, %v495
      %v497 = vpop.f32.mrf.mxu0
      %498 = vdwg.mxu0
      %v499 = vmul.f32 %v466, 0.35355338
      %v500 = vmul.f32 %v471, 0.35355338
      %v501 = vmul.f32 %v476, 0.35355338
      %v502 = vmul.f32 %v481, 0.35355338
      %v503 = vmul.f32 %v486, 0.35355338
      %v504 = vmul.f32 %v491, 0.35355338
      %v505 = vmul.f32 %v496, 0.35355338
      %vm506 = vcmask 400384
      %v507 = vsel %vm506, %v499, -inf
      %508 = vmax.xlane.f32.xlu0 %v507
      %v509 = vpop.xlane.xlu0 %508
      %v510 = vsel %vm506, %v500, -inf
      %511 = vmax.xlane.f32.xlu0 %v510
      %v512 = vpop.xlane.xlu0 %511
      %v513 = vsel %vm506, %v501, -inf
      %514 = vmax.xlane.f32.xlu0 %v513
      %v515 = vpop.xlane.xlu0 %514
      %v516 = vsel %vm506, %v502, -inf
      %517 = vmax.xlane.f32.xlu0 %v516
      %v518 = vpop.xlane.xlu0 %517
      %v519 = vsel %vm506, %v503, -inf
      %520 = vmax.xlane.f32.xlu0 %v519
      %v521 = vpop.xlane.xlu0 %520
      %v522 = vsel %vm506, %v504, -inf
      %523 = vmax.xlane.f32.xlu0 %v522
      %v524 = vpop.xlane.xlu0 %523
      %vm525 = vcmask 393216
      %v526 = vsel %vm525, %v505, -inf
      %527 = vmax.xlane.f32.xlu0 %v526
      %v528 = vpop.xlane.xlu0 %527
      %v529 = vsub.f32 %v499, %v509
      %v530 = vsub.f32 %v500, %v512
      %v531 = vsub.f32 %v501, %v515
      %v532 = vsub.f32 %v502, %v518
      %v533 = vsub.f32 %v503, %v521
      %v534 = vsub.f32 %v504, %v524
      %v535 = vsub.f32 %v505, %v528
      %v536 = vmul.f32 %v529, 1.442695
      %v537 = vpow.pop %v536
      %v538 = vmul.f32 %v530, 1.442695
      %v539 = vpow.pop %v538
      %v540 = vmul.f32 %v531, 1.442695
      %v541 = vpow.pop %v540
      %v542 = vmul.f32 %v532, 1.442695
      %v543 = vpow.pop %v542
      %v544 = vmul.f32 %v533, 1.442695
      %v545 = vpow.pop %v544
      %v546 = vmul.f32 %v534, 1.442695
      %v547 = vpow.pop %v546
      %v548 = vmul.f32 %v535, 1.442695
      %v549 = vpow.pop %v548
      %v550 = vsel %vm506, %v537, 0.0
      %551 = vadd.xlane.f32.xlu0 %v550
      %v552 = vpop.xlane.xlu0 %551
      %v553 = vsel %vm506, %v539, 0.0
      %554 = vadd.xlane.f32.xlu0 %v553
      %v555 = vpop.xlane.xlu0 %554
      %v556 = vsel %vm506, %v541, 0.0
      %557 = vadd.xlane.f32.xlu0 %v556
      %v558 = vpop.xlane.xlu0 %557
      %v559 = vsel %vm506, %v543, 0.0
      %560 = vadd.xlane.f32.xlu0 %v559
      %v561 = vpop.xlane.xlu0 %560
      %v562 = vsel %vm506, %v545, 0.0
      %563 = vadd.xlane.f32.xlu0 %v562
      %v564 = vpop.xlane.xlu0 %563
      %v565 = vsel %vm506, %v547, 0.0
      %566 = vadd.xlane.f32.xlu0 %v565
      %v567 = vpop.xlane.xlu0 %566
      %v568 = vsel %vm525, %v549, 0.0
      %569 = vadd.xlane.f32.xlu0 %v568
      %v570 = vpop.xlane.xlu0 %569
      %v571 = vrcp.pop %v552
      %v572 = vmul.f32 %v537, %v571
      %v573 = vrcp.pop %v555
      %v574 = vmul.f32 %v539, %v573
      %v575 = vrcp.pop %v558
      %v576 = vmul.f32 %v541, %v575
      %v577 = vrcp.pop %v561
      %v578 = vmul.f32 %v543, %v577
      %v579 = vrcp.pop %v564
      %v580 = vmul.f32 %v545, %v579
      %v581 = vrcp.pop %v567
      %v582 = vmul.f32 %v547, %v581
      %v583 = vrcp.pop %v570
      %v584 = vmul.f32 %v549, %v583
      %586 = vrot.lane.b32.xlu0 %v188, 32
      %v587 = vpop.permute.xlu0 %586
      %v589 = vmul.f32 %v329, %v587
      %v590 = vmul.f32 %v330, %v587
      %v591 = vmul.f32 %v331, %v587
      %v592 = vmul.f32 %v332, %v587
      %v593 = vmul.f32 %v333, %v587
      %v594 = vmul.f32 %v334, %v587
      %v595 = vmul.f32 %v335, %v587
      %v596 = vmul.f32 %v296, %v193
      %v597 = vmul.f32 %v301, %v193
      %v598 = vmul.f32 %v306, %v193
      %v599 = vmul.f32 %v311, %v193
      %v600 = vmul.f32 %v316, %v193
      %v601 = vmul.f32 %v321, %v193
      %v602 = vmul.f32 %v326, %v193
      %v604 = vsel %vm207, %v596, 0
      %v607 = vsel %vm207, %v597, 0
      %v610 = vsel %vm207, %v598, 0
      %v613 = vsel %vm207, %v599, 0
      %v616 = vsel %vm207, %v600, 0
      %v619 = vsel %vm207, %v601, 0
      %v622 = vsel %vm207, %v602, 0
      %624 = vmatprep.subr.mxu0 0.0
      %625 = vmatpush1.xpose.msra.mxu0 0.0
      %626 = vmatprep.subr.mxu0 0.0
      %627 = vmatpush1.xpose.msra.mxu0 0.0
      %628 = vmatprep.subr.mxu0 0.0
      %629 = vmatpush1.xpose.msra.mxu0 0.0
      %630 = vmatprep.subr.mxu0 0.0
      %631 = vmatpush1.xpose.msra.mxu0 0.0
      %632 = vmatprep.subr.mxu0 0.0
      %633 = vmatpush1.xpose.msra.mxu0 0.0
      %634 = vmatprep.subr.mxu0 0.0
      %635 = vmatpush1.xpose.msra.mxu0 0.0
      %636 = vmatprep.subr.mxu0 0.0
      %637 = vmatpush1.xpose.msra.mxu0 0.0
      %638 = vmatprep.subr.mxu0 0.0
      %639 = vmatpush1.xpose.msra.mxu0 0.0
      %640 = vmatprep.subr.mxu0 0.0
      %641 = vmatpush1.xpose.msra.mxu0 0.0
      %642 = vmatprep.subr.mxu0 0.0
      %643 = vmatpush1.xpose.msra.mxu0 %v397
      %644 = vmatprep.subr.mxu0 0.0
      %645 = vmatpush1.xpose.msra.mxu0 %v395
      %646 = vmatprep.subr.mxu0 0.0
      %647 = vmatpush1.xpose.msra.mxu0 %v393
      %648 = vmatprep.subr.mxu0 0.0
      %649 = vmatpush1.xpose.msra.mxu0 %v391
      %650 = vmatprep.subr.mxu0 0.0
      %651 = vmatpush1.xpose.msra.mxu0 %v389
      %652 = vmatprep.subr.mxu0 0.0
      %653 = vmatpush1.xpose.msra.mxu0 %v387
      %654 = vmatprep.subr.mxu0 0.0
      %655 = vmatpush1.xpose.msra.mxu0 %v385
      %656 = vmatprep.subr.mxu0 0.0
      %657 = vmatpush2.xpose.msra.mxu0 0.0
      %658 = vmatprep.subr.mxu0 0.0
      %659 = vmatpush2.xpose.msra.mxu0 0.0
      %660 = vmatprep.subr.mxu0 0.0
      %661 = vmatpush2.xpose.msra.mxu0 0.0
      %662 = vmatprep.subr.mxu0 0.0
      %663 = vmatpush2.xpose.msra.mxu0 0.0
      %664 = vmatprep.subr.mxu0 0.0
      %665 = vmatpush2.xpose.msra.mxu0 0.0
      %666 = vmatprep.subr.mxu0 0.0
      %667 = vmatpush2.xpose.msra.mxu0 0.0
      %668 = vmatprep.subr.mxu0 0.0
      %669 = vmatpush2.xpose.msra.mxu0 0.0
      %670 = vmatprep.subr.mxu0 0.0
      %671 = vmatpush2.xpose.msra.mxu0 0.0
      %672 = vmatprep.subr.mxu0 0.0
      %673 = vmatpush2.xpose.msra.mxu0 0.0
      %674 = vmatprep.subr.mxu0 0.0
      %675 = vmatpush2.xpose.msra.mxu0 0.0
      %676 = vmatprep.subr.mxu0 0.0
      %677 = vmatpush2.xpose.msra.mxu0 0.0
      %678 = vmatprep.subr.mxu0 0.0
      %679 = vmatpush2.xpose.msra.mxu0 0.0
      %680 = vmatprep.subr.mxu0 0.0
      %681 = vmatpush2.xpose.msra.mxu0 0.0
      %682 = vmatprep.subr.mxu0 0.0
      %683 = vmatpush2.xpose.msra.mxu0 0.0
      %684 = vmatprep.subr.mxu0 0.0
      %685 = vmatpush2.xpose.msra.mxu0 0.0
      %686 = vmatprep.subr.mxu0 0.0
      %687 = vmatpush2.xpose.msra.mxu0 0.0
      %688 = vmatprep.mubr.f32.mxu0 0.0
      %689 = vmatmul.mubr.f32.gmra.mxu0 %v604
      %v690 = vpop.f32.mrf.mxu0
      %v691 = vadd.f32 0.0, %v690
      %v692 = vpop.f32.mrf.mxu0
      %693 = vmatprep.mubr.f32.mxu0 0.0
      %694 = vmatmul.mubr.f32.gmra.mxu0 %v607
      %v695 = vpop.f32.mrf.mxu0
      %v696 = vadd.f32 0.0, %v695
      %v697 = vpop.f32.mrf.mxu0
      %698 = vmatprep.mubr.f32.mxu0 0.0
      %699 = vmatmul.mubr.f32.gmra.mxu0 %v610
      %v700 = vpop.f32.mrf.mxu0
      %v701 = vadd.f32 0.0, %v700
      %v702 = vpop.f32.mrf.mxu0
      %703 = vmatprep.mubr.f32.mxu0 0.0
      %704 = vmatmul.mubr.f32.gmra.mxu0 %v613
      %v705 = vpop.f32.mrf.mxu0
      %v706 = vadd.f32 0.0, %v705
      %v707 = vpop.f32.mrf.mxu0
      %708 = vmatprep.mubr.f32.mxu0 0.0
      %709 = vmatmul.mubr.f32.gmra.mxu0 %v616
      %v710 = vpop.f32.mrf.mxu0
      %v711 = vadd.f32 0.0, %v710
      %v712 = vpop.f32.mrf.mxu0
      %713 = vmatprep.mubr.f32.mxu0 0.0
      %714 = vmatmul.mubr.f32.gmra.mxu0 %v619
      %v715 = vpop.f32.mrf.mxu0
      %v716 = vadd.f32 0.0, %v715
      %v717 = vpop.f32.mrf.mxu0
      %718 = vmatprep.mubr.f32.mxu0 0.0
      %719 = vmatmul.mubr.f32.gmra.mxu0 %v622
      %v720 = vpop.f32.mrf.mxu0
      %v721 = vadd.f32 0.0, %v720
      %v722 = vpop.f32.mrf.mxu0
      %723 = vdwg.mxu0
      %v724 = vmul.f32 %v691, 0.35355338
      %v725 = vmul.f32 %v696, 0.35355338
      %v726 = vmul.f32 %v701, 0.35355338
      %v727 = vmul.f32 %v706, 0.35355338
      %v728 = vmul.f32 %v711, 0.35355338
      %v729 = vmul.f32 %v716, 0.35355338
      %v730 = vmul.f32 %v721, 0.35355338
      %v731 = vsel %vm506, %v724, -inf
      %732 = vmax.xlane.f32.xlu0 %v731
      %v733 = vpop.xlane.xlu0 %732
      %v734 = vsel %vm506, %v725, -inf
      %735 = vmax.xlane.f32.xlu0 %v734
      %v736 = vpop.xlane.xlu0 %735
      %v737 = vsel %vm506, %v726, -inf
      %738 = vmax.xlane.f32.xlu0 %v737
      %v739 = vpop.xlane.xlu0 %738
      %v740 = vsel %vm506, %v727, -inf
      %741 = vmax.xlane.f32.xlu0 %v740
      %v742 = vpop.xlane.xlu0 %741
      %v743 = vsel %vm506, %v728, -inf
      %744 = vmax.xlane.f32.xlu0 %v743
      %v745 = vpop.xlane.xlu0 %744
      %v746 = vsel %vm506, %v729, -inf
      %747 = vmax.xlane.f32.xlu0 %v746
      %v748 = vpop.xlane.xlu0 %747
      %v749 = vsel %vm525, %v730, -inf
      %750 = vmax.xlane.f32.xlu0 %v749
      %v751 = vpop.xlane.xlu0 %750
      %v752 = vsub.f32 %v724, %v733
      %v753 = vsub.f32 %v725, %v736
      %v754 = vsub.f32 %v726, %v739
      %v755 = vsub.f32 %v727, %v742
      %v756 = vsub.f32 %v728, %v745
      %v757 = vsub.f32 %v729, %v748
      %v758 = vsub.f32 %v730, %v751
      %v759 = vmul.f32 %v752, 1.442695
      %v760 = vpow.pop %v759
      %v761 = vmul.f32 %v753, 1.442695
      %v762 = vpow.pop %v761
      %v763 = vmul.f32 %v754, 1.442695
      %v764 = vpow.pop %v763
      %v765 = vmul.f32 %v755, 1.442695
      %v766 = vpow.pop %v765
      %v767 = vmul.f32 %v756, 1.442695
      %v768 = vpow.pop %v767
      %v769 = vmul.f32 %v757, 1.442695
      %v770 = vpow.pop %v769
      %v771 = vmul.f32 %v758, 1.442695
      %v772 = vpow.pop %v771
      %v773 = vsel %vm506, %v760, 0.0
      %774 = vadd.xlane.f32.xlu0 %v773
      %v775 = vpop.xlane.xlu0 %774
      %v776 = vsel %vm506, %v762, 0.0
      %777 = vadd.xlane.f32.xlu0 %v776
      %v778 = vpop.xlane.xlu0 %777
      %v779 = vsel %vm506, %v764, 0.0
      %780 = vadd.xlane.f32.xlu0 %v779
      %v781 = vpop.xlane.xlu0 %780
      %v782 = vsel %vm506, %v766, 0.0
      %783 = vadd.xlane.f32.xlu0 %v782
      %v784 = vpop.xlane.xlu0 %783
      %v785 = vsel %vm506, %v768, 0.0
      %786 = vadd.xlane.f32.xlu0 %v785
      %v787 = vpop.xlane.xlu0 %786
      %v788 = vsel %vm506, %v770, 0.0
      %789 = vadd.xlane.f32.xlu0 %v788
      %v790 = vpop.xlane.xlu0 %789
      %v791 = vsel %vm525, %v772, 0.0
      %792 = vadd.xlane.f32.xlu0 %v791
      %v793 = vpop.xlane.xlu0 %792
      %v794 = vrcp.pop %v775
      %v795 = vmul.f32 %v760, %v794
      %v796 = vrcp.pop %v778
      %v797 = vmul.f32 %v762, %v796
      %v798 = vrcp.pop %v781
      %v799 = vmul.f32 %v764, %v798
      %v800 = vrcp.pop %v784
      %v801 = vmul.f32 %v766, %v800
      %v802 = vrcp.pop %v787
      %v803 = vmul.f32 %v768, %v802
      %v804 = vrcp.pop %v790
      %v805 = vmul.f32 %v770, %v804
      %v806 = vrcp.pop %v793
      %v807 = vmul.f32 %v772, %v806
      %809 = vrot.lane.b32.xlu0 %v193, 32
      %v810 = vpop.permute.xlu0 %809
      %v812 = vmul.f32 %v329, %v810
      %v813 = vmul.f32 %v330, %v810
      %v814 = vmul.f32 %v331, %v810
      %v815 = vmul.f32 %v332, %v810
      %v816 = vmul.f32 %v333, %v810
      %v817 = vmul.f32 %v334, %v810
      %v818 = vmul.f32 %v335, %v810
      %826 = vrot.lane.b32.xlu0 %v812, 96
      %v827 = vpop.permute.xlu0 %826
      %828 = vrot.lane.b32.xlu0 %v813, 96
      %v829 = vpop.permute.xlu0 %828
      %830 = vrot.lane.b32.xlu0 %v814, 96
      %v831 = vpop.permute.xlu0 %830
      %832 = vrot.lane.b32.xlu0 %v815, 96
      %v833 = vpop.permute.xlu0 %832
      %834 = vrot.lane.b32.xlu0 %v816, 96
      %v835 = vpop.permute.xlu0 %834
      %836 = vrot.lane.b32.xlu0 %v817, 96
      %v837 = vpop.permute.xlu0 %836
      %838 = vrot.lane.b32.xlu0 %v818, 96
      %v839 = vpop.permute.xlu0 %838
      %v847 = vsel %vm506, %v795, 0
      %v850 = vsel %vm506, %v797, 0
      %v853 = vsel %vm506, %v799, 0
      %v856 = vsel %vm506, %v801, 0
      %v859 = vsel %vm506, %v803, 0
      %v862 = vsel %vm506, %v805, 0
      %v865 = vsel %vm506, %v807, 0
      %vm867 = vcmask 1040384
      %v868 = vsel %vm867, %v839, 0
      %870 = vmatprep.subr.mxu0 0.0
      %871 = vmatpush1.msra.mxu0 0.0
      %872 = vmatprep.subr.mxu0 0.0
      %873 = vmatpush1.msra.mxu0 0.0
      %874 = vmatprep.subr.mxu0 0.0
      %875 = vmatpush1.msra.mxu0 0.0
      %876 = vmatprep.subr.mxu0 0.0
      %877 = vmatpush1.msra.mxu0 0.0
      %878 = vmatprep.subr.mxu0 0.0
      %879 = vmatpush1.msra.mxu0 0.0
      %880 = vmatprep.subr.mxu0 0.0
      %881 = vmatpush1.msra.mxu0 0.0
      %882 = vmatprep.subr.mxu0 0.0
      %883 = vmatpush1.msra.mxu0 0.0
      %884 = vmatprep.subr.mxu0 0.0
      %885 = vmatpush1.msra.mxu0 0.0
      %886 = vmatprep.subr.mxu0 0.0
      %887 = vmatpush1.msra.mxu0 0.0
      %888 = vmatprep.subr.mxu0 0.0
      %889 = vmatpush1.msra.mxu0 %v868
      %890 = vmatprep.subr.mxu0 0.0
      %891 = vmatpush1.msra.mxu0 %v837
      %892 = vmatprep.subr.mxu0 0.0
      %893 = vmatpush1.msra.mxu0 %v835
      %894 = vmatprep.subr.mxu0 0.0
      %895 = vmatpush1.msra.mxu0 %v833
      %896 = vmatprep.subr.mxu0 0.0
      %897 = vmatpush1.msra.mxu0 %v831
      %898 = vmatprep.subr.mxu0 0.0
      %899 = vmatpush1.msra.mxu0 %v829
      %900 = vmatprep.subr.mxu0 0.0
      %901 = vmatpush1.msra.mxu0 %v827
      %902 = vmatprep.subr.mxu0 0.0
      %903 = vmatpush2.msra.mxu0 0.0
      %904 = vmatprep.subr.mxu0 0.0
      %905 = vmatpush2.msra.mxu0 0.0
      %906 = vmatprep.subr.mxu0 0.0
      %907 = vmatpush2.msra.mxu0 0.0
      %908 = vmatprep.subr.mxu0 0.0
      %909 = vmatpush2.msra.mxu0 0.0
      %910 = vmatprep.subr.mxu0 0.0
      %911 = vmatpush2.msra.mxu0 0.0
      %912 = vmatprep.subr.mxu0 0.0
      %913 = vmatpush2.msra.mxu0 0.0
      %914 = vmatprep.subr.mxu0 0.0
      %915 = vmatpush2.msra.mxu0 0.0
      %916 = vmatprep.subr.mxu0 0.0
      %917 = vmatpush2.msra.mxu0 0.0
      %918 = vmatprep.subr.mxu0 0.0
      %919 = vmatpush2.msra.mxu0 0.0
      %920 = vmatprep.subr.mxu0 0.0
      %921 = vmatpush2.msra.mxu0 0.0
      %922 = vmatprep.subr.mxu0 0.0
      %923 = vmatpush2.msra.mxu0 0.0
      %924 = vmatprep.subr.mxu0 0.0
      %925 = vmatpush2.msra.mxu0 0.0
      %926 = vmatprep.subr.mxu0 0.0
      %927 = vmatpush2.msra.mxu0 0.0
      %928 = vmatprep.subr.mxu0 0.0
      %929 = vmatpush2.msra.mxu0 0.0
      %930 = vmatprep.subr.mxu0 0.0
      %931 = vmatpush2.msra.mxu0 0.0
      %932 = vmatprep.subr.mxu0 0.0
      %933 = vmatpush2.msra.mxu0 0.0
      %934 = vmatprep.mubr.f32.mxu0 0.0
      %935 = vmatmul.mubr.f32.gmra.mxu0 %v847
      %v936 = vpop.f32.mrf.mxu0
      %v937 = vadd.f32 0.0, %v936
      %v938 = vpop.f32.mrf.mxu0
      %939 = vmatprep.mubr.f32.mxu0 0.0
      %940 = vmatmul.mubr.f32.gmra.mxu0 %v850
      %v941 = vpop.f32.mrf.mxu0
      %v942 = vadd.f32 0.0, %v941
      %v943 = vpop.f32.mrf.mxu0
      %944 = vmatprep.mubr.f32.mxu0 0.0
      %945 = vmatmul.mubr.f32.gmra.mxu0 %v853
      %v946 = vpop.f32.mrf.mxu0
      %v947 = vadd.f32 0.0, %v946
      %v948 = vpop.f32.mrf.mxu0
      %949 = vmatprep.mubr.f32.mxu0 0.0
      %950 = vmatmul.mubr.f32.gmra.mxu0 %v856
      %v951 = vpop.f32.mrf.mxu0
      %v952 = vadd.f32 0.0, %v951
      %v953 = vpop.f32.mrf.mxu0
      %954 = vmatprep.mubr.f32.mxu0 0.0
      %955 = vmatmul.mubr.f32.gmra.mxu0 %v859
      %v956 = vpop.f32.mrf.mxu0
      %v957 = vadd.f32 0.0, %v956
      %v958 = vpop.f32.mrf.mxu0
      %959 = vmatprep.mubr.f32.mxu0 0.0
      %960 = vmatmul.mubr.f32.gmra.mxu0 %v862
      %v961 = vpop.f32.mrf.mxu0
      %v962 = vadd.f32 0.0, %v961
      %v963 = vpop.f32.mrf.mxu0
      %964 = vmatprep.mubr.f32.mxu0 0.0
      %965 = vmatmul.mubr.f32.gmra.mxu0 %v865
      %v966 = vpop.f32.mrf.mxu0
      %v967 = vadd.f32 0.0, %v966
      %v968 = vpop.f32.mrf.mxu0
      %969 = vdwg.mxu0
      %977 = vrot.lane.b32.xlu0 %v589, 96
      %v978 = vpop.permute.xlu0 %977
      %979 = vrot.lane.b32.xlu0 %v590, 96
      %v980 = vpop.permute.xlu0 %979
      %981 = vrot.lane.b32.xlu0 %v591, 96
      %v982 = vpop.permute.xlu0 %981
      %983 = vrot.lane.b32.xlu0 %v592, 96
      %v984 = vpop.permute.xlu0 %983
      %985 = vrot.lane.b32.xlu0 %v593, 96
      %v986 = vpop.permute.xlu0 %985
      %987 = vrot.lane.b32.xlu0 %v594, 96
      %v988 = vpop.permute.xlu0 %987
      %989 = vrot.lane.b32.xlu0 %v595, 96
      %v990 = vpop.permute.xlu0 %989
      %v998 = vsel %vm506, %v572, 0
      %v1001 = vsel %vm506, %v574, 0
      %v1004 = vsel %vm506, %v576, 0
      %v1007 = vsel %vm506, %v578, 0
      %v1010 = vsel %vm506, %v580, 0
      %v1013 = vsel %vm506, %v582, 0
      %v1016 = vsel %vm506, %v584, 0
      %v1018 = vsel %vm867, %v990, 0
      %1020 = vmatprep.subr.mxu0 0.0
      %1021 = vmatpush1.msra.mxu0 0.0
      %1022 = vmatprep.subr.mxu0 0.0
      %1023 = vmatpush1.msra.mxu0 0.0
      %1024 = vmatprep.subr.mxu0 0.0
      %1025 = vmatpush1.msra.mxu0 0.0
      %1026 = vmatprep.subr.mxu0 0.0
      %1027 = vmatpush1.msra.mxu0 0.0
      %1028 = vmatprep.subr.mxu0 0.0
      %1029 = vmatpush1.msra.mxu0 0.0
      %1030 = vmatprep.subr.mxu0 0.0
      %1031 = vmatpush1.msra.mxu0 0.0
      %1032 = vmatprep.subr.mxu0 0.0
      %1033 = vmatpush1.msra.mxu0 0.0
      %1034 = vmatprep.subr.mxu0 0.0
      %1035 = vmatpush1.msra.mxu0 0.0
      %1036 = vmatprep.subr.mxu0 0.0
      %1037 = vmatpush1.msra.mxu0 0.0
      %1038 = vmatprep.subr.mxu0 0.0
      %1039 = vmatpush1.msra.mxu0 %v1018
      %1040 = vmatprep.subr.mxu0 0.0
      %1041 = vmatpush1.msra.mxu0 %v988
      %1042 = vmatprep.subr.mxu0 0.0
      %1043 = vmatpush1.msra.mxu0 %v986
      %1044 = vmatprep.subr.mxu0 0.0
      %1045 = vmatpush1.msra.mxu0 %v984
      %1046 = vmatprep.subr.mxu0 0.0
      %1047 = vmatpush1.msra.mxu0 %v982
      %1048 = vmatprep.subr.mxu0 0.0
      %1049 = vmatpush1.msra.mxu0 %v980
      %1050 = vmatprep.subr.mxu0 0.0
      %1051 = vmatpush1.msra.mxu0 %v978
      %1052 = vmatprep.subr.mxu0 0.0
      %1053 = vmatpush2.msra.mxu0 0.0
      %1054 = vmatprep.subr.mxu0 0.0
      %1055 = vmatpush2.msra.mxu0 0.0
      %1056 = vmatprep.subr.mxu0 0.0
      %1057 = vmatpush2.msra.mxu0 0.0
      %1058 = vmatprep.subr.mxu0 0.0
      %1059 = vmatpush2.msra.mxu0 0.0
      %1060 = vmatprep.subr.mxu0 0.0
      %1061 = vmatpush2.msra.mxu0 0.0
      %1062 = vmatprep.subr.mxu0 0.0
      %1063 = vmatpush2.msra.mxu0 0.0
      %1064 = vmatprep.subr.mxu0 0.0
      %1065 = vmatpush2.msra.mxu0 0.0
      %1066 = vmatprep.subr.mxu0 0.0
      %1067 = vmatpush2.msra.mxu0 0.0
      %1068 = vmatprep.subr.mxu0 0.0
      %1069 = vmatpush2.msra.mxu0 0.0
      %1070 = vmatprep.subr.mxu0 0.0
      %1071 = vmatpush2.msra.mxu0 0.0
      %1072 = vmatprep.subr.mxu0 0.0
      %1073 = vmatpush2.msra.mxu0 0.0
      %1074 = vmatprep.subr.mxu0 0.0
      %1075 = vmatpush2.msra.mxu0 0.0
      %1076 = vmatprep.subr.mxu0 0.0
      %1077 = vmatpush2.msra.mxu0 0.0
      %1078 = vmatprep.subr.mxu0 0.0
      %1079 = vmatpush2.msra.mxu0 0.0
      %1080 = vmatprep.subr.mxu0 0.0
      %1081 = vmatpush2.msra.mxu0 0.0
      %1082 = vmatprep.subr.mxu0 0.0
      %1083 = vmatpush2.msra.mxu0 0.0
      %1084 = vmatprep.mubr.f32.mxu0 0.0
      %1085 = vmatmul.mubr.f32.gmra.mxu0 %v998
      %v1086 = vpop.f32.mrf.mxu0
      %v1087 = vadd.f32 %v937, %v1086
      %v1088 = vpop.f32.mrf.mxu0
      %1089 = vmatprep.mubr.f32.mxu0 0.0
      %1090 = vmatmul.mubr.f32.gmra.mxu0 %v1001
      %v1091 = vpop.f32.mrf.mxu0
      %v1092 = vadd.f32 %v942, %v1091
      %v1093 = vpop.f32.mrf.mxu0
      %1094 = vmatprep.mubr.f32.mxu0 0.0
      %1095 = vmatmul.mubr.f32.gmra.mxu0 %v1004
      %v1096 = vpop.f32.mrf.mxu0
      %v1097 = vadd.f32 %v947, %v1096
      %v1098 = vpop.f32.mrf.mxu0
      %1099 = vmatprep.mubr.f32.mxu0 0.0
      %1100 = vmatmul.mubr.f32.gmra.mxu0 %v1007
      %v1101 = vpop.f32.mrf.mxu0
      %v1102 = vadd.f32 %v952, %v1101
      %v1103 = vpop.f32.mrf.mxu0
      %1104 = vmatprep.mubr.f32.mxu0 0.0
      %1105 = vmatmul.mubr.f32.gmra.mxu0 %v1010
      %v1106 = vpop.f32.mrf.mxu0
      %v1107 = vadd.f32 %v957, %v1106
      %v1108 = vpop.f32.mrf.mxu0
      %1109 = vmatprep.mubr.f32.mxu0 0.0
      %1110 = vmatmul.mubr.f32.gmra.mxu0 %v1013
      %v1111 = vpop.f32.mrf.mxu0
      %v1112 = vadd.f32 %v962, %v1111
      %v1113 = vpop.f32.mrf.mxu0
      %1114 = vmatprep.mubr.f32.mxu0 0.0
      %1115 = vmatmul.mubr.f32.gmra.mxu0 %v1016
      %v1116 = vpop.f32.mrf.mxu0
      %v1117 = vadd.f32 %v967, %v1116
      %v1118 = vpop.f32.mrf.mxu0
      %1119 = vdwg.mxu0
      %1120 = vst.msk [vmem:[%s177] sm:$0xff] %vm207, %v1087
      %1121 = vst.msk [vmem:[%s177 + $0x8] sm:$0xff] %vm207, %v1092
      %1122 = vst.msk [vmem:[%s177 + $0x10] sm:$0xff] %vm207, %v1097
      %1123 = vst.msk [vmem:[%s177 + $0x18] sm:$0xff] %vm207, %v1102
      %1124 = vst.msk [vmem:[%s177 + $0x20] sm:$0xff] %vm207, %v1107
      %1125 = vst.msk [vmem:[%s177 + $0x28] sm:$0xff] %vm207, %v1112
      %vm1126 = vcmask 122880
      %1127 = vst.msk [vmem:[%s177 + $0x30] sm:$0x1] %vm1126, %v1117
      %s1128 = scalar_lea.vmem %s170, 56
      %v1129 = vld [vmem:[%s1128] sm:$0xff]
      %v1130 = vld [vmem:[%s1128 + $0x8] sm:$0xff]
      %v1131 = vld [vmem:[%s1128 + $0x10] sm:$0xff]
      %v1132 = vld [vmem:[%s1128 + $0x18] sm:$0xff]
      %v1133 = vld [vmem:[%s1128 + $0x20] sm:$0xff]
      %v1134 = vld [vmem:[%s1128 + $0x28] sm:$0xff]
      %v1135 = vld [vmem:[%s1128 + $0x30] sm:$0x1]
      %v1137 = vsel %vm207, %v1129, 0
      %v1140 = vsel %vm207, %v1130, 0
      %v1143 = vsel %vm207, %v1131, 0
      %v1146 = vsel %vm207, %v1132, 0
      %v1149 = vsel %vm207, %v1133, 0
      %v1152 = vsel %vm207, %v1134, 0
      %v1155 = vsel %vm207, %v1135, 0
      %1157 = vmatprep.subr.mxu0 0.0
      %1158 = vmatpush1.msra.mxu0 0.0
      %1159 = vmatprep.subr.mxu0 0.0
      %1160 = vmatpush1.msra.mxu0 0.0
      %1161 = vmatprep.subr.mxu0 0.0
      %1162 = vmatpush1.msra.mxu0 0.0
      %1163 = vmatprep.subr.mxu0 0.0
      %1164 = vmatpush1.msra.mxu0 0.0
      %1165 = vmatprep.subr.mxu0 0.0
      %1166 = vmatpush1.msra.mxu0 0.0
      %1167 = vmatprep.subr.mxu0 0.0
      %1168 = vmatpush1.msra.mxu0 0.0
      %1169 = vmatprep.subr.mxu0 0.0
      %1170 = vmatpush1.msra.mxu0 0.0
      %1171 = vmatprep.subr.mxu0 0.0
      %1172 = vmatpush1.msra.mxu0 0.0
      %1173 = vmatprep.subr.mxu0 0.0
      %1174 = vmatpush1.msra.mxu0 0.0
      %1175 = vmatprep.subr.mxu0 0.0
      %1176 = vmatpush1.msra.mxu0 0.0
      %1177 = vmatprep.subr.mxu0 0.0
      %1178 = vmatpush1.msra.mxu0 0.0
      %1179 = vmatprep.subr.mxu0 0.0
      %1180 = vmatpush1.msra.mxu0 0.0
      %1181 = vmatprep.subr.mxu0 0.0
      %1182 = vmatpush1.msra.mxu0 0.0
      %1183 = vmatprep.subr.mxu0 0.0
      %1184 = vmatpush1.msra.mxu0 0.0
      %1185 = vmatprep.subr.mxu0 0.0
      %1186 = vmatpush1.msra.mxu0 %v180
      %1187 = vmatprep.subr.mxu0 0.0
      %1188 = vmatpush1.msra.mxu0 %v179
      %1189 = vmatprep.subr.mxu0 0.0
      %1190 = vmatpush2.msra.mxu0 0.0
      %1191 = vmatprep.subr.mxu0 0.0
      %1192 = vmatpush2.msra.mxu0 0.0
      %1193 = vmatprep.subr.mxu0 0.0
      %1194 = vmatpush2.msra.mxu0 0.0
      %1195 = vmatprep.subr.mxu0 0.0
      %1196 = vmatpush2.msra.mxu0 0.0
      %1197 = vmatprep.subr.mxu0 0.0
      %1198 = vmatpush2.msra.mxu0 0.0
      %1199 = vmatprep.subr.mxu0 0.0
      %1200 = vmatpush2.msra.mxu0 0.0
      %1201 = vmatprep.subr.mxu0 0.0
      %1202 = vmatpush2.msra.mxu0 0.0
      %1203 = vmatprep.subr.mxu0 0.0
      %1204 = vmatpush2.msra.mxu0 0.0
      %1205 = vmatprep.subr.mxu0 0.0
      %1206 = vmatpush2.msra.mxu0 0.0
      %1207 = vmatprep.subr.mxu0 0.0
      %1208 = vmatpush2.msra.mxu0 0.0
      %1209 = vmatprep.subr.mxu0 0.0
      %1210 = vmatpush2.msra.mxu0 0.0
      %1211 = vmatprep.subr.mxu0 0.0
      %1212 = vmatpush2.msra.mxu0 0.0
      %1213 = vmatprep.subr.mxu0 0.0
      %1214 = vmatpush2.msra.mxu0 0.0
      %1215 = vmatprep.subr.mxu0 0.0
      %1216 = vmatpush2.msra.mxu0 0.0
      %1217 = vmatprep.subr.mxu0 0.0
      %1218 = vmatpush2.msra.mxu0 0.0
      %1219 = vmatprep.subr.mxu0 0.0
      %1220 = vmatpush2.msra.mxu0 0.0
      %1221 = vmatprep.mubr.f32.mxu0 0.0
      %1222 = vmatmul.mubr.f32.gmra.mxu0 %v1137
      %v1223 = vpop.f32.mrf.mxu0
      %v1224 = vadd.f32 %v205, %v1223
      %v1225 = vpop.f32.mrf.mxu0
      %1226 = vmatprep.mubr.f32.mxu0 0.0
      %1227 = vmatmul.mubr.f32.gmra.mxu0 %v1140
      %v1228 = vpop.f32.mrf.mxu0
      %v1229 = vadd.f32 %v205, %v1228
      %v1230 = vpop.f32.mrf.mxu0
      %1231 = vmatprep.mubr.f32.mxu0 0.0
      %1232 = vmatmul.mubr.f32.gmra.mxu0 %v1143
      %v1233 = vpop.f32.mrf.mxu0
      %v1234 = vadd.f32 %v205, %v1233
      %v1235 = vpop.f32.mrf.mxu0
      %1236 = vmatprep.mubr.f32.mxu0 0.0
      %1237 = vmatmul.mubr.f32.gmra.mxu0 %v1146
      %v1238 = vpop.f32.mrf.mxu0
      %v1239 = vadd.f32 %v205, %v1238
      %v1240 = vpop.f32.mrf.mxu0
      %1241 = vmatprep.mubr.f32.mxu0 0.0
      %1242 = vmatmul.mubr.f32.gmra.mxu0 %v1149
      %v1243 = vpop.f32.mrf.mxu0
      %v1244 = vadd.f32 %v205, %v1243
      %v1245 = vpop.f32.mrf.mxu0
      %1246 = vmatprep.mubr.f32.mxu0 0.0
      %1247 = vmatmul.mubr.f32.gmra.mxu0 %v1152
      %v1248 = vpop.f32.mrf.mxu0
      %v1249 = vadd.f32 %v205, %v1248
      %v1250 = vpop.f32.mrf.mxu0
      %1251 = vmatprep.mubr.f32.mxu0 0.0
      %1252 = vmatmul.mubr.f32.gmra.mxu0 %v1155
      %v1253 = vpop.f32.mrf.mxu0
      %v1254 = vadd.f32 %v205, %v1253
      %v1255 = vpop.f32.mrf.mxu0
      %1256 = vdwg.mxu0
      %v1257 = vmax.f32 %v1224, 0.0
      %v1258 = vmax.f32 %v1229, 0.0
      %v1259 = vmax.f32 %v1234, 0.0
      %v1260 = vmax.f32 %v1239, 0.0
      %v1261 = vmax.f32 %v1244, 0.0
      %v1262 = vmax.f32 %v1249, 0.0
      %v1263 = vmax.f32 %v1254, 0.0
      %v1264 = vmul.f32 %v1224, %v188
      %v1265 = vmul.f32 %v1229, %v188
      %v1266 = vmul.f32 %v1234, %v188
      %v1267 = vmul.f32 %v1239, %v188
      %v1268 = vmul.f32 %v1244, %v188
      %v1269 = vmul.f32 %v1249, %v188
      %v1270 = vmul.f32 %v1254, %v188
      %1278 = vrot.lane.b32.xlu0 %v1224, 112
      %v1279 = vpop.permute.xlu0 %1278
      %1280 = vrot.lane.b32.xlu0 %v1229, 112
      %v1281 = vpop.permute.xlu0 %1280
      %1282 = vrot.lane.b32.xlu0 %v1234, 112
      %v1283 = vpop.permute.xlu0 %1282
      %1284 = vrot.lane.b32.xlu0 %v1239, 112
      %v1285 = vpop.permute.xlu0 %1284
      %1286 = vrot.lane.b32.xlu0 %v1244, 112
      %v1287 = vpop.permute.xlu0 %1286
      %1288 = vrot.lane.b32.xlu0 %v1249, 112
      %v1289 = vpop.permute.xlu0 %1288
      %1290 = vrot.lane.b32.xlu0 %v1254, 112
      %v1291 = vpop.permute.xlu0 %1290
      %v1293 = vsel %vm207, %v1264, 0
      %v1296 = vsel %vm207, %v1265, 0
      %v1299 = vsel %vm207, %v1266, 0
      %v1302 = vsel %vm207, %v1267, 0
      %v1305 = vsel %vm207, %v1268, 0
      %v1308 = vsel %vm207, %v1269, 0
      %v1311 = vsel %vm207, %v1270, 0
      %v1313 = vsel %vm207, %v1279, 0
      %v1315 = vsel %vm207, %v1281, 0
      %v1317 = vsel %vm207, %v1283, 0
      %v1319 = vsel %vm207, %v1285, 0
      %v1321 = vsel %vm207, %v1287, 0
      %v1323 = vsel %vm207, %v1289, 0
      %v1325 = vsel %vm207, %v1291, 0
      %1327 = vmatprep.subr.mxu0 0.0
      %1328 = vmatpush1.xpose.msra.mxu0 0.0
      %1329 = vmatprep.subr.mxu0 0.0
      %1330 = vmatpush1.xpose.msra.mxu0 0.0
      %1331 = vmatprep.subr.mxu0 0.0
      %1332 = vmatpush1.xpose.msra.mxu0 0.0
      %1333 = vmatprep.subr.mxu0 0.0
      %1334 = vmatpush1.xpose.msra.mxu0 0.0
      %1335 = vmatprep.subr.mxu0 0.0
      %1336 = vmatpush1.xpose.msra.mxu0 0.0
      %1337 = vmatprep.subr.mxu0 0.0
      %1338 = vmatpush1.xpose.msra.mxu0 0.0
      %1339 = vmatprep.subr.mxu0 0.0
      %1340 = vmatpush1.xpose.msra.mxu0 0.0
      %1341 = vmatprep.subr.mxu0 0.0
      %1342 = vmatpush1.xpose.msra.mxu0 0.0
      %1343 = vmatprep.subr.mxu0 0.0
      %1344 = vmatpush1.xpose.msra.mxu0 0.0
      %1345 = vmatprep.subr.mxu0 0.0
      %1346 = vmatpush1.xpose.msra.mxu0 %v1325
      %1347 = vmatprep.subr.mxu0 0.0
      %1348 = vmatpush1.xpose.msra.mxu0 %v1323
      %1349 = vmatprep.subr.mxu0 0.0
      %1350 = vmatpush1.xpose.msra.mxu0 %v1321
      %1351 = vmatprep.subr.mxu0 0.0
      %1352 = vmatpush1.xpose.msra.mxu0 %v1319
      %1353 = vmatprep.subr.mxu0 0.0
      %1354 = vmatpush1.xpose.msra.mxu0 %v1317
      %1355 = vmatprep.subr.mxu0 0.0
      %1356 = vmatpush1.xpose.msra.mxu0 %v1315
      %1357 = vmatprep.subr.mxu0 0.0
      %1358 = vmatpush1.xpose.msra.mxu0 %v1313
      %1359 = vmatprep.subr.mxu0 0.0
      %1360 = vmatpush2.xpose.msra.mxu0 0.0
      %1361 = vmatprep.subr.mxu0 0.0
      %1362 = vmatpush2.xpose.msra.mxu0 0.0
      %1363 = vmatprep.subr.mxu0 0.0
      %1364 = vmatpush2.xpose.msra.mxu0 0.0
      %1365 = vmatprep.subr.mxu0 0.0
      %1366 = vmatpush2.xpose.msra.mxu0 0.0
      %1367 = vmatprep.subr.mxu0 0.0
      %1368 = vmatpush2.xpose.msra.mxu0 0.0
      %1369 = vmatprep.subr.mxu0 0.0
      %1370 = vmatpush2.xpose.msra.mxu0 0.0
      %1371 = vmatprep.subr.mxu0 0.0
      %1372 = vmatpush2.xpose.msra.mxu0 0.0
      %1373 = vmatprep.subr.mxu0 0.0
      %1374 = vmatpush2.xpose.msra.mxu0 0.0
      %1375 = vmatprep.subr.mxu0 0.0
      %1376 = vmatpush2.xpose.msra.mxu0 0.0
      %1377 = vmatprep.subr.mxu0 0.0
      %1378 = vmatpush2.xpose.msra.mxu0 0.0
      %1379 = vmatprep.subr.mxu0 0.0
      %1380 = vmatpush2.xpose.msra.mxu0 0.0
      %1381 = vmatprep.subr.mxu0 0.0
      %1382 = vmatpush2.xpose.msra.mxu0 0.0
      %1383 = vmatprep.subr.mxu0 0.0
      %1384 = vmatpush2.xpose.msra.mxu0 0.0
      %1385 = vmatprep.subr.mxu0 0.0
      %1386 = vmatpush2.xpose.msra.mxu0 0.0
      %1387 = vmatprep.subr.mxu0 0.0
      %1388 = vmatpush2.xpose.msra.mxu0 0.0
      %1389 = vmatprep.subr.mxu0 0.0
      %1390 = vmatpush2.xpose.msra.mxu0 0.0
      %1391 = vmatprep.mubr.f32.mxu0 0.0
      %1392 = vmatmul.mubr.f32.gmra.mxu0 %v1293
      %v1393 = vpop.f32.mrf.mxu0
      %v1394 = vadd.f32 0.0, %v1393
      %v1395 = vpop.f32.mrf.mxu0
      %1396 = vmatprep.mubr.f32.mxu0 0.0
      %1397 = vmatmul.mubr.f32.gmra.mxu0 %v1296
      %v1398 = vpop.f32.mrf.mxu0
      %v1399 = vadd.f32 0.0, %v1398
      %v1400 = vpop.f32.mrf.mxu0
      %1401 = vmatprep.mubr.f32.mxu0 0.0
      %1402 = vmatmul.mubr.f32.gmra.mxu0 %v1299
      %v1403 = vpop.f32.mrf.mxu0
      %v1404 = vadd.f32 0.0, %v1403
      %v1405 = vpop.f32.mrf.mxu0
      %1406 = vmatprep.mubr.f32.mxu0 0.0
      %1407 = vmatmul.mubr.f32.gmra.mxu0 %v1302
      %v1408 = vpop.f32.mrf.mxu0
      %v1409 = vadd.f32 0.0, %v1408
      %v1410 = vpop.f32.mrf.mxu0
      %1411 = vmatprep.mubr.f32.mxu0 0.0
      %1412 = vmatmul.mubr.f32.gmra.mxu0 %v1305
      %v1413 = vpop.f32.mrf.mxu0
      %v1414 = vadd.f32 0.0, %v1413
      %v1415 = vpop.f32.mrf.mxu0
      %1416 = vmatprep.mubr.f32.mxu0 0.0
      %1417 = vmatmul.mubr.f32.gmra.mxu0 %v1308
      %v1418 = vpop.f32.mrf.mxu0
      %v1419 = vadd.f32 0.0, %v1418
      %v1420 = vpop.f32.mrf.mxu0
      %1421 = vmatprep.mubr.f32.mxu0 0.0
      %1422 = vmatmul.mubr.f32.gmra.mxu0 %v1311
      %v1423 = vpop.f32.mrf.mxu0
      %v1424 = vadd.f32 0.0, %v1423
      %v1425 = vpop.f32.mrf.mxu0
      %1426 = vdwg.mxu0
      %v1427 = vmul.f32 %v1394, 0.35355338
      %v1428 = vmul.f32 %v1399, 0.35355338
      %v1429 = vmul.f32 %v1404, 0.35355338
      %v1430 = vmul.f32 %v1409, 0.35355338
      %v1431 = vmul.f32 %v1414, 0.35355338
      %v1432 = vmul.f32 %v1419, 0.35355338
      %v1433 = vmul.f32 %v1424, 0.35355338
      %v1434 = vsel %vm506, %v1427, -inf
      %1435 = vmax.xlane.f32.xlu0 %v1434
      %v1436 = vpop.xlane.xlu0 %1435
      %v1437 = vsel %vm506, %v1428, -inf
      %1438 = vmax.xlane.f32.xlu0 %v1437
      %v1439 = vpop.xlane.xlu0 %1438
      %v1440 = vsel %vm506, %v1429, -inf
      %1441 = vmax.xlane.f32.xlu0 %v1440
      %v1442 = vpop.xlane.xlu0 %1441
      %v1443 = vsel %vm506, %v1430, -inf
      %1444 = vmax.xlane.f32.xlu0 %v1443
      %v1445 = vpop.xlane.xlu0 %1444
      %v1446 = vsel %vm506, %v1431, -inf
      %1447 = vmax.xlane.f32.xlu0 %v1446
      %v1448 = vpop.xlane.xlu0 %1447
      %v1449 = vsel %vm506, %v1432, -inf
      %1450 = vmax.xlane.f32.xlu0 %v1449
      %v1451 = vpop.xlane.xlu0 %1450
      %v1452 = vsel %vm525, %v1433, -inf
      %1453 = vmax.xlane.f32.xlu0 %v1452
      %v1454 = vpop.xlane.xlu0 %1453
      %v1455 = vsub.f32 %v1427, %v1436
      %v1456 = vsub.f32 %v1428, %v1439
      %v1457 = vsub.f32 %v1429, %v1442
      %v1458 = vsub.f32 %v1430, %v1445
      %v1459 = vsub.f32 %v1431, %v1448
      %v1460 = vsub.f32 %v1432, %v1451
      %v1461 = vsub.f32 %v1433, %v1454
      %v1462 = vmul.f32 %v1455, 1.442695
      %v1463 = vpow.pop %v1462
      %v1464 = vmul.f32 %v1456, 1.442695
      %v1465 = vpow.pop %v1464
      %v1466 = vmul.f32 %v1457, 1.442695
      %v1467 = vpow.pop %v1466
      %v1468 = vmul.f32 %v1458, 1.442695
      %v1469 = vpow.pop %v1468
      %v1470 = vmul.f32 %v1459, 1.442695
      %v1471 = vpow.pop %v1470
      %v1472 = vmul.f32 %v1460, 1.442695
      %v1473 = vpow.pop %v1472
      %v1474 = vmul.f32 %v1461, 1.442695
      %v1475 = vpow.pop %v1474
      %v1476 = vsel %vm506, %v1463, 0.0
      %1477 = vadd.xlane.f32.xlu0 %v1476
      %v1478 = vpop.xlane.xlu0 %1477
      %v1479 = vsel %vm506, %v1465, 0.0
      %1480 = vadd.xlane.f32.xlu0 %v1479
      %v1481 = vpop.xlane.xlu0 %1480
      %v1482 = vsel %vm506, %v1467, 0.0
      %1483 = vadd.xlane.f32.xlu0 %v1482
      %v1484 = vpop.xlane.xlu0 %1483
      %v1485 = vsel %vm506, %v1469, 0.0
      %1486 = vadd.xlane.f32.xlu0 %v1485
      %v1487 = vpop.xlane.xlu0 %1486
      %v1488 = vsel %vm506, %v1471, 0.0
      %1489 = vadd.xlane.f32.xlu0 %v1488
      %v1490 = vpop.xlane.xlu0 %1489
      %v1491 = vsel %vm506, %v1473, 0.0
      %1492 = vadd.xlane.f32.xlu0 %v1491
      %v1493 = vpop.xlane.xlu0 %1492
      %v1494 = vsel %vm525, %v1475, 0.0
      %1495 = vadd.xlane.f32.xlu0 %v1494
      %v1496 = vpop.xlane.xlu0 %1495
      %v1497 = vrcp.pop %v1478
      %v1498 = vmul.f32 %v1463, %v1497
      %v1499 = vrcp.pop %v1481
      %v1500 = vmul.f32 %v1465, %v1499
      %v1501 = vrcp.pop %v1484
      %v1502 = vmul.f32 %v1467, %v1501
      %v1503 = vrcp.pop %v1487
      %v1504 = vmul.f32 %v1469, %v1503
      %v1505 = vrcp.pop %v1490
      %v1506 = vmul.f32 %v1471, %v1505
      %v1507 = vrcp.pop %v1493
      %v1508 = vmul.f32 %v1473, %v1507
      %v1509 = vrcp.pop %v1496
      %v1510 = vmul.f32 %v1475, %v1509
      %v1511 = vmul.f32 %v1257, %v587
      %v1512 = vmul.f32 %v1258, %v587
      %v1513 = vmul.f32 %v1259, %v587
      %v1514 = vmul.f32 %v1260, %v587
      %v1515 = vmul.f32 %v1261, %v587
      %v1516 = vmul.f32 %v1262, %v587
      %v1517 = vmul.f32 %v1263, %v587
      %v1518 = vmul.f32 %v1224, %v193
      %v1519 = vmul.f32 %v1229, %v193
      %v1520 = vmul.f32 %v1234, %v193
      %v1521 = vmul.f32 %v1239, %v193
      %v1522 = vmul.f32 %v1244, %v193
      %v1523 = vmul.f32 %v1249, %v193
      %v1524 = vmul.f32 %v1254, %v193
      %v1526 = vsel %vm207, %v1518, 0
      %v1529 = vsel %vm207, %v1519, 0
      %v1532 = vsel %vm207, %v1520, 0
      %v1535 = vsel %vm207, %v1521, 0
      %v1538 = vsel %vm207, %v1522, 0
      %v1541 = vsel %vm207, %v1523, 0
      %v1544 = vsel %vm207, %v1524, 0
      %1546 = vmatprep.subr.mxu0 0.0
      %1547 = vmatpush1.xpose.msra.mxu0 0.0
      %1548 = vmatprep.subr.mxu0 0.0
      %1549 = vmatpush1.xpose.msra.mxu0 0.0
      %1550 = vmatprep.subr.mxu0 0.0
      %1551 = vmatpush1.xpose.msra.mxu0 0.0
      %1552 = vmatprep.subr.mxu0 0.0
      %1553 = vmatpush1.xpose.msra.mxu0 0.0
      %1554 = vmatprep.subr.mxu0 0.0
      %1555 = vmatpush1.xpose.msra.mxu0 0.0
      %1556 = vmatprep.subr.mxu0 0.0
      %1557 = vmatpush1.xpose.msra.mxu0 0.0
      %1558 = vmatprep.subr.mxu0 0.0
      %1559 = vmatpush1.xpose.msra.mxu0 0.0
      %1560 = vmatprep.subr.mxu0 0.0
      %1561 = vmatpush1.xpose.msra.mxu0 0.0
      %1562 = vmatprep.subr.mxu0 0.0
      %1563 = vmatpush1.xpose.msra.mxu0 0.0
      %1564 = vmatprep.subr.mxu0 0.0
      %1565 = vmatpush1.xpose.msra.mxu0 %v1325
      %1566 = vmatprep.subr.mxu0 0.0
      %1567 = vmatpush1.xpose.msra.mxu0 %v1323
      %1568 = vmatprep.subr.mxu0 0.0
      %1569 = vmatpush1.xpose.msra.mxu0 %v1321
      %1570 = vmatprep.subr.mxu0 0.0
      %1571 = vmatpush1.xpose.msra.mxu0 %v1319
      %1572 = vmatprep.subr.mxu0 0.0
      %1573 = vmatpush1.xpose.msra.mxu0 %v1317
      %1574 = vmatprep.subr.mxu0 0.0
      %1575 = vmatpush1.xpose.msra.mxu0 %v1315
      %1576 = vmatprep.subr.mxu0 0.0
      %1577 = vmatpush1.xpose.msra.mxu0 %v1313
      %1578 = vmatprep.subr.mxu0 0.0
      %1579 = vmatpush2.xpose.msra.mxu0 0.0
      %1580 = vmatprep.subr.mxu0 0.0
      %1581 = vmatpush2.xpose.msra.mxu0 0.0
      %1582 = vmatprep.subr.mxu0 0.0
      %1583 = vmatpush2.xpose.msra.mxu0 0.0
      %1584 = vmatprep.subr.mxu0 0.0
      %1585 = vmatpush2.xpose.msra.mxu0 0.0
      %1586 = vmatprep.subr.mxu0 0.0
      %1587 = vmatpush2.xpose.msra.mxu0 0.0
      %1588 = vmatprep.subr.mxu0 0.0
      %1589 = vmatpush2.xpose.msra.mxu0 0.0
      %1590 = vmatprep.subr.mxu0 0.0
      %1591 = vmatpush2.xpose.msra.mxu0 0.0
      %1592 = vmatprep.subr.mxu0 0.0
      %1593 = vmatpush2.xpose.msra.mxu0 0.0
      %1594 = vmatprep.subr.mxu0 0.0
      %1595 = vmatpush2.xpose.msra.mxu0 0.0
      %1596 = vmatprep.subr.mxu0 0.0
      %1597 = vmatpush2.xpose.msra.mxu0 0.0
      %1598 = vmatprep.subr.mxu0 0.0
      %1599 = vmatpush2.xpose.msra.mxu0 0.0
      %1600 = vmatprep.subr.mxu0 0.0
      %1601 = vmatpush2.xpose.msra.mxu0 0.0
      %1602 = vmatprep.subr.mxu0 0.0
      %1603 = vmatpush2.xpose.msra.mxu0 0.0
      %1604 = vmatprep.subr.mxu0 0.0
      %1605 = vmatpush2.xpose.msra.mxu0 0.0
      %1606 = vmatprep.subr.mxu0 0.0
      %1607 = vmatpush2.xpose.msra.mxu0 0.0
      %1608 = vmatprep.subr.mxu0 0.0
      %1609 = vmatpush2.xpose.msra.mxu0 0.0
      %1610 = vmatprep.mubr.f32.mxu0 0.0
      %1611 = vmatmul.mubr.f32.gmra.mxu0 %v1526
      %v1612 = vpop.f32.mrf.mxu0
      %v1613 = vadd.f32 0.0, %v1612
      %v1614 = vpop.f32.mrf.mxu0
      %1615 = vmatprep.mubr.f32.mxu0 0.0
      %1616 = vmatmul.mubr.f32.gmra.mxu0 %v1529
      %v1617 = vpop.f32.mrf.mxu0
      %v1618 = vadd.f32 0.0, %v1617
      %v1619 = vpop.f32.mrf.mxu0
      %1620 = vmatprep.mubr.f32.mxu0 0.0
      %1621 = vmatmul.mubr.f32.gmra.mxu0 %v1532
      %v1622 = vpop.f32.mrf.mxu0
      %v1623 = vadd.f32 0.0, %v1622
      %v1624 = vpop.f32.mrf.mxu0
      %1625 = vmatprep.mubr.f32.mxu0 0.0
      %1626 = vmatmul.mubr.f32.gmra.mxu0 %v1535
      %v1627 = vpop.f32.mrf.mxu0
      %v1628 = vadd.f32 0.0, %v1627
      %v1629 = vpop.f32.mrf.mxu0
      %1630 = vmatprep.mubr.f32.mxu0 0.0
      %1631 = vmatmul.mubr.f32.gmra.mxu0 %v1538
      %v1632 = vpop.f32.mrf.mxu0
      %v1633 = vadd.f32 0.0, %v1632
      %v1634 = vpop.f32.mrf.mxu0
      %1635 = vmatprep.mubr.f32.mxu0 0.0
      %1636 = vmatmul.mubr.f32.gmra.mxu0 %v1541
      %v1637 = vpop.f32.mrf.mxu0
      %v1638 = vadd.f32 0.0, %v1637
      %v1639 = vpop.f32.mrf.mxu0
      %1640 = vmatprep.mubr.f32.mxu0 0.0
      %1641 = vmatmul.mubr.f32.gmra.mxu0 %v1544
      %v1642 = vpop.f32.mrf.mxu0
      %v1643 = vadd.f32 0.0, %v1642
      %v1644 = vpop.f32.mrf.mxu0
      %1645 = vdwg.mxu0
      %v1646 = vmul.f32 %v1613, 0.35355338
      %v1647 = vmul.f32 %v1618, 0.35355338
      %v1648 = vmul.f32 %v1623, 0.35355338
      %v1649 = vmul.f32 %v1628, 0.35355338
      %v1650 = vmul.f32 %v1633, 0.35355338
      %v1651 = vmul.f32 %v1638, 0.35355338
      %v1652 = vmul.f32 %v1643, 0.35355338
      %v1653 = vsel %vm506, %v1646, -inf
      %1654 = vmax.xlane.f32.xlu0 %v1653
      %v1655 = vpop.xlane.xlu0 %1654
      %v1656 = vsel %vm506, %v1647, -inf
      %1657 = vmax.xlane.f32.xlu0 %v1656
      %v1658 = vpop.xlane.xlu0 %1657
      %v1659 = vsel %vm506, %v1648, -inf
      %1660 = vmax.xlane.f32.xlu0 %v1659
      %v1661 = vpop.xlane.xlu0 %1660
      %v1662 = vsel %vm506, %v1649, -inf
      %1663 = vmax.xlane.f32.xlu0 %v1662
      %v1664 = vpop.xlane.xlu0 %1663
      %v1665 = vsel %vm506, %v1650, -inf
      %1666 = vmax.xlane.f32.xlu0 %v1665
      %v1667 = vpop.xlane.xlu0 %1666
      %v1668 = vsel %vm506, %v1651, -inf
      %1669 = vmax.xlane.f32.xlu0 %v1668
      %v1670 = vpop.xlane.xlu0 %1669
      %v1671 = vsel %vm525, %v1652, -inf
      %1672 = vmax.xlane.f32.xlu0 %v1671
      %v1673 = vpop.xlane.xlu0 %1672
      %v1674 = vsub.f32 %v1646, %v1655
      %v1675 = vsub.f32 %v1647, %v1658
      %v1676 = vsub.f32 %v1648, %v1661
      %v1677 = vsub.f32 %v1649, %v1664
      %v1678 = vsub.f32 %v1650, %v1667
      %v1679 = vsub.f32 %v1651, %v1670
      %v1680 = vsub.f32 %v1652, %v1673
      %v1681 = vmul.f32 %v1674, 1.442695
      %v1682 = vpow.pop %v1681
      %v1683 = vmul.f32 %v1675, 1.442695
      %v1684 = vpow.pop %v1683
      %v1685 = vmul.f32 %v1676, 1.442695
      %v1686 = vpow.pop %v1685
      %v1687 = vmul.f32 %v1677, 1.442695
      %v1688 = vpow.pop %v1687
      %v1689 = vmul.f32 %v1678, 1.442695
      %v1690 = vpow.pop %v1689
      %v1691 = vmul.f32 %v1679, 1.442695
      %v1692 = vpow.pop %v1691
      %v1693 = vmul.f32 %v1680, 1.442695
      %v1694 = vpow.pop %v1693
      %v1695 = vsel %vm506, %v1682, 0.0
      %1696 = vadd.xlane.f32.xlu0 %v1695
      %v1697 = vpop.xlane.xlu0 %1696
      %v1698 = vsel %vm506, %v1684, 0.0
      %1699 = vadd.xlane.f32.xlu0 %v1698
      %v1700 = vpop.xlane.xlu0 %1699
      %v1701 = vsel %vm506, %v1686, 0.0
      %1702 = vadd.xlane.f32.xlu0 %v1701
      %v1703 = vpop.xlane.xlu0 %1702
      %v1704 = vsel %vm506, %v1688, 0.0
      %1705 = vadd.xlane.f32.xlu0 %v1704
      %v1706 = vpop.xlane.xlu0 %1705
      %v1707 = vsel %vm506, %v1690, 0.0
      %1708 = vadd.xlane.f32.xlu0 %v1707
      %v1709 = vpop.xlane.xlu0 %1708
      %v1710 = vsel %vm506, %v1692, 0.0
      %1711 = vadd.xlane.f32.xlu0 %v1710
      %v1712 = vpop.xlane.xlu0 %1711
      %v1713 = vsel %vm525, %v1694, 0.0
      %1714 = vadd.xlane.f32.xlu0 %v1713
      %v1715 = vpop.xlane.xlu0 %1714
      %v1716 = vrcp.pop %v1697
      %v1717 = vmul.f32 %v1682, %v1716
      %v1718 = vrcp.pop %v1700
      %v1719 = vmul.f32 %v1684, %v1718
      %v1720 = vrcp.pop %v1703
      %v1721 = vmul.f32 %v1686, %v1720
      %v1722 = vrcp.pop %v1706
      %v1723 = vmul.f32 %v1688, %v1722
      %v1724 = vrcp.pop %v1709
      %v1725 = vmul.f32 %v1690, %v1724
      %v1726 = vrcp.pop %v1712
      %v1727 = vmul.f32 %v1692, %v1726
      %v1728 = vrcp.pop %v1715
      %v1729 = vmul.f32 %v1694, %v1728
      %v1730 = vmul.f32 %v1257, %v810
      %v1731 = vmul.f32 %v1258, %v810
      %v1732 = vmul.f32 %v1259, %v810
      %v1733 = vmul.f32 %v1260, %v810
      %v1734 = vmul.f32 %v1261, %v810
      %v1735 = vmul.f32 %v1262, %v810
      %v1736 = vmul.f32 %v1263, %v810
      %1744 = vrot.lane.b32.xlu0 %v1730, 96
      %v1745 = vpop.permute.xlu0 %1744
      %1746 = vrot.lane.b32.xlu0 %v1731, 96
      %v1747 = vpop.permute.xlu0 %1746
      %1748 = vrot.lane.b32.xlu0 %v1732, 96
      %v1749 = vpop.permute.xlu0 %1748
      %1750 = vrot.lane.b32.xlu0 %v1733, 96
      %v1751 = vpop.permute.xlu0 %1750
      %1752 = vrot.lane.b32.xlu0 %v1734, 96
      %v1753 = vpop.permute.xlu0 %1752
      %1754 = vrot.lane.b32.xlu0 %v1735, 96
      %v1755 = vpop.permute.xlu0 %1754
      %1756 = vrot.lane.b32.xlu0 %v1736, 96
      %v1757 = vpop.permute.xlu0 %1756
      %v1765 = vsel %vm506, %v1717, 0
      %v1768 = vsel %vm506, %v1719, 0
      %v1771 = vsel %vm506, %v1721, 0
      %v1774 = vsel %vm506, %v1723, 0
      %v1777 = vsel %vm506, %v1725, 0
      %v1780 = vsel %vm506, %v1727, 0
      %v1783 = vsel %vm506, %v1729, 0
      %v1785 = vsel %vm867, %v1757, 0
      %1787 = vmatprep.subr.mxu0 0.0
      %1788 = vmatpush1.msra.mxu0 0.0
      %1789 = vmatprep.subr.mxu0 0.0
      %1790 = vmatpush1.msra.mxu0 0.0
      %1791 = vmatprep.subr.mxu0 0.0
      %1792 = vmatpush1.msra.mxu0 0.0
      %1793 = vmatprep.subr.mxu0 0.0
      %1794 = vmatpush1.msra.mxu0 0.0
      %1795 = vmatprep.subr.mxu0 0.0
      %1796 = vmatpush1.msra.mxu0 0.0
      %1797 = vmatprep.subr.mxu0 0.0
      %1798 = vmatpush1.msra.mxu0 0.0
      %1799 = vmatprep.subr.mxu0 0.0
      %1800 = vmatpush1.msra.mxu0 0.0
      %1801 = vmatprep.subr.mxu0 0.0
      %1802 = vmatpush1.msra.mxu0 0.0
      %1803 = vmatprep.subr.mxu0 0.0
      %1804 = vmatpush1.msra.mxu0 0.0
      %1805 = vmatprep.subr.mxu0 0.0
      %1806 = vmatpush1.msra.mxu0 %v1785
      %1807 = vmatprep.subr.mxu0 0.0
      %1808 = vmatpush1.msra.mxu0 %v1755
      %1809 = vmatprep.subr.mxu0 0.0
      %1810 = vmatpush1.msra.mxu0 %v1753
      %1811 = vmatprep.subr.mxu0 0.0
      %1812 = vmatpush1.msra.mxu0 %v1751
      %1813 = vmatprep.subr.mxu0 0.0
      %1814 = vmatpush1.msra.mxu0 %v1749
      %1815 = vmatprep.subr.mxu0 0.0
      %1816 = vmatpush1.msra.mxu0 %v1747
      %1817 = vmatprep.subr.mxu0 0.0
      %1818 = vmatpush1.msra.mxu0 %v1745
      %1819 = vmatprep.subr.mxu0 0.0
      %1820 = vmatpush2.msra.mxu0 0.0
      %1821 = vmatprep.subr.mxu0 0.0
      %1822 = vmatpush2.msra.mxu0 0.0
      %1823 = vmatprep.subr.mxu0 0.0
      %1824 = vmatpush2.msra.mxu0 0.0
      %1825 = vmatprep.subr.mxu0 0.0
      %1826 = vmatpush2.msra.mxu0 0.0
      %1827 = vmatprep.subr.mxu0 0.0
      %1828 = vmatpush2.msra.mxu0 0.0
      %1829 = vmatprep.subr.mxu0 0.0
      %1830 = vmatpush2.msra.mxu0 0.0
      %1831 = vmatprep.subr.mxu0 0.0
      %1832 = vmatpush2.msra.mxu0 0.0
      %1833 = vmatprep.subr.mxu0 0.0
      %1834 = vmatpush2.msra.mxu0 0.0
      %1835 = vmatprep.subr.mxu0 0.0
      %1836 = vmatpush2.msra.mxu0 0.0
      %1837 = vmatprep.subr.mxu0 0.0
      %1838 = vmatpush2.msra.mxu0 0.0
      %1839 = vmatprep.subr.mxu0 0.0
      %1840 = vmatpush2.msra.mxu0 0.0
      %1841 = vmatprep.subr.mxu0 0.0
      %1842 = vmatpush2.msra.mxu0 0.0
      %1843 = vmatprep.subr.mxu0 0.0
      %1844 = vmatpush2.msra.mxu0 0.0
      %1845 = vmatprep.subr.mxu0 0.0
      %1846 = vmatpush2.msra.mxu0 0.0
      %1847 = vmatprep.subr.mxu0 0.0
      %1848 = vmatpush2.msra.mxu0 0.0
      %1849 = vmatprep.subr.mxu0 0.0
      %1850 = vmatpush2.msra.mxu0 0.0
      %1851 = vmatprep.mubr.f32.mxu0 0.0
      %1852 = vmatmul.mubr.f32.gmra.mxu0 %v1765
      %v1853 = vpop.f32.mrf.mxu0
      %v1854 = vadd.f32 0.0, %v1853
      %v1855 = vpop.f32.mrf.mxu0
      %1856 = vmatprep.mubr.f32.mxu0 0.0
      %1857 = vmatmul.mubr.f32.gmra.mxu0 %v1768
      %v1858 = vpop.f32.mrf.mxu0
      %v1859 = vadd.f32 0.0, %v1858
      %v1860 = vpop.f32.mrf.mxu0
      %1861 = vmatprep.mubr.f32.mxu0 0.0
      %1862 = vmatmul.mubr.f32.gmra.mxu0 %v1771
      %v1863 = vpop.f32.mrf.mxu0
      %v1864 = vadd.f32 0.0, %v1863
      %v1865 = vpop.f32.mrf.mxu0
      %1866 = vmatprep.mubr.f32.mxu0 0.0
      %1867 = vmatmul.mubr.f32.gmra.mxu0 %v1774
      %v1868 = vpop.f32.mrf.mxu0
      %v1869 = vadd.f32 0.0, %v1868
      %v1870 = vpop.f32.mrf.mxu0
      %1871 = vmatprep.mubr.f32.mxu0 0.0
      %1872 = vmatmul.mubr.f32.gmra.mxu0 %v1777
      %v1873 = vpop.f32.mrf.mxu0
      %v1874 = vadd.f32 0.0, %v1873
      %v1875 = vpop.f32.mrf.mxu0
      %1876 = vmatprep.mubr.f32.mxu0 0.0
      %1877 = vmatmul.mubr.f32.gmra.mxu0 %v1780
      %v1878 = vpop.f32.mrf.mxu0
      %v1879 = vadd.f32 0.0, %v1878
      %v1880 = vpop.f32.mrf.mxu0
      %1881 = vmatprep.mubr.f32.mxu0 0.0
      %1882 = vmatmul.mubr.f32.gmra.mxu0 %v1783
      %v1883 = vpop.f32.mrf.mxu0
      %v1884 = vadd.f32 0.0, %v1883
      %v1885 = vpop.f32.mrf.mxu0
      %1886 = vdwg.mxu0
      %1894 = vrot.lane.b32.xlu0 %v1511, 96
      %v1895 = vpop.permute.xlu0 %1894
      %1896 = vrot.lane.b32.xlu0 %v1512, 96
      %v1897 = vpop.permute.xlu0 %1896
      %1898 = vrot.lane.b32.xlu0 %v1513, 96
      %v1899 = vpop.permute.xlu0 %1898
      %1900 = vrot.lane.b32.xlu0 %v1514, 96
      %v1901 = vpop.permute.xlu0 %1900
      %1902 = vrot.lane.b32.xlu0 %v1515, 96
      %v1903 = vpop.permute.xlu0 %1902
      %1904 = vrot.lane.b32.xlu0 %v1516, 96
      %v1905 = vpop.permute.xlu0 %1904
      %1906 = vrot.lane.b32.xlu0 %v1517, 96
      %v1907 = vpop.permute.xlu0 %1906
      %v1915 = vsel %vm506, %v1498, 0
      %v1918 = vsel %vm506, %v1500, 0
      %v1921 = vsel %vm506, %v1502, 0
      %v1924 = vsel %vm506, %v1504, 0
      %v1927 = vsel %vm506, %v1506, 0
      %v1930 = vsel %vm506, %v1508, 0
      %v1933 = vsel %vm506, %v1510, 0
      %v1935 = vsel %vm867, %v1907, 0
      %1937 = vmatprep.subr.mxu0 0.0
      %1938 = vmatpush1.msra.mxu0 0.0
      %1939 = vmatprep.subr.mxu0 0.0
      %1940 = vmatpush1.msra.mxu0 0.0
      %1941 = vmatprep.subr.mxu0 0.0
      %1942 = vmatpush1.msra.mxu0 0.0
      %1943 = vmatprep.subr.mxu0 0.0
      %1944 = vmatpush1.msra.mxu0 0.0
      %1945 = vmatprep.subr.mxu0 0.0
      %1946 = vmatpush1.msra.mxu0 0.0
      %1947 = vmatprep.subr.mxu0 0.0
      %1948 = vmatpush1.msra.mxu0 0.0
      %1949 = vmatprep.subr.mxu0 0.0
      %1950 = vmatpush1.msra.mxu0 0.0
      %1951 = vmatprep.subr.mxu0 0.0
      %1952 = vmatpush1.msra.mxu0 0.0
      %1953 = vmatprep.subr.mxu0 0.0
      %1954 = vmatpush1.msra.mxu0 0.0
      %1955 = vmatprep.subr.mxu0 0.0
      %1956 = vmatpush1.msra.mxu0 %v1935
      %1957 = vmatprep.subr.mxu0 0.0
      %1958 = vmatpush1.msra.mxu0 %v1905
      %1959 = vmatprep.subr.mxu0 0.0
      %1960 = vmatpush1.msra.mxu0 %v1903
      %1961 = vmatprep.subr.mxu0 0.0
      %1962 = vmatpush1.msra.mxu0 %v1901
      %1963 = vmatprep.subr.mxu0 0.0
      %1964 = vmatpush1.msra.mxu0 %v1899
      %1965 = vmatprep.subr.mxu0 0.0
      %1966 = vmatpush1.msra.mxu0 %v1897
      %1967 = vmatprep.subr.mxu0 0.0
      %1968 = vmatpush1.msra.mxu0 %v1895
      %1969 = vmatprep.subr.mxu0 0.0
      %1970 = vmatpush2.msra.mxu0 0.0
      %1971 = vmatprep.subr.mxu0 0.0
      %1972 = vmatpush2.msra.mxu0 0.0
      %1973 = vmatprep.subr.mxu0 0.0
      %1974 = vmatpush2.msra.mxu0 0.0
      %1975 = vmatprep.subr.mxu0 0.0
      %1976 = vmatpush2.msra.mxu0 0.0
      %1977 = vmatprep.subr.mxu0 0.0
      %1978 = vmatpush2.msra.mxu0 0.0
      %1979 = vmatprep.subr.mxu0 0.0
      %1980 = vmatpush2.msra.mxu0 0.0
      %1981 = vmatprep.subr.mxu0 0.0
      %1982 = vmatpush2.msra.mxu0 0.0
      %1983 = vmatprep.subr.mxu0 0.0
      %1984 = vmatpush2.msra.mxu0 0.0
      %1985 = vmatprep.subr.mxu0 0.0
      %1986 = vmatpush2.msra.mxu0 0.0
      %1987 = vmatprep.subr.mxu0 0.0
      %1988 = vmatpush2.msra.mxu0 0.0
      %1989 = vmatprep.subr.mxu0 0.0
      %1990 = vmatpush2.msra.mxu0 0.0
      %1991 = vmatprep.subr.mxu0 0.0
      %1992 = vmatpush2.msra.mxu0 0.0
      %1993 = vmatprep.subr.mxu0 0.0
      %1994 = vmatpush2.msra.mxu0 0.0
      %1995 = vmatprep.subr.mxu0 0.0
      %1996 = vmatpush2.msra.mxu0 0.0
      %1997 = vmatprep.subr.mxu0 0.0
      %1998 = vmatpush2.msra.mxu0 0.0
      %1999 = vmatprep.subr.mxu0 0.0
      %2000 = vmatpush2.msra.mxu0 0.0
      %2001 = vmatprep.mubr.f32.mxu0 0.0
      %2002 = vmatmul.mubr.f32.gmra.mxu0 %v1915
      %v2003 = vpop.f32.mrf.mxu0
      %v2004 = vadd.f32 %v1854, %v2003
      %v2005 = vpop.f32.mrf.mxu0
      %2006 = vmatprep.mubr.f32.mxu0 0.0
      %2007 = vmatmul.mubr.f32.gmra.mxu0 %v1918
      %v2008 = vpop.f32.mrf.mxu0
      %v2009 = vadd.f32 %v1859, %v2008
      %v2010 = vpop.f32.mrf.mxu0
      %2011 = vmatprep.mubr.f32.mxu0 0.0
      %2012 = vmatmul.mubr.f32.gmra.mxu0 %v1921
      %v2013 = vpop.f32.mrf.mxu0
      %v2014 = vadd.f32 %v1864, %v2013
      %v2015 = vpop.f32.mrf.mxu0
      %2016 = vmatprep.mubr.f32.mxu0 0.0
      %2017 = vmatmul.mubr.f32.gmra.mxu0 %v1924
      %v2018 = vpop.f32.mrf.mxu0
      %v2019 = vadd.f32 %v1869, %v2018
      %v2020 = vpop.f32.mrf.mxu0
      %2021 = vmatprep.mubr.f32.mxu0 0.0
      %2022 = vmatmul.mubr.f32.gmra.mxu0 %v1927
      %v2023 = vpop.f32.mrf.mxu0
      %v2024 = vadd.f32 %v1874, %v2023
      %v2025 = vpop.f32.mrf.mxu0
      %2026 = vmatprep.mubr.f32.mxu0 0.0
      %2027 = vmatmul.mubr.f32.gmra.mxu0 %v1930
      %v2028 = vpop.f32.mrf.mxu0
      %v2029 = vadd.f32 %v1879, %v2028
      %v2030 = vpop.f32.mrf.mxu0
      %2031 = vmatprep.mubr.f32.mxu0 0.0
      %2032 = vmatmul.mubr.f32.gmra.mxu0 %v1933
      %v2033 = vpop.f32.mrf.mxu0
      %v2034 = vadd.f32 %v1884, %v2033
      %v2035 = vpop.f32.mrf.mxu0
      %2036 = vdwg.mxu0
      %s2037 = scalar_lea.vmem %s177, 56
      %2038 = vst.msk [vmem:[%s2037] sm:$0xff] %vm207, %v2004
      %2039 = vst.msk [vmem:[%s2037 + $0x8] sm:$0xff] %vm207, %v2009
      %2040 = vst.msk [vmem:[%s2037 + $0x10] sm:$0xff] %vm207, %v2014
      %2041 = vst.msk [vmem:[%s2037 + $0x18] sm:$0xff] %vm207, %v2019
      %2042 = vst.msk [vmem:[%s2037 + $0x20] sm:$0xff] %vm207, %v2024
      %2043 = vst.msk [vmem:[%s2037 + $0x28] sm:$0xff] %vm207, %v2029
      %2044 = vst.msk [vmem:[%s2037 + $0x30] sm:$0x1] %vm1126, %v2034
      %s2045 = scalar_lea.vmem %s170, 112
      %v2046 = vld [vmem:[%s2045] sm:$0xff]
      %v2047 = vld [vmem:[%s2045 + $0x8] sm:$0xff]
      %v2048 = vld [vmem:[%s2045 + $0x10] sm:$0xff]
      %v2049 = vld [vmem:[%s2045 + $0x18] sm:$0xff]
      %v2050 = vld [vmem:[%s2045 + $0x20] sm:$0xff]
      %v2051 = vld [vmem:[%s2045 + $0x28] sm:$0xff]
      %v2052 = vld [vmem:[%s2045 + $0x30] sm:$0x1]
      %v2054 = vsel %vm207, %v2046, 0
      %v2057 = vsel %vm207, %v2047, 0
      %v2060 = vsel %vm207, %v2048, 0
      %v2063 = vsel %vm207, %v2049, 0
      %v2066 = vsel %vm207, %v2050, 0
      %v2069 = vsel %vm207, %v2051, 0
      %v2072 = vsel %vm207, %v2052, 0
      %2074 = vmatprep.subr.mxu0 0.0
      %2075 = vmatpush1.msra.mxu0 0.0
      %2076 = vmatprep.subr.mxu0 0.0
      %2077 = vmatpush1.msra.mxu0 0.0
      %2078 = vmatprep.subr.mxu0 0.0
      %2079 = vmatpush1.msra.mxu0 0.0
      %2080 = vmatprep.subr.mxu0 0.0
      %2081 = vmatpush1.msra.mxu0 0.0
      %2082 = vmatprep.subr.mxu0 0.0
      %2083 = vmatpush1.msra.mxu0 0.0
      %2084 = vmatprep.subr.mxu0 0.0
      %2085 = vmatpush1.msra.mxu0 0.0
      %2086 = vmatprep.subr.mxu0 0.0
      %2087 = vmatpush1.msra.mxu0 0.0
      %2088 = vmatprep.subr.mxu0 0.0
      %2089 = vmatpush1.msra.mxu0 0.0
      %2090 = vmatprep.subr.mxu0 0.0
      %2091 = vmatpush1.msra.mxu0 0.0
      %2092 = vmatprep.subr.mxu0 0.0
      %2093 = vmatpush1.msra.mxu0 0.0
      %2094 = vmatprep.subr.mxu0 0.0
      %2095 = vmatpush1.msra.mxu0 0.0
      %2096 = vmatprep.subr.mxu0 0.0
      %2097 = vmatpush1.msra.mxu0 0.0
      %2098 = vmatprep.subr.mxu0 0.0
      %2099 = vmatpush1.msra.mxu0 0.0
      %2100 = vmatprep.subr.mxu0 0.0
      %2101 = vmatpush1.msra.mxu0 0.0
      %2102 = vmatprep.subr.mxu0 0.0
      %2103 = vmatpush1.msra.mxu0 %v180
      %2104 = vmatprep.subr.mxu0 0.0
      %2105 = vmatpush1.msra.mxu0 %v179
      %2106 = vmatprep.subr.mxu0 0.0
      %2107 = vmatpush2.msra.mxu0 0.0
      %2108 = vmatprep.subr.mxu0 0.0
      %2109 = vmatpush2.msra.mxu0 0.0
      %2110 = vmatprep.subr.mxu0 0.0
      %2111 = vmatpush2.msra.mxu0 0.0
      %2112 = vmatprep.subr.mxu0 0.0
      %2113 = vmatpush2.msra.mxu0 0.0
      %2114 = vmatprep.subr.mxu0 0.0
      %2115 = vmatpush2.msra.mxu0 0.0
      %2116 = vmatprep.subr.mxu0 0.0
      %2117 = vmatpush2.msra.mxu0 0.0
      %2118 = vmatprep.subr.mxu0 0.0
      %2119 = vmatpush2.msra.mxu0 0.0
      %2120 = vmatprep.subr.mxu0 0.0
      %2121 = vmatpush2.msra.mxu0 0.0
      %2122 = vmatprep.subr.mxu0 0.0
      %2123 = vmatpush2.msra.mxu0 0.0
      %2124 = vmatprep.subr.mxu0 0.0
      %2125 = vmatpush2.msra.mxu0 0.0
      %2126 = vmatprep.subr.mxu0 0.0
      %2127 = vmatpush2.msra.mxu0 0.0
      %2128 = vmatprep.subr.mxu0 0.0
      %2129 = vmatpush2.msra.mxu0 0.0
      %2130 = vmatprep.subr.mxu0 0.0
      %2131 = vmatpush2.msra.mxu0 0.0
      %2132 = vmatprep.subr.mxu0 0.0
      %2133 = vmatpush2.msra.mxu0 0.0
      %2134 = vmatprep.subr.mxu0 0.0
      %2135 = vmatpush2.msra.mxu0 0.0
      %2136 = vmatprep.subr.mxu0 0.0
      %2137 = vmatpush2.msra.mxu0 0.0
      %2138 = vmatprep.mubr.f32.mxu0 0.0
      %2139 = vmatmul.mubr.f32.gmra.mxu0 %v2054
      %v2140 = vpop.f32.mrf.mxu0
      %v2141 = vadd.f32 %v205, %v2140
      %v2142 = vpop.f32.mrf.mxu0
      %2143 = vmatprep.mubr.f32.mxu0 0.0
      %2144 = vmatmul.mubr.f32.gmra.mxu0 %v2057
      %v2145 = vpop.f32.mrf.mxu0
      %v2146 = vadd.f32 %v205, %v2145
      %v2147 = vpop.f32.mrf.mxu0
      %2148 = vmatprep.mubr.f32.mxu0 0.0
      %2149 = vmatmul.mubr.f32.gmra.mxu0 %v2060
      %v2150 = vpop.f32.mrf.mxu0
      %v2151 = vadd.f32 %v205, %v2150
      %v2152 = vpop.f32.mrf.mxu0
      %2153 = vmatprep.mubr.f32.mxu0 0.0
      %2154 = vmatmul.mubr.f32.gmra.mxu0 %v2063
      %v2155 = vpop.f32.mrf.mxu0
      %v2156 = vadd.f32 %v205, %v2155
      %v2157 = vpop.f32.mrf.mxu0
      %2158 = vmatprep.mubr.f32.mxu0 0.0
      %2159 = vmatmul.mubr.f32.gmra.mxu0 %v2066
      %v2160 = vpop.f32.mrf.mxu0
      %v2161 = vadd.f32 %v205, %v2160
      %v2162 = vpop.f32.mrf.mxu0
      %2163 = vmatprep.mubr.f32.mxu0 0.0
      %2164 = vmatmul.mubr.f32.gmra.mxu0 %v2069
      %v2165 = vpop.f32.mrf.mxu0
      %v2166 = vadd.f32 %v205, %v2165
      %v2167 = vpop.f32.mrf.mxu0
      %2168 = vmatprep.mubr.f32.mxu0 0.0
      %2169 = vmatmul.mubr.f32.gmra.mxu0 %v2072
      %v2170 = vpop.f32.mrf.mxu0
      %v2171 = vadd.f32 %v205, %v2170
      %v2172 = vpop.f32.mrf.mxu0
      %2173 = vdwg.mxu0
      %v2174 = vmax.f32 %v2141, 0.0
      %v2175 = vmax.f32 %v2146, 0.0
      %v2176 = vmax.f32 %v2151, 0.0
      %v2177 = vmax.f32 %v2156, 0.0
      %v2178 = vmax.f32 %v2161, 0.0
      %v2179 = vmax.f32 %v2166, 0.0
      %v2180 = vmax.f32 %v2171, 0.0
      %v2181 = vmul.f32 %v2141, %v188
      %v2182 = vmul.f32 %v2146, %v188
      %v2183 = vmul.f32 %v2151, %v188
      %v2184 = vmul.f32 %v2156, %v188
      %v2185 = vmul.f32 %v2161, %v188
      %v2186 = vmul.f32 %v2166, %v188
      %v2187 = vmul.f32 %v2171, %v188
      %2195 = vrot.lane.b32.xlu0 %v2141, 112
      %v2196 = vpop.permute.xlu0 %2195
      %2197 = vrot.lane.b32.xlu0 %v2146, 112
      %v2198 = vpop.permute.xlu0 %2197
      %2199 = vrot.lane.b32.xlu0 %v2151, 112
      %v2200 = vpop.permute.xlu0 %2199
      %2201 = vrot.lane.b32.xlu0 %v2156, 112
      %v2202 = vpop.permute.xlu0 %2201
      %2203 = vrot.lane.b32.xlu0 %v2161, 112
      %v2204 = vpop.permute.xlu0 %2203
      %2205 = vrot.lane.b32.xlu0 %v2166, 112
      %v2206 = vpop.permute.xlu0 %2205
      %2207 = vrot.lane.b32.xlu0 %v2171, 112
      %v2208 = vpop.permute.xlu0 %2207
      %v2210 = vsel %vm207, %v2181, 0
      %v2213 = vsel %vm207, %v2182, 0
      %v2216 = vsel %vm207, %v2183, 0
      %v2219 = vsel %vm207, %v2184, 0
      %v2222 = vsel %vm207, %v2185, 0
      %v2225 = vsel %vm207, %v2186, 0
      %v2228 = vsel %vm207, %v2187, 0
      %v2230 = vsel %vm207, %v2196, 0
      %v2232 = vsel %vm207, %v2198, 0
      %v2234 = vsel %vm207, %v2200, 0
      %v2236 = vsel %vm207, %v2202, 0
      %v2238 = vsel %vm207, %v2204, 0
      %v2240 = vsel %vm207, %v2206, 0
      %v2242 = vsel %vm207, %v2208, 0
      %2244 = vmatprep.subr.mxu0 0.0
      %2245 = vmatpush1.xpose.msra.mxu0 0.0
      %2246 = vmatprep.subr.mxu0 0.0
      %2247 = vmatpush1.xpose.msra.mxu0 0.0
      %2248 = vmatprep.subr.mxu0 0.0
      %2249 = vmatpush1.xpose.msra.mxu0 0.0
      %2250 = vmatprep.subr.mxu0 0.0
      %2251 = vmatpush1.xpose.msra.mxu0 0.0
      %2252 = vmatprep.subr.mxu0 0.0
      %2253 = vmatpush1.xpose.msra.mxu0 0.0
      %2254 = vmatprep.subr.mxu0 0.0
      %2255 = vmatpush1.xpose.msra.mxu0 0.0
      %2256 = vmatprep.subr.mxu0 0.0
      %2257 = vmatpush1.xpose.msra.mxu0 0.0
      %2258 = vmatprep.subr.mxu0 0.0
      %2259 = vmatpush1.xpose.msra.mxu0 0.0
      %2260 = vmatprep.subr.mxu0 0.0
      %2261 = vmatpush1.xpose.msra.mxu0 0.0
      %2262 = vmatprep.subr.mxu0 0.0
      %2263 = vmatpush1.xpose.msra.mxu0 %v2242
      %2264 = vmatprep.subr.mxu0 0.0
      %2265 = vmatpush1.xpose.msra.mxu0 %v2240
      %2266 = vmatprep.subr.mxu0 0.0
      %2267 = vmatpush1.xpose.msra.mxu0 %v2238
      %2268 = vmatprep.subr.mxu0 0.0
      %2269 = vmatpush1.xpose.msra.mxu0 %v2236
      %2270 = vmatprep.subr.mxu0 0.0
      %2271 = vmatpush1.xpose.msra.mxu0 %v2234
      %2272 = vmatprep.subr.mxu0 0.0
      %2273 = vmatpush1.xpose.msra.mxu0 %v2232
      %2274 = vmatprep.subr.mxu0 0.0
      %2275 = vmatpush1.xpose.msra.mxu0 %v2230
      %2276 = vmatprep.subr.mxu0 0.0
      %2277 = vmatpush2.xpose.msra.mxu0 0.0
      %2278 = vmatprep.subr.mxu0 0.0
      %2279 = vmatpush2.xpose.msra.mxu0 0.0
      %2280 = vmatprep.subr.mxu0 0.0
      %2281 = vmatpush2.xpose.msra.mxu0 0.0
      %2282 = vmatprep.subr.mxu0 0.0
      %2283 = vmatpush2.xpose.msra.mxu0 0.0
      %2284 = vmatprep.subr.mxu0 0.0
      %2285 = vmatpush2.xpose.msra.mxu0 0.0
      %2286 = vmatprep.subr.mxu0 0.0
      %2287 = vmatpush2.xpose.msra.mxu0 0.0
      %2288 = vmatprep.subr.mxu0 0.0
      %2289 = vmatpush2.xpose.msra.mxu0 0.0
      %2290 = vmatprep.subr.mxu0 0.0
      %2291 = vmatpush2.xpose.msra.mxu0 0.0
      %2292 = vmatprep.subr.mxu0 0.0
      %2293 = vmatpush2.xpose.msra.mxu0 0.0
      %2294 = vmatprep.subr.mxu0 0.0
      %2295 = vmatpush2.xpose.msra.mxu0 0.0
      %2296 = vmatprep.subr.mxu0 0.0
      %2297 = vmatpush2.xpose.msra.mxu0 0.0
      %2298 = vmatprep.subr.mxu0 0.0
      %2299 = vmatpush2.xpose.msra.mxu0 0.0
      %2300 = vmatprep.subr.mxu0 0.0
      %2301 = vmatpush2.xpose.msra.mxu0 0.0
      %2302 = vmatprep.subr.mxu0 0.0
      %2303 = vmatpush2.xpose.msra.mxu0 0.0
      %2304 = vmatprep.subr.mxu0 0.0
      %2305 = vmatpush2.xpose.msra.mxu0 0.0
      %2306 = vmatprep.subr.mxu0 0.0
      %2307 = vmatpush2.xpose.msra.mxu0 0.0
      %2308 = vmatprep.mubr.f32.mxu0 0.0
      %2309 = vmatmul.mubr.f32.gmra.mxu0 %v2210
      %v2310 = vpop.f32.mrf.mxu0
      %v2311 = vadd.f32 0.0, %v2310
      %v2312 = vpop.f32.mrf.mxu0
      %2313 = vmatprep.mubr.f32.mxu0 0.0
      %2314 = vmatmul.mubr.f32.gmra.mxu0 %v2213
      %v2315 = vpop.f32.mrf.mxu0
      %v2316 = vadd.f32 0.0, %v2315
      %v2317 = vpop.f32.mrf.mxu0
      %2318 = vmatprep.mubr.f32.mxu0 0.0
      %2319 = vmatmul.mubr.f32.gmra.mxu0 %v2216
      %v2320 = vpop.f32.mrf.mxu0
      %v2321 = vadd.f32 0.0, %v2320
      %v2322 = vpop.f32.mrf.mxu0
      %2323 = vmatprep.mubr.f32.mxu0 0.0
      %2324 = vmatmul.mubr.f32.gmra.mxu0 %v2219
      %v2325 = vpop.f32.mrf.mxu0
      %v2326 = vadd.f32 0.0, %v2325
      %v2327 = vpop.f32.mrf.mxu0
      %2328 = vmatprep.mubr.f32.mxu0 0.0
      %2329 = vmatmul.mubr.f32.gmra.mxu0 %v2222
      %v2330 = vpop.f32.mrf.mxu0
      %v2331 = vadd.f32 0.0, %v2330
      %v2332 = vpop.f32.mrf.mxu0
      %2333 = vmatprep.mubr.f32.mxu0 0.0
      %2334 = vmatmul.mubr.f32.gmra.mxu0 %v2225
      %v2335 = vpop.f32.mrf.mxu0
      %v2336 = vadd.f32 0.0, %v2335
      %v2337 = vpop.f32.mrf.mxu0
      %2338 = vmatprep.mubr.f32.mxu0 0.0
      %2339 = vmatmul.mubr.f32.gmra.mxu0 %v2228
      %v2340 = vpop.f32.mrf.mxu0
      %v2341 = vadd.f32 0.0, %v2340
      %v2342 = vpop.f32.mrf.mxu0
      %2343 = vdwg.mxu0
      %v2344 = vmul.f32 %v2311, 0.35355338
      %v2345 = vmul.f32 %v2316, 0.35355338
      %v2346 = vmul.f32 %v2321, 0.35355338
      %v2347 = vmul.f32 %v2326, 0.35355338
      %v2348 = vmul.f32 %v2331, 0.35355338
      %v2349 = vmul.f32 %v2336, 0.35355338
      %v2350 = vmul.f32 %v2341, 0.35355338
      %v2351 = vsel %vm506, %v2344, -inf
      %2352 = vmax.xlane.f32.xlu0 %v2351
      %v2353 = vpop.xlane.xlu0 %2352
      %v2354 = vsel %vm506, %v2345, -inf
      %2355 = vmax.xlane.f32.xlu0 %v2354
      %v2356 = vpop.xlane.xlu0 %2355
      %v2357 = vsel %vm506, %v2346, -inf
      %2358 = vmax.xlane.f32.xlu0 %v2357
      %v2359 = vpop.xlane.xlu0 %2358
      %v2360 = vsel %vm506, %v2347, -inf
      %2361 = vmax.xlane.f32.xlu0 %v2360
      %v2362 = vpop.xlane.xlu0 %2361
      %v2363 = vsel %vm506, %v2348, -inf
      %2364 = vmax.xlane.f32.xlu0 %v2363
      %v2365 = vpop.xlane.xlu0 %2364
      %v2366 = vsel %vm506, %v2349, -inf
      %2367 = vmax.xlane.f32.xlu0 %v2366
      %v2368 = vpop.xlane.xlu0 %2367
      %v2369 = vsel %vm525, %v2350, -inf
      %2370 = vmax.xlane.f32.xlu0 %v2369
      %v2371 = vpop.xlane.xlu0 %2370
      %v2372 = vsub.f32 %v2344, %v2353
      %v2373 = vsub.f32 %v2345, %v2356
      %v2374 = vsub.f32 %v2346, %v2359
      %v2375 = vsub.f32 %v2347, %v2362
      %v2376 = vsub.f32 %v2348, %v2365
      %v2377 = vsub.f32 %v2349, %v2368
      %v2378 = vsub.f32 %v2350, %v2371
      %v2379 = vmul.f32 %v2372, 1.442695
      %v2380 = vpow.pop %v2379
      %v2381 = vmul.f32 %v2373, 1.442695
      %v2382 = vpow.pop %v2381
      %v2383 = vmul.f32 %v2374, 1.442695
      %v2384 = vpow.pop %v2383
      %v2385 = vmul.f32 %v2375, 1.442695
      %v2386 = vpow.pop %v2385
      %v2387 = vmul.f32 %v2376, 1.442695
      %v2388 = vpow.pop %v2387
      %v2389 = vmul.f32 %v2377, 1.442695
      %v2390 = vpow.pop %v2389
      %v2391 = vmul.f32 %v2378, 1.442695
      %v2392 = vpow.pop %v2391
      %v2393 = vsel %vm506, %v2380, 0.0
      %2394 = vadd.xlane.f32.xlu0 %v2393
      %v2395 = vpop.xlane.xlu0 %2394
      %v2396 = vsel %vm506, %v2382, 0.0
      %2397 = vadd.xlane.f32.xlu0 %v2396
      %v2398 = vpop.xlane.xlu0 %2397
      %v2399 = vsel %vm506, %v2384, 0.0
      %2400 = vadd.xlane.f32.xlu0 %v2399
      %v2401 = vpop.xlane.xlu0 %2400
      %v2402 = vsel %vm506, %v2386, 0.0
      %2403 = vadd.xlane.f32.xlu0 %v2402
      %v2404 = vpop.xlane.xlu0 %2403
      %v2405 = vsel %vm506, %v2388, 0.0
      %2406 = vadd.xlane.f32.xlu0 %v2405
      %v2407 = vpop.xlane.xlu0 %2406
      %v2408 = vsel %vm506, %v2390, 0.0
      %2409 = vadd.xlane.f32.xlu0 %v2408
      %v2410 = vpop.xlane.xlu0 %2409
      %v2411 = vsel %vm525, %v2392, 0.0
      %2412 = vadd.xlane.f32.xlu0 %v2411
      %v2413 = vpop.xlane.xlu0 %2412
      %v2414 = vrcp.pop %v2395
      %v2415 = vmul.f32 %v2380, %v2414
      %v2416 = vrcp.pop %v2398
      %v2417 = vmul.f32 %v2382, %v2416
      %v2418 = vrcp.pop %v2401
      %v2419 = vmul.f32 %v2384, %v2418
      %v2420 = vrcp.pop %v2404
      %v2421 = vmul.f32 %v2386, %v2420
      %v2422 = vrcp.pop %v2407
      %v2423 = vmul.f32 %v2388, %v2422
      %v2424 = vrcp.pop %v2410
      %v2425 = vmul.f32 %v2390, %v2424
      %v2426 = vrcp.pop %v2413
      %v2427 = vmul.f32 %v2392, %v2426
      %v2428 = vmul.f32 %v2174, %v587
      %v2429 = vmul.f32 %v2175, %v587
      %v2430 = vmul.f32 %v2176, %v587
      %v2431 = vmul.f32 %v2177, %v587
      %v2432 = vmul.f32 %v2178, %v587
      %v2433 = vmul.f32 %v2179, %v587
      %v2434 = vmul.f32 %v2180, %v587
      %v2435 = vmul.f32 %v2141, %v193
      %v2436 = vmul.f32 %v2146, %v193
      %v2437 = vmul.f32 %v2151, %v193
      %v2438 = vmul.f32 %v2156, %v193
      %v2439 = vmul.f32 %v2161, %v193
      %v2440 = vmul.f32 %v2166, %v193
      %v2441 = vmul.f32 %v2171, %v193
      %v2443 = vsel %vm207, %v2435, 0
      %v2446 = vsel %vm207, %v2436, 0
      %v2449 = vsel %vm207, %v2437, 0
      %v2452 = vsel %vm207, %v2438, 0
      %v2455 = vsel %vm207, %v2439, 0
      %v2458 = vsel %vm207, %v2440, 0
      %v2461 = vsel %vm207, %v2441, 0
      %2463 = vmatprep.subr.mxu0 0.0
      %2464 = vmatpush1.xpose.msra.mxu0 0.0
      %2465 = vmatprep.subr.mxu0 0.0
      %2466 = vmatpush1.xpose.msra.mxu0 0.0
      %2467 = vmatprep.subr.mxu0 0.0
      %2468 = vmatpush1.xpose.msra.mxu0 0.0
      %2469 = vmatprep.subr.mxu0 0.0
      %2470 = vmatpush1.xpose.msra.mxu0 0.0
      %2471 = vmatprep.subr.mxu0 0.0
      %2472 = vmatpush1.xpose.msra.mxu0 0.0
      %2473 = vmatprep.subr.mxu0 0.0
      %2474 = vmatpush1.xpose.msra.mxu0 0.0
      %2475 = vmatprep.subr.mxu0 0.0
      %2476 = vmatpush1.xpose.msra.mxu0 0.0
      %2477 = vmatprep.subr.mxu0 0.0
      %2478 = vmatpush1.xpose.msra.mxu0 0.0
      %2479 = vmatprep.subr.mxu0 0.0
      %2480 = vmatpush1.xpose.msra.mxu0 0.0
      %2481 = vmatprep.subr.mxu0 0.0
      %2482 = vmatpush1.xpose.msra.mxu0 %v2242
      %2483 = vmatprep.subr.mxu0 0.0
      %2484 = vmatpush1.xpose.msra.mxu0 %v2240
      %2485 = vmatprep.subr.mxu0 0.0
      %2486 = vmatpush1.xpose.msra.mxu0 %v2238
      %2487 = vmatprep.subr.mxu0 0.0
      %2488 = vmatpush1.xpose.msra.mxu0 %v2236
      %2489 = vmatprep.subr.mxu0 0.0
      %2490 = vmatpush1.xpose.msra.mxu0 %v2234
      %2491 = vmatprep.subr.mxu0 0.0
      %2492 = vmatpush1.xpose.msra.mxu0 %v2232
      %2493 = vmatprep.subr.mxu0 0.0
      %2494 = vmatpush1.xpose.msra.mxu0 %v2230
      %2495 = vmatprep.subr.mxu0 0.0
      %2496 = vmatpush2.xpose.msra.mxu0 0.0
      %2497 = vmatprep.subr.mxu0 0.0
      %2498 = vmatpush2.xpose.msra.mxu0 0.0
      %2499 = vmatprep.subr.mxu0 0.0
      %2500 = vmatpush2.xpose.msra.mxu0 0.0
      %2501 = vmatprep.subr.mxu0 0.0
      %2502 = vmatpush2.xpose.msra.mxu0 0.0
      %2503 = vmatprep.subr.mxu0 0.0
      %2504 = vmatpush2.xpose.msra.mxu0 0.0
      %2505 = vmatprep.subr.mxu0 0.0
      %2506 = vmatpush2.xpose.msra.mxu0 0.0
      %2507 = vmatprep.subr.mxu0 0.0
      %2508 = vmatpush2.xpose.msra.mxu0 0.0
      %2509 = vmatprep.subr.mxu0 0.0
      %2510 = vmatpush2.xpose.msra.mxu0 0.0
      %2511 = vmatprep.subr.mxu0 0.0
      %2512 = vmatpush2.xpose.msra.mxu0 0.0
      %2513 = vmatprep.subr.mxu0 0.0
      %2514 = vmatpush2.xpose.msra.mxu0 0.0
      %2515 = vmatprep.subr.mxu0 0.0
      %2516 = vmatpush2.xpose.msra.mxu0 0.0
      %2517 = vmatprep.subr.mxu0 0.0
      %2518 = vmatpush2.xpose.msra.mxu0 0.0
      %2519 = vmatprep.subr.mxu0 0.0
      %2520 = vmatpush2.xpose.msra.mxu0 0.0
      %2521 = vmatprep.subr.mxu0 0.0
      %2522 = vmatpush2.xpose.msra.mxu0 0.0
      %2523 = vmatprep.subr.mxu0 0.0
      %2524 = vmatpush2.xpose.msra.mxu0 0.0
      %2525 = vmatprep.subr.mxu0 0.0
      %2526 = vmatpush2.xpose.msra.mxu0 0.0
      %2527 = vmatprep.mubr.f32.mxu0 0.0
      %2528 = vmatmul.mubr.f32.gmra.mxu0 %v2443
      %v2529 = vpop.f32.mrf.mxu0
      %v2530 = vadd.f32 0.0, %v2529
      %v2531 = vpop.f32.mrf.mxu0
      %2532 = vmatprep.mubr.f32.mxu0 0.0
      %2533 = vmatmul.mubr.f32.gmra.mxu0 %v2446
      %v2534 = vpop.f32.mrf.mxu0
      %v2535 = vadd.f32 0.0, %v2534
      %v2536 = vpop.f32.mrf.mxu0
      %2537 = vmatprep.mubr.f32.mxu0 0.0
      %2538 = vmatmul.mubr.f32.gmra.mxu0 %v2449
      %v2539 = vpop.f32.mrf.mxu0
      %v2540 = vadd.f32 0.0, %v2539
      %v2541 = vpop.f32.mrf.mxu0
      %2542 = vmatprep.mubr.f32.mxu0 0.0
      %2543 = vmatmul.mubr.f32.gmra.mxu0 %v2452
      %v2544 = vpop.f32.mrf.mxu0
      %v2545 = vadd.f32 0.0, %v2544
      %v2546 = vpop.f32.mrf.mxu0
      %2547 = vmatprep.mubr.f32.mxu0 0.0
      %2548 = vmatmul.mubr.f32.gmra.mxu0 %v2455
      %v2549 = vpop.f32.mrf.mxu0
      %v2550 = vadd.f32 0.0, %v2549
      %v2551 = vpop.f32.mrf.mxu0
      %2552 = vmatprep.mubr.f32.mxu0 0.0
      %2553 = vmatmul.mubr.f32.gmra.mxu0 %v2458
      %v2554 = vpop.f32.mrf.mxu0
      %v2555 = vadd.f32 0.0, %v2554
      %v2556 = vpop.f32.mrf.mxu0
      %2557 = vmatprep.mubr.f32.mxu0 0.0
      %2558 = vmatmul.mubr.f32.gmra.mxu0 %v2461
      %v2559 = vpop.f32.mrf.mxu0
      %v2560 = vadd.f32 0.0, %v2559
      %v2561 = vpop.f32.mrf.mxu0
      %2562 = vdwg.mxu0
      %v2563 = vmul.f32 %v2530, 0.35355338
      %v2564 = vmul.f32 %v2535, 0.35355338
      %v2565 = vmul.f32 %v2540, 0.35355338
      %v2566 = vmul.f32 %v2545, 0.35355338
      %v2567 = vmul.f32 %v2550, 0.35355338
      %v2568 = vmul.f32 %v2555, 0.35355338
      %v2569 = vmul.f32 %v2560, 0.35355338
      %v2570 = vsel %vm506, %v2563, -inf
      %2571 = vmax.xlane.f32.xlu0 %v2570
      %v2572 = vpop.xlane.xlu0 %2571
      %v2573 = vsel %vm506, %v2564, -inf
      %2574 = vmax.xlane.f32.xlu0 %v2573
      %v2575 = vpop.xlane.xlu0 %2574
      %v2576 = vsel %vm506, %v2565, -inf
      %2577 = vmax.xlane.f32.xlu0 %v2576
      %v2578 = vpop.xlane.xlu0 %2577
      %v2579 = vsel %vm506, %v2566, -inf
      %2580 = vmax.xlane.f32.xlu0 %v2579
      %v2581 = vpop.xlane.xlu0 %2580
      %v2582 = vsel %vm506, %v2567, -inf
      %2583 = vmax.xlane.f32.xlu0 %v2582
      %v2584 = vpop.xlane.xlu0 %2583
      %v2585 = vsel %vm506, %v2568, -inf
      %2586 = vmax.xlane.f32.xlu0 %v2585
      %v2587 = vpop.xlane.xlu0 %2586
      %v2588 = vsel %vm525, %v2569, -inf
      %2589 = vmax.xlane.f32.xlu0 %v2588
      %v2590 = vpop.xlane.xlu0 %2589
      %v2591 = vsub.f32 %v2563, %v2572
      %v2592 = vsub.f32 %v2564, %v2575
      %v2593 = vsub.f32 %v2565, %v2578
      %v2594 = vsub.f32 %v2566, %v2581
      %v2595 = vsub.f32 %v2567, %v2584
      %v2596 = vsub.f32 %v2568, %v2587
      %v2597 = vsub.f32 %v2569, %v2590
      %v2598 = vmul.f32 %v2591, 1.442695
      %v2599 = vpow.pop %v2598
      %v2600 = vmul.f32 %v2592, 1.442695
      %v2601 = vpow.pop %v2600
      %v2602 = vmul.f32 %v2593, 1.442695
      %v2603 = vpow.pop %v2602
      %v2604 = vmul.f32 %v2594, 1.442695
      %v2605 = vpow.pop %v2604
      %v2606 = vmul.f32 %v2595, 1.442695
      %v2607 = vpow.pop %v2606
      %v2608 = vmul.f32 %v2596, 1.442695
      %v2609 = vpow.pop %v2608
      %v2610 = vmul.f32 %v2597, 1.442695
      %v2611 = vpow.pop %v2610
      %v2612 = vsel %vm506, %v2599, 0.0
      %2613 = vadd.xlane.f32.xlu0 %v2612
      %v2614 = vpop.xlane.xlu0 %2613
      %v2615 = vsel %vm506, %v2601, 0.0
      %2616 = vadd.xlane.f32.xlu0 %v2615
      %v2617 = vpop.xlane.xlu0 %2616
      %v2618 = vsel %vm506, %v2603, 0.0
      %2619 = vadd.xlane.f32.xlu0 %v2618
      %v2620 = vpop.xlane.xlu0 %2619
      %v2621 = vsel %vm506, %v2605, 0.0
      %2622 = vadd.xlane.f32.xlu0 %v2621
      %v2623 = vpop.xlane.xlu0 %2622
      %v2624 = vsel %vm506, %v2607, 0.0
      %2625 = vadd.xlane.f32.xlu0 %v2624
      %v2626 = vpop.xlane.xlu0 %2625
      %v2627 = vsel %vm506, %v2609, 0.0
      %2628 = vadd.xlane.f32.xlu0 %v2627
      %v2629 = vpop.xlane.xlu0 %2628
      %v2630 = vsel %vm525, %v2611, 0.0
      %2631 = vadd.xlane.f32.xlu0 %v2630
      %v2632 = vpop.xlane.xlu0 %2631
      %v2633 = vrcp.pop %v2614
      %v2634 = vmul.f32 %v2599, %v2633
      %v2635 = vrcp.pop %v2617
      %v2636 = vmul.f32 %v2601, %v2635
      %v2637 = vrcp.pop %v2620
      %v2638 = vmul.f32 %v2603, %v2637
      %v2639 = vrcp.pop %v2623
      %v2640 = vmul.f32 %v2605, %v2639
      %v2641 = vrcp.pop %v2626
      %v2642 = vmul.f32 %v2607, %v2641
      %v2643 = vrcp.pop %v2629
      %v2644 = vmul.f32 %v2609, %v2643
      %v2645 = vrcp.pop %v2632
      %v2646 = vmul.f32 %v2611, %v2645
      %v2647 = vmul.f32 %v2174, %v810
      %v2648 = vmul.f32 %v2175, %v810
      %v2649 = vmul.f32 %v2176, %v810
      %v2650 = vmul.f32 %v2177, %v810
      %v2651 = vmul.f32 %v2178, %v810
      %v2652 = vmul.f32 %v2179, %v810
      %v2653 = vmul.f32 %v2180, %v810
      %2661 = vrot.lane.b32.xlu0 %v2647, 96
      %v2662 = vpop.permute.xlu0 %2661
      %2663 = vrot.lane.b32.xlu0 %v2648, 96
      %v2664 = vpop.permute.xlu0 %2663
      %2665 = vrot.lane.b32.xlu0 %v2649, 96
      %v2666 = vpop.permute.xlu0 %2665
      %2667 = vrot.lane.b32.xlu0 %v2650, 96
      %v2668 = vpop.permute.xlu0 %2667
      %2669 = vrot.lane.b32.xlu0 %v2651, 96
      %v2670 = vpop.permute.xlu0 %2669
      %2671 = vrot.lane.b32.xlu0 %v2652, 96
      %v2672 = vpop.permute.xlu0 %2671
      %2673 = vrot.lane.b32.xlu0 %v2653, 96
      %v2674 = vpop.permute.xlu0 %2673
      %v2682 = vsel %vm506, %v2634, 0
      %v2685 = vsel %vm506, %v2636, 0
      %v2688 = vsel %vm506, %v2638, 0
      %v2691 = vsel %vm506, %v2640, 0
      %v2694 = vsel %vm506, %v2642, 0
      %v2697 = vsel %vm506, %v2644, 0
      %v2700 = vsel %vm506, %v2646, 0
      %v2702 = vsel %vm867, %v2674, 0
      %2704 = vmatprep.subr.mxu0 0.0
      %2705 = vmatpush1.msra.mxu0 0.0
      %2706 = vmatprep.subr.mxu0 0.0
      %2707 = vmatpush1.msra.mxu0 0.0
      %2708 = vmatprep.subr.mxu0 0.0
      %2709 = vmatpush1.msra.mxu0 0.0
      %2710 = vmatprep.subr.mxu0 0.0
      %2711 = vmatpush1.msra.mxu0 0.0
      %2712 = vmatprep.subr.mxu0 0.0
      %2713 = vmatpush1.msra.mxu0 0.0
      %2714 = vmatprep.subr.mxu0 0.0
      %2715 = vmatpush1.msra.mxu0 0.0
      %2716 = vmatprep.subr.mxu0 0.0
      %2717 = vmatpush1.msra.mxu0 0.0
      %2718 = vmatprep.subr.mxu0 0.0
      %2719 = vmatpush1.msra.mxu0 0.0
      %2720 = vmatprep.subr.mxu0 0.0
      %2721 = vmatpush1.msra.mxu0 0.0
      %2722 = vmatprep.subr.mxu0 0.0
      %2723 = vmatpush1.msra.mxu0 %v2702
      %2724 = vmatprep.subr.mxu0 0.0
      %2725 = vmatpush1.msra.mxu0 %v2672
      %2726 = vmatprep.subr.mxu0 0.0
      %2727 = vmatpush1.msra.mxu0 %v2670
      %2728 = vmatprep.subr.mxu0 0.0
      %2729 = vmatpush1.msra.mxu0 %v2668
      %2730 = vmatprep.subr.mxu0 0.0
      %2731 = vmatpush1.msra.mxu0 %v2666
      %2732 = vmatprep.subr.mxu0 0.0
      %2733 = vmatpush1.msra.mxu0 %v2664
      %2734 = vmatprep.subr.mxu0 0.0
      %2735 = vmatpush1.msra.mxu0 %v2662
      %2736 = vmatprep.subr.mxu0 0.0
      %2737 = vmatpush2.msra.mxu0 0.0
      %2738 = vmatprep.subr.mxu0 0.0
      %2739 = vmatpush2.msra.mxu0 0.0
      %2740 = vmatprep.subr.mxu0 0.0
      %2741 = vmatpush2.msra.mxu0 0.0
      %2742 = vmatprep.subr.mxu0 0.0
      %2743 = vmatpush2.msra.mxu0 0.0
      %2744 = vmatprep.subr.mxu0 0.0
      %2745 = vmatpush2.msra.mxu0 0.0
      %2746 = vmatprep.subr.mxu0 0.0
      %2747 = vmatpush2.msra.mxu0 0.0
      %2748 = vmatprep.subr.mxu0 0.0
      %2749 = vmatpush2.msra.mxu0 0.0
      %2750 = vmatprep.subr.mxu0 0.0
      %2751 = vmatpush2.msra.mxu0 0.0
      %2752 = vmatprep.subr.mxu0 0.0
      %2753 = vmatpush2.msra.mxu0 0.0
      %2754 = vmatprep.subr.mxu0 0.0
      %2755 = vmatpush2.msra.mxu0 0.0
      %2756 = vmatprep.subr.mxu0 0.0
      %2757 = vmatpush2.msra.mxu0 0.0
      %2758 = vmatprep.subr.mxu0 0.0
      %2759 = vmatpush2.msra.mxu0 0.0
      %2760 = vmatprep.subr.mxu0 0.0
      %2761 = vmatpush2.msra.mxu0 0.0
      %2762 = vmatprep.subr.mxu0 0.0
      %2763 = vmatpush2.msra.mxu0 0.0
      %2764 = vmatprep.subr.mxu0 0.0
      %2765 = vmatpush2.msra.mxu0 0.0
      %2766 = vmatprep.subr.mxu0 0.0
      %2767 = vmatpush2.msra.mxu0 0.0
      %2768 = vmatprep.mubr.f32.mxu0 0.0
      %2769 = vmatmul.mubr.f32.gmra.mxu0 %v2682
      %v2770 = vpop.f32.mrf.mxu0
      %v2771 = vadd.f32 0.0, %v2770
      %v2772 = vpop.f32.mrf.mxu0
      %2773 = vmatprep.mubr.f32.mxu0 0.0
      %2774 = vmatmul.mubr.f32.gmra.mxu0 %v2685
      %v2775 = vpop.f32.mrf.mxu0
      %v2776 = vadd.f32 0.0, %v2775
      %v2777 = vpop.f32.mrf.mxu0
      %2778 = vmatprep.mubr.f32.mxu0 0.0
      %2779 = vmatmul.mubr.f32.gmra.mxu0 %v2688
      %v2780 = vpop.f32.mrf.mxu0
      %v2781 = vadd.f32 0.0, %v2780
      %v2782 = vpop.f32.mrf.mxu0
      %2783 = vmatprep.mubr.f32.mxu0 0.0
      %2784 = vmatmul.mubr.f32.gmra.mxu0 %v2691
      %v2785 = vpop.f32.mrf.mxu0
      %v2786 = vadd.f32 0.0, %v2785
      %v2787 = vpop.f32.mrf.mxu0
      %2788 = vmatprep.mubr.f32.mxu0 0.0
      %2789 = vmatmul.mubr.f32.gmra.mxu0 %v2694
      %v2790 = vpop.f32.mrf.mxu0
      %v2791 = vadd.f32 0.0, %v2790
      %v2792 = vpop.f32.mrf.mxu0
      %2793 = vmatprep.mubr.f32.mxu0 0.0
      %2794 = vmatmul.mubr.f32.gmra.mxu0 %v2697
      %v2795 = vpop.f32.mrf.mxu0
      %v2796 = vadd.f32 0.0, %v2795
      %v2797 = vpop.f32.mrf.mxu0
      %2798 = vmatprep.mubr.f32.mxu0 0.0
      %2799 = vmatmul.mubr.f32.gmra.mxu0 %v2700
      %v2800 = vpop.f32.mrf.mxu0
      %v2801 = vadd.f32 0.0, %v2800
      %v2802 = vpop.f32.mrf.mxu0
      %2803 = vdwg.mxu0
      %2811 = vrot.lane.b32.xlu0 %v2428, 96
      %v2812 = vpop.permute.xlu0 %2811
      %2813 = vrot.lane.b32.xlu0 %v2429, 96
      %v2814 = vpop.permute.xlu0 %2813
      %2815 = vrot.lane.b32.xlu0 %v2430, 96
      %v2816 = vpop.permute.xlu0 %2815
      %2817 = vrot.lane.b32.xlu0 %v2431, 96
      %v2818 = vpop.permute.xlu0 %2817
      %2819 = vrot.lane.b32.xlu0 %v2432, 96
      %v2820 = vpop.permute.xlu0 %2819
      %2821 = vrot.lane.b32.xlu0 %v2433, 96
      %v2822 = vpop.permute.xlu0 %2821
      %2823 = vrot.lane.b32.xlu0 %v2434, 96
      %v2824 = vpop.permute.xlu0 %2823
      %v2832 = vsel %vm506, %v2415, 0
      %v2835 = vsel %vm506, %v2417, 0
      %v2838 = vsel %vm506, %v2419, 0
      %v2841 = vsel %vm506, %v2421, 0
      %v2844 = vsel %vm506, %v2423, 0
      %v2847 = vsel %vm506, %v2425, 0
      %v2850 = vsel %vm506, %v2427, 0
      %v2852 = vsel %vm867, %v2824, 0
      %2854 = vmatprep.subr.mxu0 0.0
      %2855 = vmatpush1.msra.mxu0 0.0
      %2856 = vmatprep.subr.mxu0 0.0
      %2857 = vmatpush1.msra.mxu0 0.0
      %2858 = vmatprep.subr.mxu0 0.0
      %2859 = vmatpush1.msra.mxu0 0.0
      %2860 = vmatprep.subr.mxu0 0.0
      %2861 = vmatpush1.msra.mxu0 0.0
      %2862 = vmatprep.subr.mxu0 0.0
      %2863 = vmatpush1.msra.mxu0 0.0
      %2864 = vmatprep.subr.mxu0 0.0
      %2865 = vmatpush1.msra.mxu0 0.0
      %2866 = vmatprep.subr.mxu0 0.0
      %2867 = vmatpush1.msra.mxu0 0.0
      %2868 = vmatprep.subr.mxu0 0.0
      %2869 = vmatpush1.msra.mxu0 0.0
      %2870 = vmatprep.subr.mxu0 0.0
      %2871 = vmatpush1.msra.mxu0 0.0
      %2872 = vmatprep.subr.mxu0 0.0
      %2873 = vmatpush1.msra.mxu0 %v2852
      %2874 = vmatprep.subr.mxu0 0.0
      %2875 = vmatpush1.msra.mxu0 %v2822
      %2876 = vmatprep.subr.mxu0 0.0
      %2877 = vmatpush1.msra.mxu0 %v2820
      %2878 = vmatprep.subr.mxu0 0.0
      %2879 = vmatpush1.msra.mxu0 %v2818
      %2880 = vmatprep.subr.mxu0 0.0
      %2881 = vmatpush1.msra.mxu0 %v2816
      %2882 = vmatprep.subr.mxu0 0.0
      %2883 = vmatpush1.msra.mxu0 %v2814
      %2884 = vmatprep.subr.mxu0 0.0
      %2885 = vmatpush1.msra.mxu0 %v2812
      %2886 = vmatprep.subr.mxu0 0.0
      %2887 = vmatpush2.msra.mxu0 0.0
      %2888 = vmatprep.subr.mxu0 0.0
      %2889 = vmatpush2.msra.mxu0 0.0
      %2890 = vmatprep.subr.mxu0 0.0
      %2891 = vmatpush2.msra.mxu0 0.0
      %2892 = vmatprep.subr.mxu0 0.0
      %2893 = vmatpush2.msra.mxu0 0.0
      %2894 = vmatprep.subr.mxu0 0.0
      %2895 = vmatpush2.msra.mxu0 0.0
      %2896 = vmatprep.subr.mxu0 0.0
      %2897 = vmatpush2.msra.mxu0 0.0
      %2898 = vmatprep.subr.mxu0 0.0
      %2899 = vmatpush2.msra.mxu0 0.0
      %2900 = vmatprep.subr.mxu0 0.0
      %2901 = vmatpush2.msra.mxu0 0.0
      %2902 = vmatprep.subr.mxu0 0.0
      %2903 = vmatpush2.msra.mxu0 0.0
      %2904 = vmatprep.subr.mxu0 0.0
      %2905 = vmatpush2.msra.mxu0 0.0
      %2906 = vmatprep.subr.mxu0 0.0
      %2907 = vmatpush2.msra.mxu0 0.0
      %2908 = vmatprep.subr.mxu0 0.0
      %2909 = vmatpush2.msra.mxu0 0.0
      %2910 = vmatprep.subr.mxu0 0.0
      %2911 = vmatpush2.msra.mxu0 0.0
      %2912 = vmatprep.subr.mxu0 0.0
      %2913 = vmatpush2.msra.mxu0 0.0
      %2914 = vmatprep.subr.mxu0 0.0
      %2915 = vmatpush2.msra.mxu0 0.0
      %2916 = vmatprep.subr.mxu0 0.0
      %2917 = vmatpush2.msra.mxu0 0.0
      %2918 = vmatprep.mubr.f32.mxu0 0.0
      %2919 = vmatmul.mubr.f32.gmra.mxu0 %v2832
      %v2920 = vpop.f32.mrf.mxu0
      %v2921 = vadd.f32 %v2771, %v2920
      %v2922 = vpop.f32.mrf.mxu0
      %2923 = vmatprep.mubr.f32.mxu0 0.0
      %2924 = vmatmul.mubr.f32.gmra.mxu0 %v2835
      %v2925 = vpop.f32.mrf.mxu0
      %v2926 = vadd.f32 %v2776, %v2925
      %v2927 = vpop.f32.mrf.mxu0
      %2928 = vmatprep.mubr.f32.mxu0 0.0
      %2929 = vmatmul.mubr.f32.gmra.mxu0 %v2838
      %v2930 = vpop.f32.mrf.mxu0
      %v2931 = vadd.f32 %v2781, %v2930
      %v2932 = vpop.f32.mrf.mxu0
      %2933 = vmatprep.mubr.f32.mxu0 0.0
      %2934 = vmatmul.mubr.f32.gmra.mxu0 %v2841
      %v2935 = vpop.f32.mrf.mxu0
      %v2936 = vadd.f32 %v2786, %v2935
      %v2937 = vpop.f32.mrf.mxu0
      %2938 = vmatprep.mubr.f32.mxu0 0.0
      %2939 = vmatmul.mubr.f32.gmra.mxu0 %v2844
      %v2940 = vpop.f32.mrf.mxu0
      %v2941 = vadd.f32 %v2791, %v2940
      %v2942 = vpop.f32.mrf.mxu0
      %2943 = vmatprep.mubr.f32.mxu0 0.0
      %2944 = vmatmul.mubr.f32.gmra.mxu0 %v2847
      %v2945 = vpop.f32.mrf.mxu0
      %v2946 = vadd.f32 %v2796, %v2945
      %v2947 = vpop.f32.mrf.mxu0
      %2948 = vmatprep.mubr.f32.mxu0 0.0
      %2949 = vmatmul.mubr.f32.gmra.mxu0 %v2850
      %v2950 = vpop.f32.mrf.mxu0
      %v2951 = vadd.f32 %v2801, %v2950
      %v2952 = vpop.f32.mrf.mxu0
      %2953 = vdwg.mxu0
      %s2954 = scalar_lea.vmem %s177, 112
      %2955 = vst.msk [vmem:[%s2954] sm:$0xff] %vm207, %v2921
      %2956 = vst.msk [vmem:[%s2954 + $0x8] sm:$0xff] %vm207, %v2926
      %2957 = vst.msk [vmem:[%s2954 + $0x10] sm:$0xff] %vm207, %v2931
      %2958 = vst.msk [vmem:[%s2954 + $0x18] sm:$0xff] %vm207, %v2936
      %2959 = vst.msk [vmem:[%s2954 + $0x20] sm:$0xff] %vm207, %v2941
      %2960 = vst.msk [vmem:[%s2954 + $0x28] sm:$0xff] %vm207, %v2946
      %2961 = vst.msk [vmem:[%s2954 + $0x30] sm:$0x1] %vm1126, %v2951
      %s2962 = scalar_lea.vmem %s170, 168
      %v2963 = vld [vmem:[%s2962] sm:$0xff]
      %v2964 = vld [vmem:[%s2962 + $0x8] sm:$0xff]
      %v2965 = vld [vmem:[%s2962 + $0x10] sm:$0xff]
      %v2966 = vld [vmem:[%s2962 + $0x18] sm:$0xff]
      %v2967 = vld [vmem:[%s2962 + $0x20] sm:$0xff]
      %v2968 = vld [vmem:[%s2962 + $0x28] sm:$0xff]
      %v2969 = vld [vmem:[%s2962 + $0x30] sm:$0x1]
      %v2971 = vsel %vm207, %v2963, 0
      %v2974 = vsel %vm207, %v2964, 0
      %v2977 = vsel %vm207, %v2965, 0
      %v2980 = vsel %vm207, %v2966, 0
      %v2983 = vsel %vm207, %v2967, 0
      %v2986 = vsel %vm207, %v2968, 0
      %v2989 = vsel %vm207, %v2969, 0
      %2991 = vmatprep.subr.mxu0 0.0
      %2992 = vmatpush1.msra.mxu0 0.0
      %2993 = vmatprep.subr.mxu0 0.0
      %2994 = vmatpush1.msra.mxu0 0.0
      %2995 = vmatprep.subr.mxu0 0.0
      %2996 = vmatpush1.msra.mxu0 0.0
      %2997 = vmatprep.subr.mxu0 0.0
      %2998 = vmatpush1.msra.mxu0 0.0
      %2999 = vmatprep.subr.mxu0 0.0
      %3000 = vmatpush1.msra.mxu0 0.0
      %3001 = vmatprep.subr.mxu0 0.0
      %3002 = vmatpush1.msra.mxu0 0.0
      %3003 = vmatprep.subr.mxu0 0.0
      %3004 = vmatpush1.msra.mxu0 0.0
      %3005 = vmatprep.subr.mxu0 0.0
      %3006 = vmatpush1.msra.mxu0 0.0
      %3007 = vmatprep.subr.mxu0 0.0
      %3008 = vmatpush1.msra.mxu0 0.0
      %3009 = vmatprep.subr.mxu0 0.0
      %3010 = vmatpush1.msra.mxu0 0.0
      %3011 = vmatprep.subr.mxu0 0.0
      %3012 = vmatpush1.msra.mxu0 0.0
      %3013 = vmatprep.subr.mxu0 0.0
      %3014 = vmatpush1.msra.mxu0 0.0
      %3015 = vmatprep.subr.mxu0 0.0
      %3016 = vmatpush1.msra.mxu0 0.0
      %3017 = vmatprep.subr.mxu0 0.0
      %3018 = vmatpush1.msra.mxu0 0.0
      %3019 = vmatprep.subr.mxu0 0.0
      %3020 = vmatpush1.msra.mxu0 %v180
      %3021 = vmatprep.subr.mxu0 0.0
      %3022 = vmatpush1.msra.mxu0 %v179
      %3023 = vmatprep.subr.mxu0 0.0
      %3024 = vmatpush2.msra.mxu0 0.0
      %3025 = vmatprep.subr.mxu0 0.0
      %3026 = vmatpush2.msra.mxu0 0.0
      %3027 = vmatprep.subr.mxu0 0.0
      %3028 = vmatpush2.msra.mxu0 0.0
      %3029 = vmatprep.subr.mxu0 0.0
      %3030 = vmatpush2.msra.mxu0 0.0
      %3031 = vmatprep.subr.mxu0 0.0
      %3032 = vmatpush2.msra.mxu0 0.0
      %3033 = vmatprep.subr.mxu0 0.0
      %3034 = vmatpush2.msra.mxu0 0.0
      %3035 = vmatprep.subr.mxu0 0.0
      %3036 = vmatpush2.msra.mxu0 0.0
      %3037 = vmatprep.subr.mxu0 0.0
      %3038 = vmatpush2.msra.mxu0 0.0
      %3039 = vmatprep.subr.mxu0 0.0
      %3040 = vmatpush2.msra.mxu0 0.0
      %3041 = vmatprep.subr.mxu0 0.0
      %3042 = vmatpush2.msra.mxu0 0.0
      %3043 = vmatprep.subr.mxu0 0.0
      %3044 = vmatpush2.msra.mxu0 0.0
      %3045 = vmatprep.subr.mxu0 0.0
      %3046 = vmatpush2.msra.mxu0 0.0
      %3047 = vmatprep.subr.mxu0 0.0
      %3048 = vmatpush2.msra.mxu0 0.0
      %3049 = vmatprep.subr.mxu0 0.0
      %3050 = vmatpush2.msra.mxu0 0.0
      %3051 = vmatprep.subr.mxu0 0.0
      %3052 = vmatpush2.msra.mxu0 0.0
      %3053 = vmatprep.subr.mxu0 0.0
      %3054 = vmatpush2.msra.mxu0 0.0
      %3055 = vmatprep.mubr.f32.mxu0 0.0
      %3056 = vmatmul.mubr.f32.gmra.mxu0 %v2971
      %v3057 = vpop.f32.mrf.mxu0
      %v3058 = vadd.f32 %v205, %v3057
      %v3059 = vpop.f32.mrf.mxu0
      %3060 = vmatprep.mubr.f32.mxu0 0.0
      %3061 = vmatmul.mubr.f32.gmra.mxu0 %v2974
      %v3062 = vpop.f32.mrf.mxu0
      %v3063 = vadd.f32 %v205, %v3062
      %v3064 = vpop.f32.mrf.mxu0
      %3065 = vmatprep.mubr.f32.mxu0 0.0
      %3066 = vmatmul.mubr.f32.gmra.mxu0 %v2977
      %v3067 = vpop.f32.mrf.mxu0
      %v3068 = vadd.f32 %v205, %v3067
      %v3069 = vpop.f32.mrf.mxu0
      %3070 = vmatprep.mubr.f32.mxu0 0.0
      %3071 = vmatmul.mubr.f32.gmra.mxu0 %v2980
      %v3072 = vpop.f32.mrf.mxu0
      %v3073 = vadd.f32 %v205, %v3072
      %v3074 = vpop.f32.mrf.mxu0
      %3075 = vmatprep.mubr.f32.mxu0 0.0
      %3076 = vmatmul.mubr.f32.gmra.mxu0 %v2983
      %v3077 = vpop.f32.mrf.mxu0
      %v3078 = vadd.f32 %v205, %v3077
      %v3079 = vpop.f32.mrf.mxu0
      %3080 = vmatprep.mubr.f32.mxu0 0.0
      %3081 = vmatmul.mubr.f32.gmra.mxu0 %v2986
      %v3082 = vpop.f32.mrf.mxu0
      %v3083 = vadd.f32 %v205, %v3082
      %v3084 = vpop.f32.mrf.mxu0
      %3085 = vmatprep.mubr.f32.mxu0 0.0
      %3086 = vmatmul.mubr.f32.gmra.mxu0 %v2989
      %v3087 = vpop.f32.mrf.mxu0
      %v3088 = vadd.f32 %v205, %v3087
      %v3089 = vpop.f32.mrf.mxu0
      %3090 = vdwg.mxu0
      %v3091 = vmax.f32 %v3058, 0.0
      %v3092 = vmax.f32 %v3063, 0.0
      %v3093 = vmax.f32 %v3068, 0.0
      %v3094 = vmax.f32 %v3073, 0.0
      %v3095 = vmax.f32 %v3078, 0.0
      %v3096 = vmax.f32 %v3083, 0.0
      %v3097 = vmax.f32 %v3088, 0.0
      %v3098 = vmul.f32 %v3058, %v188
      %v3099 = vmul.f32 %v3063, %v188
      %v3100 = vmul.f32 %v3068, %v188
      %v3101 = vmul.f32 %v3073, %v188
      %v3102 = vmul.f32 %v3078, %v188
      %v3103 = vmul.f32 %v3083, %v188
      %v3104 = vmul.f32 %v3088, %v188
      %3112 = vrot.lane.b32.xlu0 %v3058, 112
      %v3113 = vpop.permute.xlu0 %3112
      %3114 = vrot.lane.b32.xlu0 %v3063, 112
      %v3115 = vpop.permute.xlu0 %3114
      %3116 = vrot.lane.b32.xlu0 %v3068, 112
      %v3117 = vpop.permute.xlu0 %3116
      %3118 = vrot.lane.b32.xlu0 %v3073, 112
      %v3119 = vpop.permute.xlu0 %3118
      %3120 = vrot.lane.b32.xlu0 %v3078, 112
      %v3121 = vpop.permute.xlu0 %3120
      %3122 = vrot.lane.b32.xlu0 %v3083, 112
      %v3123 = vpop.permute.xlu0 %3122
      %3124 = vrot.lane.b32.xlu0 %v3088, 112
      %v3125 = vpop.permute.xlu0 %3124
      %v3127 = vsel %vm207, %v3098, 0
      %v3130 = vsel %vm207, %v3099, 0
      %v3133 = vsel %vm207, %v3100, 0
      %v3136 = vsel %vm207, %v3101, 0
      %v3139 = vsel %vm207, %v3102, 0
      %v3142 = vsel %vm207, %v3103, 0
      %v3145 = vsel %vm207, %v3104, 0
      %v3147 = vsel %vm207, %v3113, 0
      %v3149 = vsel %vm207, %v3115, 0
      %v3151 = vsel %vm207, %v3117, 0
      %v3153 = vsel %vm207, %v3119, 0
      %v3155 = vsel %vm207, %v3121, 0
      %v3157 = vsel %vm207, %v3123, 0
      %v3159 = vsel %vm207, %v3125, 0
      %3161 = vmatprep.subr.mxu0 0.0
      %3162 = vmatpush1.xpose.msra.mxu0 0.0
      %3163 = vmatprep.subr.mxu0 0.0
      %3164 = vmatpush1.xpose.msra.mxu0 0.0
      %3165 = vmatprep.subr.mxu0 0.0
      %3166 = vmatpush1.xpose.msra.mxu0 0.0
      %3167 = vmatprep.subr.mxu0 0.0
      %3168 = vmatpush1.xpose.msra.mxu0 0.0
      %3169 = vmatprep.subr.mxu0 0.0
      %3170 = vmatpush1.xpose.msra.mxu0 0.0
      %3171 = vmatprep.subr.mxu0 0.0
      %3172 = vmatpush1.xpose.msra.mxu0 0.0
      %3173 = vmatprep.subr.mxu0 0.0
      %3174 = vmatpush1.xpose.msra.mxu0 0.0
      %3175 = vmatprep.subr.mxu0 0.0
      %3176 = vmatpush1.xpose.msra.mxu0 0.0
      %3177 = vmatprep.subr.mxu0 0.0
      %3178 = vmatpush1.xpose.msra.mxu0 0.0
      %3179 = vmatprep.subr.mxu0 0.0
      %3180 = vmatpush1.xpose.msra.mxu0 %v3159
      %3181 = vmatprep.subr.mxu0 0.0
      %3182 = vmatpush1.xpose.msra.mxu0 %v3157
      %3183 = vmatprep.subr.mxu0 0.0
      %3184 = vmatpush1.xpose.msra.mxu0 %v3155
      %3185 = vmatprep.subr.mxu0 0.0
      %3186 = vmatpush1.xpose.msra.mxu0 %v3153
      %3187 = vmatprep.subr.mxu0 0.0
      %3188 = vmatpush1.xpose.msra.mxu0 %v3151
      %3189 = vmatprep.subr.mxu0 0.0
      %3190 = vmatpush1.xpose.msra.mxu0 %v3149
      %3191 = vmatprep.subr.mxu0 0.0
      %3192 = vmatpush1.xpose.msra.mxu0 %v3147
      %3193 = vmatprep.subr.mxu0 0.0
      %3194 = vmatpush2.xpose.msra.mxu0 0.0
      %3195 = vmatprep.subr.mxu0 0.0
      %3196 = vmatpush2.xpose.msra.mxu0 0.0
      %3197 = vmatprep.subr.mxu0 0.0
      %3198 = vmatpush2.xpose.msra.mxu0 0.0
      %3199 = vmatprep.subr.mxu0 0.0
      %3200 = vmatpush2.xpose.msra.mxu0 0.0
      %3201 = vmatprep.subr.mxu0 0.0
      %3202 = vmatpush2.xpose.msra.mxu0 0.0
      %3203 = vmatprep.subr.mxu0 0.0
      %3204 = vmatpush2.xpose.msra.mxu0 0.0
      %3205 = vmatprep.subr.mxu0 0.0
      %3206 = vmatpush2.xpose.msra.mxu0 0.0
      %3207 = vmatprep.subr.mxu0 0.0
      %3208 = vmatpush2.xpose.msra.mxu0 0.0
      %3209 = vmatprep.subr.mxu0 0.0
      %3210 = vmatpush2.xpose.msra.mxu0 0.0
      %3211 = vmatprep.subr.mxu0 0.0
      %3212 = vmatpush2.xpose.msra.mxu0 0.0
      %3213 = vmatprep.subr.mxu0 0.0
      %3214 = vmatpush2.xpose.msra.mxu0 0.0
      %3215 = vmatprep.subr.mxu0 0.0
      %3216 = vmatpush2.xpose.msra.mxu0 0.0
      %3217 = vmatprep.subr.mxu0 0.0
      %3218 = vmatpush2.xpose.msra.mxu0 0.0
      %3219 = vmatprep.subr.mxu0 0.0
      %3220 = vmatpush2.xpose.msra.mxu0 0.0
      %3221 = vmatprep.subr.mxu0 0.0
      %3222 = vmatpush2.xpose.msra.mxu0 0.0
      %3223 = vmatprep.subr.mxu0 0.0
      %3224 = vmatpush2.xpose.msra.mxu0 0.0
      %3225 = vmatprep.mubr.f32.mxu0 0.0
      %3226 = vmatmul.mubr.f32.gmra.mxu0 %v3127
      %v3227 = vpop.f32.mrf.mxu0
      %v3228 = vadd.f32 0.0, %v3227
      %v3229 = vpop.f32.mrf.mxu0
      %3230 = vmatprep.mubr.f32.mxu0 0.0
      %3231 = vmatmul.mubr.f32.gmra.mxu0 %v3130
      %v3232 = vpop.f32.mrf.mxu0
      %v3233 = vadd.f32 0.0, %v3232
      %v3234 = vpop.f32.mrf.mxu0
      %3235 = vmatprep.mubr.f32.mxu0 0.0
      %3236 = vmatmul.mubr.f32.gmra.mxu0 %v3133
      %v3237 = vpop.f32.mrf.mxu0
      %v3238 = vadd.f32 0.0, %v3237
      %v3239 = vpop.f32.mrf.mxu0
      %3240 = vmatprep.mubr.f32.mxu0 0.0
      %3241 = vmatmul.mubr.f32.gmra.mxu0 %v3136
      %v3242 = vpop.f32.mrf.mxu0
      %v3243 = vadd.f32 0.0, %v3242
      %v3244 = vpop.f32.mrf.mxu0
      %3245 = vmatprep.mubr.f32.mxu0 0.0
      %3246 = vmatmul.mubr.f32.gmra.mxu0 %v3139
      %v3247 = vpop.f32.mrf.mxu0
      %v3248 = vadd.f32 0.0, %v3247
      %v3249 = vpop.f32.mrf.mxu0
      %3250 = vmatprep.mubr.f32.mxu0 0.0
      %3251 = vmatmul.mubr.f32.gmra.mxu0 %v3142
      %v3252 = vpop.f32.mrf.mxu0
      %v3253 = vadd.f32 0.0, %v3252
      %v3254 = vpop.f32.mrf.mxu0
      %3255 = vmatprep.mubr.f32.mxu0 0.0
      %3256 = vmatmul.mubr.f32.gmra.mxu0 %v3145
      %v3257 = vpop.f32.mrf.mxu0
      %v3258 = vadd.f32 0.0, %v3257
      %v3259 = vpop.f32.mrf.mxu0
      %3260 = vdwg.mxu0
      %v3261 = vmul.f32 %v3228, 0.35355338
      %v3262 = vmul.f32 %v3233, 0.35355338
      %v3263 = vmul.f32 %v3238, 0.35355338
      %v3264 = vmul.f32 %v3243, 0.35355338
      %v3265 = vmul.f32 %v3248, 0.35355338
      %v3266 = vmul.f32 %v3253, 0.35355338
      %v3267 = vmul.f32 %v3258, 0.35355338
      %v3268 = vsel %vm506, %v3261, -inf
      %3269 = vmax.xlane.f32.xlu0 %v3268
      %v3270 = vpop.xlane.xlu0 %3269
      %v3271 = vsel %vm506, %v3262, -inf
      %3272 = vmax.xlane.f32.xlu0 %v3271
      %v3273 = vpop.xlane.xlu0 %3272
      %v3274 = vsel %vm506, %v3263, -inf
      %3275 = vmax.xlane.f32.xlu0 %v3274
      %v3276 = vpop.xlane.xlu0 %3275
      %v3277 = vsel %vm506, %v3264, -inf
      %3278 = vmax.xlane.f32.xlu0 %v3277
      %v3279 = vpop.xlane.xlu0 %3278
      %v3280 = vsel %vm506, %v3265, -inf
      %3281 = vmax.xlane.f32.xlu0 %v3280
      %v3282 = vpop.xlane.xlu0 %3281
      %v3283 = vsel %vm506, %v3266, -inf
      %3284 = vmax.xlane.f32.xlu0 %v3283
      %v3285 = vpop.xlane.xlu0 %3284
      %v3286 = vsel %vm525, %v3267, -inf
      %3287 = vmax.xlane.f32.xlu0 %v3286
      %v3288 = vpop.xlane.xlu0 %3287
      %v3289 = vsub.f32 %v3261, %v3270
      %v3290 = vsub.f32 %v3262, %v3273
      %v3291 = vsub.f32 %v3263, %v3276
      %v3292 = vsub.f32 %v3264, %v3279
      %v3293 = vsub.f32 %v3265, %v3282
      %v3294 = vsub.f32 %v3266, %v3285
      %v3295 = vsub.f32 %v3267, %v3288
      %v3296 = vmul.f32 %v3289, 1.442695
      %v3297 = vpow.pop %v3296
      %v3298 = vmul.f32 %v3290, 1.442695
      %v3299 = vpow.pop %v3298
      %v3300 = vmul.f32 %v3291, 1.442695
      %v3301 = vpow.pop %v3300
      %v3302 = vmul.f32 %v3292, 1.442695
      %v3303 = vpow.pop %v3302
      %v3304 = vmul.f32 %v3293, 1.442695
      %v3305 = vpow.pop %v3304
      %v3306 = vmul.f32 %v3294, 1.442695
      %v3307 = vpow.pop %v3306
      %v3308 = vmul.f32 %v3295, 1.442695
      %v3309 = vpow.pop %v3308
      %v3310 = vsel %vm506, %v3297, 0.0
      %3311 = vadd.xlane.f32.xlu0 %v3310
      %v3312 = vpop.xlane.xlu0 %3311
      %v3313 = vsel %vm506, %v3299, 0.0
      %3314 = vadd.xlane.f32.xlu0 %v3313
      %v3315 = vpop.xlane.xlu0 %3314
      %v3316 = vsel %vm506, %v3301, 0.0
      %3317 = vadd.xlane.f32.xlu0 %v3316
      %v3318 = vpop.xlane.xlu0 %3317
      %v3319 = vsel %vm506, %v3303, 0.0
      %3320 = vadd.xlane.f32.xlu0 %v3319
      %v3321 = vpop.xlane.xlu0 %3320
      %v3322 = vsel %vm506, %v3305, 0.0
      %3323 = vadd.xlane.f32.xlu0 %v3322
      %v3324 = vpop.xlane.xlu0 %3323
      %v3325 = vsel %vm506, %v3307, 0.0
      %3326 = vadd.xlane.f32.xlu0 %v3325
      %v3327 = vpop.xlane.xlu0 %3326
      %v3328 = vsel %vm525, %v3309, 0.0
      %3329 = vadd.xlane.f32.xlu0 %v3328
      %v3330 = vpop.xlane.xlu0 %3329
      %v3331 = vrcp.pop %v3312
      %v3332 = vmul.f32 %v3297, %v3331
      %v3333 = vrcp.pop %v3315
      %v3334 = vmul.f32 %v3299, %v3333
      %v3335 = vrcp.pop %v3318
      %v3336 = vmul.f32 %v3301, %v3335
      %v3337 = vrcp.pop %v3321
      %v3338 = vmul.f32 %v3303, %v3337
      %v3339 = vrcp.pop %v3324
      %v3340 = vmul.f32 %v3305, %v3339
      %v3341 = vrcp.pop %v3327
      %v3342 = vmul.f32 %v3307, %v3341
      %v3343 = vrcp.pop %v3330
      %v3344 = vmul.f32 %v3309, %v3343
      %v3345 = vmul.f32 %v3091, %v587
      %v3346 = vmul.f32 %v3092, %v587
      %v3347 = vmul.f32 %v3093, %v587
      %v3348 = vmul.f32 %v3094, %v587
      %v3349 = vmul.f32 %v3095, %v587
      %v3350 = vmul.f32 %v3096, %v587
      %v3351 = vmul.f32 %v3097, %v587
      %v3352 = vmul.f32 %v3058, %v193
      %v3353 = vmul.f32 %v3063, %v193
      %v3354 = vmul.f32 %v3068, %v193
      %v3355 = vmul.f32 %v3073, %v193
      %v3356 = vmul.f32 %v3078, %v193
      %v3357 = vmul.f32 %v3083, %v193
      %v3358 = vmul.f32 %v3088, %v193
      %v3360 = vsel %vm207, %v3352, 0
      %v3363 = vsel %vm207, %v3353, 0
      %v3366 = vsel %vm207, %v3354, 0
      %v3369 = vsel %vm207, %v3355, 0
      %v3372 = vsel %vm207, %v3356, 0
      %v3375 = vsel %vm207, %v3357, 0
      %v3378 = vsel %vm207, %v3358, 0
      %3380 = vmatprep.subr.mxu0 0.0
      %3381 = vmatpush1.xpose.msra.mxu0 0.0
      %3382 = vmatprep.subr.mxu0 0.0
      %3383 = vmatpush1.xpose.msra.mxu0 0.0
      %3384 = vmatprep.subr.mxu0 0.0
      %3385 = vmatpush1.xpose.msra.mxu0 0.0
      %3386 = vmatprep.subr.mxu0 0.0
      %3387 = vmatpush1.xpose.msra.mxu0 0.0
      %3388 = vmatprep.subr.mxu0 0.0
      %3389 = vmatpush1.xpose.msra.mxu0 0.0
      %3390 = vmatprep.subr.mxu0 0.0
      %3391 = vmatpush1.xpose.msra.mxu0 0.0
      %3392 = vmatprep.subr.mxu0 0.0
      %3393 = vmatpush1.xpose.msra.mxu0 0.0
      %3394 = vmatprep.subr.mxu0 0.0
      %3395 = vmatpush1.xpose.msra.mxu0 0.0
      %3396 = vmatprep.subr.mxu0 0.0
      %3397 = vmatpush1.xpose.msra.mxu0 0.0
      %3398 = vmatprep.subr.mxu0 0.0
      %3399 = vmatpush1.xpose.msra.mxu0 %v3159
      %3400 = vmatprep.subr.mxu0 0.0
      %3401 = vmatpush1.xpose.msra.mxu0 %v3157
      %3402 = vmatprep.subr.mxu0 0.0
      %3403 = vmatpush1.xpose.msra.mxu0 %v3155
      %3404 = vmatprep.subr.mxu0 0.0
      %3405 = vmatpush1.xpose.msra.mxu0 %v3153
      %3406 = vmatprep.subr.mxu0 0.0
      %3407 = vmatpush1.xpose.msra.mxu0 %v3151
      %3408 = vmatprep.subr.mxu0 0.0
      %3409 = vmatpush1.xpose.msra.mxu0 %v3149
      %3410 = vmatprep.subr.mxu0 0.0
      %3411 = vmatpush1.xpose.msra.mxu0 %v3147
      %3412 = vmatprep.subr.mxu0 0.0
      %3413 = vmatpush2.xpose.msra.mxu0 0.0
      %3414 = vmatprep.subr.mxu0 0.0
      %3415 = vmatpush2.xpose.msra.mxu0 0.0
      %3416 = vmatprep.subr.mxu0 0.0
      %3417 = vmatpush2.xpose.msra.mxu0 0.0
      %3418 = vmatprep.subr.mxu0 0.0
      %3419 = vmatpush2.xpose.msra.mxu0 0.0
      %3420 = vmatprep.subr.mxu0 0.0
      %3421 = vmatpush2.xpose.msra.mxu0 0.0
      %3422 = vmatprep.subr.mxu0 0.0
      %3423 = vmatpush2.xpose.msra.mxu0 0.0
      %3424 = vmatprep.subr.mxu0 0.0
      %3425 = vmatpush2.xpose.msra.mxu0 0.0
      %3426 = vmatprep.subr.mxu0 0.0
      %3427 = vmatpush2.xpose.msra.mxu0 0.0
      %3428 = vmatprep.subr.mxu0 0.0
      %3429 = vmatpush2.xpose.msra.mxu0 0.0
      %3430 = vmatprep.subr.mxu0 0.0
      %3431 = vmatpush2.xpose.msra.mxu0 0.0
      %3432 = vmatprep.subr.mxu0 0.0
      %3433 = vmatpush2.xpose.msra.mxu0 0.0
      %3434 = vmatprep.subr.mxu0 0.0
      %3435 = vmatpush2.xpose.msra.mxu0 0.0
      %3436 = vmatprep.subr.mxu0 0.0
      %3437 = vmatpush2.xpose.msra.mxu0 0.0
      %3438 = vmatprep.subr.mxu0 0.0
      %3439 = vmatpush2.xpose.msra.mxu0 0.0
      %3440 = vmatprep.subr.mxu0 0.0
      %3441 = vmatpush2.xpose.msra.mxu0 0.0
      %3442 = vmatprep.subr.mxu0 0.0
      %3443 = vmatpush2.xpose.msra.mxu0 0.0
      %3444 = vmatprep.mubr.f32.mxu0 0.0
      %3445 = vmatmul.mubr.f32.gmra.mxu0 %v3360
      %v3446 = vpop.f32.mrf.mxu0
      %v3447 = vadd.f32 0.0, %v3446
      %v3448 = vpop.f32.mrf.mxu0
      %3449 = vmatprep.mubr.f32.mxu0 0.0
      %3450 = vmatmul.mubr.f32.gmra.mxu0 %v3363
      %v3451 = vpop.f32.mrf.mxu0
      %v3452 = vadd.f32 0.0, %v3451
      %v3453 = vpop.f32.mrf.mxu0
      %3454 = vmatprep.mubr.f32.mxu0 0.0
      %3455 = vmatmul.mubr.f32.gmra.mxu0 %v3366
      %v3456 = vpop.f32.mrf.mxu0
      %v3457 = vadd.f32 0.0, %v3456
      %v3458 = vpop.f32.mrf.mxu0
      %3459 = vmatprep.mubr.f32.mxu0 0.0
      %3460 = vmatmul.mubr.f32.gmra.mxu0 %v3369
      %v3461 = vpop.f32.mrf.mxu0
      %v3462 = vadd.f32 0.0, %v3461
      %v3463 = vpop.f32.mrf.mxu0
      %3464 = vmatprep.mubr.f32.mxu0 0.0
      %3465 = vmatmul.mubr.f32.gmra.mxu0 %v3372
      %v3466 = vpop.f32.mrf.mxu0
      %v3467 = vadd.f32 0.0, %v3466
      %v3468 = vpop.f32.mrf.mxu0
      %3469 = vmatprep.mubr.f32.mxu0 0.0
      %3470 = vmatmul.mubr.f32.gmra.mxu0 %v3375
      %v3471 = vpop.f32.mrf.mxu0
      %v3472 = vadd.f32 0.0, %v3471
      %v3473 = vpop.f32.mrf.mxu0
      %3474 = vmatprep.mubr.f32.mxu0 0.0
      %3475 = vmatmul.mubr.f32.gmra.mxu0 %v3378
      %v3476 = vpop.f32.mrf.mxu0
      %v3477 = vadd.f32 0.0, %v3476
      %v3478 = vpop.f32.mrf.mxu0
      %3479 = vdwg.mxu0
      %v3480 = vmul.f32 %v3447, 0.35355338
      %v3481 = vmul.f32 %v3452, 0.35355338
      %v3482 = vmul.f32 %v3457, 0.35355338
      %v3483 = vmul.f32 %v3462, 0.35355338
      %v3484 = vmul.f32 %v3467, 0.35355338
      %v3485 = vmul.f32 %v3472, 0.35355338
      %v3486 = vmul.f32 %v3477, 0.35355338
      %v3487 = vsel %vm506, %v3480, -inf
      %3488 = vmax.xlane.f32.xlu0 %v3487
      %v3489 = vpop.xlane.xlu0 %3488
      %v3490 = vsel %vm506, %v3481, -inf
      %3491 = vmax.xlane.f32.xlu0 %v3490
      %v3492 = vpop.xlane.xlu0 %3491
      %v3493 = vsel %vm506, %v3482, -inf
      %3494 = vmax.xlane.f32.xlu0 %v3493
      %v3495 = vpop.xlane.xlu0 %3494
      %v3496 = vsel %vm506, %v3483, -inf
      %3497 = vmax.xlane.f32.xlu0 %v3496
      %v3498 = vpop.xlane.xlu0 %3497
      %v3499 = vsel %vm506, %v3484, -inf
      %3500 = vmax.xlane.f32.xlu0 %v3499
      %v3501 = vpop.xlane.xlu0 %3500
      %v3502 = vsel %vm506, %v3485, -inf
      %3503 = vmax.xlane.f32.xlu0 %v3502
      %v3504 = vpop.xlane.xlu0 %3503
      %v3505 = vsel %vm525, %v3486, -inf
      %3506 = vmax.xlane.f32.xlu0 %v3505
      %v3507 = vpop.xlane.xlu0 %3506
      %v3508 = vsub.f32 %v3480, %v3489
      %v3509 = vsub.f32 %v3481, %v3492
      %v3510 = vsub.f32 %v3482, %v3495
      %v3511 = vsub.f32 %v3483, %v3498
      %v3512 = vsub.f32 %v3484, %v3501
      %v3513 = vsub.f32 %v3485, %v3504
      %v3514 = vsub.f32 %v3486, %v3507
      %v3515 = vmul.f32 %v3508, 1.442695
      %v3516 = vpow.pop %v3515
      %v3517 = vmul.f32 %v3509, 1.442695
      %v3518 = vpow.pop %v3517
      %v3519 = vmul.f32 %v3510, 1.442695
      %v3520 = vpow.pop %v3519
      %v3521 = vmul.f32 %v3511, 1.442695
      %v3522 = vpow.pop %v3521
      %v3523 = vmul.f32 %v3512, 1.442695
      %v3524 = vpow.pop %v3523
      %v3525 = vmul.f32 %v3513, 1.442695
      %v3526 = vpow.pop %v3525
      %v3527 = vmul.f32 %v3514, 1.442695
      %v3528 = vpow.pop %v3527
      %v3529 = vsel %vm506, %v3516, 0.0
      %3530 = vadd.xlane.f32.xlu0 %v3529
      %v3531 = vpop.xlane.xlu0 %3530
      %v3532 = vsel %vm506, %v3518, 0.0
      %3533 = vadd.xlane.f32.xlu0 %v3532
      %v3534 = vpop.xlane.xlu0 %3533
      %v3535 = vsel %vm506, %v3520, 0.0
      %3536 = vadd.xlane.f32.xlu0 %v3535
      %v3537 = vpop.xlane.xlu0 %3536
      %v3538 = vsel %vm506, %v3522, 0.0
      %3539 = vadd.xlane.f32.xlu0 %v3538
      %v3540 = vpop.xlane.xlu0 %3539
      %v3541 = vsel %vm506, %v3524, 0.0
      %3542 = vadd.xlane.f32.xlu0 %v3541
      %v3543 = vpop.xlane.xlu0 %3542
      %v3544 = vsel %vm506, %v3526, 0.0
      %3545 = vadd.xlane.f32.xlu0 %v3544
      %v3546 = vpop.xlane.xlu0 %3545
      %v3547 = vsel %vm525, %v3528, 0.0
      %3548 = vadd.xlane.f32.xlu0 %v3547
      %v3549 = vpop.xlane.xlu0 %3548
      %v3550 = vrcp.pop %v3531
      %v3551 = vmul.f32 %v3516, %v3550
      %v3552 = vrcp.pop %v3534
      %v3553 = vmul.f32 %v3518, %v3552
      %v3554 = vrcp.pop %v3537
      %v3555 = vmul.f32 %v3520, %v3554
      %v3556 = vrcp.pop %v3540
      %v3557 = vmul.f32 %v3522, %v3556
      %v3558 = vrcp.pop %v3543
      %v3559 = vmul.f32 %v3524, %v3558
      %v3560 = vrcp.pop %v3546
      %v3561 = vmul.f32 %v3526, %v3560
      %v3562 = vrcp.pop %v3549
      %v3563 = vmul.f32 %v3528, %v3562
      %v3564 = vmul.f32 %v3091, %v810
      %v3565 = vmul.f32 %v3092, %v810
      %v3566 = vmul.f32 %v3093, %v810
      %v3567 = vmul.f32 %v3094, %v810
      %v3568 = vmul.f32 %v3095, %v810
      %v3569 = vmul.f32 %v3096, %v810
      %v3570 = vmul.f32 %v3097, %v810
      %3578 = vrot.lane.b32.xlu0 %v3564, 96
      %v3579 = vpop.permute.xlu0 %3578
      %3580 = vrot.lane.b32.xlu0 %v3565, 96
      %v3581 = vpop.permute.xlu0 %3580
      %3582 = vrot.lane.b32.xlu0 %v3566, 96
      %v3583 = vpop.permute.xlu0 %3582
      %3584 = vrot.lane.b32.xlu0 %v3567, 96
      %v3585 = vpop.permute.xlu0 %3584
      %3586 = vrot.lane.b32.xlu0 %v3568, 96
      %v3587 = vpop.permute.xlu0 %3586
      %3588 = vrot.lane.b32.xlu0 %v3569, 96
      %v3589 = vpop.permute.xlu0 %3588
      %3590 = vrot.lane.b32.xlu0 %v3570, 96
      %v3591 = vpop.permute.xlu0 %3590
      %v3599 = vsel %vm506, %v3551, 0
      %v3602 = vsel %vm506, %v3553, 0
      %v3605 = vsel %vm506, %v3555, 0
      %v3608 = vsel %vm506, %v3557, 0
      %v3611 = vsel %vm506, %v3559, 0
      %v3614 = vsel %vm506, %v3561, 0
      %v3617 = vsel %vm506, %v3563, 0
      %v3619 = vsel %vm867, %v3591, 0
      %3621 = vmatprep.subr.mxu0 0.0
      %3622 = vmatpush1.msra.mxu0 0.0
      %3623 = vmatprep.subr.mxu0 0.0
      %3624 = vmatpush1.msra.mxu0 0.0
      %3625 = vmatprep.subr.mxu0 0.0
      %3626 = vmatpush1.msra.mxu0 0.0
      %3627 = vmatprep.subr.mxu0 0.0
      %3628 = vmatpush1.msra.mxu0 0.0
      %3629 = vmatprep.subr.mxu0 0.0
      %3630 = vmatpush1.msra.mxu0 0.0
      %3631 = vmatprep.subr.mxu0 0.0
      %3632 = vmatpush1.msra.mxu0 0.0
      %3633 = vmatprep.subr.mxu0 0.0
      %3634 = vmatpush1.msra.mxu0 0.0
      %3635 = vmatprep.subr.mxu0 0.0
      %3636 = vmatpush1.msra.mxu0 0.0
      %3637 = vmatprep.subr.mxu0 0.0
      %3638 = vmatpush1.msra.mxu0 0.0
      %3639 = vmatprep.subr.mxu0 0.0
      %3640 = vmatpush1.msra.mxu0 %v3619
      %3641 = vmatprep.subr.mxu0 0.0
      %3642 = vmatpush1.msra.mxu0 %v3589
      %3643 = vmatprep.subr.mxu0 0.0
      %3644 = vmatpush1.msra.mxu0 %v3587
      %3645 = vmatprep.subr.mxu0 0.0
      %3646 = vmatpush1.msra.mxu0 %v3585
      %3647 = vmatprep.subr.mxu0 0.0
      %3648 = vmatpush1.msra.mxu0 %v3583
      %3649 = vmatprep.subr.mxu0 0.0
      %3650 = vmatpush1.msra.mxu0 %v3581
      %3651 = vmatprep.subr.mxu0 0.0
      %3652 = vmatpush1.msra.mxu0 %v3579
      %3653 = vmatprep.subr.mxu0 0.0
      %3654 = vmatpush2.msra.mxu0 0.0
      %3655 = vmatprep.subr.mxu0 0.0
      %3656 = vmatpush2.msra.mxu0 0.0
      %3657 = vmatprep.subr.mxu0 0.0
      %3658 = vmatpush2.msra.mxu0 0.0
      %3659 = vmatprep.subr.mxu0 0.0
      %3660 = vmatpush2.msra.mxu0 0.0
      %3661 = vmatprep.subr.mxu0 0.0
      %3662 = vmatpush2.msra.mxu0 0.0
      %3663 = vmatprep.subr.mxu0 0.0
      %3664 = vmatpush2.msra.mxu0 0.0
      %3665 = vmatprep.subr.mxu0 0.0
      %3666 = vmatpush2.msra.mxu0 0.0
      %3667 = vmatprep.subr.mxu0 0.0
      %3668 = vmatpush2.msra.mxu0 0.0
      %3669 = vmatprep.subr.mxu0 0.0
      %3670 = vmatpush2.msra.mxu0 0.0
      %3671 = vmatprep.subr.mxu0 0.0
      %3672 = vmatpush2.msra.mxu0 0.0
      %3673 = vmatprep.subr.mxu0 0.0
      %3674 = vmatpush2.msra.mxu0 0.0
      %3675 = vmatprep.subr.mxu0 0.0
      %3676 = vmatpush2.msra.mxu0 0.0
      %3677 = vmatprep.subr.mxu0 0.0
      %3678 = vmatpush2.msra.mxu0 0.0
      %3679 = vmatprep.subr.mxu0 0.0
      %3680 = vmatpush2.msra.mxu0 0.0
      %3681 = vmatprep.subr.mxu0 0.0
      %3682 = vmatpush2.msra.mxu0 0.0
      %3683 = vmatprep.subr.mxu0 0.0
      %3684 = vmatpush2.msra.mxu0 0.0
      %3685 = vmatprep.mubr.f32.mxu0 0.0
      %3686 = vmatmul.mubr.f32.gmra.mxu0 %v3599
      %v3687 = vpop.f32.mrf.mxu0
      %v3688 = vadd.f32 0.0, %v3687
      %v3689 = vpop.f32.mrf.mxu0
      %3690 = vmatprep.mubr.f32.mxu0 0.0
      %3691 = vmatmul.mubr.f32.gmra.mxu0 %v3602
      %v3692 = vpop.f32.mrf.mxu0
      %v3693 = vadd.f32 0.0, %v3692
      %v3694 = vpop.f32.mrf.mxu0
      %3695 = vmatprep.mubr.f32.mxu0 0.0
      %3696 = vmatmul.mubr.f32.gmra.mxu0 %v3605
      %v3697 = vpop.f32.mrf.mxu0
      %v3698 = vadd.f32 0.0, %v3697
      %v3699 = vpop.f32.mrf.mxu0
      %3700 = vmatprep.mubr.f32.mxu0 0.0
      %3701 = vmatmul.mubr.f32.gmra.mxu0 %v3608
      %v3702 = vpop.f32.mrf.mxu0
      %v3703 = vadd.f32 0.0, %v3702
      %v3704 = vpop.f32.mrf.mxu0
      %3705 = vmatprep.mubr.f32.mxu0 0.0
      %3706 = vmatmul.mubr.f32.gmra.mxu0 %v3611
      %v3707 = vpop.f32.mrf.mxu0
      %v3708 = vadd.f32 0.0, %v3707
      %v3709 = vpop.f32.mrf.mxu0
      %3710 = vmatprep.mubr.f32.mxu0 0.0
      %3711 = vmatmul.mubr.f32.gmra.mxu0 %v3614
      %v3712 = vpop.f32.mrf.mxu0
      %v3713 = vadd.f32 0.0, %v3712
      %v3714 = vpop.f32.mrf.mxu0
      %3715 = vmatprep.mubr.f32.mxu0 0.0
      %3716 = vmatmul.mubr.f32.gmra.mxu0 %v3617
      %v3717 = vpop.f32.mrf.mxu0
      %v3718 = vadd.f32 0.0, %v3717
      %v3719 = vpop.f32.mrf.mxu0
      %3720 = vdwg.mxu0
      %3728 = vrot.lane.b32.xlu0 %v3345, 96
      %v3729 = vpop.permute.xlu0 %3728
      %3730 = vrot.lane.b32.xlu0 %v3346, 96
      %v3731 = vpop.permute.xlu0 %3730
      %3732 = vrot.lane.b32.xlu0 %v3347, 96
      %v3733 = vpop.permute.xlu0 %3732
      %3734 = vrot.lane.b32.xlu0 %v3348, 96
      %v3735 = vpop.permute.xlu0 %3734
      %3736 = vrot.lane.b32.xlu0 %v3349, 96
      %v3737 = vpop.permute.xlu0 %3736
      %3738 = vrot.lane.b32.xlu0 %v3350, 96
      %v3739 = vpop.permute.xlu0 %3738
      %3740 = vrot.lane.b32.xlu0 %v3351, 96
      %v3741 = vpop.permute.xlu0 %3740
      %v3749 = vsel %vm506, %v3332, 0
      %v3752 = vsel %vm506, %v3334, 0
      %v3755 = vsel %vm506, %v3336, 0
      %v3758 = vsel %vm506, %v3338, 0
      %v3761 = vsel %vm506, %v3340, 0
      %v3764 = vsel %vm506, %v3342, 0
      %v3767 = vsel %vm506, %v3344, 0
      %v3769 = vsel %vm867, %v3741, 0
      %3771 = vmatprep.subr.mxu0 0.0
      %3772 = vmatpush1.msra.mxu0 0.0
      %3773 = vmatprep.subr.mxu0 0.0
      %3774 = vmatpush1.msra.mxu0 0.0
      %3775 = vmatprep.subr.mxu0 0.0
      %3776 = vmatpush1.msra.mxu0 0.0
      %3777 = vmatprep.subr.mxu0 0.0
      %3778 = vmatpush1.msra.mxu0 0.0
      %3779 = vmatprep.subr.mxu0 0.0
      %3780 = vmatpush1.msra.mxu0 0.0
      %3781 = vmatprep.subr.mxu0 0.0
      %3782 = vmatpush1.msra.mxu0 0.0
      %3783 = vmatprep.subr.mxu0 0.0
      %3784 = vmatpush1.msra.mxu0 0.0
      %3785 = vmatprep.subr.mxu0 0.0
      %3786 = vmatpush1.msra.mxu0 0.0
      %3787 = vmatprep.subr.mxu0 0.0
      %3788 = vmatpush1.msra.mxu0 0.0
      %3789 = vmatprep.subr.mxu0 0.0
      %3790 = vmatpush1.msra.mxu0 %v3769
      %3791 = vmatprep.subr.mxu0 0.0
      %3792 = vmatpush1.msra.mxu0 %v3739
      %3793 = vmatprep.subr.mxu0 0.0
      %3794 = vmatpush1.msra.mxu0 %v3737
      %3795 = vmatprep.subr.mxu0 0.0
      %3796 = vmatpush1.msra.mxu0 %v3735
      %3797 = vmatprep.subr.mxu0 0.0
      %3798 = vmatpush1.msra.mxu0 %v3733
      %3799 = vmatprep.subr.mxu0 0.0
      %3800 = vmatpush1.msra.mxu0 %v3731
      %3801 = vmatprep.subr.mxu0 0.0
      %3802 = vmatpush1.msra.mxu0 %v3729
      %3803 = vmatprep.subr.mxu0 0.0
      %3804 = vmatpush2.msra.mxu0 0.0
      %3805 = vmatprep.subr.mxu0 0.0
      %3806 = vmatpush2.msra.mxu0 0.0
      %3807 = vmatprep.subr.mxu0 0.0
      %3808 = vmatpush2.msra.mxu0 0.0
      %3809 = vmatprep.subr.mxu0 0.0
      %3810 = vmatpush2.msra.mxu0 0.0
      %3811 = vmatprep.subr.mxu0 0.0
      %3812 = vmatpush2.msra.mxu0 0.0
      %3813 = vmatprep.subr.mxu0 0.0
      %3814 = vmatpush2.msra.mxu0 0.0
      %3815 = vmatprep.subr.mxu0 0.0
      %3816 = vmatpush2.msra.mxu0 0.0
      %3817 = vmatprep.subr.mxu0 0.0
      %3818 = vmatpush2.msra.mxu0 0.0
      %3819 = vmatprep.subr.mxu0 0.0
      %3820 = vmatpush2.msra.mxu0 0.0
      %3821 = vmatprep.subr.mxu0 0.0
      %3822 = vmatpush2.msra.mxu0 0.0
      %3823 = vmatprep.subr.mxu0 0.0
      %3824 = vmatpush2.msra.mxu0 0.0
      %3825 = vmatprep.subr.mxu0 0.0
      %3826 = vmatpush2.msra.mxu0 0.0
      %3827 = vmatprep.subr.mxu0 0.0
      %3828 = vmatpush2.msra.mxu0 0.0
      %3829 = vmatprep.subr.mxu0 0.0
      %3830 = vmatpush2.msra.mxu0 0.0
      %3831 = vmatprep.subr.mxu0 0.0
      %3832 = vmatpush2.msra.mxu0 0.0
      %3833 = vmatprep.subr.mxu0 0.0
      %3834 = vmatpush2.msra.mxu0 0.0
      %3835 = vmatprep.mubr.f32.mxu0 0.0
      %3836 = vmatmul.mubr.f32.gmra.mxu0 %v3749
      %v3837 = vpop.f32.mrf.mxu0
      %v3838 = vadd.f32 %v3688, %v3837
      %v3839 = vpop.f32.mrf.mxu0
      %3840 = vmatprep.mubr.f32.mxu0 0.0
      %3841 = vmatmul.mubr.f32.gmra.mxu0 %v3752
      %v3842 = vpop.f32.mrf.mxu0
      %v3843 = vadd.f32 %v3693, %v3842
      %v3844 = vpop.f32.mrf.mxu0
      %3845 = vmatprep.mubr.f32.mxu0 0.0
      %3846 = vmatmul.mubr.f32.gmra.mxu0 %v3755
      %v3847 = vpop.f32.mrf.mxu0
      %v3848 = vadd.f32 %v3698, %v3847
      %v3849 = vpop.f32.mrf.mxu0
      %3850 = vmatprep.mubr.f32.mxu0 0.0
      %3851 = vmatmul.mubr.f32.gmra.mxu0 %v3758
      %v3852 = vpop.f32.mrf.mxu0
      %v3853 = vadd.f32 %v3703, %v3852
      %v3854 = vpop.f32.mrf.mxu0
      %3855 = vmatprep.mubr.f32.mxu0 0.0
      %3856 = vmatmul.mubr.f32.gmra.mxu0 %v3761
      %v3857 = vpop.f32.mrf.mxu0
      %v3858 = vadd.f32 %v3708, %v3857
      %v3859 = vpop.f32.mrf.mxu0
      %3860 = vmatprep.mubr.f32.mxu0 0.0
      %3861 = vmatmul.mubr.f32.gmra.mxu0 %v3764
      %v3862 = vpop.f32.mrf.mxu0
      %v3863 = vadd.f32 %v3713, %v3862
      %v3864 = vpop.f32.mrf.mxu0
      %3865 = vmatprep.mubr.f32.mxu0 0.0
      %3866 = vmatmul.mubr.f32.gmra.mxu0 %v3767
      %v3867 = vpop.f32.mrf.mxu0
      %v3868 = vadd.f32 %v3718, %v3867
      %v3869 = vpop.f32.mrf.mxu0
      %3870 = vdwg.mxu0
      %s3871 = scalar_lea.vmem %s177, 168
      %3872 = vst.msk [vmem:[%s3871] sm:$0xff] %vm207, %v3838
      %3873 = vst.msk [vmem:[%s3871 + $0x8] sm:$0xff] %vm207, %v3843
      %3874 = vst.msk [vmem:[%s3871 + $0x10] sm:$0xff] %vm207, %v3848
      %3875 = vst.msk [vmem:[%s3871 + $0x18] sm:$0xff] %vm207, %v3853
      %3876 = vst.msk [vmem:[%s3871 + $0x20] sm:$0xff] %vm207, %v3858
      %3877 = vst.msk [vmem:[%s3871 + $0x28] sm:$0xff] %vm207, %v3863
      %3878 = vst.msk [vmem:[%s3871 + $0x30] sm:$0x1] %vm1126, %v3868
      %s3879 = smul.u32 4, %s14
      %p3880 = scmp.lt.s32.totalorder %s3879, 7
      %s3881 = scalar_select %p3880, %s3879, 7
      %s3882 = smul.addr %s3881, 7
      %s3883 = smul.addr %s3882, 8
      %s3884 = scalar_lea.vmem %s3, %s3883
      // Predicated region
      $region33: #{csrmbc_pallas.4} parent=31 // pred_check
        %p3885 = pneg %p100
      $region34: #{csrmbc_pallas.4} parent=31 // pred_check_branch
        %3887 = sbr.rel (%p3885) target = $region36
      $region35: #{csrmbc_pallas.4} parent=31 // pred_region
        %s3888 = smul.u32 4, %s14
      $region36: #{csrmbc_pallas.4} parent=31 // pred_fallthru
        _
    $region32: #{csrmbc_pallas.4} parent=5 // pred_fallthru
      _
    %p3889 = scmp.le.s32.totalorder 2, %s9
    // Predicated region
    $region37: #{csrmbc_pallas.4} parent=5 // pred_check
      %p3890 = pneg %p3889
    $region38: #{csrmbc_pallas.4} parent=5 // pred_check_branch
      %3892 = sbr.rel (%p3890) target = $region40
    $region39: #{csrmbc_pallas.4} parent=5 // pred_region
      %s3893 = ssub.s32 %s9, 2
      // Predicated region
      $region41: #{csrmbc_pallas.4} parent=39 // pred_check
        %p3894 = pneg %p106
      $region42: #{csrmbc_pallas.4} parent=39 // pred_check_branch
        %3896 = sbr.rel (%p3894) target = $region44
      $region43: #{csrmbc_pallas.4} parent=39 // pred_region
        %s3897 = smul.u32 4, %s15
        %p3898 = scmp.lt.s32.totalorder %s3897, 7
        %s3899 = scalar_select %p3898, %s3897, 7
        %s3900 = smul.addr %s3899, 7
        %s3901 = smul.addr %s3900, 8
        %s3902 = scalar_lea.vmem %s3, %s3901
      $region44: #{csrmbc_pallas.4} parent=39 // pred_fallthru
        _
    $region40: #{csrmbc_pallas.4} parent=5 // pred_fallthru
      _
  $region6: #{csrmbc_pallas.4} parent=0 // loop_footer
    %s13 = sadd.s32 1, %s9
  $region7: #{csrmbc_pallas.4} parent=0 // loop_footer_branch
    %8 = sbr.rel target = $region3
  $region8: #{csrmbc_pallas.4} parent=0 // loop_exit
    _

// kernel: csrmbc_pallas.5
$region0: #{csrmbc_pallas.5}
  #allocation0 [shape = 'u32[]', space=smem, size = 0x4, offset = 0x4, fixed_abs, tag = 'smem constant byte address 0x4 - core index']
  #allocation1 [shape = 'u32[144,128]{1,0:T(1,128)}', space=vmem, size = 0x12000, scoped, tag = 'internal scratch']
  #allocation2 [shape = 'f32[226,16]{1,0:T(8,128)}', space=vmem, size = 0x1d000, scoped, tag = 'scratch operand']
  %s0 = inlined_call_operand.vmem [shape: f32[2,196,16], index: 0, kind: input, shape index: {}]
  %s1 = inlined_call_operand.vmem [shape: f32[2,196,16], index: 1, kind: input, shape index: {}]
  %s2 = inlined_call_operand.vmem [shape: f32[2,196,16], index: 2, kind: input, shape index: {}]
  %s3 = inlined_call_operand.vmem [shape: f32[196,9], index: 3, kind: input, shape index: {}]
  %s4 = inlined_call_operand.vmem [shape: f32[9,16], index: 4, kind: input, shape index: {}]
  %s5 = inlined_call_operand.vmem [shape: f32[1,16], index: 5, kind: input, shape index: {}]
  %s6 = inlined_call_operand.vmem [shape: f32[16,16], index: 6, kind: input, shape index: {}]
  %s7 = inlined_call_operand.vmem [shape: f32[16,16], index: 7, kind: input, shape index: {}]
  %s8 = inlined_call_operand.vmem [shape: f32[1,16], index: 8, kind: input, shape index: {}]
  %s9 = inlined_call_operand.vmem [shape: f32[16,32], index: 9, kind: input, shape index: {}]
  %s10 = inlined_call_operand.vmem [shape: f32[16,32], index: 10, kind: input, shape index: {}]
  %s11 = inlined_call_operand.vmem [shape: f32[1,32], index: 11, kind: input, shape index: {}]
  %s12 = inlined_call_operand.vmem [shape: f32[2,32,196], index: 12, kind: output, shape index: {}]
  %s13 = sld [smem:[#allocation0]]
  $region81: #{csrmbc_pallas.5} parent=0
    _
  %s15 = ssub.s32 1, %s13
  %s16 = scalar_select 0, %s15, %s13
  loop: start=0, step=1, limit=4
  $region2: #{csrmbc_pallas.5} parent=0 // loop_pre_header
    _
  $region3: #{csrmbc_pallas.5} parent=0 // loop_header
    %s18 = sphi 0, %s22
    %p19 = scmp.ge.s32.totalorder %s18, 4
    %s28 = sphi 0, %s30
    %s31 = sphi 0, %s28
    %s32 = sphi 0, %s31
    %s48 = sphi 0, %s32
    %s54 = sphi 0, %s56
    %s57 = sphi 0, %s54
    %s58 = sphi 0, %s57
    %s74 = sphi 0, %s58
    %s80 = sphi 0, %s82
    %s83 = sphi 0, %s80
    %s84 = sphi 0, %s83
    %s100 = sphi 0, %s84
    %s104 = sphi 0, %s104
    %s106 = sphi 0, %s104
    %s107 = sphi 0, %s106
    %s121 = sphi 0, %s107
    %s125 = sphi 0, %s125
    %s127 = sphi 0, %s125
    %s128 = sphi 0, %s127
    %s142 = sphi 0, %s128
    %s146 = sphi 0, %s146
    %s148 = sphi 0, %s146
    %s149 = sphi 0, %s148
    %s163 = sphi 0, %s149
    %s167 = sphi 0, %s167
    %s169 = sphi 0, %s167
    %s170 = sphi 0, %s169
    %s184 = sphi 0, %s170
    %s188 = sphi 0, %s188
    %s190 = sphi 0, %s188
    %s191 = sphi 0, %s190
    %s205 = sphi 0, %s191
    %s209 = sphi 0, %s209
    %s211 = sphi 0, %s209
    %s212 = sphi 0, %s211
    %s226 = sphi 0, %s212
    %s230 = sphi 0, %s230
    %s232 = sphi 0, %s230
    %s233 = sphi 0, %s232
    %s247 = sphi 0, %s233
    %s251 = sphi 0, %s251
    %s253 = sphi 0, %s251
    %s254 = sphi 0, %s253
    %s268 = sphi 0, %s254
    %s272 = sphi 0, %s272
    %s274 = sphi 0, %s272
    %s275 = sphi 0, %s274
    %s289 = sphi 0, %s275
    %s295 = sphi 0, %s297
    %s298 = sphi 0, %s295
    %s299 = sphi 0, %s298
    %s315 = sphi 0, %s299
  $region4: #{csrmbc_pallas.5} parent=0 // loop_header_branch
    %21 = sbr.rel (%p19) target = $region8
  $region5: #{csrmbc_pallas.5} parent=0 // loop_body
    %s23 = ssub.s32 %s18, 1
    %s24 = ssub.s32 %s18, 2
    %s25 = sadd.s32 %s18, 1
    %s26 = ssub.s32 %s18, %s25
    %p27 = scmp.eq.s32.totalorder %s26, 0
    %s29 = sadd.s32 %s28, 1
    %s30 = scalar_select %p27, %s28, %s29
    %p33 = pneg %p27
    %p34 = scmp.eq.s32.totalorder %s18, 1
    %p35 = por %p33, %p34
    %p36 = scmp.ne.s32.totalorder %s28, %s31
    %p37 = scmp.eq.s32.totalorder %s18, 0
    %p38 = por %p36, %p37
    %p39 = scmp.ne.s32.totalorder %s28, %s31
    %p40 = scmp.eq.s32.totalorder %s23, 1
    %p41 = por %p39, %p40
    %p42 = scmp.ne.s32.totalorder %s31, %s32
    %p43 = scmp.eq.s32.totalorder %s23, 0
    %p44 = por %p42, %p43
    %p45 = scmp.ne.s32.totalorder %s31, %s32
    %p46 = scmp.eq.s32.totalorder %s24, 1
    %p47 = por %p45, %p46
    %p49 = scmp.ne.s32.totalorder %s32, %s48
    %p50 = scmp.eq.s32.totalorder %s24, 0
    %p51 = por %p49, %p50
    %s52 = ssub.s32 %s18, %s25
    %p53 = scmp.eq.s32.totalorder %s52, 0
    %s55 = sadd.s32 %s54, 1
    %s56 = scalar_select %p53, %s54, %s55
    %p59 = pneg %p53
    %p60 = scmp.eq.s32.totalorder %s18, 1
    %p61 = por %p59, %p60
    %p62 = scmp.ne.s32.totalorder %s54, %s57
    %p63 = scmp.eq.s32.totalorder %s18, 0
    %p64 = por %p62, %p63
    %p65 = scmp.ne.s32.totalorder %s54, %s57
    %p66 = scmp.eq.s32.totalorder %s23, 1
    %p67 = por %p65, %p66
    %p68 = scmp.ne.s32.totalorder %s57, %s58
    %p69 = scmp.eq.s32.totalorder %s23, 0
    %p70 = por %p68, %p69
    %p71 = scmp.ne.s32.totalorder %s57, %s58
    %p72 = scmp.eq.s32.totalorder %s24, 1
    %p73 = por %p71, %p72
    %p75 = scmp.ne.s32.totalorder %s58, %s74
    %p76 = scmp.eq.s32.totalorder %s24, 0
    %p77 = por %p75, %p76
    %s78 = ssub.s32 %s18, %s25
    %p79 = scmp.eq.s32.totalorder %s78, 0
    %s81 = sadd.s32 %s80, 1
    %s82 = scalar_select %p79, %s80, %s81
    %p85 = pneg %p79
    %p86 = scmp.eq.s32.totalorder %s18, 1
    %p87 = por %p85, %p86
    %p88 = scmp.ne.s32.totalorder %s80, %s83
    %p89 = scmp.eq.s32.totalorder %s18, 0
    %p90 = por %p88, %p89
    %p91 = scmp.ne.s32.totalorder %s80, %s83
    %p92 = scmp.eq.s32.totalorder %s23, 1
    %p93 = por %p91, %p92
    %p94 = scmp.ne.s32.totalorder %s83, %s84
    %p95 = scmp.eq.s32.totalorder %s23, 0
    %p96 = por %p94, %p95
    %p97 = scmp.ne.s32.totalorder %s83, %s84
    %p98 = scmp.eq.s32.totalorder %s24, 1
    %p99 = por %p97, %p98
    %p101 = scmp.ne.s32.totalorder %s84, %s100
    %p102 = scmp.eq.s32.totalorder %s24, 0
    %p103 = por %p101, %p102
    %s105 = sadd.s32 %s104, 1
    %p108 = scmp.eq.s32.totalorder %s18, 1
    %p109 = scmp.ne.s32.totalorder %s104, %s106
    %p110 = scmp.eq.s32.totalorder %s18, 0
    %p111 = por %p109, %p110
    %p112 = scmp.ne.s32.totalorder %s104, %s106
    %p113 = scmp.eq.s32.totalorder %s23, 1
    %p114 = por %p112, %p113
    %p115 = scmp.ne.s32.totalorder %s106, %s107
    %p116 = scmp.eq.s32.totalorder %s23, 0
    %p117 = por %p115, %p116
    %p118 = scmp.ne.s32.totalorder %s106, %s107
    %p119 = scmp.eq.s32.totalorder %s24, 1
    %p120 = por %p118, %p119
    %p122 = scmp.ne.s32.totalorder %s107, %s121
    %p123 = scmp.eq.s32.totalorder %s24, 0
    %p124 = por %p122, %p123
    %s126 = sadd.s32 %s125, 1
    %p129 = scmp.eq.s32.totalorder %s18, 1
    %p130 = scmp.ne.s32.totalorder %s125, %s127
    %p131 = scmp.eq.s32.totalorder %s18, 0
    %p132 = por %p130, %p131
    %p133 = scmp.ne.s32.totalorder %s125, %s127
    %p134 = scmp.eq.s32.totalorder %s23, 1
    %p135 = por %p133, %p134
    %p136 = scmp.ne.s32.totalorder %s127, %s128
    %p137 = scmp.eq.s32.totalorder %s23, 0
    %p138 = por %p136, %p137
    %p139 = scmp.ne.s32.totalorder %s127, %s128
    %p140 = scmp.eq.s32.totalorder %s24, 1
    %p141 = por %p139, %p140
    %p143 = scmp.ne.s32.totalorder %s128, %s142
    %p144 = scmp.eq.s32.totalorder %s24, 0
    %p145 = por %p143, %p144
    %s147 = sadd.s32 %s146, 1
    %p150 = scmp.eq.s32.totalorder %s18, 1
    %p151 = scmp.ne.s32.totalorder %s146, %s148
    %p152 = scmp.eq.s32.totalorder %s18, 0
    %p153 = por %p151, %p152
    %p154 = scmp.ne.s32.totalorder %s146, %s148
    %p155 = scmp.eq.s32.totalorder %s23, 1
    %p156 = por %p154, %p155
    %p157 = scmp.ne.s32.totalorder %s148, %s149
    %p158 = scmp.eq.s32.totalorder %s23, 0
    %p159 = por %p157, %p158
    %p160 = scmp.ne.s32.totalorder %s148, %s149
    %p161 = scmp.eq.s32.totalorder %s24, 1
    %p162 = por %p160, %p161
    %p164 = scmp.ne.s32.totalorder %s149, %s163
    %p165 = scmp.eq.s32.totalorder %s24, 0
    %p166 = por %p164, %p165
    %s168 = sadd.s32 %s167, 1
    %p171 = scmp.eq.s32.totalorder %s18, 1
    %p172 = scmp.ne.s32.totalorder %s167, %s169
    %p173 = scmp.eq.s32.totalorder %s18, 0
    %p174 = por %p172, %p173
    %p175 = scmp.ne.s32.totalorder %s167, %s169
    %p176 = scmp.eq.s32.totalorder %s23, 1
    %p177 = por %p175, %p176
    %p178 = scmp.ne.s32.totalorder %s169, %s170
    %p179 = scmp.eq.s32.totalorder %s23, 0
    %p180 = por %p178, %p179
    %p181 = scmp.ne.s32.totalorder %s169, %s170
    %p182 = scmp.eq.s32.totalorder %s24, 1
    %p183 = por %p181, %p182
    %p185 = scmp.ne.s32.totalorder %s170, %s184
    %p186 = scmp.eq.s32.totalorder %s24, 0
    %p187 = por %p185, %p186
    %s189 = sadd.s32 %s188, 1
    %p192 = scmp.eq.s32.totalorder %s18, 1
    %p193 = scmp.ne.s32.totalorder %s188, %s190
    %p194 = scmp.eq.s32.totalorder %s18, 0
    %p195 = por %p193, %p194
    %p196 = scmp.ne.s32.totalorder %s188, %s190
    %p197 = scmp.eq.s32.totalorder %s23, 1
    %p198 = por %p196, %p197
    %p199 = scmp.ne.s32.totalorder %s190, %s191
    %p200 = scmp.eq.s32.totalorder %s23, 0
    %p201 = por %p199, %p200
    %p202 = scmp.ne.s32.totalorder %s190, %s191
    %p203 = scmp.eq.s32.totalorder %s24, 1
    %p204 = por %p202, %p203
    %p206 = scmp.ne.s32.totalorder %s191, %s205
    %p207 = scmp.eq.s32.totalorder %s24, 0
    %p208 = por %p206, %p207
    %s210 = sadd.s32 %s209, 1
    %p213 = scmp.eq.s32.totalorder %s18, 1
    %p214 = scmp.ne.s32.totalorder %s209, %s211
    %p215 = scmp.eq.s32.totalorder %s18, 0
    %p216 = por %p214, %p215
    %p217 = scmp.ne.s32.totalorder %s209, %s211
    %p218 = scmp.eq.s32.totalorder %s23, 1
    %p219 = por %p217, %p218
    %p220 = scmp.ne.s32.totalorder %s211, %s212
    %p221 = scmp.eq.s32.totalorder %s23, 0
    %p222 = por %p220, %p221
    %p223 = scmp.ne.s32.totalorder %s211, %s212
    %p224 = scmp.eq.s32.totalorder %s24, 1
    %p225 = por %p223, %p224
    %p227 = scmp.ne.s32.totalorder %s212, %s226
    %p228 = scmp.eq.s32.totalorder %s24, 0
    %p229 = por %p227, %p228
    %s231 = sadd.s32 %s230, 1
    %p234 = scmp.eq.s32.totalorder %s18, 1
    %p235 = scmp.ne.s32.totalorder %s230, %s232
    %p236 = scmp.eq.s32.totalorder %s18, 0
    %p237 = por %p235, %p236
    %p238 = scmp.ne.s32.totalorder %s230, %s232
    %p239 = scmp.eq.s32.totalorder %s23, 1
    %p240 = por %p238, %p239
    %p241 = scmp.ne.s32.totalorder %s232, %s233
    %p242 = scmp.eq.s32.totalorder %s23, 0
    %p243 = por %p241, %p242
    %p244 = scmp.ne.s32.totalorder %s232, %s233
    %p245 = scmp.eq.s32.totalorder %s24, 1
    %p246 = por %p244, %p245
    %p248 = scmp.ne.s32.totalorder %s233, %s247
    %p249 = scmp.eq.s32.totalorder %s24, 0
    %p250 = por %p248, %p249
    %s252 = sadd.s32 %s251, 1
    %p255 = scmp.eq.s32.totalorder %s18, 1
    %p256 = scmp.ne.s32.totalorder %s251, %s253
    %p257 = scmp.eq.s32.totalorder %s18, 0
    %p258 = por %p256, %p257
    %p259 = scmp.ne.s32.totalorder %s251, %s253
    %p260 = scmp.eq.s32.totalorder %s23, 1
    %p261 = por %p259, %p260
    %p262 = scmp.ne.s32.totalorder %s253, %s254
    %p263 = scmp.eq.s32.totalorder %s23, 0
    %p264 = por %p262, %p263
    %p265 = scmp.ne.s32.totalorder %s253, %s254
    %p266 = scmp.eq.s32.totalorder %s24, 1
    %p267 = por %p265, %p266
    %p269 = scmp.ne.s32.totalorder %s254, %s268
    %p270 = scmp.eq.s32.totalorder %s24, 0
    %p271 = por %p269, %p270
    %s273 = sadd.s32 %s272, 1
    %p276 = scmp.eq.s32.totalorder %s18, 1
    %p277 = scmp.ne.s32.totalorder %s272, %s274
    %p278 = scmp.eq.s32.totalorder %s18, 0
    %p279 = por %p277, %p278
    %p280 = scmp.ne.s32.totalorder %s272, %s274
    %p281 = scmp.eq.s32.totalorder %s23, 1
    %p282 = por %p280, %p281
    %p283 = scmp.ne.s32.totalorder %s274, %s275
    %p284 = scmp.eq.s32.totalorder %s23, 0
    %p285 = por %p283, %p284
    %p286 = scmp.ne.s32.totalorder %s274, %s275
    %p287 = scmp.eq.s32.totalorder %s24, 1
    %p288 = por %p286, %p287
    %p290 = scmp.ne.s32.totalorder %s275, %s289
    %p291 = scmp.eq.s32.totalorder %s24, 0
    %p292 = por %p290, %p291
    %s293 = ssub.s32 %s18, %s25
    %p294 = scmp.eq.s32.totalorder %s293, 0
    %s296 = sadd.s32 %s295, 1
    %s297 = scalar_select %p294, %s295, %s296
    %p300 = pneg %p294
    %p301 = scmp.eq.s32.totalorder %s18, 1
    %p302 = por %p300, %p301
    %p303 = scmp.ne.s32.totalorder %s295, %s298
    %p304 = scmp.eq.s32.totalorder %s18, 0
    %p305 = por %p303, %p304
    %p306 = scmp.ne.s32.totalorder %s295, %s298
    %p307 = scmp.eq.s32.totalorder %s23, 1
    %p308 = por %p306, %p307
    %p309 = scmp.ne.s32.totalorder %s298, %s299
    %p310 = scmp.eq.s32.totalorder %s23, 0
    %p311 = por %p309, %p310
    %p312 = scmp.ne.s32.totalorder %s298, %s299
    %p313 = scmp.eq.s32.totalorder %s24, 1
    %p314 = por %p312, %p313
    %p316 = scmp.ne.s32.totalorder %s299, %s315
    %p317 = scmp.eq.s32.totalorder %s24, 0
    %p318 = por %p316, %p317
    %p319 = scmp.le.s32.totalorder 1, %s18
    %p320 = scmp.lt.s32.totalorder %s18, 3
    %p321 = pnand %p319, %p320
    %p322 = pneg %p321
    // Predicated region
    $region9: #{csrmbc_pallas.5} parent=5 // pred_check
      _
    $region10: #{csrmbc_pallas.5} parent=5 // pred_check_branch
      %324 = sbr.rel (%p321) target = $region12
    $region11: #{csrmbc_pallas.5} parent=5 // pred_region
      %s325 = ssub.s32 %s18, 1
      // Predicated region
      $region13: #{csrmbc_pallas.5} parent=11 // pred_check
        %p326 = pneg %p117
      $region14: #{csrmbc_pallas.5} parent=11 // pred_check_branch
        %328 = sbr.rel (%p326) target = $region16
      $region15: #{csrmbc_pallas.5} parent=11 // pred_region
        _
      $region16: #{csrmbc_pallas.5} parent=11 // pred_fallthru
        _
      // Predicated region
      $region17: #{csrmbc_pallas.5} parent=11 // pred_check
        %p329 = pneg %p138
      $region18: #{csrmbc_pallas.5} parent=11 // pred_check_branch
        %331 = sbr.rel (%p329) target = $region20
      $region19: #{csrmbc_pallas.5} parent=11 // pred_region
        _
      $region20: #{csrmbc_pallas.5} parent=11 // pred_fallthru
        _
      // Predicated region
      $region21: #{csrmbc_pallas.5} parent=11 // pred_check
        %p332 = pneg %p159
      $region22: #{csrmbc_pallas.5} parent=11 // pred_check_branch
        %334 = sbr.rel (%p332) target = $region24
      $region23: #{csrmbc_pallas.5} parent=11 // pred_region
        _
      $region24: #{csrmbc_pallas.5} parent=11 // pred_fallthru
        _
      // Predicated region
      $region25: #{csrmbc_pallas.5} parent=11 // pred_check
        %p335 = pneg %p180
      $region26: #{csrmbc_pallas.5} parent=11 // pred_check_branch
        %337 = sbr.rel (%p335) target = $region28
      $region27: #{csrmbc_pallas.5} parent=11 // pred_region
        _
      $region28: #{csrmbc_pallas.5} parent=11 // pred_fallthru
        _
      // Predicated region
      $region29: #{csrmbc_pallas.5} parent=11 // pred_check
        %p338 = pneg %p201
      $region30: #{csrmbc_pallas.5} parent=11 // pred_check_branch
        %340 = sbr.rel (%p338) target = $region32
      $region31: #{csrmbc_pallas.5} parent=11 // pred_region
        _
      $region32: #{csrmbc_pallas.5} parent=11 // pred_fallthru
        _
      // Predicated region
      $region33: #{csrmbc_pallas.5} parent=11 // pred_check
        %p341 = pneg %p222
      $region34: #{csrmbc_pallas.5} parent=11 // pred_check_branch
        %343 = sbr.rel (%p341) target = $region36
      $region35: #{csrmbc_pallas.5} parent=11 // pred_region
        _
      $region36: #{csrmbc_pallas.5} parent=11 // pred_fallthru
        _
      // Predicated region
      $region37: #{csrmbc_pallas.5} parent=11 // pred_check
        %p344 = pneg %p243
      $region38: #{csrmbc_pallas.5} parent=11 // pred_check_branch
        %346 = sbr.rel (%p344) target = $region40
      $region39: #{csrmbc_pallas.5} parent=11 // pred_region
        _
      $region40: #{csrmbc_pallas.5} parent=11 // pred_fallthru
        _
      // Predicated region
      $region41: #{csrmbc_pallas.5} parent=11 // pred_check
        %p347 = pneg %p264
      $region42: #{csrmbc_pallas.5} parent=11 // pred_check_branch
        %349 = sbr.rel (%p347) target = $region44
      $region43: #{csrmbc_pallas.5} parent=11 // pred_region
        _
      $region44: #{csrmbc_pallas.5} parent=11 // pred_fallthru
        _
      // Predicated region
      $region45: #{csrmbc_pallas.5} parent=11 // pred_check
        %p350 = pneg %p285
      $region46: #{csrmbc_pallas.5} parent=11 // pred_check_branch
        %352 = sbr.rel (%p350) target = $region48
      $region47: #{csrmbc_pallas.5} parent=11 // pred_region
        _
      $region48: #{csrmbc_pallas.5} parent=11 // pred_fallthru
        _
    $region12: #{csrmbc_pallas.5} parent=5 // pred_fallthru
      _
    %p353 = scmp.lt.s32.totalorder %s18, 2
    // Predicated region
    $region49: #{csrmbc_pallas.5} parent=5 // pred_check
      %p354 = pneg %p353
    $region50: #{csrmbc_pallas.5} parent=5 // pred_check_branch
      %356 = sbr.rel (%p354) target = $region52
    $region51: #{csrmbc_pallas.5} parent=5 // pred_region
      // Predicated region
      $region53: #{csrmbc_pallas.5} parent=51 // pred_check
        %p357 = pneg %p38
      $region54: #{csrmbc_pallas.5} parent=51 // pred_check_branch
        %359 = sbr.rel (%p357) target = $region56
      $region55: #{csrmbc_pallas.5} parent=51 // pred_region
        %p360 = scmp.lt.s32.totalorder %s18, 1
        %s361 = scalar_select %p360, %s18, 1
        %s362 = smul.addr %s361, 25
        %s363 = smul.addr %s362, 8
        %s364 = scalar_lea.vmem %s0, %s363
      $region56: #{csrmbc_pallas.5} parent=51 // pred_fallthru
        _
      // Predicated region
      $region57: #{csrmbc_pallas.5} parent=51 // pred_check
        %p365 = pneg %p64
      $region58: #{csrmbc_pallas.5} parent=51 // pred_check_branch
        %367 = sbr.rel (%p365) target = $region60
      $region59: #{csrmbc_pallas.5} parent=51 // pred_region
        %p368 = scmp.lt.s32.totalorder %s18, 1
        %s369 = scalar_select %p368, %s18, 1
        %s370 = smul.addr %s369, 25
        %s371 = smul.addr %s370, 8
        %s372 = scalar_lea.vmem %s1, %s371
      $region60: #{csrmbc_pallas.5} parent=51 // pred_fallthru
        _
      // Predicated region
      $region61: #{csrmbc_pallas.5} parent=51 // pred_check
        %p373 = pneg %p90
      $region62: #{csrmbc_pallas.5} parent=51 // pred_check_branch
        %375 = sbr.rel (%p373) target = $region64
      $region63: #{csrmbc_pallas.5} parent=51 // pred_region
        %p376 = scmp.lt.s32.totalorder %s18, 1
        %s377 = scalar_select %p376, %s18, 1
        %s378 = smul.addr %s377, 25
        %s379 = smul.addr %s378, 8
        %s380 = scalar_lea.vmem %s2, %s379
      $region64: #{csrmbc_pallas.5} parent=51 // pred_fallthru
        _
    $region52: #{csrmbc_pallas.5} parent=5 // pred_fallthru
      _
    %p381 = scmp.le.s32.totalorder 1, %s18
    %p382 = scmp.lt.s32.totalorder %s18, 3
    %p383 = pnand %p381, %p382
    %p384 = pneg %p383
    // Predicated region
    $region65: #{csrmbc_pallas.5} parent=5 // pred_check
      _
    $region66: #{csrmbc_pallas.5} parent=5 // pred_check_branch
      %386 = sbr.rel (%p383) target = $region68
    $region67: #{csrmbc_pallas.5} parent=5 // pred_region
      %s387 = ssub.s32 %s18, 1
      %p388 = scmp.lt.s32.totalorder %s23, 1
      %s389 = scalar_select %p388, %s23, 1
      %s390 = smul.addr %s389, 25
      %s391 = smul.addr %s390, 8
      %s392 = scalar_lea.vmem %s0, %s391
      %p393 = pneg %p44
      %p394 = pneg %p41
      %p395 = scmp.lt.s32.totalorder %s23, 1
      %s396 = scalar_select %p395, %s23, 1
      %s397 = smul.addr %s396, 25
      %s398 = smul.addr %s397, 8
      %s399 = scalar_lea.vmem %s1, %s398
      %p400 = pneg %p70
      %p401 = pneg %p67
      %p402 = scmp.lt.s32.totalorder %s23, 1
      %s403 = scalar_select %p402, %s23, 1
      %s404 = smul.addr %s403, 25
      %s405 = smul.addr %s404, 8
      %s406 = scalar_lea.vmem %s2, %s405
      %p407 = pneg %p96
      %p408 = pneg %p93
      %p409 = pneg %p117
      %p410 = pneg %p114
      %p411 = pneg %p138
      %p412 = pneg %p135
      %p413 = pneg %p159
      %p414 = pneg %p156
      %p415 = pneg %p180
      %p416 = pneg %p177
      %p417 = pneg %p201
      %p418 = pneg %p198
      %p419 = pneg %p222
      %p420 = pneg %p219
      %p421 = pneg %p243
      %p422 = pneg %p240
      %p423 = pneg %p264
      %p424 = pneg %p261
      %p425 = pneg %p285
      %p426 = pneg %p282
      %p427 = pneg %p311
      %p428 = pneg %p308
      %p429 = scmp.lt.s32.totalorder %s23, 1
      %s430 = scalar_select %p429, %s23, 1
      %s431 = smul.addr %s430, 8
      %s432 = smul.addr %s431, 8
      %s433 = scalar_lea.vmem %s12, %s432
      %p434 = scmp.lt.s32.totalorder %s23, 1
      %s435 = scalar_select %p434, %s23, 1
      %s436 = smul.addr %s435, 25
      %s437 = smul.addr %s436, 8
      %s438 = scalar_lea.vmem %s0, %s437
      %p439 = scmp.lt.s32.totalorder %s23, 1
      %s440 = scalar_select %p439, %s23, 1
      %s441 = smul.addr %s440, 25
      %s442 = smul.addr %s441, 8
      %s443 = scalar_lea.vmem %s1, %s442
      %p444 = scmp.lt.s32.totalorder %s23, 1
      %s445 = scalar_select %p444, %s23, 1
      %s446 = smul.addr %s445, 25
      %s447 = smul.addr %s446, 8
      %s448 = scalar_lea.vmem %s2, %s447
      %p449 = scmp.lt.s32.totalorder %s23, 1
      %s450 = scalar_select %p449, %s23, 1
      %s451 = smul.addr %s450, 8
      %s452 = smul.addr %s451, 8
      %s453 = scalar_lea.vmem %s12, %s452
      %v454 = vld [vmem:[%s438] sm:$0xff]
      %v455 = vld [vmem:[%s438 + $0x8] sm:$0xff]
      %v456 = vld [vmem:[%s438 + $0x10] sm:$0xff]
      %v457 = vld [vmem:[%s438 + $0x18] sm:$0xff]
      %v458 = vld [vmem:[%s438 + $0x20] sm:$0xff]
      %v459 = vld [vmem:[%s438 + $0x28] sm:$0xff]
      %v460 = vld [vmem:[%s438 + $0x30] sm:$0xff]
      %v461 = vld [vmem:[%s438 + $0x38] sm:$0xff]
      %v462 = vld [vmem:[%s438 + $0x40] sm:$0xff]
      %v463 = vld [vmem:[%s438 + $0x48] sm:$0xff]
      %v464 = vld [vmem:[%s438 + $0x50] sm:$0xff]
      %v465 = vld [vmem:[%s438 + $0x58] sm:$0xff]
      %v466 = vld [vmem:[%s438 + $0x60] sm:$0xff]
      %v467 = vld [vmem:[%s438 + $0x68] sm:$0xff]
      %v468 = vld [vmem:[%s438 + $0x70] sm:$0xff]
      %v469 = vld [vmem:[%s438 + $0x78] sm:$0xff]
      %v470 = vld [vmem:[%s438 + $0x80] sm:$0xff]
      %v471 = vld [vmem:[%s438 + $0x88] sm:$0xff]
      %v472 = vld [vmem:[%s438 + $0x90] sm:$0xff]
      %v473 = vld [vmem:[%s438 + $0x98] sm:$0xff]
      %v474 = vld [vmem:[%s438 + $0xa0] sm:$0xff]
      %v475 = vld [vmem:[%s438 + $0xa8] sm:$0xff]
      %v476 = vld [vmem:[%s438 + $0xb0] sm:$0xff]
      %v477 = vld [vmem:[%s438 + $0xb8] sm:$0xff]
      %v478 = vld [vmem:[%s438 + $0xc0] sm:$0xf]
      %vm479 = vcmask 130048
      %480 = vst.msk [vmem:[#allocation2] sm:$0xff] %vm479, 0.0
      %vm481 = vcmask 129024
      %482 = vst.msk [vmem:[#allocation2 + $0x8] sm:$0x7f] %vm481, 0.0
      %483 = vst.msk [vmem:[#allocation2 + $0xd3] sm:$0xff] %vm479, 0.0
      %484 = vst.msk [vmem:[#allocation2 + $0xdb] sm:$0x7f] %vm481, 0.0
      %485 = vst.msk [vmem:[#allocation2 + $0xf] sm:$0xff] %vm479, %v454
      %486 = vst.msk [vmem:[#allocation2 + $0x17] sm:$0xff] %vm479, %v455
      %487 = vst.msk [vmem:[#allocation2 + $0x1f] sm:$0xff] %vm479, %v456
      %488 = vst.msk [vmem:[#allocation2 + $0x27] sm:$0xff] %vm479, %v457
      %489 = vst.msk [vmem:[#allocation2 + $0x2f] sm:$0xff] %vm479, %v458
      %490 = vst.msk [vmem:[#allocation2 + $0x37] sm:$0xff] %vm479, %v459
      %491 = vst.msk [vmem:[#allocation2 + $0x3f] sm:$0xff] %vm479, %v460
      %492 = vst.msk [vmem:[#allocation2 + $0x47] sm:$0xff] %vm479, %v461
      %493 = vst.msk [vmem:[#allocation2 + $0x4f] sm:$0xff] %vm479, %v462
      %494 = vst.msk [vmem:[#allocation2 + $0x57] sm:$0xff] %vm479, %v463
      %495 = vst.msk [vmem:[#allocation2 + $0x5f] sm:$0xff] %vm479, %v464
      %496 = vst.msk [vmem:[#allocation2 + $0x67] sm:$0xff] %vm479, %v465
      %497 = vst.msk [vmem:[#allocation2 + $0x6f] sm:$0xff] %vm479, %v466
      %498 = vst.msk [vmem:[#allocation2 + $0x77] sm:$0xff] %vm479, %v467
      %499 = vst.msk [vmem:[#allocation2 + $0x7f] sm:$0xff] %vm479, %v468
      %500 = vst.msk [vmem:[#allocation2 + $0x87] sm:$0xff] %vm479, %v469
      %501 = vst.msk [vmem:[#allocation2 + $0x8f] sm:$0xff] %vm479, %v470
      %502 = vst.msk [vmem:[#allocation2 + $0x97] sm:$0xff] %vm479, %v471
      %503 = vst.msk [vmem:[#allocation2 + $0x9f] sm:$0xff] %vm479, %v472
      %504 = vst.msk [vmem:[#allocation2 + $0xa7] sm:$0xff] %vm479, %v473
      %505 = vst.msk [vmem:[#allocation2 + $0xaf] sm:$0xff] %vm479, %v474
      %506 = vst.msk [vmem:[#allocation2 + $0xb7] sm:$0xff] %vm479, %v475
      %507 = vst.msk [vmem:[#allocation2 + $0xbf] sm:$0xff] %vm479, %v476
      %508 = vst.msk [vmem:[#allocation2 + $0xc7] sm:$0xff] %vm479, %v477
      %vm509 = vcmask 125952
      %510 = vst.msk [vmem:[#allocation2 + $0xcf] sm:$0xf] %vm509, %v478
      %v511 = vld [vmem:[#allocation2] sm:$0xff]
      %v512 = vld [vmem:[#allocation2 + $0x8] sm:$0xff]
      %v513 = vld [vmem:[#allocation2 + $0x10] sm:$0xff]
      %v514 = vld [vmem:[#allocation2 + $0x18] sm:$0xff]
      %v515 = vld [vmem:[#allocation2 + $0x20] sm:$0xff]
      %v516 = vld [vmem:[#allocation2 + $0x28] sm:$0xff]
      %v517 = vld [vmem:[#allocation2 + $0x30] sm:$0xff]
      %v518 = vld [vmem:[#allocation2 + $0x38] sm:$0xff]
      %v519 = vld [vmem:[#allocation2 + $0x40] sm:$0xff]
      %v520 = vld [vmem:[#allocation2 + $0x48] sm:$0xff]
      %v521 = vld [vmem:[#allocation2 + $0x50] sm:$0xff]
      %v522 = vld [vmem:[#allocation2 + $0x58] sm:$0xff]
      %v523 = vld [vmem:[#allocation2 + $0x60] sm:$0xff]
      %v524 = vld [vmem:[#allocation2 + $0x68] sm:$0xff]
      %v525 = vld [vmem:[#allocation2 + $0x70] sm:$0xff]
      %v526 = vld [vmem:[#allocation2 + $0x78] sm:$0xff]
      %v527 = vld [vmem:[#allocation2 + $0x80] sm:$0xff]
      %v528 = vld [vmem:[#allocation2 + $0x88] sm:$0xff]
      %v529 = vld [vmem:[#allocation2 + $0x90] sm:$0xff]
      %v530 = vld [vmem:[#allocation2 + $0x98] sm:$0xff]
      %v531 = vld [vmem:[#allocation2 + $0xa0] sm:$0xff]
      %v532 = vld [vmem:[#allocation2 + $0xa8] sm:$0xff]
      %v533 = vld [vmem:[#allocation2 + $0xb0] sm:$0xff]
      %v534 = vld [vmem:[#allocation2 + $0xb8] sm:$0xff]
      %v535 = vld [vmem:[#allocation2 + $0xc0] sm:$0xff]
      %v536 = vld [vmem:[#allocation2 + $0xc8] sm:$0xff]
      %v537 = vld [vmem:[#allocation2 + $0xd0] sm:$0xff]
      %v538 = vld [vmem:[#allocation2 + $0xd8] sm:$0xff]
      %v539 = vld [vmem:[#allocation2 + $0xe0] sm:$0x3]
      %v540 = vld [vmem:[%s3] sm:$0xff]
      %v541 = vld [vmem:[%s3 + $0x8] sm:$0xff]
      %v542 = vld [vmem:[%s3 + $0x10] sm:$0xff]
      %v543 = vld [vmem:[%s3 + $0x18] sm:$0xff]
      %v544 = vld [vmem:[%s3 + $0x20] sm:$0xff]
      %v545 = vld [vmem:[%s3 + $0x28] sm:$0xff]
      %v546 = vld [vmem:[%s3 + $0x30] sm:$0xff]
      %v547 = vld [vmem:[%s3 + $0x38] sm:$0xff]
      %v548 = vld [vmem:[%s3 + $0x40] sm:$0xff]
      %v549 = vld [vmem:[%s3 + $0x48] sm:$0xff]
      %v550 = vld [vmem:[%s3 + $0x50] sm:$0xff]
      %v551 = vld [vmem:[%s3 + $0x58] sm:$0xff]
      %v552 = vld [vmem:[%s3 + $0x60] sm:$0xff]
      %v553 = vld [vmem:[%s3 + $0x68] sm:$0xff]
      %v554 = vld [vmem:[%s3 + $0x70] sm:$0xff]
      %v555 = vld [vmem:[%s3 + $0x78] sm:$0xff]
      %v556 = vld [vmem:[%s3 + $0x80] sm:$0xff]
      %v557 = vld [vmem:[%s3 + $0x88] sm:$0xff]
      %v558 = vld [vmem:[%s3 + $0x90] sm:$0xff]
      %v559 = vld [vmem:[%s3 + $0x98] sm:$0xff]
      %v560 = vld [vmem:[%s3 + $0xa0] sm:$0xff]
      %v561 = vld [vmem:[%s3 + $0xa8] sm:$0xff]
      %v562 = vld [vmem:[%s3 + $0xb0] sm:$0xff]
      %v563 = vld [vmem:[%s3 + $0xb8] sm:$0xff]
      %v564 = vld [vmem:[%s3 + $0xc0] sm:$0xf]
      %v565 = vld [vmem:[%s4] sm:$0xff]
      %v566 = vld [vmem:[%s4 + $0x8] sm:$0x1]
      %568 = vset.pattern.permute.xlu0 0
      %569 = vperm.xlu0 %568, %v540
      %v570 = vpop.permute.xlu0 %569
      %573 = vset.pattern.permute.xlu0 0
      %574 = vperm.xlu0 %573, %v541
      %v575 = vpop.permute.xlu0 %574
      %578 = vset.pattern.permute.xlu0 0
      %579 = vperm.xlu0 %578, %v542
      %v580 = vpop.permute.xlu0 %579
      %583 = vset.pattern.permute.xlu0 0
      %584 = vperm.xlu0 %583, %v543
      %v585 = vpop.permute.xlu0 %584
      %588 = vset.pattern.permute.xlu0 0
      %589 = vperm.xlu0 %588, %v544
      %v590 = vpop.permute.xlu0 %589
      %593 = vset.pattern.permute.xlu0 0
      %594 = vperm.xlu0 %593, %v545
      %v595 = vpop.permute.xlu0 %594
      %598 = vset.pattern.permute.xlu0 0
      %599 = vperm.xlu0 %598, %v546
      %v600 = vpop.permute.xlu0 %599
      %603 = vset.pattern.permute.xlu0 0
      %604 = vperm.xlu0 %603, %v547
      %v605 = vpop.permute.xlu0 %604
      %608 = vset.pattern.permute.xlu0 0
      %609 = vperm.xlu0 %608, %v548
      %v610 = vpop.permute.xlu0 %609
      %613 = vset.pattern.permute.xlu0 0
      %614 = vperm.xlu0 %613, %v549
      %v615 = vpop.permute.xlu0 %614
      %618 = vset.pattern.permute.xlu0 0
      %619 = vperm.xlu0 %618, %v550
      %v620 = vpop.permute.xlu0 %619
      %623 = vset.pattern.permute.xlu0 0
      %624 = vperm.xlu0 %623, %v551
      %v625 = vpop.permute.xlu0 %624
      %628 = vset.pattern.permute.xlu0 0
      %629 = vperm.xlu0 %628, %v552
      %v630 = vpop.permute.xlu0 %629
      %633 = vset.pattern.permute.xlu0 0
      %634 = vperm.xlu0 %633, %v553
      %v635 = vpop.permute.xlu0 %634
      %638 = vset.pattern.permute.xlu0 0
      %639 = vperm.xlu0 %638, %v554
      %v640 = vpop.permute.xlu0 %639
      %643 = vset.pattern.permute.xlu0 0
      %644 = vperm.xlu0 %643, %v555
      %v645 = vpop.permute.xlu0 %644
      %648 = vset.pattern.permute.xlu0 0
      %649 = vperm.xlu0 %648, %v556
      %v650 = vpop.permute.xlu0 %649
      %653 = vset.pattern.permute.xlu0 0
      %654 = vperm.xlu0 %653, %v557
      %v655 = vpop.permute.xlu0 %654
      %658 = vset.pattern.permute.xlu0 0
      %659 = vperm.xlu0 %658, %v558
      %v660 = vpop.permute.xlu0 %659
      %663 = vset.pattern.permute.xlu0 0
      %664 = vperm.xlu0 %663, %v559
      %v665 = vpop.permute.xlu0 %664
      %668 = vset.pattern.permute.xlu0 0
      %669 = vperm.xlu0 %668, %v560
      %v670 = vpop.permute.xlu0 %669
      %673 = vset.pattern.permute.xlu0 0
      %674 = vperm.xlu0 %673, %v561
      %v675 = vpop.permute.xlu0 %674
      %678 = vset.pattern.permute.xlu0 0
      %679 = vperm.xlu0 %678, %v562
      %v680 = vpop.permute.xlu0 %679
      %683 = vset.pattern.permute.xlu0 0
      %684 = vperm.xlu0 %683, %v563
      %v685 = vpop.permute.xlu0 %684
      %688 = vset.pattern.permute.xlu0 0
      %689 = vperm.xlu0 %688, %v564
      %v690 = vpop.permute.xlu0 %689
      %v692 = vmul.f32 %v511, %v570
      %v693 = vmul.f32 %v512, %v575
      %v694 = vmul.f32 %v513, %v580
      %v695 = vmul.f32 %v514, %v585
      %v696 = vmul.f32 %v515, %v590
      %v697 = vmul.f32 %v516, %v595
      %v698 = vmul.f32 %v517, %v600
      %v699 = vmul.f32 %v518, %v605
      %v700 = vmul.f32 %v519, %v610
      %v701 = vmul.f32 %v520, %v615
      %v702 = vmul.f32 %v521, %v620
      %v703 = vmul.f32 %v522, %v625
      %v704 = vmul.f32 %v523, %v630
      %v705 = vmul.f32 %v524, %v635
      %v706 = vmul.f32 %v525, %v640
      %v707 = vmul.f32 %v526, %v645
      %v708 = vmul.f32 %v527, %v650
      %v709 = vmul.f32 %v528, %v655
      %v710 = vmul.f32 %v529, %v660
      %v711 = vmul.f32 %v530, %v665
      %v712 = vmul.f32 %v531, %v670
      %v713 = vmul.f32 %v532, %v675
      %v714 = vmul.f32 %v533, %v680
      %v715 = vmul.f32 %v534, %v685
      %v716 = vmul.f32 %v535, %v690
      %v717 = vlaneseq
      %v718 = vshrl.u32 %v717, 7
      %v719 = vsub.s32 0, %v718
      %v720 = vrot.slane %v565, %v719
      %v721 = vmul.f32 %v692, %v720
      %v722 = vmul.f32 %v693, %v720
      %v723 = vmul.f32 %v694, %v720
      %v724 = vmul.f32 %v695, %v720
      %v725 = vmul.f32 %v696, %v720
      %v726 = vmul.f32 %v697, %v720
      %v727 = vmul.f32 %v698, %v720
      %v728 = vmul.f32 %v699, %v720
      %v729 = vmul.f32 %v700, %v720
      %v730 = vmul.f32 %v701, %v720
      %v731 = vmul.f32 %v702, %v720
      %v732 = vmul.f32 %v703, %v720
      %v733 = vmul.f32 %v704, %v720
      %v734 = vmul.f32 %v705, %v720
      %v735 = vmul.f32 %v706, %v720
      %v736 = vmul.f32 %v707, %v720
      %v737 = vmul.f32 %v708, %v720
      %v738 = vmul.f32 %v709, %v720
      %v739 = vmul.f32 %v710, %v720
      %v740 = vmul.f32 %v711, %v720
      %v741 = vmul.f32 %v712, %v720
      %v742 = vmul.f32 %v713, %v720
      %v743 = vmul.f32 %v714, %v720
      %v744 = vmul.f32 %v715, %v720
      %v745 = vmul.f32 %v716, %v720
      %v746 = vadd.f32 %v721, 0.0
      %v747 = vadd.f32 %v722, 0.0
      %v748 = vadd.f32 %v723, 0.0
      %v749 = vadd.f32 %v724, 0.0
      %v750 = vadd.f32 %v725, 0.0
      %v751 = vadd.f32 %v726, 0.0
      %v752 = vadd.f32 %v727, 0.0
      %v753 = vadd.f32 %v728, 0.0
      %v754 = vadd.f32 %v729, 0.0
      %v755 = vadd.f32 %v730, 0.0
      %v756 = vadd.f32 %v731, 0.0
      %v757 = vadd.f32 %v732, 0.0
      %v758 = vadd.f32 %v733, 0.0
      %v759 = vadd.f32 %v734, 0.0
      %v760 = vadd.f32 %v735, 0.0
      %v761 = vadd.f32 %v736, 0.0
      %v762 = vadd.f32 %v737, 0.0
      %v763 = vadd.f32 %v738, 0.0
      %v764 = vadd.f32 %v739, 0.0
      %v765 = vadd.f32 %v740, 0.0
      %v766 = vadd.f32 %v741, 0.0
      %v767 = vadd.f32 %v742, 0.0
      %v768 = vadd.f32 %v743, 0.0
      %v769 = vadd.f32 %v744, 0.0
      %v770 = vadd.f32 %v745, 0.0
      %771 = vset.pattern.permute.xlu0 1
      %772 = vperm.xlu0 %771, %v540
      %v773 = vpop.permute.xlu0 %772
      %774 = vset.pattern.permute.xlu0 1
      %775 = vperm.xlu0 %774, %v541
      %v776 = vpop.permute.xlu0 %775
      %777 = vset.pattern.permute.xlu0 1
      %778 = vperm.xlu0 %777, %v542
      %v779 = vpop.permute.xlu0 %778
      %780 = vset.pattern.permute.xlu0 1
      %781 = vperm.xlu0 %780, %v543
      %v782 = vpop.permute.xlu0 %781
      %783 = vset.pattern.permute.xlu0 1
      %784 = vperm.xlu0 %783, %v544
      %v785 = vpop.permute.xlu0 %784
      %786 = vset.pattern.permute.xlu0 1
      %787 = vperm.xlu0 %786, %v545
      %v788 = vpop.permute.xlu0 %787
      %789 = vset.pattern.permute.xlu0 1
      %790 = vperm.xlu0 %789, %v546
      %v791 = vpop.permute.xlu0 %790
      %792 = vset.pattern.permute.xlu0 1
      %793 = vperm.xlu0 %792, %v547
      %v794 = vpop.permute.xlu0 %793
      %795 = vset.pattern.permute.xlu0 1
      %796 = vperm.xlu0 %795, %v548
      %v797 = vpop.permute.xlu0 %796
      %798 = vset.pattern.permute.xlu0 1
      %799 = vperm.xlu0 %798, %v549
      %v800 = vpop.permute.xlu0 %799
      %801 = vset.pattern.permute.xlu0 1
      %802 = vperm.xlu0 %801, %v550
      %v803 = vpop.permute.xlu0 %802
      %804 = vset.pattern.permute.xlu0 1
      %805 = vperm.xlu0 %804, %v551
      %v806 = vpop.permute.xlu0 %805
      %807 = vset.pattern.permute.xlu0 1
      %808 = vperm.xlu0 %807, %v552
      %v809 = vpop.permute.xlu0 %808
      %810 = vset.pattern.permute.xlu0 1
      %811 = vperm.xlu0 %810, %v553
      %v812 = vpop.permute.xlu0 %811
      %813 = vset.pattern.permute.xlu0 1
      %814 = vperm.xlu0 %813, %v554
      %v815 = vpop.permute.xlu0 %814
      %816 = vset.pattern.permute.xlu0 1
      %817 = vperm.xlu0 %816, %v555
      %v818 = vpop.permute.xlu0 %817
      %819 = vset.pattern.permute.xlu0 1
      %820 = vperm.xlu0 %819, %v556
      %v821 = vpop.permute.xlu0 %820
      %822 = vset.pattern.permute.xlu0 1
      %823 = vperm.xlu0 %822, %v557
      %v824 = vpop.permute.xlu0 %823
      %825 = vset.pattern.permute.xlu0 1
      %826 = vperm.xlu0 %825, %v558
      %v827 = vpop.permute.xlu0 %826
      %828 = vset.pattern.permute.xlu0 1
      %829 = vperm.xlu0 %828, %v559
      %v830 = vpop.permute.xlu0 %829
      %831 = vset.pattern.permute.xlu0 1
      %832 = vperm.xlu0 %831, %v560
      %v833 = vpop.permute.xlu0 %832
      %834 = vset.pattern.permute.xlu0 1
      %835 = vperm.xlu0 %834, %v561
      %v836 = vpop.permute.xlu0 %835
      %837 = vset.pattern.permute.xlu0 1
      %838 = vperm.xlu0 %837, %v562
      %v839 = vpop.permute.xlu0 %838
      %840 = vset.pattern.permute.xlu0 1
      %841 = vperm.xlu0 %840, %v563
      %v842 = vpop.permute.xlu0 %841
      %843 = vset.pattern.permute.xlu0 1
      %844 = vperm.xlu0 %843, %v564
      %v845 = vpop.permute.xlu0 %844
      %vm846 = vcmask 1040384
      %v847 = vrot.slane %v773, 7
      %v848 = vrot.slane %v776, 7
      %v849 = vsel %vm846, %v847, %v848
      %v850 = vrot.slane %v779, 7
      %v851 = vsel %vm846, %v848, %v850
      %v852 = vrot.slane %v782, 7
      %v853 = vsel %vm846, %v850, %v852
      %v854 = vrot.slane %v785, 7
      %v855 = vsel %vm846, %v852, %v854
      %v856 = vrot.slane %v788, 7
      %v857 = vsel %vm846, %v854, %v856
      %v858 = vrot.slane %v791, 7
      %v859 = vsel %vm846, %v856, %v858
      %v860 = vrot.slane %v794, 7
      %v861 = vsel %vm846, %v858, %v860
      %v862 = vrot.slane %v797, 7
      %v863 = vsel %vm846, %v860, %v862
      %v864 = vrot.slane %v800, 7
      %v865 = vsel %vm846, %v862, %v864
      %v866 = vrot.slane %v803, 7
      %v867 = vsel %vm846, %v864, %v866
      %v868 = vrot.slane %v806, 7
      %v869 = vsel %vm846, %v866, %v868
      %v870 = vrot.slane %v809, 7
      %v871 = vsel %vm846, %v868, %v870
      %v872 = vrot.slane %v812, 7
      %v873 = vsel %vm846, %v870, %v872
      %v874 = vrot.slane %v815, 7
      %v875 = vsel %vm846, %v872, %v874
      %v876 = vrot.slane %v818, 7
      %v877 = vsel %vm846, %v874, %v876
      %v878 = vrot.slane %v821, 7
      %v879 = vsel %vm846, %v876, %v878
      %v880 = vrot.slane %v824, 7
      %v881 = vsel %vm846, %v878, %v880
      %v882 = vrot.slane %v827, 7
      %v883 = vsel %vm846, %v880, %v882
      %v884 = vrot.slane %v830, 7
      %v885 = vsel %vm846, %v882, %v884
      %v886 = vrot.slane %v833, 7
      %v887 = vsel %vm846, %v884, %v886
      %v888 = vrot.slane %v836, 7
      %v889 = vsel %vm846, %v886, %v888
      %v890 = vrot.slane %v839, 7
      %v891 = vsel %vm846, %v888, %v890
      %v892 = vrot.slane %v842, 7
      %v893 = vsel %vm846, %v890, %v892
      %v894 = vrot.slane %v845, 7
      %v895 = vsel %vm846, %v892, %v894
      %v921 = vmul.f32 %v511, %v847
      %v922 = vmul.f32 %v512, %v849
      %v923 = vmul.f32 %v513, %v851
      %v924 = vmul.f32 %v514, %v853
      %v925 = vmul.f32 %v515, %v855
      %v926 = vmul.f32 %v516, %v857
      %v927 = vmul.f32 %v517, %v859
      %v928 = vmul.f32 %v518, %v861
      %v929 = vmul.f32 %v519, %v863
      %v930 = vmul.f32 %v520, %v865
      %v931 = vmul.f32 %v521, %v867
      %v932 = vmul.f32 %v522, %v869
      %v933 = vmul.f32 %v523, %v871
      %v934 = vmul.f32 %v524, %v873
      %v935 = vmul.f32 %v525, %v875
      %v936 = vmul.f32 %v526, %v877
      %v937 = vmul.f32 %v527, %v879
      %v938 = vmul.f32 %v528, %v881
      %v939 = vmul.f32 %v529, %v883
      %v940 = vmul.f32 %v530, %v885
      %v941 = vmul.f32 %v531, %v887
      %v942 = vmul.f32 %v532, %v889
      %v943 = vmul.f32 %v533, %v891
      %v944 = vmul.f32 %v534, %v893
      %v945 = vmul.f32 %v535, %v895
      %v946 = vlaneseq
      %v947 = vshrl.u32 %v946, 7
      %v948 = vsub.s32 1, %v947
      %v949 = vrot.slane %v565, %v948
      %v950 = vmul.f32 %v921, %v949
      %v951 = vmul.f32 %v922, %v949
      %v952 = vmul.f32 %v923, %v949
      %v953 = vmul.f32 %v924, %v949
      %v954 = vmul.f32 %v925, %v949
      %v955 = vmul.f32 %v926, %v949
      %v956 = vmul.f32 %v927, %v949
      %v957 = vmul.f32 %v928, %v949
      %v958 = vmul.f32 %v929, %v949
      %v959 = vmul.f32 %v930, %v949
      %v960 = vmul.f32 %v931, %v949
      %v961 = vmul.f32 %v932, %v949
      %v962 = vmul.f32 %v933, %v949
      %v963 = vmul.f32 %v934, %v949
      %v964 = vmul.f32 %v935, %v949
      %v965 = vmul.f32 %v936, %v949
      %v966 = vmul.f32 %v937, %v949
      %v967 = vmul.f32 %v938, %v949
      %v968 = vmul.f32 %v939, %v949
      %v969 = vmul.f32 %v940, %v949
      %v970 = vmul.f32 %v941, %v949
      %v971 = vmul.f32 %v942, %v949
      %v972 = vmul.f32 %v943, %v949
      %v973 = vmul.f32 %v944, %v949
      %v974 = vmul.f32 %v945, %v949
      %vm1000 = vcmask 1046528
      %v1001 = vrot.slane %v950, 1
      %v1002 = vrot.slane %v951, 1
      %v1003 = vsel %vm1000, %v1001, %v1002
      %v1004 = vrot.slane %v952, 1
      %v1005 = vsel %vm1000, %v1002, %v1004
      %v1006 = vrot.slane %v953, 1
      %v1007 = vsel %vm1000, %v1004, %v1006
      %v1008 = vrot.slane %v954, 1
      %v1009 = vsel %vm1000, %v1006, %v1008
      %v1010 = vrot.slane %v955, 1
      %v1011 = vsel %vm1000, %v1008, %v1010
      %v1012 = vrot.slane %v956, 1
      %v1013 = vsel %vm1000, %v1010, %v1012
      %v1014 = vrot.slane %v957, 1
      %v1015 = vsel %vm1000, %v1012, %v1014
      %v1016 = vrot.slane %v958, 1
      %v1017 = vsel %vm1000, %v1014, %v1016
      %v1018 = vrot.slane %v959, 1
      %v1019 = vsel %vm1000, %v1016, %v1018
      %v1020 = vrot.slane %v960, 1
      %v1021 = vsel %vm1000, %v1018, %v1020
      %v1022 = vrot.slane %v961, 1
      %v1023 = vsel %vm1000, %v1020, %v1022
      %v1024 = vrot.slane %v962, 1
      %v1025 = vsel %vm1000, %v1022, %v1024
      %v1026 = vrot.slane %v963, 1
      %v1027 = vsel %vm1000, %v1024, %v1026
      %v1028 = vrot.slane %v964, 1
      %v1029 = vsel %vm1000, %v1026, %v1028
      %v1030 = vrot.slane %v965, 1
      %v1031 = vsel %vm1000, %v1028, %v1030
      %v1032 = vrot.slane %v966, 1
      %v1033 = vsel %vm1000, %v1030, %v1032
      %v1034 = vrot.slane %v967, 1
      %v1035 = vsel %vm1000, %v1032, %v1034
      %v1036 = vrot.slane %v968, 1
      %v1037 = vsel %vm1000, %v1034, %v1036
      %v1038 = vrot.slane %v969, 1
      %v1039 = vsel %vm1000, %v1036, %v1038
      %v1040 = vrot.slane %v970, 1
      %v1041 = vsel %vm1000, %v1038, %v1040
      %v1042 = vrot.slane %v971, 1
      %v1043 = vsel %vm1000, %v1040, %v1042
      %v1044 = vrot.slane %v972, 1
      %v1045 = vsel %vm1000, %v1042, %v1044
      %v1046 = vrot.slane %v973, 1
      %v1047 = vsel %vm1000, %v1044, %v1046
      %v1048 = vrot.slane %v974, 1
      %v1049 = vsel %vm1000, %v1046, %v1048
      %v1075 = vadd.f32 %v746, %v1003
      %v1076 = vadd.f32 %v747, %v1005
      %v1077 = vadd.f32 %v748, %v1007
      %v1078 = vadd.f32 %v749, %v1009
      %v1079 = vadd.f32 %v750, %v1011
      %v1080 = vadd.f32 %v751, %v1013
      %v1081 = vadd.f32 %v752, %v1015
      %v1082 = vadd.f32 %v753, %v1017
      %v1083 = vadd.f32 %v754, %v1019
      %v1084 = vadd.f32 %v755, %v1021
      %v1085 = vadd.f32 %v756, %v1023
      %v1086 = vadd.f32 %v757, %v1025
      %v1087 = vadd.f32 %v758, %v1027
      %v1088 = vadd.f32 %v759, %v1029
      %v1089 = vadd.f32 %v760, %v1031
      %v1090 = vadd.f32 %v761, %v1033
      %v1091 = vadd.f32 %v762, %v1035
      %v1092 = vadd.f32 %v763, %v1037
      %v1093 = vadd.f32 %v764, %v1039
      %v1094 = vadd.f32 %v765, %v1041
      %v1095 = vadd.f32 %v766, %v1043
      %v1096 = vadd.f32 %v767, %v1045
      %v1097 = vadd.f32 %v768, %v1047
      %v1098 = vadd.f32 %v769, %v1049
      %v1099 = vadd.f32 %v770, %v1048
      %1100 = vset.pattern.permute.xlu0 2
      %1101 = vperm.xlu0 %1100, %v540
      %v1102 = vpop.permute.xlu0 %1101
      %1103 = vset.pattern.permute.xlu0 2
      %1104 = vperm.xlu0 %1103, %v541
      %v1105 = vpop.permute.xlu0 %1104
      %1106 = vset.pattern.permute.xlu0 2
      %1107 = vperm.xlu0 %1106, %v542
      %v1108 = vpop.permute.xlu0 %1107
      %1109 = vset.pattern.permute.xlu0 2
      %1110 = vperm.xlu0 %1109, %v543
      %v1111 = vpop.permute.xlu0 %1110
      %1112 = vset.pattern.permute.xlu0 2
      %1113 = vperm.xlu0 %1112, %v544
      %v1114 = vpop.permute.xlu0 %1113
      %1115 = vset.pattern.permute.xlu0 2
      %1116 = vperm.xlu0 %1115, %v545
      %v1117 = vpop.permute.xlu0 %1116
      %1118 = vset.pattern.permute.xlu0 2
      %1119 = vperm.xlu0 %1118, %v546
      %v1120 = vpop.permute.xlu0 %1119
      %1121 = vset.pattern.permute.xlu0 2
      %1122 = vperm.xlu0 %1121, %v547
      %v1123 = vpop.permute.xlu0 %1122
      %1124 = vset.pattern.permute.xlu0 2
      %1125 = vperm.xlu0 %1124, %v548
      %v1126 = vpop.permute.xlu0 %1125
      %1127 = vset.pattern.permute.xlu0 2
      %1128 = vperm.xlu0 %1127, %v549
      %v1129 = vpop.permute.xlu0 %1128
      %1130 = vset.pattern.permute.xlu0 2
      %1131 = vperm.xlu0 %1130, %v550
      %v1132 = vpop.permute.xlu0 %1131
      %1133 = vset.pattern.permute.xlu0 2
      %1134 = vperm.xlu0 %1133, %v551
      %v1135 = vpop.permute.xlu0 %1134
      %1136 = vset.pattern.permute.xlu0 2
      %1137 = vperm.xlu0 %1136, %v552
      %v1138 = vpop.permute.xlu0 %1137
      %1139 = vset.pattern.permute.xlu0 2
      %1140 = vperm.xlu0 %1139, %v553
      %v1141 = vpop.permute.xlu0 %1140
      %1142 = vset.pattern.permute.xlu0 2
      %1143 = vperm.xlu0 %1142, %v554
      %v1144 = vpop.permute.xlu0 %1143
      %1145 = vset.pattern.permute.xlu0 2
      %1146 = vperm.xlu0 %1145, %v555
      %v1147 = vpop.permute.xlu0 %1146
      %1148 = vset.pattern.permute.xlu0 2
      %1149 = vperm.xlu0 %1148, %v556
      %v1150 = vpop.permute.xlu0 %1149
      %1151 = vset.pattern.permute.xlu0 2
      %1152 = vperm.xlu0 %1151, %v557
      %v1153 = vpop.permute.xlu0 %1152
      %1154 = vset.pattern.permute.xlu0 2
      %1155 = vperm.xlu0 %1154, %v558
      %v1156 = vpop.permute.xlu0 %1155
      %1157 = vset.pattern.permute.xlu0 2
      %1158 = vperm.xlu0 %1157, %v559
      %v1159 = vpop.permute.xlu0 %1158
      %1160 = vset.pattern.permute.xlu0 2
      %1161 = vperm.xlu0 %1160, %v560
      %v1162 = vpop.permute.xlu0 %1161
      %1163 = vset.pattern.permute.xlu0 2
      %1164 = vperm.xlu0 %1163, %v561
      %v1165 = vpop.permute.xlu0 %1164
      %1166 = vset.pattern.permute.xlu0 2
      %1167 = vperm.xlu0 %1166, %v562
      %v1168 = vpop.permute.xlu0 %1167
      %1169 = vset.pattern.permute.xlu0 2
      %1170 = vperm.xlu0 %1169, %v563
      %v1171 = vpop.permute.xlu0 %1170
      %1172 = vset.pattern.permute.xlu0 2
      %1173 = vperm.xlu0 %1172, %v564
      %v1174 = vpop.permute.xlu0 %1173
      %vm1175 = vcmask 1041408
      %v1176 = vrot.slane %v1102, 6
      %v1177 = vrot.slane %v1105, 6
      %v1178 = vsel %vm1175, %v1176, %v1177
      %v1179 = vrot.slane %v1108, 6
      %v1180 = vsel %vm1175, %v1177, %v1179
      %v1181 = vrot.slane %v1111, 6
      %v1182 = vsel %vm1175, %v1179, %v1181
      %v1183 = vrot.slane %v1114, 6
      %v1184 = vsel %vm1175, %v1181, %v1183
      %v1185 = vrot.slane %v1117, 6
      %v1186 = vsel %vm1175, %v1183, %v1185
      %v1187 = vrot.slane %v1120, 6
      %v1188 = vsel %vm1175, %v1185, %v1187
      %v1189 = vrot.slane %v1123, 6
      %v1190 = vsel %vm1175, %v1187, %v1189
      %v1191 = vrot.slane %v1126, 6
      %v1192 = vsel %vm1175, %v1189, %v1191
      %v1193 = vrot.slane %v1129, 6
      %v1194 = vsel %vm1175, %v1191, %v1193
      %v1195 = vrot.slane %v1132, 6
      %v1196 = vsel %vm1175, %v1193, %v1195
      %v1197 = vrot.slane %v1135, 6
      %v1198 = vsel %vm1175, %v1195, %v1197
      %v1199 = vrot.slane %v1138, 6
      %v1200 = vsel %vm1175, %v1197, %v1199
      %v1201 = vrot.slane %v1141, 6
      %v1202 = vsel %vm1175, %v1199, %v1201
      %v1203 = vrot.slane %v1144, 6
      %v1204 = vsel %vm1175, %v1201, %v1203
      %v1205 = vrot.slane %v1147, 6
      %v1206 = vsel %vm1175, %v1203, %v1205
      %v1207 = vrot.slane %v1150, 6
      %v1208 = vsel %vm1175, %v1205, %v1207
      %v1209 = vrot.slane %v1153, 6
      %v1210 = vsel %vm1175, %v1207, %v1209
      %v1211 = vrot.slane %v1156, 6
      %v1212 = vsel %vm1175, %v1209, %v1211
      %v1213 = vrot.slane %v1159, 6
      %v1214 = vsel %vm1175, %v1211, %v1213
      %v1215 = vrot.slane %v1162, 6
      %v1216 = vsel %vm1175, %v1213, %v1215
      %v1217 = vrot.slane %v1165, 6
      %v1218 = vsel %vm1175, %v1215, %v1217
      %v1219 = vrot.slane %v1168, 6
      %v1220 = vsel %vm1175, %v1217, %v1219
      %v1221 = vrot.slane %v1171, 6
      %v1222 = vsel %vm1175, %v1219, %v1221
      %v1223 = vrot.slane %v1174, 6
      %v1224 = vsel %vm1175, %v1221, %v1223
      %v1250 = vmul.f32 %v511, %v1176
      %v1251 = vmul.f32 %v512, %v1178
      %v1252 = vmul.f32 %v513, %v1180
      %v1253 = vmul.f32 %v514, %v1182
      %v1254 = vmul.f32 %v515, %v1184
      %v1255 = vmul.f32 %v516, %v1186
      %v1256 = vmul.f32 %v517, %v1188
      %v1257 = vmul.f32 %v518, %v1190
      %v1258 = vmul.f32 %v519, %v1192
      %v1259 = vmul.f32 %v520, %v1194
      %v1260 = vmul.f32 %v521, %v1196
      %v1261 = vmul.f32 %v522, %v1198
      %v1262 = vmul.f32 %v523, %v1200
      %v1263 = vmul.f32 %v524, %v1202
      %v1264 = vmul.f32 %v525, %v1204
      %v1265 = vmul.f32 %v526, %v1206
      %v1266 = vmul.f32 %v527, %v1208
      %v1267 = vmul.f32 %v528, %v1210
      %v1268 = vmul.f32 %v529, %v1212
      %v1269 = vmul.f32 %v530, %v1214
      %v1270 = vmul.f32 %v531, %v1216
      %v1271 = vmul.f32 %v532, %v1218
      %v1272 = vmul.f32 %v533, %v1220
      %v1273 = vmul.f32 %v534, %v1222
      %v1274 = vmul.f32 %v535, %v1224
      %v1275 = vlaneseq
      %v1276 = vshrl.u32 %v1275, 7
      %v1277 = vsub.s32 2, %v1276
      %v1278 = vrot.slane %v565, %v1277
      %v1279 = vmul.f32 %v1250, %v1278
      %v1280 = vmul.f32 %v1251, %v1278
      %v1281 = vmul.f32 %v1252, %v1278
      %v1282 = vmul.f32 %v1253, %v1278
      %v1283 = vmul.f32 %v1254, %v1278
      %v1284 = vmul.f32 %v1255, %v1278
      %v1285 = vmul.f32 %v1256, %v1278
      %v1286 = vmul.f32 %v1257, %v1278
      %v1287 = vmul.f32 %v1258, %v1278
      %v1288 = vmul.f32 %v1259, %v1278
      %v1289 = vmul.f32 %v1260, %v1278
      %v1290 = vmul.f32 %v1261, %v1278
      %v1291 = vmul.f32 %v1262, %v1278
      %v1292 = vmul.f32 %v1263, %v1278
      %v1293 = vmul.f32 %v1264, %v1278
      %v1294 = vmul.f32 %v1265, %v1278
      %v1295 = vmul.f32 %v1266, %v1278
      %v1296 = vmul.f32 %v1267, %v1278
      %v1297 = vmul.f32 %v1268, %v1278
      %v1298 = vmul.f32 %v1269, %v1278
      %v1299 = vmul.f32 %v1270, %v1278
      %v1300 = vmul.f32 %v1271, %v1278
      %v1301 = vmul.f32 %v1272, %v1278
      %v1302 = vmul.f32 %v1273, %v1278
      %v1303 = vmul.f32 %v1274, %v1278
      %vm1329 = vcmask 1045504
      %v1330 = vrot.slane %v1279, 2
      %v1331 = vrot.slane %v1280, 2
      %v1332 = vsel %vm1329, %v1330, %v1331
      %v1333 = vrot.slane %v1281, 2
      %v1334 = vsel %vm1329, %v1331, %v1333
      %v1335 = vrot.slane %v1282, 2
      %v1336 = vsel %vm1329, %v1333, %v1335
      %v1337 = vrot.slane %v1283, 2
      %v1338 = vsel %vm1329, %v1335, %v1337
      %v1339 = vrot.slane %v1284, 2
      %v1340 = vsel %vm1329, %v1337, %v1339
      %v1341 = vrot.slane %v1285, 2
      %v1342 = vsel %vm1329, %v1339, %v1341
      %v1343 = vrot.slane %v1286, 2
      %v1344 = vsel %vm1329, %v1341, %v1343
      %v1345 = vrot.slane %v1287, 2
      %v1346 = vsel %vm1329, %v1343, %v1345
      %v1347 = vrot.slane %v1288, 2
      %v1348 = vsel %vm1329, %v1345, %v1347
      %v1349 = vrot.slane %v1289, 2
      %v1350 = vsel %vm1329, %v1347, %v1349
      %v1351 = vrot.slane %v1290, 2
      %v1352 = vsel %vm1329, %v1349, %v1351
      %v1353 = vrot.slane %v1291, 2
      %v1354 = vsel %vm1329, %v1351, %v1353
      %v1355 = vrot.slane %v1292, 2
      %v1356 = vsel %vm1329, %v1353, %v1355
      %v1357 = vrot.slane %v1293, 2
      %v1358 = vsel %vm1329, %v1355, %v1357
      %v1359 = vrot.slane %v1294, 2
      %v1360 = vsel %vm1329, %v1357, %v1359
      %v1361 = vrot.slane %v1295, 2
      %v1362 = vsel %vm1329, %v1359, %v1361
      %v1363 = vrot.slane %v1296, 2
      %v1364 = vsel %vm1329, %v1361, %v1363
      %v1365 = vrot.slane %v1297, 2
      %v1366 = vsel %vm1329, %v1363, %v1365
      %v1367 = vrot.slane %v1298, 2
      %v1368 = vsel %vm1329, %v1365, %v1367
      %v1369 = vrot.slane %v1299, 2
      %v1370 = vsel %vm1329, %v1367, %v1369
      %v1371 = vrot.slane %v1300, 2
      %v1372 = vsel %vm1329, %v1369, %v1371
      %v1373 = vrot.slane %v1301, 2
      %v1374 = vsel %vm1329, %v1371, %v1373
      %v1375 = vrot.slane %v1302, 2
      %v1376 = vsel %vm1329, %v1373, %v1375
      %v1377 = vrot.slane %v1303, 2
      %v1378 = vsel %vm1329, %v1375, %v1377
      %v1404 = vadd.f32 %v1075, %v1332
      %v1405 = vadd.f32 %v1076, %v1334
      %v1406 = vadd.f32 %v1077, %v1336
      %v1407 = vadd.f32 %v1078, %v1338
      %v1408 = vadd.f32 %v1079, %v1340
      %v1409 = vadd.f32 %v1080, %v1342
      %v1410 = vadd.f32 %v1081, %v1344
      %v1411 = vadd.f32 %v1082, %v1346
      %v1412 = vadd.f32 %v1083, %v1348
      %v1413 = vadd.f32 %v1084, %v1350
      %v1414 = vadd.f32 %v1085, %v1352
      %v1415 = vadd.f32 %v1086, %v1354
      %v1416 = vadd.f32 %v1087, %v1356
      %v1417 = vadd.f32 %v1088, %v1358
      %v1418 = vadd.f32 %v1089, %v1360
      %v1419 = vadd.f32 %v1090, %v1362
      %v1420 = vadd.f32 %v1091, %v1364
      %v1421 = vadd.f32 %v1092, %v1366
      %v1422 = vadd.f32 %v1093, %v1368
      %v1423 = vadd.f32 %v1094, %v1370
      %v1424 = vadd.f32 %v1095, %v1372
      %v1425 = vadd.f32 %v1096, %v1374
      %v1426 = vadd.f32 %v1097, %v1376
      %v1427 = vadd.f32 %v1098, %v1378
      %v1428 = vadd.f32 %v1099, %v1377
      %1429 = vset.pattern.permute.xlu0 3
      %1430 = vperm.xlu0 %1429, %v540
      %v1431 = vpop.permute.xlu0 %1430
      %1432 = vset.pattern.permute.xlu0 3
      %1433 = vperm.xlu0 %1432, %v541
      %v1434 = vpop.permute.xlu0 %1433
      %1435 = vset.pattern.permute.xlu0 3
      %1436 = vperm.xlu0 %1435, %v542
      %v1437 = vpop.permute.xlu0 %1436
      %1438 = vset.pattern.permute.xlu0 3
      %1439 = vperm.xlu0 %1438, %v543
      %v1440 = vpop.permute.xlu0 %1439
      %1441 = vset.pattern.permute.xlu0 3
      %1442 = vperm.xlu0 %1441, %v544
      %v1443 = vpop.permute.xlu0 %1442
      %1444 = vset.pattern.permute.xlu0 3
      %1445 = vperm.xlu0 %1444, %v545
      %v1446 = vpop.permute.xlu0 %1445
      %1447 = vset.pattern.permute.xlu0 3
      %1448 = vperm.xlu0 %1447, %v546
      %v1449 = vpop.permute.xlu0 %1448
      %1450 = vset.pattern.permute.xlu0 3
      %1451 = vperm.xlu0 %1450, %v547
      %v1452 = vpop.permute.xlu0 %1451
      %1453 = vset.pattern.permute.xlu0 3
      %1454 = vperm.xlu0 %1453, %v548
      %v1455 = vpop.permute.xlu0 %1454
      %1456 = vset.pattern.permute.xlu0 3
      %1457 = vperm.xlu0 %1456, %v549
      %v1458 = vpop.permute.xlu0 %1457
      %1459 = vset.pattern.permute.xlu0 3
      %1460 = vperm.xlu0 %1459, %v550
      %v1461 = vpop.permute.xlu0 %1460
      %1462 = vset.pattern.permute.xlu0 3
      %1463 = vperm.xlu0 %1462, %v551
      %v1464 = vpop.permute.xlu0 %1463
      %1465 = vset.pattern.permute.xlu0 3
      %1466 = vperm.xlu0 %1465, %v552
      %v1467 = vpop.permute.xlu0 %1466
      %1468 = vset.pattern.permute.xlu0 3
      %1469 = vperm.xlu0 %1468, %v553
      %v1470 = vpop.permute.xlu0 %1469
      %1471 = vset.pattern.permute.xlu0 3
      %1472 = vperm.xlu0 %1471, %v554
      %v1473 = vpop.permute.xlu0 %1472
      %1474 = vset.pattern.permute.xlu0 3
      %1475 = vperm.xlu0 %1474, %v555
      %v1476 = vpop.permute.xlu0 %1475
      %1477 = vset.pattern.permute.xlu0 3
      %1478 = vperm.xlu0 %1477, %v556
      %v1479 = vpop.permute.xlu0 %1478
      %1480 = vset.pattern.permute.xlu0 3
      %1481 = vperm.xlu0 %1480, %v557
      %v1482 = vpop.permute.xlu0 %1481
      %1483 = vset.pattern.permute.xlu0 3
      %1484 = vperm.xlu0 %1483, %v558
      %v1485 = vpop.permute.xlu0 %1484
      %1486 = vset.pattern.permute.xlu0 3
      %1487 = vperm.xlu0 %1486, %v559
      %v1488 = vpop.permute.xlu0 %1487
      %1489 = vset.pattern.permute.xlu0 3
      %1490 = vperm.xlu0 %1489, %v560
      %v1491 = vpop.permute.xlu0 %1490
      %1492 = vset.pattern.permute.xlu0 3
      %1493 = vperm.xlu0 %1492, %v561
      %v1494 = vpop.permute.xlu0 %1493
      %1495 = vset.pattern.permute.xlu0 3
      %1496 = vperm.xlu0 %1495, %v562
      %v1497 = vpop.permute.xlu0 %1496
      %1498 = vset.pattern.permute.xlu0 3
      %1499 = vperm.xlu0 %1498, %v563
      %v1500 = vpop.permute.xlu0 %1499
      %1501 = vset.pattern.permute.xlu0 3
      %1502 = vperm.xlu0 %1501, %v564
      %v1503 = vpop.permute.xlu0 %1502
      %v1504 = vrot.slane %v1431, 2
      %v1505 = vrot.slane %v1434, 2
      %v1506 = vsel %vm1329, %v1504, %v1505
      %v1507 = vrot.slane %v1437, 2
      %v1508 = vsel %vm1329, %v1505, %v1507
      %v1509 = vrot.slane %v1440, 2
      %v1510 = vsel %vm1329, %v1507, %v1509
      %v1511 = vrot.slane %v1443, 2
      %v1512 = vsel %vm1329, %v1509, %v1511
      %v1513 = vrot.slane %v1446, 2
      %v1514 = vsel %vm1329, %v1511, %v1513
      %v1515 = vrot.slane %v1449, 2
      %v1516 = vsel %vm1329, %v1513, %v1515
      %v1517 = vrot.slane %v1452, 2
      %v1518 = vsel %vm1329, %v1515, %v1517
      %v1519 = vrot.slane %v1455, 2
      %v1520 = vsel %vm1329, %v1517, %v1519
      %v1521 = vrot.slane %v1458, 2
      %v1522 = vsel %vm1329, %v1519, %v1521
      %v1523 = vrot.slane %v1461, 2
      %v1524 = vsel %vm1329, %v1521, %v1523
      %v1525 = vrot.slane %v1464, 2
      %v1526 = vsel %vm1329, %v1523, %v1525
      %v1527 = vrot.slane %v1467, 2
      %v1528 = vsel %vm1329, %v1525, %v1527
      %v1529 = vrot.slane %v1470, 2
      %v1530 = vsel %vm1329, %v1527, %v1529
      %v1531 = vrot.slane %v1473, 2
      %v1532 = vsel %vm1329, %v1529, %v1531
      %v1533 = vrot.slane %v1476, 2
      %v1534 = vsel %vm1329, %v1531, %v1533
      %v1535 = vrot.slane %v1479, 2
      %v1536 = vsel %vm1329, %v1533, %v1535
      %v1537 = vrot.slane %v1482, 2
      %v1538 = vsel %vm1329, %v1535, %v1537
      %v1539 = vrot.slane %v1485, 2
      %v1540 = vsel %vm1329, %v1537, %v1539
      %v1541 = vrot.slane %v1488, 2
      %v1542 = vsel %vm1329, %v1539, %v1541
      %v1543 = vrot.slane %v1491, 2
      %v1544 = vsel %vm1329, %v1541, %v1543
      %v1545 = vrot.slane %v1494, 2
      %v1546 = vsel %vm1329, %v1543, %v1545
      %v1547 = vrot.slane %v1497, 2
      %v1548 = vsel %vm1329, %v1545, %v1547
      %v1549 = vrot.slane %v1500, 2
      %v1550 = vsel %vm1329, %v1547, %v1549
      %v1551 = vrot.slane %v1503, 2
      %v1552 = vsel %vm1329, %v1549, %v1551
      %v1579 = vmul.f32 %v512, %v1504
      %v1580 = vmul.f32 %v513, %v1506
      %v1581 = vmul.f32 %v514, %v1508
      %v1582 = vmul.f32 %v515, %v1510
      %v1583 = vmul.f32 %v516, %v1512
      %v1584 = vmul.f32 %v517, %v1514
      %v1585 = vmul.f32 %v518, %v1516
      %v1586 = vmul.f32 %v519, %v1518
      %v1587 = vmul.f32 %v520, %v1520
      %v1588 = vmul.f32 %v521, %v1522
      %v1589 = vmul.f32 %v522, %v1524
      %v1590 = vmul.f32 %v523, %v1526
      %v1591 = vmul.f32 %v524, %v1528
      %v1592 = vmul.f32 %v525, %v1530
      %v1593 = vmul.f32 %v526, %v1532
      %v1594 = vmul.f32 %v527, %v1534
      %v1595 = vmul.f32 %v528, %v1536
      %v1596 = vmul.f32 %v529, %v1538
      %v1597 = vmul.f32 %v530, %v1540
      %v1598 = vmul.f32 %v531, %v1542
      %v1599 = vmul.f32 %v532, %v1544
      %v1600 = vmul.f32 %v533, %v1546
      %v1601 = vmul.f32 %v534, %v1548
      %v1602 = vmul.f32 %v535, %v1550
      %v1603 = vmul.f32 %v536, %v1552
      %v1604 = vmul.f32 %v537, %v1551
      %v1605 = vlaneseq
      %v1606 = vshrl.u32 %v1605, 7
      %v1607 = vsub.s32 3, %v1606
      %v1608 = vrot.slane %v565, %v1607
      %v1609 = vmul.f32 %v1579, %v1608
      %v1610 = vmul.f32 %v1580, %v1608
      %v1611 = vmul.f32 %v1581, %v1608
      %v1612 = vmul.f32 %v1582, %v1608
      %v1613 = vmul.f32 %v1583, %v1608
      %v1614 = vmul.f32 %v1584, %v1608
      %v1615 = vmul.f32 %v1585, %v1608
      %v1616 = vmul.f32 %v1586, %v1608
      %v1617 = vmul.f32 %v1587, %v1608
      %v1618 = vmul.f32 %v1588, %v1608
      %v1619 = vmul.f32 %v1589, %v1608
      %v1620 = vmul.f32 %v1590, %v1608
      %v1621 = vmul.f32 %v1591, %v1608
      %v1622 = vmul.f32 %v1592, %v1608
      %v1623 = vmul.f32 %v1593, %v1608
      %v1624 = vmul.f32 %v1594, %v1608
      %v1625 = vmul.f32 %v1595, %v1608
      %v1626 = vmul.f32 %v1596, %v1608
      %v1627 = vmul.f32 %v1597, %v1608
      %v1628 = vmul.f32 %v1598, %v1608
      %v1629 = vmul.f32 %v1599, %v1608
      %v1630 = vmul.f32 %v1600, %v1608
      %v1631 = vmul.f32 %v1601, %v1608
      %v1632 = vmul.f32 %v1602, %v1608
      %v1633 = vmul.f32 %v1603, %v1608
      %v1634 = vmul.f32 %v1604, %v1608
      %v1661 = vrot.slane %v1609, 6
      %v1662 = vrot.slane %v1610, 6
      %v1663 = vsel %vm1175, %v1661, %v1662
      %v1664 = vrot.slane %v1611, 6
      %v1665 = vsel %vm1175, %v1662, %v1664
      %v1666 = vrot.slane %v1612, 6
      %v1667 = vsel %vm1175, %v1664, %v1666
      %v1668 = vrot.slane %v1613, 6
      %v1669 = vsel %vm1175, %v1666, %v1668
      %v1670 = vrot.slane %v1614, 6
      %v1671 = vsel %vm1175, %v1668, %v1670
      %v1672 = vrot.slane %v1615, 6
      %v1673 = vsel %vm1175, %v1670, %v1672
      %v1674 = vrot.slane %v1616, 6
      %v1675 = vsel %vm1175, %v1672, %v1674
      %v1676 = vrot.slane %v1617, 6
      %v1677 = vsel %vm1175, %v1674, %v1676
      %v1678 = vrot.slane %v1618, 6
      %v1679 = vsel %vm1175, %v1676, %v1678
      %v1680 = vrot.slane %v1619, 6
      %v1681 = vsel %vm1175, %v1678, %v1680
      %v1682 = vrot.slane %v1620, 6
      %v1683 = vsel %vm1175, %v1680, %v1682
      %v1684 = vrot.slane %v1621, 6
      %v1685 = vsel %vm1175, %v1682, %v1684
      %v1686 = vrot.slane %v1622, 6
      %v1687 = vsel %vm1175, %v1684, %v1686
      %v1688 = vrot.slane %v1623, 6
      %v1689 = vsel %vm1175, %v1686, %v1688
      %v1690 = vrot.slane %v1624, 6
      %v1691 = vsel %vm1175, %v1688, %v1690
      %v1692 = vrot.slane %v1625, 6
      %v1693 = vsel %vm1175, %v1690, %v1692
      %v1694 = vrot.slane %v1626, 6
      %v1695 = vsel %vm1175, %v1692, %v1694
      %v1696 = vrot.slane %v1627, 6
      %v1697 = vsel %vm1175, %v1694, %v1696
      %v1698 = vrot.slane %v1628, 6
      %v1699 = vsel %vm1175, %v1696, %v1698
      %v1700 = vrot.slane %v1629, 6
      %v1701 = vsel %vm1175, %v1698, %v1700
      %v1702 = vrot.slane %v1630, 6
      %v1703 = vsel %vm1175, %v1700, %v1702
      %v1704 = vrot.slane %v1631, 6
      %v1705 = vsel %vm1175, %v1702, %v1704
      %v1706 = vrot.slane %v1632, 6
      %v1707 = vsel %vm1175, %v1704, %v1706
      %v1708 = vrot.slane %v1633, 6
      %v1709 = vsel %vm1175, %v1706, %v1708
      %v1710 = vrot.slane %v1634, 6
      %v1711 = vsel %vm1175, %v1708, %v1710
      %v1737 = vadd.f32 %v1404, %v1663
      %v1738 = vadd.f32 %v1405, %v1665
      %v1739 = vadd.f32 %v1406, %v1667
      %v1740 = vadd.f32 %v1407, %v1669
      %v1741 = vadd.f32 %v1408, %v1671
      %v1742 = vadd.f32 %v1409, %v1673
      %v1743 = vadd.f32 %v1410, %v1675
      %v1744 = vadd.f32 %v1411, %v1677
      %v1745 = vadd.f32 %v1412, %v1679
      %v1746 = vadd.f32 %v1413, %v1681
      %v1747 = vadd.f32 %v1414, %v1683
      %v1748 = vadd.f32 %v1415, %v1685
      %v1749 = vadd.f32 %v1416, %v1687
      %v1750 = vadd.f32 %v1417, %v1689
      %v1751 = vadd.f32 %v1418, %v1691
      %v1752 = vadd.f32 %v1419, %v1693
      %v1753 = vadd.f32 %v1420, %v1695
      %v1754 = vadd.f32 %v1421, %v1697
      %v1755 = vadd.f32 %v1422, %v1699
      %v1756 = vadd.f32 %v1423, %v1701
      %v1757 = vadd.f32 %v1424, %v1703
      %v1758 = vadd.f32 %v1425, %v1705
      %v1759 = vadd.f32 %v1426, %v1707
      %v1760 = vadd.f32 %v1427, %v1709
      %v1761 = vadd.f32 %v1428, %v1711
      %1762 = vset.pattern.permute.xlu0 4
      %1763 = vperm.xlu0 %1762, %v540
      %v1764 = vpop.permute.xlu0 %1763
      %1765 = vset.pattern.permute.xlu0 4
      %1766 = vperm.xlu0 %1765, %v541
      %v1767 = vpop.permute.xlu0 %1766
      %1768 = vset.pattern.permute.xlu0 4
      %1769 = vperm.xlu0 %1768, %v542
      %v1770 = vpop.permute.xlu0 %1769
      %1771 = vset.pattern.permute.xlu0 4
      %1772 = vperm.xlu0 %1771, %v543
      %v1773 = vpop.permute.xlu0 %1772
      %1774 = vset.pattern.permute.xlu0 4
      %1775 = vperm.xlu0 %1774, %v544
      %v1776 = vpop.permute.xlu0 %1775
      %1777 = vset.pattern.permute.xlu0 4
      %1778 = vperm.xlu0 %1777, %v545
      %v1779 = vpop.permute.xlu0 %1778
      %1780 = vset.pattern.permute.xlu0 4
      %1781 = vperm.xlu0 %1780, %v546
      %v1782 = vpop.permute.xlu0 %1781
      %1783 = vset.pattern.permute.xlu0 4
      %1784 = vperm.xlu0 %1783, %v547
      %v1785 = vpop.permute.xlu0 %1784
      %1786 = vset.pattern.permute.xlu0 4
      %1787 = vperm.xlu0 %1786, %v548
      %v1788 = vpop.permute.xlu0 %1787
      %1789 = vset.pattern.permute.xlu0 4
      %1790 = vperm.xlu0 %1789, %v549
      %v1791 = vpop.permute.xlu0 %1790
      %1792 = vset.pattern.permute.xlu0 4
      %1793 = vperm.xlu0 %1792, %v550
      %v1794 = vpop.permute.xlu0 %1793
      %1795 = vset.pattern.permute.xlu0 4
      %1796 = vperm.xlu0 %1795, %v551
      %v1797 = vpop.permute.xlu0 %1796
      %1798 = vset.pattern.permute.xlu0 4
      %1799 = vperm.xlu0 %1798, %v552
      %v1800 = vpop.permute.xlu0 %1799
      %1801 = vset.pattern.permute.xlu0 4
      %1802 = vperm.xlu0 %1801, %v553
      %v1803 = vpop.permute.xlu0 %1802
      %1804 = vset.pattern.permute.xlu0 4
      %1805 = vperm.xlu0 %1804, %v554
      %v1806 = vpop.permute.xlu0 %1805
      %1807 = vset.pattern.permute.xlu0 4
      %1808 = vperm.xlu0 %1807, %v555
      %v1809 = vpop.permute.xlu0 %1808
      %1810 = vset.pattern.permute.xlu0 4
      %1811 = vperm.xlu0 %1810, %v556
      %v1812 = vpop.permute.xlu0 %1811
      %1813 = vset.pattern.permute.xlu0 4
      %1814 = vperm.xlu0 %1813, %v557
      %v1815 = vpop.permute.xlu0 %1814
      %1816 = vset.pattern.permute.xlu0 4
      %1817 = vperm.xlu0 %1816, %v558
      %v1818 = vpop.permute.xlu0 %1817
      %1819 = vset.pattern.permute.xlu0 4
      %1820 = vperm.xlu0 %1819, %v559
      %v1821 = vpop.permute.xlu0 %1820
      %1822 = vset.pattern.permute.xlu0 4
      %1823 = vperm.xlu0 %1822, %v560
      %v1824 = vpop.permute.xlu0 %1823
      %1825 = vset.pattern.permute.xlu0 4
      %1826 = vperm.xlu0 %1825, %v561
      %v1827 = vpop.permute.xlu0 %1826
      %1828 = vset.pattern.permute.xlu0 4
      %1829 = vperm.xlu0 %1828, %v562
      %v1830 = vpop.permute.xlu0 %1829
      %1831 = vset.pattern.permute.xlu0 4
      %1832 = vperm.xlu0 %1831, %v563
      %v1833 = vpop.permute.xlu0 %1832
      %1834 = vset.pattern.permute.xlu0 4
      %1835 = vperm.xlu0 %1834, %v564
      %v1836 = vpop.permute.xlu0 %1835
      %v1837 = vrot.slane %v1764, 1
      %v1838 = vrot.slane %v1767, 1
      %v1839 = vsel %vm1000, %v1837, %v1838
      %v1840 = vrot.slane %v1770, 1
      %v1841 = vsel %vm1000, %v1838, %v1840
      %v1842 = vrot.slane %v1773, 1
      %v1843 = vsel %vm1000, %v1840, %v1842
      %v1844 = vrot.slane %v1776, 1
      %v1845 = vsel %vm1000, %v1842, %v1844
      %v1846 = vrot.slane %v1779, 1
      %v1847 = vsel %vm1000, %v1844, %v1846
      %v1848 = vrot.slane %v1782, 1
      %v1849 = vsel %vm1000, %v1846, %v1848
      %v1850 = vrot.slane %v1785, 1
      %v1851 = vsel %vm1000, %v1848, %v1850
      %v1852 = vrot.slane %v1788, 1
      %v1853 = vsel %vm1000, %v1850, %v1852
      %v1854 = vrot.slane %v1791, 1
      %v1855 = vsel %vm1000, %v1852, %v1854
      %v1856 = vrot.slane %v1794, 1
      %v1857 = vsel %vm1000, %v1854, %v1856
      %v1858 = vrot.slane %v1797, 1
      %v1859 = vsel %vm1000, %v1856, %v1858
      %v1860 = vrot.slane %v1800, 1
      %v1861 = vsel %vm1000, %v1858, %v1860
      %v1862 = vrot.slane %v1803, 1
      %v1863 = vsel %vm1000, %v1860, %v1862
      %v1864 = vrot.slane %v1806, 1
      %v1865 = vsel %vm1000, %v1862, %v1864
      %v1866 = vrot.slane %v1809, 1
      %v1867 = vsel %vm1000, %v1864, %v1866
      %v1868 = vrot.slane %v1812, 1
      %v1869 = vsel %vm1000, %v1866, %v1868
      %v1870 = vrot.slane %v1815, 1
      %v1871 = vsel %vm1000, %v1868, %v1870
      %v1872 = vrot.slane %v1818, 1
      %v1873 = vsel %vm1000, %v1870, %v1872
      %v1874 = vrot.slane %v1821, 1
      %v1875 = vsel %vm1000, %v1872, %v1874
      %v1876 = vrot.slane %v1824, 1
      %v1877 = vsel %vm1000, %v1874, %v1876
      %v1878 = vrot.slane %v1827, 1
      %v1879 = vsel %vm1000, %v1876, %v1878
      %v1880 = vrot.slane %v1830, 1
      %v1881 = vsel %vm1000, %v1878, %v1880
      %v1882 = vrot.slane %v1833, 1
      %v1883 = vsel %vm1000, %v1880, %v1882
      %v1884 = vrot.slane %v1836, 1
      %v1885 = vsel %vm1000, %v1882, %v1884
      %v1912 = vmul.f32 %v512, %v1837
      %v1913 = vmul.f32 %v513, %v1839
      %v1914 = vmul.f32 %v514, %v1841
      %v1915 = vmul.f32 %v515, %v1843
      %v1916 = vmul.f32 %v516, %v1845
      %v1917 = vmul.f32 %v517, %v1847
      %v1918 = vmul.f32 %v518, %v1849
      %v1919 = vmul.f32 %v519, %v1851
      %v1920 = vmul.f32 %v520, %v1853
      %v1921 = vmul.f32 %v521, %v1855
      %v1922 = vmul.f32 %v522, %v1857
      %v1923 = vmul.f32 %v523, %v1859
      %v1924 = vmul.f32 %v524, %v1861
      %v1925 = vmul.f32 %v525, %v1863
      %v1926 = vmul.f32 %v526, %v1865
      %v1927 = vmul.f32 %v527, %v1867
      %v1928 = vmul.f32 %v528, %v1869
      %v1929 = vmul.f32 %v529, %v1871
      %v1930 = vmul.f32 %v530, %v1873
      %v1931 = vmul.f32 %v531, %v1875
      %v1932 = vmul.f32 %v532, %v1877
      %v1933 = vmul.f32 %v533, %v1879
      %v1934 = vmul.f32 %v534, %v1881
      %v1935 = vmul.f32 %v535, %v1883
      %v1936 = vmul.f32 %v536, %v1885
      %v1937 = vmul.f32 %v537, %v1884
      %v1938 = vlaneseq
      %v1939 = vshrl.u32 %v1938, 7
      %v1940 = vsub.s32 4, %v1939
      %v1941 = vrot.slane %v565, %v1940
      %v1942 = vmul.f32 %v1912, %v1941
      %v1943 = vmul.f32 %v1913, %v1941
      %v1944 = vmul.f32 %v1914, %v1941
      %v1945 = vmul.f32 %v1915, %v1941
      %v1946 = vmul.f32 %v1916, %v1941
      %v1947 = vmul.f32 %v1917, %v1941
      %v1948 = vmul.f32 %v1918, %v1941
      %v1949 = vmul.f32 %v1919, %v1941
      %v1950 = vmul.f32 %v1920, %v1941
      %v1951 = vmul.f32 %v1921, %v1941
      %v1952 = vmul.f32 %v1922, %v1941
      %v1953 = vmul.f32 %v1923, %v1941
      %v1954 = vmul.f32 %v1924, %v1941
      %v1955 = vmul.f32 %v1925, %v1941
      %v1956 = vmul.f32 %v1926, %v1941
      %v1957 = vmul.f32 %v1927, %v1941
      %v1958 = vmul.f32 %v1928, %v1941
      %v1959 = vmul.f32 %v1929, %v1941
      %v1960 = vmul.f32 %v1930, %v1941
      %v1961 = vmul.f32 %v1931, %v1941
      %v1962 = vmul.f32 %v1932, %v1941
      %v1963 = vmul.f32 %v1933, %v1941
      %v1964 = vmul.f32 %v1934, %v1941
      %v1965 = vmul.f32 %v1935, %v1941
      %v1966 = vmul.f32 %v1936, %v1941
      %v1967 = vmul.f32 %v1937, %v1941
      %v1994 = vrot.slane %v1942, 7
      %v1995 = vrot.slane %v1943, 7
      %v1996 = vsel %vm846, %v1994, %v1995
      %v1997 = vrot.slane %v1944, 7
      %v1998 = vsel %vm846, %v1995, %v1997
      %v1999 = vrot.slane %v1945, 7
      %v2000 = vsel %vm846, %v1997, %v1999
      %v2001 = vrot.slane %v1946, 7
      %v2002 = vsel %vm846, %v1999, %v2001
      %v2003 = vrot.slane %v1947, 7
      %v2004 = vsel %vm846, %v2001, %v2003
      %v2005 = vrot.slane %v1948, 7
      %v2006 = vsel %vm846, %v2003, %v2005
      %v2007 = vrot.slane %v1949, 7
      %v2008 = vsel %vm846, %v2005, %v2007
      %v2009 = vrot.slane %v1950, 7
      %v2010 = vsel %vm846, %v2007, %v2009
      %v2011 = vrot.slane %v1951, 7
      %v2012 = vsel %vm846, %v2009, %v2011
      %v2013 = vrot.slane %v1952, 7
      %v2014 = vsel %vm846, %v2011, %v2013
      %v2015 = vrot.slane %v1953, 7
      %v2016 = vsel %vm846, %v2013, %v2015
      %v2017 = vrot.slane %v1954, 7
      %v2018 = vsel %vm846, %v2015, %v2017
      %v2019 = vrot.slane %v1955, 7
      %v2020 = vsel %vm846, %v2017, %v2019
      %v2021 = vrot.slane %v1956, 7
      %v2022 = vsel %vm846, %v2019, %v2021
      %v2023 = vrot.slane %v1957, 7
      %v2024 = vsel %vm846, %v2021, %v2023
      %v2025 = vrot.slane %v1958, 7
      %v2026 = vsel %vm846, %v2023, %v2025
      %v2027 = vrot.slane %v1959, 7
      %v2028 = vsel %vm846, %v2025, %v2027
      %v2029 = vrot.slane %v1960, 7
      %v2030 = vsel %vm846, %v2027, %v2029
      %v2031 = vrot.slane %v1961, 7
      %v2032 = vsel %vm846, %v2029, %v2031
      %v2033 = vrot.slane %v1962, 7
      %v2034 = vsel %vm846, %v2031, %v2033
      %v2035 = vrot.slane %v1963, 7
      %v2036 = vsel %vm846, %v2033, %v2035
      %v2037 = vrot.slane %v1964, 7
      %v2038 = vsel %vm846, %v2035, %v2037
      %v2039 = vrot.slane %v1965, 7
      %v2040 = vsel %vm846, %v2037, %v2039
      %v2041 = vrot.slane %v1966, 7
      %v2042 = vsel %vm846, %v2039, %v2041
      %v2043 = vrot.slane %v1967, 7
      %v2044 = vsel %vm846, %v2041, %v2043
      %v2070 = vadd.f32 %v1737, %v1996
      %v2071 = vadd.f32 %v1738, %v1998
      %v2072 = vadd.f32 %v1739, %v2000
      %v2073 = vadd.f32 %v1740, %v2002
      %v2074 = vadd.f32 %v1741, %v2004
      %v2075 = vadd.f32 %v1742, %v2006
      %v2076 = vadd.f32 %v1743, %v2008
      %v2077 = vadd.f32 %v1744, %v2010
      %v2078 = vadd.f32 %v1745, %v2012
      %v2079 = vadd.f32 %v1746, %v2014
      %v2080 = vadd.f32 %v1747, %v2016
      %v2081 = vadd.f32 %v1748, %v2018
      %v2082 = vadd.f32 %v1749, %v2020
      %v2083 = vadd.f32 %v1750, %v2022
      %v2084 = vadd.f32 %v1751, %v2024
      %v2085 = vadd.f32 %v1752, %v2026
      %v2086 = vadd.f32 %v1753, %v2028
      %v2087 = vadd.f32 %v1754, %v2030
      %v2088 = vadd.f32 %v1755, %v2032
      %v2089 = vadd.f32 %v1756, %v2034
      %v2090 = vadd.f32 %v1757, %v2036
      %v2091 = vadd.f32 %v1758, %v2038
      %v2092 = vadd.f32 %v1759, %v2040
      %v2093 = vadd.f32 %v1760, %v2042
      %v2094 = vadd.f32 %v1761, %v2044
      %2095 = vset.pattern.permute.xlu0 5
      %2096 = vperm.xlu0 %2095, %v540
      %v2097 = vpop.permute.xlu0 %2096
      %2099 = vset.pattern.permute.xlu0 5
      %2100 = vperm.xlu0 %2099, %v541
      %v2101 = vpop.permute.xlu0 %2100
      %2103 = vset.pattern.permute.xlu0 5
      %2104 = vperm.xlu0 %2103, %v542
      %v2105 = vpop.permute.xlu0 %2104
      %2107 = vset.pattern.permute.xlu0 5
      %2108 = vperm.xlu0 %2107, %v543
      %v2109 = vpop.permute.xlu0 %2108
      %2111 = vset.pattern.permute.xlu0 5
      %2112 = vperm.xlu0 %2111, %v544
      %v2113 = vpop.permute.xlu0 %2112
      %2115 = vset.pattern.permute.xlu0 5
      %2116 = vperm.xlu0 %2115, %v545
      %v2117 = vpop.permute.xlu0 %2116
      %2119 = vset.pattern.permute.xlu0 5
      %2120 = vperm.xlu0 %2119, %v546
      %v2121 = vpop.permute.xlu0 %2120
      %2123 = vset.pattern.permute.xlu0 5
      %2124 = vperm.xlu0 %2123, %v547
      %v2125 = vpop.permute.xlu0 %2124
      %2127 = vset.pattern.permute.xlu0 5
      %2128 = vperm.xlu0 %2127, %v548
      %v2129 = vpop.permute.xlu0 %2128
      %2131 = vset.pattern.permute.xlu0 5
      %2132 = vperm.xlu0 %2131, %v549
      %v2133 = vpop.permute.xlu0 %2132
      %2135 = vset.pattern.permute.xlu0 5
      %2136 = vperm.xlu0 %2135, %v550
      %v2137 = vpop.permute.xlu0 %2136
      %2139 = vset.pattern.permute.xlu0 5
      %2140 = vperm.xlu0 %2139, %v551
      %v2141 = vpop.permute.xlu0 %2140
      %2143 = vset.pattern.permute.xlu0 5
      %2144 = vperm.xlu0 %2143, %v552
      %v2145 = vpop.permute.xlu0 %2144
      %2147 = vset.pattern.permute.xlu0 5
      %2148 = vperm.xlu0 %2147, %v553
      %v2149 = vpop.permute.xlu0 %2148
      %2151 = vset.pattern.permute.xlu0 5
      %2152 = vperm.xlu0 %2151, %v554
      %v2153 = vpop.permute.xlu0 %2152
      %2155 = vset.pattern.permute.xlu0 5
      %2156 = vperm.xlu0 %2155, %v555
      %v2157 = vpop.permute.xlu0 %2156
      %2159 = vset.pattern.permute.xlu0 5
      %2160 = vperm.xlu0 %2159, %v556
      %v2161 = vpop.permute.xlu0 %2160
      %2163 = vset.pattern.permute.xlu0 5
      %2164 = vperm.xlu0 %2163, %v557
      %v2165 = vpop.permute.xlu0 %2164
      %2167 = vset.pattern.permute.xlu0 5
      %2168 = vperm.xlu0 %2167, %v558
      %v2169 = vpop.permute.xlu0 %2168
      %2171 = vset.pattern.permute.xlu0 5
      %2172 = vperm.xlu0 %2171, %v559
      %v2173 = vpop.permute.xlu0 %2172
      %2175 = vset.pattern.permute.xlu0 5
      %2176 = vperm.xlu0 %2175, %v560
      %v2177 = vpop.permute.xlu0 %2176
      %2179 = vset.pattern.permute.xlu0 5
      %2180 = vperm.xlu0 %2179, %v561
      %v2181 = vpop.permute.xlu0 %2180
      %2183 = vset.pattern.permute.xlu0 5
      %2184 = vperm.xlu0 %2183, %v562
      %v2185 = vpop.permute.xlu0 %2184
      %2187 = vset.pattern.permute.xlu0 5
      %2188 = vperm.xlu0 %2187, %v563
      %v2189 = vpop.permute.xlu0 %2188
      %2191 = vset.pattern.permute.xlu0 5
      %2192 = vperm.xlu0 %2191, %v564
      %v2193 = vpop.permute.xlu0 %2192
      %v2195 = vmul.f32 %v513, %v2097
      %v2196 = vmul.f32 %v514, %v2101
      %v2197 = vmul.f32 %v515, %v2105
      %v2198 = vmul.f32 %v516, %v2109
      %v2199 = vmul.f32 %v517, %v2113
      %v2200 = vmul.f32 %v518, %v2117
      %v2201 = vmul.f32 %v519, %v2121
      %v2202 = vmul.f32 %v520, %v2125
      %v2203 = vmul.f32 %v521, %v2129
      %v2204 = vmul.f32 %v522, %v2133
      %v2205 = vmul.f32 %v523, %v2137
      %v2206 = vmul.f32 %v524, %v2141
      %v2207 = vmul.f32 %v525, %v2145
      %v2208 = vmul.f32 %v526, %v2149
      %v2209 = vmul.f32 %v527, %v2153
      %v2210 = vmul.f32 %v528, %v2157
      %v2211 = vmul.f32 %v529, %v2161
      %v2212 = vmul.f32 %v530, %v2165
      %v2213 = vmul.f32 %v531, %v2169
      %v2214 = vmul.f32 %v532, %v2173
      %v2215 = vmul.f32 %v533, %v2177
      %v2216 = vmul.f32 %v534, %v2181
      %v2217 = vmul.f32 %v535, %v2185
      %v2218 = vmul.f32 %v536, %v2189
      %v2219 = vmul.f32 %v537, %v2193
      %v2220 = vlaneseq
      %v2221 = vshrl.u32 %v2220, 7
      %v2222 = vsub.s32 5, %v2221
      %v2223 = vrot.slane %v565, %v2222
      %v2224 = vmul.f32 %v2195, %v2223
      %v2225 = vmul.f32 %v2196, %v2223
      %v2226 = vmul.f32 %v2197, %v2223
      %v2227 = vmul.f32 %v2198, %v2223
      %v2228 = vmul.f32 %v2199, %v2223
      %v2229 = vmul.f32 %v2200, %v2223
      %v2230 = vmul.f32 %v2201, %v2223
      %v2231 = vmul.f32 %v2202, %v2223
      %v2232 = vmul.f32 %v2203, %v2223
      %v2233 = vmul.f32 %v2204, %v2223
      %v2234 = vmul.f32 %v2205, %v2223
      %v2235 = vmul.f32 %v2206, %v2223
      %v2236 = vmul.f32 %v2207, %v2223
      %v2237 = vmul.f32 %v2208, %v2223
      %v2238 = vmul.f32 %v2209, %v2223
      %v2239 = vmul.f32 %v2210, %v2223
      %v2240 = vmul.f32 %v2211, %v2223
      %v2241 = vmul.f32 %v2212, %v2223
      %v2242 = vmul.f32 %v2213, %v2223
      %v2243 = vmul.f32 %v2214, %v2223
      %v2244 = vmul.f32 %v2215, %v2223
      %v2245 = vmul.f32 %v2216, %v2223
      %v2246 = vmul.f32 %v2217, %v2223
      %v2247 = vmul.f32 %v2218, %v2223
      %v2248 = vmul.f32 %v2219, %v2223
      %v2249 = vadd.f32 %v2070, %v2224
      %v2250 = vadd.f32 %v2071, %v2225
      %v2251 = vadd.f32 %v2072, %v2226
      %v2252 = vadd.f32 %v2073, %v2227
      %v2253 = vadd.f32 %v2074, %v2228
      %v2254 = vadd.f32 %v2075, %v2229
      %v2255 = vadd.f32 %v2076, %v2230
      %v2256 = vadd.f32 %v2077, %v2231
      %v2257 = vadd.f32 %v2078, %v2232
      %v2258 = vadd.f32 %v2079, %v2233
      %v2259 = vadd.f32 %v2080, %v2234
      %v2260 = vadd.f32 %v2081, %v2235
      %v2261 = vadd.f32 %v2082, %v2236
      %v2262 = vadd.f32 %v2083, %v2237
      %v2263 = vadd.f32 %v2084, %v2238
      %v2264 = vadd.f32 %v2085, %v2239
      %v2265 = vadd.f32 %v2086, %v2240
      %v2266 = vadd.f32 %v2087, %v2241
      %v2267 = vadd.f32 %v2088, %v2242
      %v2268 = vadd.f32 %v2089, %v2243
      %v2269 = vadd.f32 %v2090, %v2244
      %v2270 = vadd.f32 %v2091, %v2245
      %v2271 = vadd.f32 %v2092, %v2246
      %v2272 = vadd.f32 %v2093, %v2247
      %v2273 = vadd.f32 %v2094, %v2248
      %2274 = vset.pattern.permute.xlu0 6
      %2275 = vperm.xlu0 %2274, %v540
      %v2276 = vpop.permute.xlu0 %2275
      %2277 = vset.pattern.permute.xlu0 6
      %2278 = vperm.xlu0 %2277, %v541
      %v2279 = vpop.permute.xlu0 %2278
      %2280 = vset.pattern.permute.xlu0 6
      %2281 = vperm.xlu0 %2280, %v542
      %v2282 = vpop.permute.xlu0 %2281
      %2283 = vset.pattern.permute.xlu0 6
      %2284 = vperm.xlu0 %2283, %v543
      %v2285 = vpop.permute.xlu0 %2284
      %2286 = vset.pattern.permute.xlu0 6
      %2287 = vperm.xlu0 %2286, %v544
      %v2288 = vpop.permute.xlu0 %2287
      %2289 = vset.pattern.permute.xlu0 6
      %2290 = vperm.xlu0 %2289, %v545
      %v2291 = vpop.permute.xlu0 %2290
      %2292 = vset.pattern.permute.xlu0 6
      %2293 = vperm.xlu0 %2292, %v546
      %v2294 = vpop.permute.xlu0 %2293
      %2295 = vset.pattern.permute.xlu0 6
      %2296 = vperm.xlu0 %2295, %v547
      %v2297 = vpop.permute.xlu0 %2296
      %2298 = vset.pattern.permute.xlu0 6
      %2299 = vperm.xlu0 %2298, %v548
      %v2300 = vpop.permute.xlu0 %2299
      %2301 = vset.pattern.permute.xlu0 6
      %2302 = vperm.xlu0 %2301, %v549
      %v2303 = vpop.permute.xlu0 %2302
      %2304 = vset.pattern.permute.xlu0 6
      %2305 = vperm.xlu0 %2304, %v550
      %v2306 = vpop.permute.xlu0 %2305
      %2307 = vset.pattern.permute.xlu0 6
      %2308 = vperm.xlu0 %2307, %v551
      %v2309 = vpop.permute.xlu0 %2308
      %2310 = vset.pattern.permute.xlu0 6
      %2311 = vperm.xlu0 %2310, %v552
      %v2312 = vpop.permute.xlu0 %2311
      %2313 = vset.pattern.permute.xlu0 6
      %2314 = vperm.xlu0 %2313, %v553
      %v2315 = vpop.permute.xlu0 %2314
      %2316 = vset.pattern.permute.xlu0 6
      %2317 = vperm.xlu0 %2316, %v554
      %v2318 = vpop.permute.xlu0 %2317
      %2319 = vset.pattern.permute.xlu0 6
      %2320 = vperm.xlu0 %2319, %v555
      %v2321 = vpop.permute.xlu0 %2320
      %2322 = vset.pattern.permute.xlu0 6
      %2323 = vperm.xlu0 %2322, %v556
      %v2324 = vpop.permute.xlu0 %2323
      %2325 = vset.pattern.permute.xlu0 6
      %2326 = vperm.xlu0 %2325, %v557
      %v2327 = vpop.permute.xlu0 %2326
      %2328 = vset.pattern.permute.xlu0 6
      %2329 = vperm.xlu0 %2328, %v558
      %v2330 = vpop.permute.xlu0 %2329
      %2331 = vset.pattern.permute.xlu0 6
      %2332 = vperm.xlu0 %2331, %v559
      %v2333 = vpop.permute.xlu0 %2332
      %2334 = vset.pattern.permute.xlu0 6
      %2335 = vperm.xlu0 %2334, %v560
      %v2336 = vpop.permute.xlu0 %2335
      %2337 = vset.pattern.permute.xlu0 6
      %2338 = vperm.xlu0 %2337, %v561
      %v2339 = vpop.permute.xlu0 %2338
      %2340 = vset.pattern.permute.xlu0 6
      %2341 = vperm.xlu0 %2340, %v562
      %v2342 = vpop.permute.xlu0 %2341
      %2343 = vset.pattern.permute.xlu0 6
      %2344 = vperm.xlu0 %2343, %v563
      %v2345 = vpop.permute.xlu0 %2344
      %2346 = vset.pattern.permute.xlu0 6
      %2347 = vperm.xlu0 %2346, %v564
      %v2348 = vpop.permute.xlu0 %2347
      %vm2349 = vcmask 1043456
      %v2350 = vrot.slane %v2276, 4
      %v2351 = vrot.slane %v2279, 4
      %v2352 = vsel %vm2349, %v2350, %v2351
      %v2353 = vrot.slane %v2282, 4
      %v2354 = vsel %vm2349, %v2351, %v2353
      %v2355 = vrot.slane %v2285, 4
      %v2356 = vsel %vm2349, %v2353, %v2355
      %v2357 = vrot.slane %v2288, 4
      %v2358 = vsel %vm2349, %v2355, %v2357
      %v2359 = vrot.slane %v2291, 4
      %v2360 = vsel %vm2349, %v2357, %v2359
      %v2361 = vrot.slane %v2294, 4
      %v2362 = vsel %vm2349, %v2359, %v2361
      %v2363 = vrot.slane %v2297, 4
      %v2364 = vsel %vm2349, %v2361, %v2363
      %v2365 = vrot.slane %v2300, 4
      %v2366 = vsel %vm2349, %v2363, %v2365
      %v2367 = vrot.slane %v2303, 4
      %v2368 = vsel %vm2349, %v2365, %v2367
      %v2369 = vrot.slane %v2306, 4
      %v2370 = vsel %vm2349, %v2367, %v2369
      %v2371 = vrot.slane %v2309, 4
      %v2372 = vsel %vm2349, %v2369, %v2371
      %v2373 = vrot.slane %v2312, 4
      %v2374 = vsel %vm2349, %v2371, %v2373
      %v2375 = vrot.slane %v2315, 4
      %v2376 = vsel %vm2349, %v2373, %v2375
      %v2377 = vrot.slane %v2318, 4
      %v2378 = vsel %vm2349, %v2375, %v2377
      %v2379 = vrot.slane %v2321, 4
      %v2380 = vsel %vm2349, %v2377, %v2379
      %v2381 = vrot.slane %v2324, 4
      %v2382 = vsel %vm2349, %v2379, %v2381
      %v2383 = vrot.slane %v2327, 4
      %v2384 = vsel %vm2349, %v2381, %v2383
      %v2385 = vrot.slane %v2330, 4
      %v2386 = vsel %vm2349, %v2383, %v2385
      %v2387 = vrot.slane %v2333, 4
      %v2388 = vsel %vm2349, %v2385, %v2387
      %v2389 = vrot.slane %v2336, 4
      %v2390 = vsel %vm2349, %v2387, %v2389
      %v2391 = vrot.slane %v2339, 4
      %v2392 = vsel %vm2349, %v2389, %v2391
      %v2393 = vrot.slane %v2342, 4
      %v2394 = vsel %vm2349, %v2391, %v2393
      %v2395 = vrot.slane %v2345, 4
      %v2396 = vsel %vm2349, %v2393, %v2395
      %v2397 = vrot.slane %v2348, 4
      %v2398 = vsel %vm2349, %v2395, %v2397
      %v2424 = vmul.f32 %v514, %v2350
      %v2425 = vmul.f32 %v515, %v2352
      %v2426 = vmul.f32 %v516, %v2354
      %v2427 = vmul.f32 %v517, %v2356
      %v2428 = vmul.f32 %v518, %v2358
      %v2429 = vmul.f32 %v519, %v2360
      %v2430 = vmul.f32 %v520, %v2362
      %v2431 = vmul.f32 %v521, %v2364
      %v2432 = vmul.f32 %v522, %v2366
      %v2433 = vmul.f32 %v523, %v2368
      %v2434 = vmul.f32 %v524, %v2370
      %v2435 = vmul.f32 %v525, %v2372
      %v2436 = vmul.f32 %v526, %v2374
      %v2437 = vmul.f32 %v527, %v2376
      %v2438 = vmul.f32 %v528, %v2378
      %v2439 = vmul.f32 %v529, %v2380
      %v2440 = vmul.f32 %v530, %v2382
      %v2441 = vmul.f32 %v531, %v2384
      %v2442 = vmul.f32 %v532, %v2386
      %v2443 = vmul.f32 %v533, %v2388
      %v2444 = vmul.f32 %v534, %v2390
      %v2445 = vmul.f32 %v535, %v2392
      %v2446 = vmul.f32 %v536, %v2394
      %v2447 = vmul.f32 %v537, %v2396
      %v2448 = vmul.f32 %v538, %v2398
      %v2449 = vlaneseq
      %v2450 = vshrl.u32 %v2449, 7
      %v2451 = vsub.s32 6, %v2450
      %v2452 = vrot.slane %v565, %v2451
      %v2453 = vmul.f32 %v2424, %v2452
      %v2454 = vmul.f32 %v2425, %v2452
      %v2455 = vmul.f32 %v2426, %v2452
      %v2456 = vmul.f32 %v2427, %v2452
      %v2457 = vmul.f32 %v2428, %v2452
      %v2458 = vmul.f32 %v2429, %v2452
      %v2459 = vmul.f32 %v2430, %v2452
      %v2460 = vmul.f32 %v2431, %v2452
      %v2461 = vmul.f32 %v2432, %v2452
      %v2462 = vmul.f32 %v2433, %v2452
      %v2463 = vmul.f32 %v2434, %v2452
      %v2464 = vmul.f32 %v2435, %v2452
      %v2465 = vmul.f32 %v2436, %v2452
      %v2466 = vmul.f32 %v2437, %v2452
      %v2467 = vmul.f32 %v2438, %v2452
      %v2468 = vmul.f32 %v2439, %v2452
      %v2469 = vmul.f32 %v2440, %v2452
      %v2470 = vmul.f32 %v2441, %v2452
      %v2471 = vmul.f32 %v2442, %v2452
      %v2472 = vmul.f32 %v2443, %v2452
      %v2473 = vmul.f32 %v2444, %v2452
      %v2474 = vmul.f32 %v2445, %v2452
      %v2475 = vmul.f32 %v2446, %v2452
      %v2476 = vmul.f32 %v2447, %v2452
      %v2477 = vmul.f32 %v2448, %v2452
      %v2503 = vrot.slane %v2453, 4
      %v2504 = vrot.slane %v2454, 4
      %v2505 = vsel %vm2349, %v2503, %v2504
      %v2506 = vrot.slane %v2455, 4
      %v2507 = vsel %vm2349, %v2504, %v2506
      %v2508 = vrot.slane %v2456, 4
      %v2509 = vsel %vm2349, %v2506, %v2508
      %v2510 = vrot.slane %v2457, 4
      %v2511 = vsel %vm2349, %v2508, %v2510
      %v2512 = vrot.slane %v2458, 4
      %v2513 = vsel %vm2349, %v2510, %v2512
      %v2514 = vrot.slane %v2459, 4
      %v2515 = vsel %vm2349, %v2512, %v2514
      %v2516 = vrot.slane %v2460, 4
      %v2517 = vsel %vm2349, %v2514, %v2516
      %v2518 = vrot.slane %v2461, 4
      %v2519 = vsel %vm2349, %v2516, %v2518
      %v2520 = vrot.slane %v2462, 4
      %v2521 = vsel %vm2349, %v2518, %v2520
      %v2522 = vrot.slane %v2463, 4
      %v2523 = vsel %vm2349, %v2520, %v2522
      %v2524 = vrot.slane %v2464, 4
      %v2525 = vsel %vm2349, %v2522, %v2524
      %v2526 = vrot.slane %v2465, 4
      %v2527 = vsel %vm2349, %v2524, %v2526
      %v2528 = vrot.slane %v2466, 4
      %v2529 = vsel %vm2349, %v2526, %v2528
      %v2530 = vrot.slane %v2467, 4
      %v2531 = vsel %vm2349, %v2528, %v2530
      %v2532 = vrot.slane %v2468, 4
      %v2533 = vsel %vm2349, %v2530, %v2532
      %v2534 = vrot.slane %v2469, 4
      %v2535 = vsel %vm2349, %v2532, %v2534
      %v2536 = vrot.slane %v2470, 4
      %v2537 = vsel %vm2349, %v2534, %v2536
      %v2538 = vrot.slane %v2471, 4
      %v2539 = vsel %vm2349, %v2536, %v2538
      %v2540 = vrot.slane %v2472, 4
      %v2541 = vsel %vm2349, %v2538, %v2540
      %v2542 = vrot.slane %v2473, 4
      %v2543 = vsel %vm2349, %v2540, %v2542
      %v2544 = vrot.slane %v2474, 4
      %v2545 = vsel %vm2349, %v2542, %v2544
      %v2546 = vrot.slane %v2475, 4
      %v2547 = vsel %vm2349, %v2544, %v2546
      %v2548 = vrot.slane %v2476, 4
      %v2549 = vsel %vm2349, %v2546, %v2548
      %v2550 = vrot.slane %v2477, 4
      %v2551 = vsel %vm2349, %v2548, %v2550
      %v2577 = vadd.f32 %v2249, %v2505
      %v2578 = vadd.f32 %v2250, %v2507
      %v2579 = vadd.f32 %v2251, %v2509
      %v2580 = vadd.f32 %v2252, %v2511
      %v2581 = vadd.f32 %v2253, %v2513
      %v2582 = vadd.f32 %v2254, %v2515
      %v2583 = vadd.f32 %v2255, %v2517
      %v2584 = vadd.f32 %v2256, %v2519
      %v2585 = vadd.f32 %v2257, %v2521
      %v2586 = vadd.f32 %v2258, %v2523
      %v2587 = vadd.f32 %v2259, %v2525
      %v2588 = vadd.f32 %v2260, %v2527
      %v2589 = vadd.f32 %v2261, %v2529
      %v2590 = vadd.f32 %v2262, %v2531
      %v2591 = vadd.f32 %v2263, %v2533
      %v2592 = vadd.f32 %v2264, %v2535
      %v2593 = vadd.f32 %v2265, %v2537
      %v2594 = vadd.f32 %v2266, %v2539
      %v2595 = vadd.f32 %v2267, %v2541
      %v2596 = vadd.f32 %v2268, %v2543
      %v2597 = vadd.f32 %v2269, %v2545
      %v2598 = vadd.f32 %v2270, %v2547
      %v2599 = vadd.f32 %v2271, %v2549
      %v2600 = vadd.f32 %v2272, %v2551
      %v2601 = vadd.f32 %v2273, %v2550
      %2602 = vset.pattern.permute.xlu0 7
      %2603 = vperm.xlu0 %2602, %v540
      %v2604 = vpop.permute.xlu0 %2603
      %2605 = vset.pattern.permute.xlu0 7
      %2606 = vperm.xlu0 %2605, %v541
      %v2607 = vpop.permute.xlu0 %2606
      %2608 = vset.pattern.permute.xlu0 7
      %2609 = vperm.xlu0 %2608, %v542
      %v2610 = vpop.permute.xlu0 %2609
      %2611 = vset.pattern.permute.xlu0 7
      %2612 = vperm.xlu0 %2611, %v543
      %v2613 = vpop.permute.xlu0 %2612
      %2614 = vset.pattern.permute.xlu0 7
      %2615 = vperm.xlu0 %2614, %v544
      %v2616 = vpop.permute.xlu0 %2615
      %2617 = vset.pattern.permute.xlu0 7
      %2618 = vperm.xlu0 %2617, %v545
      %v2619 = vpop.permute.xlu0 %2618
      %2620 = vset.pattern.permute.xlu0 7
      %2621 = vperm.xlu0 %2620, %v546
      %v2622 = vpop.permute.xlu0 %2621
      %2623 = vset.pattern.permute.xlu0 7
      %2624 = vperm.xlu0 %2623, %v547
      %v2625 = vpop.permute.xlu0 %2624
      %2626 = vset.pattern.permute.xlu0 7
      %2627 = vperm.xlu0 %2626, %v548
      %v2628 = vpop.permute.xlu0 %2627
      %2629 = vset.pattern.permute.xlu0 7
      %2630 = vperm.xlu0 %2629, %v549
      %v2631 = vpop.permute.xlu0 %2630
      %2632 = vset.pattern.permute.xlu0 7
      %2633 = vperm.xlu0 %2632, %v550
      %v2634 = vpop.permute.xlu0 %2633
      %2635 = vset.pattern.permute.xlu0 7
      %2636 = vperm.xlu0 %2635, %v551
      %v2637 = vpop.permute.xlu0 %2636
      %2638 = vset.pattern.permute.xlu0 7
      %2639 = vperm.xlu0 %2638, %v552
      %v2640 = vpop.permute.xlu0 %2639
      %2641 = vset.pattern.permute.xlu0 7
      %2642 = vperm.xlu0 %2641, %v553
      %v2643 = vpop.permute.xlu0 %2642
      %2644 = vset.pattern.permute.xlu0 7
      %2645 = vperm.xlu0 %2644, %v554
      %v2646 = vpop.permute.xlu0 %2645
      %2647 = vset.pattern.permute.xlu0 7
      %2648 = vperm.xlu0 %2647, %v555
      %v2649 = vpop.permute.xlu0 %2648
      %2650 = vset.pattern.permute.xlu0 7
      %2651 = vperm.xlu0 %2650, %v556
      %v2652 = vpop.permute.xlu0 %2651
      %2653 = vset.pattern.permute.xlu0 7
      %2654 = vperm.xlu0 %2653, %v557
      %v2655 = vpop.permute.xlu0 %2654
      %2656 = vset.pattern.permute.xlu0 7
      %2657 = vperm.xlu0 %2656, %v558
      %v2658 = vpop.permute.xlu0 %2657
      %2659 = vset.pattern.permute.xlu0 7
      %2660 = vperm.xlu0 %2659, %v559
      %v2661 = vpop.permute.xlu0 %2660
      %2662 = vset.pattern.permute.xlu0 7
      %2663 = vperm.xlu0 %2662, %v560
      %v2664 = vpop.permute.xlu0 %2663
      %2665 = vset.pattern.permute.xlu0 7
      %2666 = vperm.xlu0 %2665, %v561
      %v2667 = vpop.permute.xlu0 %2666
      %2668 = vset.pattern.permute.xlu0 7
      %2669 = vperm.xlu0 %2668, %v562
      %v2670 = vpop.permute.xlu0 %2669
      %2671 = vset.pattern.permute.xlu0 7
      %2672 = vperm.xlu0 %2671, %v563
      %v2673 = vpop.permute.xlu0 %2672
      %2674 = vset.pattern.permute.xlu0 7
      %2675 = vperm.xlu0 %2674, %v564
      %v2676 = vpop.permute.xlu0 %2675
      %vm2677 = vcmask 1044480
      %v2678 = vrot.slane %v2604, 3
      %v2679 = vrot.slane %v2607, 3
      %v2680 = vsel %vm2677, %v2678, %v2679
      %v2681 = vrot.slane %v2610, 3
      %v2682 = vsel %vm2677, %v2679, %v2681
      %v2683 = vrot.slane %v2613, 3
      %v2684 = vsel %vm2677, %v2681, %v2683
      %v2685 = vrot.slane %v2616, 3
      %v2686 = vsel %vm2677, %v2683, %v2685
      %v2687 = vrot.slane %v2619, 3
      %v2688 = vsel %vm2677, %v2685, %v2687
      %v2689 = vrot.slane %v2622, 3
      %v2690 = vsel %vm2677, %v2687, %v2689
      %v2691 = vrot.slane %v2625, 3
      %v2692 = vsel %vm2677, %v2689, %v2691
      %v2693 = vrot.slane %v2628, 3
      %v2694 = vsel %vm2677, %v2691, %v2693
      %v2695 = vrot.slane %v2631, 3
      %v2696 = vsel %vm2677, %v2693, %v2695
      %v2697 = vrot.slane %v2634, 3
      %v2698 = vsel %vm2677, %v2695, %v2697
      %v2699 = vrot.slane %v2637, 3
      %v2700 = vsel %vm2677, %v2697, %v2699
      %v2701 = vrot.slane %v2640, 3
      %v2702 = vsel %vm2677, %v2699, %v2701
      %v2703 = vrot.slane %v2643, 3
      %v2704 = vsel %vm2677, %v2701, %v2703
      %v2705 = vrot.slane %v2646, 3
      %v2706 = vsel %vm2677, %v2703, %v2705
      %v2707 = vrot.slane %v2649, 3
      %v2708 = vsel %vm2677, %v2705, %v2707
      %v2709 = vrot.slane %v2652, 3
      %v2710 = vsel %vm2677, %v2707, %v2709
      %v2711 = vrot.slane %v2655, 3
      %v2712 = vsel %vm2677, %v2709, %v2711
      %v2713 = vrot.slane %v2658, 3
      %v2714 = vsel %vm2677, %v2711, %v2713
      %v2715 = vrot.slane %v2661, 3
      %v2716 = vsel %vm2677, %v2713, %v2715
      %v2717 = vrot.slane %v2664, 3
      %v2718 = vsel %vm2677, %v2715, %v2717
      %v2719 = vrot.slane %v2667, 3
      %v2720 = vsel %vm2677, %v2717, %v2719
      %v2721 = vrot.slane %v2670, 3
      %v2722 = vsel %vm2677, %v2719, %v2721
      %v2723 = vrot.slane %v2673, 3
      %v2724 = vsel %vm2677, %v2721, %v2723
      %v2725 = vrot.slane %v2676, 3
      %v2726 = vsel %vm2677, %v2723, %v2725
      %v2753 = vmul.f32 %v514, %v2678
      %v2754 = vmul.f32 %v515, %v2680
      %v2755 = vmul.f32 %v516, %v2682
      %v2756 = vmul.f32 %v517, %v2684
      %v2757 = vmul.f32 %v518, %v2686
      %v2758 = vmul.f32 %v519, %v2688
      %v2759 = vmul.f32 %v520, %v2690
      %v2760 = vmul.f32 %v521, %v2692
      %v2761 = vmul.f32 %v522, %v2694
      %v2762 = vmul.f32 %v523, %v2696
      %v2763 = vmul.f32 %v524, %v2698
      %v2764 = vmul.f32 %v525, %v2700
      %v2765 = vmul.f32 %v526, %v2702
      %v2766 = vmul.f32 %v527, %v2704
      %v2767 = vmul.f32 %v528, %v2706
      %v2768 = vmul.f32 %v529, %v2708
      %v2769 = vmul.f32 %v530, %v2710
      %v2770 = vmul.f32 %v531, %v2712
      %v2771 = vmul.f32 %v532, %v2714
      %v2772 = vmul.f32 %v533, %v2716
      %v2773 = vmul.f32 %v534, %v2718
      %v2774 = vmul.f32 %v535, %v2720
      %v2775 = vmul.f32 %v536, %v2722
      %v2776 = vmul.f32 %v537, %v2724
      %v2777 = vmul.f32 %v538, %v2726
      %v2778 = vmul.f32 %v539, %v2725
      %v2779 = vlaneseq
      %v2780 = vshrl.u32 %v2779, 7
      %v2781 = vsub.s32 7, %v2780
      %v2782 = vrot.slane %v565, %v2781
      %v2783 = vmul.f32 %v2753, %v2782
      %v2784 = vmul.f32 %v2754, %v2782
      %v2785 = vmul.f32 %v2755, %v2782
      %v2786 = vmul.f32 %v2756, %v2782
      %v2787 = vmul.f32 %v2757, %v2782
      %v2788 = vmul.f32 %v2758, %v2782
      %v2789 = vmul.f32 %v2759, %v2782
      %v2790 = vmul.f32 %v2760, %v2782
      %v2791 = vmul.f32 %v2761, %v2782
      %v2792 = vmul.f32 %v2762, %v2782
      %v2793 = vmul.f32 %v2763, %v2782
      %v2794 = vmul.f32 %v2764, %v2782
      %v2795 = vmul.f32 %v2765, %v2782
      %v2796 = vmul.f32 %v2766, %v2782
      %v2797 = vmul.f32 %v2767, %v2782
      %v2798 = vmul.f32 %v2768, %v2782
      %v2799 = vmul.f32 %v2769, %v2782
      %v2800 = vmul.f32 %v2770, %v2782
      %v2801 = vmul.f32 %v2771, %v2782
      %v2802 = vmul.f32 %v2772, %v2782
      %v2803 = vmul.f32 %v2773, %v2782
      %v2804 = vmul.f32 %v2774, %v2782
      %v2805 = vmul.f32 %v2775, %v2782
      %v2806 = vmul.f32 %v2776, %v2782
      %v2807 = vmul.f32 %v2777, %v2782
      %v2808 = vmul.f32 %v2778, %v2782
      %vm2835 = vcmask 1042432
      %v2836 = vrot.slane %v2783, 5
      %v2837 = vrot.slane %v2784, 5
      %v2838 = vsel %vm2835, %v2836, %v2837
      %v2839 = vrot.slane %v2785, 5
      %v2840 = vsel %vm2835, %v2837, %v2839
      %v2841 = vrot.slane %v2786, 5
      %v2842 = vsel %vm2835, %v2839, %v2841
      %v2843 = vrot.slane %v2787, 5
      %v2844 = vsel %vm2835, %v2841, %v2843
      %v2845 = vrot.slane %v2788, 5
      %v2846 = vsel %vm2835, %v2843, %v2845
      %v2847 = vrot.slane %v2789, 5
      %v2848 = vsel %vm2835, %v2845, %v2847
      %v2849 = vrot.slane %v2790, 5
      %v2850 = vsel %vm2835, %v2847, %v2849
      %v2851 = vrot.slane %v2791, 5
      %v2852 = vsel %vm2835, %v2849, %v2851
      %v2853 = vrot.slane %v2792, 5
      %v2854 = vsel %vm2835, %v2851, %v2853
      %v2855 = vrot.slane %v2793, 5
      %v2856 = vsel %vm2835, %v2853, %v2855
      %v2857 = vrot.slane %v2794, 5
      %v2858 = vsel %vm2835, %v2855, %v2857
      %v2859 = vrot.slane %v2795, 5
      %v2860 = vsel %vm2835, %v2857, %v2859
      %v2861 = vrot.slane %v2796, 5
      %v2862 = vsel %vm2835, %v2859, %v2861
      %v2863 = vrot.slane %v2797, 5
      %v2864 = vsel %vm2835, %v2861, %v2863
      %v2865 = vrot.slane %v2798, 5
      %v2866 = vsel %vm2835, %v2863, %v2865
      %v2867 = vrot.slane %v2799, 5
      %v2868 = vsel %vm2835, %v2865, %v2867
      %v2869 = vrot.slane %v2800, 5
      %v2870 = vsel %vm2835, %v2867, %v2869
      %v2871 = vrot.slane %v2801, 5
      %v2872 = vsel %vm2835, %v2869, %v2871
      %v2873 = vrot.slane %v2802, 5
      %v2874 = vsel %vm2835, %v2871, %v2873
      %v2875 = vrot.slane %v2803, 5
      %v2876 = vsel %vm2835, %v2873, %v2875
      %v2877 = vrot.slane %v2804, 5
      %v2878 = vsel %vm2835, %v2875, %v2877
      %v2879 = vrot.slane %v2805, 5
      %v2880 = vsel %vm2835, %v2877, %v2879
      %v2881 = vrot.slane %v2806, 5
      %v2882 = vsel %vm2835, %v2879, %v2881
      %v2883 = vrot.slane %v2807, 5
      %v2884 = vsel %vm2835, %v2881, %v2883
      %v2885 = vrot.slane %v2808, 5
      %v2886 = vsel %vm2835, %v2883, %v2885
      %v2912 = vadd.f32 %v2577, %v2838
      %v2913 = vadd.f32 %v2578, %v2840
      %v2914 = vadd.f32 %v2579, %v2842
      %v2915 = vadd.f32 %v2580, %v2844
      %v2916 = vadd.f32 %v2581, %v2846
      %v2917 = vadd.f32 %v2582, %v2848
      %v2918 = vadd.f32 %v2583, %v2850
      %v2919 = vadd.f32 %v2584, %v2852
      %v2920 = vadd.f32 %v2585, %v2854
      %v2921 = vadd.f32 %v2586, %v2856
      %v2922 = vadd.f32 %v2587, %v2858
      %v2923 = vadd.f32 %v2588, %v2860
      %v2924 = vadd.f32 %v2589, %v2862
      %v2925 = vadd.f32 %v2590, %v2864
      %v2926 = vadd.f32 %v2591, %v2866
      %v2927 = vadd.f32 %v2592, %v2868
      %v2928 = vadd.f32 %v2593, %v2870
      %v2929 = vadd.f32 %v2594, %v2872
      %v2930 = vadd.f32 %v2595, %v2874
      %v2931 = vadd.f32 %v2596, %v2876
      %v2932 = vadd.f32 %v2597, %v2878
      %v2933 = vadd.f32 %v2598, %v2880
      %v2934 = vadd.f32 %v2599, %v2882
      %v2935 = vadd.f32 %v2600, %v2884
      %v2936 = vadd.f32 %v2601, %v2886
      %2937 = vset.pattern.permute.xlu0 8
      %2938 = vperm.xlu0 %2937, %v540
      %v2939 = vpop.permute.xlu0 %2938
      %2940 = vset.pattern.permute.xlu0 8
      %2941 = vperm.xlu0 %2940, %v541
      %v2942 = vpop.permute.xlu0 %2941
      %2943 = vset.pattern.permute.xlu0 8
      %2944 = vperm.xlu0 %2943, %v542
      %v2945 = vpop.permute.xlu0 %2944
      %2946 = vset.pattern.permute.xlu0 8
      %2947 = vperm.xlu0 %2946, %v543
      %v2948 = vpop.permute.xlu0 %2947
      %2949 = vset.pattern.permute.xlu0 8
      %2950 = vperm.xlu0 %2949, %v544
      %v2951 = vpop.permute.xlu0 %2950
      %2952 = vset.pattern.permute.xlu0 8
      %2953 = vperm.xlu0 %2952, %v545
      %v2954 = vpop.permute.xlu0 %2953
      %2955 = vset.pattern.permute.xlu0 8
      %2956 = vperm.xlu0 %2955, %v546
      %v2957 = vpop.permute.xlu0 %2956
      %2958 = vset.pattern.permute.xlu0 8
      %2959 = vperm.xlu0 %2958, %v547
      %v2960 = vpop.permute.xlu0 %2959
      %2961 = vset.pattern.permute.xlu0 8
      %2962 = vperm.xlu0 %2961, %v548
      %v2963 = vpop.permute.xlu0 %2962
      %2964 = vset.pattern.permute.xlu0 8
      %2965 = vperm.xlu0 %2964, %v549
      %v2966 = vpop.permute.xlu0 %2965
      %2967 = vset.pattern.permute.xlu0 8
      %2968 = vperm.xlu0 %2967, %v550
      %v2969 = vpop.permute.xlu0 %2968
      %2970 = vset.pattern.permute.xlu0 8
      %2971 = vperm.xlu0 %2970, %v551
      %v2972 = vpop.permute.xlu0 %2971
      %2973 = vset.pattern.permute.xlu0 8
      %2974 = vperm.xlu0 %2973, %v552
      %v2975 = vpop.permute.xlu0 %2974
      %2976 = vset.pattern.permute.xlu0 8
      %2977 = vperm.xlu0 %2976, %v553
      %v2978 = vpop.permute.xlu0 %2977
      %2979 = vset.pattern.permute.xlu0 8
      %2980 = vperm.xlu0 %2979, %v554
      %v2981 = vpop.permute.xlu0 %2980
      %2982 = vset.pattern.permute.xlu0 8
      %2983 = vperm.xlu0 %2982, %v555
      %v2984 = vpop.permute.xlu0 %2983
      %2985 = vset.pattern.permute.xlu0 8
      %2986 = vperm.xlu0 %2985, %v556
      %v2987 = vpop.permute.xlu0 %2986
      %2988 = vset.pattern.permute.xlu0 8
      %2989 = vperm.xlu0 %2988, %v557
      %v2990 = vpop.permute.xlu0 %2989
      %2991 = vset.pattern.permute.xlu0 8
      %2992 = vperm.xlu0 %2991, %v558
      %v2993 = vpop.permute.xlu0 %2992
      %2994 = vset.pattern.permute.xlu0 8
      %2995 = vperm.xlu0 %2994, %v559
      %v2996 = vpop.permute.xlu0 %2995
      %2997 = vset.pattern.permute.xlu0 8
      %2998 = vperm.xlu0 %2997, %v560
      %v2999 = vpop.permute.xlu0 %2998
      %3000 = vset.pattern.permute.xlu0 8
      %3001 = vperm.xlu0 %3000, %v561
      %v3002 = vpop.permute.xlu0 %3001
      %3003 = vset.pattern.permute.xlu0 8
      %3004 = vperm.xlu0 %3003, %v562
      %v3005 = vpop.permute.xlu0 %3004
      %3006 = vset.pattern.permute.xlu0 8
      %3007 = vperm.xlu0 %3006, %v563
      %v3008 = vpop.permute.xlu0 %3007
      %3009 = vset.pattern.permute.xlu0 8
      %3010 = vperm.xlu0 %3009, %v564
      %v3011 = vpop.permute.xlu0 %3010
      %v3012 = vrot.slane %v2939, 2
      %v3013 = vrot.slane %v2942, 2
      %v3014 = vsel %vm1329, %v3012, %v3013
      %v3015 = vrot.slane %v2945, 2
      %v3016 = vsel %vm1329, %v3013, %v3015
      %v3017 = vrot.slane %v2948, 2
      %v3018 = vsel %vm1329, %v3015, %v3017
      %v3019 = vrot.slane %v2951, 2
      %v3020 = vsel %vm1329, %v3017, %v3019
      %v3021 = vrot.slane %v2954, 2
      %v3022 = vsel %vm1329, %v3019, %v3021
      %v3023 = vrot.slane %v2957, 2
      %v3024 = vsel %vm1329, %v3021, %v3023
      %v3025 = vrot.slane %v2960, 2
      %v3026 = vsel %vm1329, %v3023, %v3025
      %v3027 = vrot.slane %v2963, 2
      %v3028 = vsel %vm1329, %v3025, %v3027
      %v3029 = vrot.slane %v2966, 2
      %v3030 = vsel %vm1329, %v3027, %v3029
      %v3031 = vrot.slane %v2969, 2
      %v3032 = vsel %vm1329, %v3029, %v3031
      %v3033 = vrot.slane %v2972, 2
      %v3034 = vsel %vm1329, %v3031, %v3033
      %v3035 = vrot.slane %v2975, 2
      %v3036 = vsel %vm1329, %v3033, %v3035
      %v3037 = vrot.slane %v2978, 2
      %v3038 = vsel %vm1329, %v3035, %v3037
      %v3039 = vrot.slane %v2981, 2
      %v3040 = vsel %vm1329, %v3037, %v3039
      %v3041 = vrot.slane %v2984, 2
      %v3042 = vsel %vm1329, %v3039, %v3041
      %v3043 = vrot.slane %v2987, 2
      %v3044 = vsel %vm1329, %v3041, %v3043
      %v3045 = vrot.slane %v2990, 2
      %v3046 = vsel %vm1329, %v3043, %v3045
      %v3047 = vrot.slane %v2993, 2
      %v3048 = vsel %vm1329, %v3045, %v3047
      %v3049 = vrot.slane %v2996, 2
      %v3050 = vsel %vm1329, %v3047, %v3049
      %v3051 = vrot.slane %v2999, 2
      %v3052 = vsel %vm1329, %v3049, %v3051
      %v3053 = vrot.slane %v3002, 2
      %v3054 = vsel %vm1329, %v3051, %v3053
      %v3055 = vrot.slane %v3005, 2
      %v3056 = vsel %vm1329, %v3053, %v3055
      %v3057 = vrot.slane %v3008, 2
      %v3058 = vsel %vm1329, %v3055, %v3057
      %v3059 = vrot.slane %v3011, 2
      %v3060 = vsel %vm1329, %v3057, %v3059
      %v3087 = vmul.f32 %v514, %v3012
      %v3088 = vmul.f32 %v515, %v3014
      %v3089 = vmul.f32 %v516, %v3016
      %v3090 = vmul.f32 %v517, %v3018
      %v3091 = vmul.f32 %v518, %v3020
      %v3092 = vmul.f32 %v519, %v3022
      %v3093 = vmul.f32 %v520, %v3024
      %v3094 = vmul.f32 %v521, %v3026
      %v3095 = vmul.f32 %v522, %v3028
      %v3096 = vmul.f32 %v523, %v3030
      %v3097 = vmul.f32 %v524, %v3032
      %v3098 = vmul.f32 %v525, %v3034
      %v3099 = vmul.f32 %v526, %v3036
      %v3100 = vmul.f32 %v527, %v3038
      %v3101 = vmul.f32 %v528, %v3040
      %v3102 = vmul.f32 %v529, %v3042
      %v3103 = vmul.f32 %v530, %v3044
      %v3104 = vmul.f32 %v531, %v3046
      %v3105 = vmul.f32 %v532, %v3048
      %v3106 = vmul.f32 %v533, %v3050
      %v3107 = vmul.f32 %v534, %v3052
      %v3108 = vmul.f32 %v535, %v3054
      %v3109 = vmul.f32 %v536, %v3056
      %v3110 = vmul.f32 %v537, %v3058
      %v3111 = vmul.f32 %v538, %v3060
      %v3112 = vmul.f32 %v539, %v3059
      %v3113 = vlaneseq
      %v3114 = vshrl.u32 %v3113, 7
      %v3115 = vsub.s32 0, %v3114
      %v3116 = vrot.slane %v566, %v3115
      %v3117 = vmul.f32 %v3087, %v3116
      %v3118 = vmul.f32 %v3088, %v3116
      %v3119 = vmul.f32 %v3089, %v3116
      %v3120 = vmul.f32 %v3090, %v3116
      %v3121 = vmul.f32 %v3091, %v3116
      %v3122 = vmul.f32 %v3092, %v3116
      %v3123 = vmul.f32 %v3093, %v3116
      %v3124 = vmul.f32 %v3094, %v3116
      %v3125 = vmul.f32 %v3095, %v3116
      %v3126 = vmul.f32 %v3096, %v3116
      %v3127 = vmul.f32 %v3097, %v3116
      %v3128 = vmul.f32 %v3098, %v3116
      %v3129 = vmul.f32 %v3099, %v3116
      %v3130 = vmul.f32 %v3100, %v3116
      %v3131 = vmul.f32 %v3101, %v3116
      %v3132 = vmul.f32 %v3102, %v3116
      %v3133 = vmul.f32 %v3103, %v3116
      %v3134 = vmul.f32 %v3104, %v3116
      %v3135 = vmul.f32 %v3105, %v3116
      %v3136 = vmul.f32 %v3106, %v3116
      %v3137 = vmul.f32 %v3107, %v3116
      %v3138 = vmul.f32 %v3108, %v3116
      %v3139 = vmul.f32 %v3109, %v3116
      %v3140 = vmul.f32 %v3110, %v3116
      %v3141 = vmul.f32 %v3111, %v3116
      %v3142 = vmul.f32 %v3112, %v3116
      %v3169 = vrot.slane %v3117, 6
      %v3170 = vrot.slane %v3118, 6
      %v3171 = vsel %vm1175, %v3169, %v3170
      %v3172 = vrot.slane %v3119, 6
      %v3173 = vsel %vm1175, %v3170, %v3172
      %v3174 = vrot.slane %v3120, 6
      %v3175 = vsel %vm1175, %v3172, %v3174
      %v3176 = vrot.slane %v3121, 6
      %v3177 = vsel %vm1175, %v3174, %v3176
      %v3178 = vrot.slane %v3122, 6
      %v3179 = vsel %vm1175, %v3176, %v3178
      %v3180 = vrot.slane %v3123, 6
      %v3181 = vsel %vm1175, %v3178, %v3180
      %v3182 = vrot.slane %v3124, 6
      %v3183 = vsel %vm1175, %v3180, %v3182
      %v3184 = vrot.slane %v3125, 6
      %v3185 = vsel %vm1175, %v3182, %v3184
      %v3186 = vrot.slane %v3126, 6
      %v3187 = vsel %vm1175, %v3184, %v3186
      %v3188 = vrot.slane %v3127, 6
      %v3189 = vsel %vm1175, %v3186, %v3188
      %v3190 = vrot.slane %v3128, 6
      %v3191 = vsel %vm1175, %v3188, %v3190
      %v3192 = vrot.slane %v3129, 6
      %v3193 = vsel %vm1175, %v3190, %v3192
      %v3194 = vrot.slane %v3130, 6
      %v3195 = vsel %vm1175, %v3192, %v3194
      %v3196 = vrot.slane %v3131, 6
      %v3197 = vsel %vm1175, %v3194, %v3196
      %v3198 = vrot.slane %v3132, 6
      %v3199 = vsel %vm1175, %v3196, %v3198
      %v3200 = vrot.slane %v3133, 6
      %v3201 = vsel %vm1175, %v3198, %v3200
      %v3202 = vrot.slane %v3134, 6
      %v3203 = vsel %vm1175, %v3200, %v3202
      %v3204 = vrot.slane %v3135, 6
      %v3205 = vsel %vm1175, %v3202, %v3204
      %v3206 = vrot.slane %v3136, 6
      %v3207 = vsel %vm1175, %v3204, %v3206
      %v3208 = vrot.slane %v3137, 6
      %v3209 = vsel %vm1175, %v3206, %v3208
      %v3210 = vrot.slane %v3138, 6
      %v3211 = vsel %vm1175, %v3208, %v3210
      %v3212 = vrot.slane %v3139, 6
      %v3213 = vsel %vm1175, %v3210, %v3212
      %v3214 = vrot.slane %v3140, 6
      %v3215 = vsel %vm1175, %v3212, %v3214
      %v3216 = vrot.slane %v3141, 6
      %v3217 = vsel %vm1175, %v3214, %v3216
      %v3218 = vrot.slane %v3142, 6
      %v3219 = vsel %vm1175, %v3216, %v3218
      %v3245 = vadd.f32 %v2912, %v3171
      %v3246 = vadd.f32 %v2913, %v3173
      %v3247 = vadd.f32 %v2914, %v3175
      %v3248 = vadd.f32 %v2915, %v3177
      %v3249 = vadd.f32 %v2916, %v3179
      %v3250 = vadd.f32 %v2917, %v3181
      %v3251 = vadd.f32 %v2918, %v3183
      %v3252 = vadd.f32 %v2919, %v3185
      %v3253 = vadd.f32 %v2920, %v3187
      %v3254 = vadd.f32 %v2921, %v3189
      %v3255 = vadd.f32 %v2922, %v3191
      %v3256 = vadd.f32 %v2923, %v3193
      %v3257 = vadd.f32 %v2924, %v3195
      %v3258 = vadd.f32 %v2925, %v3197
      %v3259 = vadd.f32 %v2926, %v3199
      %v3260 = vadd.f32 %v2927, %v3201
      %v3261 = vadd.f32 %v2928, %v3203
      %v3262 = vadd.f32 %v2929, %v3205
      %v3263 = vadd.f32 %v2930, %v3207
      %v3264 = vadd.f32 %v2931, %v3209
      %v3265 = vadd.f32 %v2932, %v3211
      %v3266 = vadd.f32 %v2933, %v3213
      %v3267 = vadd.f32 %v2934, %v3215
      %v3268 = vadd.f32 %v2935, %v3217
      %v3269 = vadd.f32 %v2936, %v3219
      %v3270 = vld [vmem:[%s5] sm:$0x1]
      %v3272 = vlaneseq
      %v3273 = vshrl.u32 %v3272, 7
      %v3274 = vsub.s32 0, %v3273
      %v3275 = vrot.slane %v3270, %v3274
      %v3277 = vadd.f32 %v3245, %v3275
      %v3278 = vadd.f32 %v3246, %v3275
      %v3279 = vadd.f32 %v3247, %v3275
      %v3280 = vadd.f32 %v3248, %v3275
      %v3281 = vadd.f32 %v3249, %v3275
      %v3282 = vadd.f32 %v3250, %v3275
      %v3283 = vadd.f32 %v3251, %v3275
      %v3284 = vadd.f32 %v3252, %v3275
      %v3285 = vadd.f32 %v3253, %v3275
      %v3286 = vadd.f32 %v3254, %v3275
      %v3287 = vadd.f32 %v3255, %v3275
      %v3288 = vadd.f32 %v3256, %v3275
      %v3289 = vadd.f32 %v3257, %v3275
      %v3290 = vadd.f32 %v3258, %v3275
      %v3291 = vadd.f32 %v3259, %v3275
      %v3292 = vadd.f32 %v3260, %v3275
      %v3293 = vadd.f32 %v3261, %v3275
      %v3294 = vadd.f32 %v3262, %v3275
      %v3295 = vadd.f32 %v3263, %v3275
      %v3296 = vadd.f32 %v3264, %v3275
      %v3297 = vadd.f32 %v3265, %v3275
      %v3298 = vadd.f32 %v3266, %v3275
      %v3299 = vadd.f32 %v3267, %v3275
      %v3300 = vadd.f32 %v3268, %v3275
      %v3301 = vadd.f32 %v3269, %v3275
      %v3302 = vxor.u32 %v3277, 2147483648
      %v3303 = vxor.u32 %v3278, 2147483648
      %v3304 = vxor.u32 %v3279, 2147483648
      %v3305 = vxor.u32 %v3280, 2147483648
      %v3306 = vxor.u32 %v3281, 2147483648
      %v3307 = vxor.u32 %v3282, 2147483648
      %v3308 = vxor.u32 %v3283, 2147483648
      %v3309 = vxor.u32 %v3284, 2147483648
      %v3310 = vxor.u32 %v3285, 2147483648
      %v3311 = vxor.u32 %v3286, 2147483648
      %v3312 = vxor.u32 %v3287, 2147483648
      %v3313 = vxor.u32 %v3288, 2147483648
      %v3314 = vxor.u32 %v3289, 2147483648
      %v3315 = vxor.u32 %v3290, 2147483648
      %v3316 = vxor.u32 %v3291, 2147483648
      %v3317 = vxor.u32 %v3292, 2147483648
      %v3318 = vxor.u32 %v3293, 2147483648
      %v3319 = vxor.u32 %v3294, 2147483648
      %v3320 = vxor.u32 %v3295, 2147483648
      %v3321 = vxor.u32 %v3296, 2147483648
      %v3322 = vxor.u32 %v3297, 2147483648
      %v3323 = vxor.u32 %v3298, 2147483648
      %v3324 = vxor.u32 %v3299, 2147483648
      %v3325 = vxor.u32 %v3300, 2147483648
      %v3326 = vxor.u32 %v3301, 2147483648
      %v3327 = vmul.f32 %v3302, 1.442695
      %v3328 = vpow.pop %v3327
      %v3329 = vmul.f32 %v3303, 1.442695
      %v3330 = vpow.pop %v3329
      %v3331 = vmul.f32 %v3304, 1.442695
      %v3332 = vpow.pop %v3331
      %v3333 = vmul.f32 %v3305, 1.442695
      %v3334 = vpow.pop %v3333
      %v3335 = vmul.f32 %v3306, 1.442695
      %v3336 = vpow.pop %v3335
      %v3337 = vmul.f32 %v3307, 1.442695
      %v3338 = vpow.pop %v3337
      %v3339 = vmul.f32 %v3308, 1.442695
      %v3340 = vpow.pop %v3339
      %v3341 = vmul.f32 %v3309, 1.442695
      %v3342 = vpow.pop %v3341
      %v3343 = vmul.f32 %v3310, 1.442695
      %v3344 = vpow.pop %v3343
      %v3345 = vmul.f32 %v3311, 1.442695
      %v3346 = vpow.pop %v3345
      %v3347 = vmul.f32 %v3312, 1.442695
      %v3348 = vpow.pop %v3347
      %v3349 = vmul.f32 %v3313, 1.442695
      %v3350 = vpow.pop %v3349
      %v3351 = vmul.f32 %v3314, 1.442695
      %v3352 = vpow.pop %v3351
      %v3353 = vmul.f32 %v3315, 1.442695
      %v3354 = vpow.pop %v3353
      %v3355 = vmul.f32 %v3316, 1.442695
      %v3356 = vpow.pop %v3355
      %v3357 = vmul.f32 %v3317, 1.442695
      %v3358 = vpow.pop %v3357
      %v3359 = vmul.f32 %v3318, 1.442695
      %v3360 = vpow.pop %v3359
      %v3361 = vmul.f32 %v3319, 1.442695
      %v3362 = vpow.pop %v3361
      %v3363 = vmul.f32 %v3320, 1.442695
      %v3364 = vpow.pop %v3363
      %v3365 = vmul.f32 %v3321, 1.442695
      %v3366 = vpow.pop %v3365
      %v3367 = vmul.f32 %v3322, 1.442695
      %v3368 = vpow.pop %v3367
      %v3369 = vmul.f32 %v3323, 1.442695
      %v3370 = vpow.pop %v3369
      %v3371 = vmul.f32 %v3324, 1.442695
      %v3372 = vpow.pop %v3371
      %v3373 = vmul.f32 %v3325, 1.442695
      %v3374 = vpow.pop %v3373
      %v3375 = vmul.f32 %v3326, 1.442695
      %v3376 = vpow.pop %v3375
      %v3377 = vadd.f32 %v3328, 1.0
      %v3378 = vadd.f32 %v3330, 1.0
      %v3379 = vadd.f32 %v3332, 1.0
      %v3380 = vadd.f32 %v3334, 1.0
      %v3381 = vadd.f32 %v3336, 1.0
      %v3382 = vadd.f32 %v3338, 1.0
      %v3383 = vadd.f32 %v3340, 1.0
      %v3384 = vadd.f32 %v3342, 1.0
      %v3385 = vadd.f32 %v3344, 1.0
      %v3386 = vadd.f32 %v3346, 1.0
      %v3387 = vadd.f32 %v3348, 1.0
      %v3388 = vadd.f32 %v3350, 1.0
      %v3389 = vadd.f32 %v3352, 1.0
      %v3390 = vadd.f32 %v3354, 1.0
      %v3391 = vadd.f32 %v3356, 1.0
      %v3392 = vadd.f32 %v3358, 1.0
      %v3393 = vadd.f32 %v3360, 1.0
      %v3394 = vadd.f32 %v3362, 1.0
      %v3395 = vadd.f32 %v3364, 1.0
      %v3396 = vadd.f32 %v3366, 1.0
      %v3397 = vadd.f32 %v3368, 1.0
      %v3398 = vadd.f32 %v3370, 1.0
      %v3399 = vadd.f32 %v3372, 1.0
      %v3400 = vadd.f32 %v3374, 1.0
      %v3401 = vadd.f32 %v3376, 1.0
      %v3402 = vrcp.pop %v3377
      %v3403 = vmul.f32 1.0, %v3402
      %v3404 = vrcp.pop %v3378
      %v3405 = vmul.f32 1.0, %v3404
      %v3406 = vrcp.pop %v3379
      %v3407 = vmul.f32 1.0, %v3406
      %v3408 = vrcp.pop %v3380
      %v3409 = vmul.f32 1.0, %v3408
      %v3410 = vrcp.pop %v3381
      %v3411 = vmul.f32 1.0, %v3410
      %v3412 = vrcp.pop %v3382
      %v3413 = vmul.f32 1.0, %v3412
      %v3414 = vrcp.pop %v3383
      %v3415 = vmul.f32 1.0, %v3414
      %v3416 = vrcp.pop %v3384
      %v3417 = vmul.f32 1.0, %v3416
      %v3418 = vrcp.pop %v3385
      %v3419 = vmul.f32 1.0, %v3418
      %v3420 = vrcp.pop %v3386
      %v3421 = vmul.f32 1.0, %v3420
      %v3422 = vrcp.pop %v3387
      %v3423 = vmul.f32 1.0, %v3422
      %v3424 = vrcp.pop %v3388
      %v3425 = vmul.f32 1.0, %v3424
      %v3426 = vrcp.pop %v3389
      %v3427 = vmul.f32 1.0, %v3426
      %v3428 = vrcp.pop %v3390
      %v3429 = vmul.f32 1.0, %v3428
      %v3430 = vrcp.pop %v3391
      %v3431 = vmul.f32 1.0, %v3430
      %v3432 = vrcp.pop %v3392
      %v3433 = vmul.f32 1.0, %v3432
      %v3434 = vrcp.pop %v3393
      %v3435 = vmul.f32 1.0, %v3434
      %v3436 = vrcp.pop %v3394
      %v3437 = vmul.f32 1.0, %v3436
      %v3438 = vrcp.pop %v3395
      %v3439 = vmul.f32 1.0, %v3438
      %v3440 = vrcp.pop %v3396
      %v3441 = vmul.f32 1.0, %v3440
      %v3442 = vrcp.pop %v3397
      %v3443 = vmul.f32 1.0, %v3442
      %v3444 = vrcp.pop %v3398
      %v3445 = vmul.f32 1.0, %v3444
      %v3446 = vrcp.pop %v3399
      %v3447 = vmul.f32 1.0, %v3446
      %v3448 = vrcp.pop %v3400
      %v3449 = vmul.f32 1.0, %v3448
      %v3450 = vrcp.pop %v3401
      %v3451 = vmul.f32 1.0, %v3450
      %v3452 = vmul.f32 %v3277, %v3403
      %v3453 = vmul.f32 %v3278, %v3405
      %v3454 = vmul.f32 %v3279, %v3407
      %v3455 = vmul.f32 %v3280, %v3409
      %v3456 = vmul.f32 %v3281, %v3411
      %v3457 = vmul.f32 %v3282, %v3413
      %v3458 = vmul.f32 %v3283, %v3415
      %v3459 = vmul.f32 %v3284, %v3417
      %v3460 = vmul.f32 %v3285, %v3419
      %v3461 = vmul.f32 %v3286, %v3421
      %v3462 = vmul.f32 %v3287, %v3423
      %v3463 = vmul.f32 %v3288, %v3425
      %v3464 = vmul.f32 %v3289, %v3427
      %v3465 = vmul.f32 %v3290, %v3429
      %v3466 = vmul.f32 %v3291, %v3431
      %v3467 = vmul.f32 %v3292, %v3433
      %v3468 = vmul.f32 %v3293, %v3435
      %v3469 = vmul.f32 %v3294, %v3437
      %v3470 = vmul.f32 %v3295, %v3439
      %v3471 = vmul.f32 %v3296, %v3441
      %v3472 = vmul.f32 %v3297, %v3443
      %v3473 = vmul.f32 %v3298, %v3445
      %v3474 = vmul.f32 %v3299, %v3447
      %v3475 = vmul.f32 %v3300, %v3449
      %v3476 = vmul.f32 %v3301, %v3451
      %v3477 = vadd.f32 %v454, %v3452
      %v3478 = vadd.f32 %v455, %v3453
      %v3479 = vadd.f32 %v456, %v3454
      %v3480 = vadd.f32 %v457, %v3455
      %v3481 = vadd.f32 %v458, %v3456
      %v3482 = vadd.f32 %v459, %v3457
      %v3483 = vadd.f32 %v460, %v3458
      %v3484 = vadd.f32 %v461, %v3459
      %v3485 = vadd.f32 %v462, %v3460
      %v3486 = vadd.f32 %v463, %v3461
      %v3487 = vadd.f32 %v464, %v3462
      %v3488 = vadd.f32 %v465, %v3463
      %v3489 = vadd.f32 %v466, %v3464
      %v3490 = vadd.f32 %v467, %v3465
      %v3491 = vadd.f32 %v468, %v3466
      %v3492 = vadd.f32 %v469, %v3467
      %v3493 = vadd.f32 %v470, %v3468
      %v3494 = vadd.f32 %v471, %v3469
      %v3495 = vadd.f32 %v472, %v3470
      %v3496 = vadd.f32 %v473, %v3471
      %v3497 = vadd.f32 %v474, %v3472
      %v3498 = vadd.f32 %v475, %v3473
      %v3499 = vadd.f32 %v476, %v3474
      %v3500 = vadd.f32 %v477, %v3475
      %v3501 = vadd.f32 %v478, %v3476
      %v3502 = vld [vmem:[%s443] sm:$0xff]
      %v3503 = vld [vmem:[%s443 + $0x8] sm:$0xff]
      %v3504 = vld [vmem:[%s443 + $0x10] sm:$0xff]
      %v3505 = vld [vmem:[%s443 + $0x18] sm:$0xff]
      %v3506 = vld [vmem:[%s443 + $0x20] sm:$0xff]
      %v3507 = vld [vmem:[%s443 + $0x28] sm:$0xff]
      %v3508 = vld [vmem:[%s443 + $0x30] sm:$0xff]
      %v3509 = vld [vmem:[%s443 + $0x38] sm:$0xff]
      %v3510 = vld [vmem:[%s443 + $0x40] sm:$0xff]
      %v3511 = vld [vmem:[%s443 + $0x48] sm:$0xff]
      %v3512 = vld [vmem:[%s443 + $0x50] sm:$0xff]
      %v3513 = vld [vmem:[%s443 + $0x58] sm:$0xff]
      %v3514 = vld [vmem:[%s443 + $0x60] sm:$0xff]
      %v3515 = vld [vmem:[%s443 + $0x68] sm:$0xff]
      %v3516 = vld [vmem:[%s443 + $0x70] sm:$0xff]
      %v3517 = vld [vmem:[%s443 + $0x78] sm:$0xff]
      %v3518 = vld [vmem:[%s443 + $0x80] sm:$0xff]
      %v3519 = vld [vmem:[%s443 + $0x88] sm:$0xff]
      %v3520 = vld [vmem:[%s443 + $0x90] sm:$0xff]
      %v3521 = vld [vmem:[%s443 + $0x98] sm:$0xff]
      %v3522 = vld [vmem:[%s443 + $0xa0] sm:$0xff]
      %v3523 = vld [vmem:[%s443 + $0xa8] sm:$0xff]
      %v3524 = vld [vmem:[%s443 + $0xb0] sm:$0xff]
      %v3525 = vld [vmem:[%s443 + $0xb8] sm:$0xff]
      %v3526 = vld [vmem:[%s443 + $0xc0] sm:$0xf]
      %v3527 = vld [vmem:[%s6] sm:$0xff]
      %v3528 = vld [vmem:[%s6 + $0x8] sm:$0xff]
      %v3530 = vsel %vm479, %v3477, 0
      %v3533 = vsel %vm479, %v3478, 0
      %v3536 = vsel %vm479, %v3479, 0
      %v3539 = vsel %vm479, %v3480, 0
      %v3542 = vsel %vm479, %v3481, 0
      %v3545 = vsel %vm479, %v3482, 0
      %v3548 = vsel %vm479, %v3483, 0
      %v3551 = vsel %vm479, %v3484, 0
      %v3554 = vsel %vm479, %v3485, 0
      %v3557 = vsel %vm479, %v3486, 0
      %v3560 = vsel %vm479, %v3487, 0
      %v3563 = vsel %vm479, %v3488, 0
      %v3566 = vsel %vm479, %v3489, 0
      %v3569 = vsel %vm479, %v3490, 0
      %v3572 = vsel %vm479, %v3491, 0
      %v3575 = vsel %vm479, %v3492, 0
      %v3578 = vsel %vm479, %v3493, 0
      %v3581 = vsel %vm479, %v3494, 0
      %v3584 = vsel %vm479, %v3495, 0
      %v3587 = vsel %vm479, %v3496, 0
      %v3590 = vsel %vm479, %v3497, 0
      %v3593 = vsel %vm479, %v3498, 0
      %v3596 = vsel %vm479, %v3499, 0
      %v3599 = vsel %vm479, %v3500, 0
      %v3602 = vsel %vm479, %v3501, 0
      %3604 = vmatprep.subr.mxu0 0.0
      %3605 = vmatpush1.msra.mxu0 0.0
      %3606 = vmatprep.subr.mxu0 0.0
      %3607 = vmatpush1.msra.mxu0 0.0
      %3608 = vmatprep.subr.mxu0 0.0
      %3609 = vmatpush1.msra.mxu0 0.0
      %3610 = vmatprep.subr.mxu0 0.0
      %3611 = vmatpush1.msra.mxu0 0.0
      %3612 = vmatprep.subr.mxu0 0.0
      %3613 = vmatpush1.msra.mxu0 0.0
      %3614 = vmatprep.subr.mxu0 0.0
      %3615 = vmatpush1.msra.mxu0 0.0
      %3616 = vmatprep.subr.mxu0 0.0
      %3617 = vmatpush1.msra.mxu0 0.0
      %3618 = vmatprep.subr.mxu0 0.0
      %3619 = vmatpush1.msra.mxu0 0.0
      %3620 = vmatprep.subr.mxu0 0.0
      %3621 = vmatpush1.msra.mxu0 0.0
      %3622 = vmatprep.subr.mxu0 0.0
      %3623 = vmatpush1.msra.mxu0 0.0
      %3624 = vmatprep.subr.mxu0 0.0
      %3625 = vmatpush1.msra.mxu0 0.0
      %3626 = vmatprep.subr.mxu0 0.0
      %3627 = vmatpush1.msra.mxu0 0.0
      %3628 = vmatprep.subr.mxu0 0.0
      %3629 = vmatpush1.msra.mxu0 0.0
      %3630 = vmatprep.subr.mxu0 0.0
      %3631 = vmatpush1.msra.mxu0 0.0
      %3632 = vmatprep.subr.mxu0 0.0
      %3633 = vmatpush1.msra.mxu0 %v3528
      %3634 = vmatprep.subr.mxu0 0.0
      %3635 = vmatpush1.msra.mxu0 %v3527
      %3636 = vmatprep.subr.mxu0 0.0
      %3637 = vmatpush2.msra.mxu0 0.0
      %3638 = vmatprep.subr.mxu0 0.0
      %3639 = vmatpush2.msra.mxu0 0.0
      %3640 = vmatprep.subr.mxu0 0.0
      %3641 = vmatpush2.msra.mxu0 0.0
      %3642 = vmatprep.subr.mxu0 0.0
      %3643 = vmatpush2.msra.mxu0 0.0
      %3644 = vmatprep.subr.mxu0 0.0
      %3645 = vmatpush2.msra.mxu0 0.0
      %3646 = vmatprep.subr.mxu0 0.0
      %3647 = vmatpush2.msra.mxu0 0.0
      %3648 = vmatprep.subr.mxu0 0.0
      %3649 = vmatpush2.msra.mxu0 0.0
      %3650 = vmatprep.subr.mxu0 0.0
      %3651 = vmatpush2.msra.mxu0 0.0
      %3652 = vmatprep.subr.mxu0 0.0
      %3653 = vmatpush2.msra.mxu0 0.0
      %3654 = vmatprep.subr.mxu0 0.0
      %3655 = vmatpush2.msra.mxu0 0.0
      %3656 = vmatprep.subr.mxu0 0.0
      %3657 = vmatpush2.msra.mxu0 0.0
      %3658 = vmatprep.subr.mxu0 0.0
      %3659 = vmatpush2.msra.mxu0 0.0
      %3660 = vmatprep.subr.mxu0 0.0
      %3661 = vmatpush2.msra.mxu0 0.0
      %3662 = vmatprep.subr.mxu0 0.0
      %3663 = vmatpush2.msra.mxu0 0.0
      %3664 = vmatprep.subr.mxu0 0.0
      %3665 = vmatpush2.msra.mxu0 0.0
      %3666 = vmatprep.subr.mxu0 0.0
      %3667 = vmatpush2.msra.mxu0 0.0
      %3668 = vmatprep.mubr.f32.mxu0 0.0
      %3669 = vmatmul.mubr.f32.gmra.mxu0 %v3530
      %v3670 = vpop.f32.mrf.mxu0
      %v3671 = vadd.f32 0.0, %v3670
      %v3672 = vpop.f32.mrf.mxu0
      %3673 = vmatprep.mubr.f32.mxu0 0.0
      %3674 = vmatmul.mubr.f32.gmra.mxu0 %v3533
      %v3675 = vpop.f32.mrf.mxu0
      %v3676 = vadd.f32 0.0, %v3675
      %v3677 = vpop.f32.mrf.mxu0
      %3678 = vmatprep.mubr.f32.mxu0 0.0
      %3679 = vmatmul.mubr.f32.gmra.mxu0 %v3536
      %v3680 = vpop.f32.mrf.mxu0
      %v3681 = vadd.f32 0.0, %v3680
      %v3682 = vpop.f32.mrf.mxu0
      %3683 = vmatprep.mubr.f32.mxu0 0.0
      %3684 = vmatmul.mubr.f32.gmra.mxu0 %v3539
      %v3685 = vpop.f32.mrf.mxu0
      %v3686 = vadd.f32 0.0, %v3685
      %v3687 = vpop.f32.mrf.mxu0
      %3688 = vmatprep.mubr.f32.mxu0 0.0
      %3689 = vmatmul.mubr.f32.gmra.mxu0 %v3542
      %v3690 = vpop.f32.mrf.mxu0
      %v3691 = vadd.f32 0.0, %v3690
      %v3692 = vpop.f32.mrf.mxu0
      %3693 = vmatprep.mubr.f32.mxu0 0.0
      %3694 = vmatmul.mubr.f32.gmra.mxu0 %v3545
      %v3695 = vpop.f32.mrf.mxu0
      %v3696 = vadd.f32 0.0, %v3695
      %v3697 = vpop.f32.mrf.mxu0
      %3698 = vmatprep.mubr.f32.mxu0 0.0
      %3699 = vmatmul.mubr.f32.gmra.mxu0 %v3548
      %v3700 = vpop.f32.mrf.mxu0
      %v3701 = vadd.f32 0.0, %v3700
      %v3702 = vpop.f32.mrf.mxu0
      %3703 = vmatprep.mubr.f32.mxu0 0.0
      %3704 = vmatmul.mubr.f32.gmra.mxu0 %v3551
      %v3705 = vpop.f32.mrf.mxu0
      %v3706 = vadd.f32 0.0, %v3705
      %v3707 = vpop.f32.mrf.mxu0
      %3708 = vmatprep.mubr.f32.mxu0 0.0
      %3709 = vmatmul.mubr.f32.gmra.mxu0 %v3554
      %v3710 = vpop.f32.mrf.mxu0
      %v3711 = vadd.f32 0.0, %v3710
      %v3712 = vpop.f32.mrf.mxu0
      %3713 = vmatprep.mubr.f32.mxu0 0.0
      %3714 = vmatmul.mubr.f32.gmra.mxu0 %v3557
      %v3715 = vpop.f32.mrf.mxu0
      %v3716 = vadd.f32 0.0, %v3715
      %v3717 = vpop.f32.mrf.mxu0
      %3718 = vmatprep.mubr.f32.mxu0 0.0
      %3719 = vmatmul.mubr.f32.gmra.mxu0 %v3560
      %v3720 = vpop.f32.mrf.mxu0
      %v3721 = vadd.f32 0.0, %v3720
      %v3722 = vpop.f32.mrf.mxu0
      %3723 = vmatprep.mubr.f32.mxu0 0.0
      %3724 = vmatmul.mubr.f32.gmra.mxu0 %v3563
      %v3725 = vpop.f32.mrf.mxu0
      %v3726 = vadd.f32 0.0, %v3725
      %v3727 = vpop.f32.mrf.mxu0
      %3728 = vmatprep.mubr.f32.mxu0 0.0
      %3729 = vmatmul.mubr.f32.gmra.mxu0 %v3566
      %v3730 = vpop.f32.mrf.mxu0
      %v3731 = vadd.f32 0.0, %v3730
      %v3732 = vpop.f32.mrf.mxu0
      %3733 = vmatprep.mubr.f32.mxu0 0.0
      %3734 = vmatmul.mubr.f32.gmra.mxu0 %v3569
      %v3735 = vpop.f32.mrf.mxu0
      %v3736 = vadd.f32 0.0, %v3735
      %v3737 = vpop.f32.mrf.mxu0
      %3738 = vmatprep.mubr.f32.mxu0 0.0
      %3739 = vmatmul.mubr.f32.gmra.mxu0 %v3572
      %v3740 = vpop.f32.mrf.mxu0
      %v3741 = vadd.f32 0.0, %v3740
      %v3742 = vpop.f32.mrf.mxu0
      %3743 = vmatprep.mubr.f32.mxu0 0.0
      %3744 = vmatmul.mubr.f32.gmra.mxu0 %v3575
      %v3745 = vpop.f32.mrf.mxu0
      %v3746 = vadd.f32 0.0, %v3745
      %v3747 = vpop.f32.mrf.mxu0
      %3748 = vmatprep.mubr.f32.mxu0 0.0
      %3749 = vmatmul.mubr.f32.gmra.mxu0 %v3578
      %v3750 = vpop.f32.mrf.mxu0
      %v3751 = vadd.f32 0.0, %v3750
      %v3752 = vpop.f32.mrf.mxu0
      %3753 = vmatprep.mubr.f32.mxu0 0.0
      %3754 = vmatmul.mubr.f32.gmra.mxu0 %v3581
      %v3755 = vpop.f32.mrf.mxu0
      %v3756 = vadd.f32 0.0, %v3755
      %v3757 = vpop.f32.mrf.mxu0
      %3758 = vmatprep.mubr.f32.mxu0 0.0
      %3759 = vmatmul.mubr.f32.gmra.mxu0 %v3584
      %v3760 = vpop.f32.mrf.mxu0
      %v3761 = vadd.f32 0.0, %v3760
      %v3762 = vpop.f32.mrf.mxu0
      %3763 = vmatprep.mubr.f32.mxu0 0.0
      %3764 = vmatmul.mubr.f32.gmra.mxu0 %v3587
      %v3765 = vpop.f32.mrf.mxu0
      %v3766 = vadd.f32 0.0, %v3765
      %v3767 = vpop.f32.mrf.mxu0
      %3768 = vmatprep.mubr.f32.mxu0 0.0
      %3769 = vmatmul.mubr.f32.gmra.mxu0 %v3590
      %v3770 = vpop.f32.mrf.mxu0
      %v3771 = vadd.f32 0.0, %v3770
      %v3772 = vpop.f32.mrf.mxu0
      %3773 = vmatprep.mubr.f32.mxu0 0.0
      %3774 = vmatmul.mubr.f32.gmra.mxu0 %v3593
      %v3775 = vpop.f32.mrf.mxu0
      %v3776 = vadd.f32 0.0, %v3775
      %v3777 = vpop.f32.mrf.mxu0
      %3778 = vmatprep.mubr.f32.mxu0 0.0
      %3779 = vmatmul.mubr.f32.gmra.mxu0 %v3596
      %v3780 = vpop.f32.mrf.mxu0
      %v3781 = vadd.f32 0.0, %v3780
      %v3782 = vpop.f32.mrf.mxu0
      %3783 = vmatprep.mubr.f32.mxu0 0.0
      %3784 = vmatmul.mubr.f32.gmra.mxu0 %v3599
      %v3785 = vpop.f32.mrf.mxu0
      %v3786 = vadd.f32 0.0, %v3785
      %v3787 = vpop.f32.mrf.mxu0
      %3788 = vmatprep.mubr.f32.mxu0 0.0
      %3789 = vmatmul.mubr.f32.gmra.mxu0 %v3602
      %v3790 = vpop.f32.mrf.mxu0
      %v3791 = vadd.f32 0.0, %v3790
      %v3792 = vpop.f32.mrf.mxu0
      %3793 = vdwg.mxu0
      %v3794 = vadd.f32 %v3502, %v3671
      %v3795 = vadd.f32 %v3503, %v3676
      %v3796 = vadd.f32 %v3504, %v3681
      %v3797 = vadd.f32 %v3505, %v3686
      %v3798 = vadd.f32 %v3506, %v3691
      %v3799 = vadd.f32 %v3507, %v3696
      %v3800 = vadd.f32 %v3508, %v3701
      %v3801 = vadd.f32 %v3509, %v3706
      %v3802 = vadd.f32 %v3510, %v3711
      %v3803 = vadd.f32 %v3511, %v3716
      %v3804 = vadd.f32 %v3512, %v3721
      %v3805 = vadd.f32 %v3513, %v3726
      %v3806 = vadd.f32 %v3514, %v3731
      %v3807 = vadd.f32 %v3515, %v3736
      %v3808 = vadd.f32 %v3516, %v3741
      %v3809 = vadd.f32 %v3517, %v3746
      %v3810 = vadd.f32 %v3518, %v3751
      %v3811 = vadd.f32 %v3519, %v3756
      %v3812 = vadd.f32 %v3520, %v3761
      %v3813 = vadd.f32 %v3521, %v3766
      %v3814 = vadd.f32 %v3522, %v3771
      %v3815 = vadd.f32 %v3523, %v3776
      %v3816 = vadd.f32 %v3524, %v3781
      %v3817 = vadd.f32 %v3525, %v3786
      %v3818 = vadd.f32 %v3526, %v3791
      %v3819 = vld [vmem:[%s7] sm:$0xff]
      %v3820 = vld [vmem:[%s7 + $0x8] sm:$0xff]
      %v3821 = vld [vmem:[%s8] sm:$0x1]
      %v3823 = vlaneseq
      %v3824 = vshrl.u32 %v3823, 7
      %v3825 = vsub.s32 0, %v3824
      %v3826 = vrot.slane %v3821, %v3825
      %v3829 = vsel %vm479, %v3794, 0
      %v3832 = vsel %vm479, %v3795, 0
      %v3835 = vsel %vm479, %v3796, 0
      %v3838 = vsel %vm479, %v3797, 0
      %v3841 = vsel %vm479, %v3798, 0
      %v3844 = vsel %vm479, %v3799, 0
      %v3847 = vsel %vm479, %v3800, 0
      %v3850 = vsel %vm479, %v3801, 0
      %v3853 = vsel %vm479, %v3802, 0
      %v3856 = vsel %vm479, %v3803, 0
      %v3859 = vsel %vm479, %v3804, 0
      %v3862 = vsel %vm479, %v3805, 0
      %v3865 = vsel %vm479, %v3806, 0
      %v3868 = vsel %vm479, %v3807, 0
      %v3871 = vsel %vm479, %v3808, 0
      %v3874 = vsel %vm479, %v3809, 0
      %v3877 = vsel %vm479, %v3810, 0
      %v3880 = vsel %vm479, %v3811, 0
      %v3883 = vsel %vm479, %v3812, 0
      %v3886 = vsel %vm479, %v3813, 0
      %v3889 = vsel %vm479, %v3814, 0
      %v3892 = vsel %vm479, %v3815, 0
      %v3895 = vsel %vm479, %v3816, 0
      %v3898 = vsel %vm479, %v3817, 0
      %v3901 = vsel %vm479, %v3818, 0
      %3903 = vmatprep.subr.mxu0 0.0
      %3904 = vmatpush1.msra.mxu0 0.0
      %3905 = vmatprep.subr.mxu0 0.0
      %3906 = vmatpush1.msra.mxu0 0.0
      %3907 = vmatprep.subr.mxu0 0.0
      %3908 = vmatpush1.msra.mxu0 0.0
      %3909 = vmatprep.subr.mxu0 0.0
      %3910 = vmatpush1.msra.mxu0 0.0
      %3911 = vmatprep.subr.mxu0 0.0
      %3912 = vmatpush1.msra.mxu0 0.0
      %3913 = vmatprep.subr.mxu0 0.0
      %3914 = vmatpush1.msra.mxu0 0.0
      %3915 = vmatprep.subr.mxu0 0.0
      %3916 = vmatpush1.msra.mxu0 0.0
      %3917 = vmatprep.subr.mxu0 0.0
      %3918 = vmatpush1.msra.mxu0 0.0
      %3919 = vmatprep.subr.mxu0 0.0
      %3920 = vmatpush1.msra.mxu0 0.0
      %3921 = vmatprep.subr.mxu0 0.0
      %3922 = vmatpush1.msra.mxu0 0.0
      %3923 = vmatprep.subr.mxu0 0.0
      %3924 = vmatpush1.msra.mxu0 0.0
      %3925 = vmatprep.subr.mxu0 0.0
      %3926 = vmatpush1.msra.mxu0 0.0
      %3927 = vmatprep.subr.mxu0 0.0
      %3928 = vmatpush1.msra.mxu0 0.0
      %3929 = vmatprep.subr.mxu0 0.0
      %3930 = vmatpush1.msra.mxu0 0.0
      %3931 = vmatprep.subr.mxu0 0.0
      %3932 = vmatpush1.msra.mxu0 %v3820
      %3933 = vmatprep.subr.mxu0 0.0
      %3934 = vmatpush1.msra.mxu0 %v3819
      %3935 = vmatprep.subr.mxu0 0.0
      %3936 = vmatpush2.msra.mxu0 0.0
      %3937 = vmatprep.subr.mxu0 0.0
      %3938 = vmatpush2.msra.mxu0 0.0
      %3939 = vmatprep.subr.mxu0 0.0
      %3940 = vmatpush2.msra.mxu0 0.0
      %3941 = vmatprep.subr.mxu0 0.0
      %3942 = vmatpush2.msra.mxu0 0.0
      %3943 = vmatprep.subr.mxu0 0.0
      %3944 = vmatpush2.msra.mxu0 0.0
      %3945 = vmatprep.subr.mxu0 0.0
      %3946 = vmatpush2.msra.mxu0 0.0
      %3947 = vmatprep.subr.mxu0 0.0
      %3948 = vmatpush2.msra.mxu0 0.0
      %3949 = vmatprep.subr.mxu0 0.0
      %3950 = vmatpush2.msra.mxu0 0.0
      %3951 = vmatprep.subr.mxu0 0.0
      %3952 = vmatpush2.msra.mxu0 0.0
      %3953 = vmatprep.subr.mxu0 0.0
      %3954 = vmatpush2.msra.mxu0 0.0
      %3955 = vmatprep.subr.mxu0 0.0
      %3956 = vmatpush2.msra.mxu0 0.0
      %3957 = vmatprep.subr.mxu0 0.0
      %3958 = vmatpush2.msra.mxu0 0.0
      %3959 = vmatprep.subr.mxu0 0.0
      %3960 = vmatpush2.msra.mxu0 0.0
      %3961 = vmatprep.subr.mxu0 0.0
      %3962 = vmatpush2.msra.mxu0 0.0
      %3963 = vmatprep.subr.mxu0 0.0
      %3964 = vmatpush2.msra.mxu0 0.0
      %3965 = vmatprep.subr.mxu0 0.0
      %3966 = vmatpush2.msra.mxu0 0.0
      %3967 = vmatprep.mubr.f32.mxu0 0.0
      %3968 = vmatmul.mubr.f32.gmra.mxu0 %v3829
      %v3969 = vpop.f32.mrf.mxu0
      %v3970 = vadd.f32 %v3826, %v3969
      %v3971 = vpop.f32.mrf.mxu0
      %3972 = vmatprep.mubr.f32.mxu0 0.0
      %3973 = vmatmul.mubr.f32.gmra.mxu0 %v3832
      %v3974 = vpop.f32.mrf.mxu0
      %v3975 = vadd.f32 %v3826, %v3974
      %v3976 = vpop.f32.mrf.mxu0
      %3977 = vmatprep.mubr.f32.mxu0 0.0
      %3978 = vmatmul.mubr.f32.gmra.mxu0 %v3835
      %v3979 = vpop.f32.mrf.mxu0
      %v3980 = vadd.f32 %v3826, %v3979
      %v3981 = vpop.f32.mrf.mxu0
      %3982 = vmatprep.mubr.f32.mxu0 0.0
      %3983 = vmatmul.mubr.f32.gmra.mxu0 %v3838
      %v3984 = vpop.f32.mrf.mxu0
      %v3985 = vadd.f32 %v3826, %v3984
      %v3986 = vpop.f32.mrf.mxu0
      %3987 = vmatprep.mubr.f32.mxu0 0.0
      %3988 = vmatmul.mubr.f32.gmra.mxu0 %v3841
      %v3989 = vpop.f32.mrf.mxu0
      %v3990 = vadd.f32 %v3826, %v3989
      %v3991 = vpop.f32.mrf.mxu0
      %3992 = vmatprep.mubr.f32.mxu0 0.0
      %3993 = vmatmul.mubr.f32.gmra.mxu0 %v3844
      %v3994 = vpop.f32.mrf.mxu0
      %v3995 = vadd.f32 %v3826, %v3994
      %v3996 = vpop.f32.mrf.mxu0
      %3997 = vmatprep.mubr.f32.mxu0 0.0
      %3998 = vmatmul.mubr.f32.gmra.mxu0 %v3847
      %v3999 = vpop.f32.mrf.mxu0
      %v4000 = vadd.f32 %v3826, %v3999
      %v4001 = vpop.f32.mrf.mxu0
      %4002 = vmatprep.mubr.f32.mxu0 0.0
      %4003 = vmatmul.mubr.f32.gmra.mxu0 %v3850
      %v4004 = vpop.f32.mrf.mxu0
      %v4005 = vadd.f32 %v3826, %v4004
      %v4006 = vpop.f32.mrf.mxu0
      %4007 = vmatprep.mubr.f32.mxu0 0.0
      %4008 = vmatmul.mubr.f32.gmra.mxu0 %v3853
      %v4009 = vpop.f32.mrf.mxu0
      %v4010 = vadd.f32 %v3826, %v4009
      %v4011 = vpop.f32.mrf.mxu0
      %4012 = vmatprep.mubr.f32.mxu0 0.0
      %4013 = vmatmul.mubr.f32.gmra.mxu0 %v3856
      %v4014 = vpop.f32.mrf.mxu0
      %v4015 = vadd.f32 %v3826, %v4014
      %v4016 = vpop.f32.mrf.mxu0
      %4017 = vmatprep.mubr.f32.mxu0 0.0
      %4018 = vmatmul.mubr.f32.gmra.mxu0 %v3859
      %v4019 = vpop.f32.mrf.mxu0
      %v4020 = vadd.f32 %v3826, %v4019
      %v4021 = vpop.f32.mrf.mxu0
      %4022 = vmatprep.mubr.f32.mxu0 0.0
      %4023 = vmatmul.mubr.f32.gmra.mxu0 %v3862
      %v4024 = vpop.f32.mrf.mxu0
      %v4025 = vadd.f32 %v3826, %v4024
      %v4026 = vpop.f32.mrf.mxu0
      %4027 = vmatprep.mubr.f32.mxu0 0.0
      %4028 = vmatmul.mubr.f32.gmra.mxu0 %v3865
      %v4029 = vpop.f32.mrf.mxu0
      %v4030 = vadd.f32 %v3826, %v4029
      %v4031 = vpop.f32.mrf.mxu0
      %4032 = vmatprep.mubr.f32.mxu0 0.0
      %4033 = vmatmul.mubr.f32.gmra.mxu0 %v3868
      %v4034 = vpop.f32.mrf.mxu0
      %v4035 = vadd.f32 %v3826, %v4034
      %v4036 = vpop.f32.mrf.mxu0
      %4037 = vmatprep.mubr.f32.mxu0 0.0
      %4038 = vmatmul.mubr.f32.gmra.mxu0 %v3871
      %v4039 = vpop.f32.mrf.mxu0
      %v4040 = vadd.f32 %v3826, %v4039
      %v4041 = vpop.f32.mrf.mxu0
      %4042 = vmatprep.mubr.f32.mxu0 0.0
      %4043 = vmatmul.mubr.f32.gmra.mxu0 %v3874
      %v4044 = vpop.f32.mrf.mxu0
      %v4045 = vadd.f32 %v3826, %v4044
      %v4046 = vpop.f32.mrf.mxu0
      %4047 = vmatprep.mubr.f32.mxu0 0.0
      %4048 = vmatmul.mubr.f32.gmra.mxu0 %v3877
      %v4049 = vpop.f32.mrf.mxu0
      %v4050 = vadd.f32 %v3826, %v4049
      %v4051 = vpop.f32.mrf.mxu0
      %4052 = vmatprep.mubr.f32.mxu0 0.0
      %4053 = vmatmul.mubr.f32.gmra.mxu0 %v3880
      %v4054 = vpop.f32.mrf.mxu0
      %v4055 = vadd.f32 %v3826, %v4054
      %v4056 = vpop.f32.mrf.mxu0
      %4057 = vmatprep.mubr.f32.mxu0 0.0
      %4058 = vmatmul.mubr.f32.gmra.mxu0 %v3883
      %v4059 = vpop.f32.mrf.mxu0
      %v4060 = vadd.f32 %v3826, %v4059
      %v4061 = vpop.f32.mrf.mxu0
      %4062 = vmatprep.mubr.f32.mxu0 0.0
      %4063 = vmatmul.mubr.f32.gmra.mxu0 %v3886
      %v4064 = vpop.f32.mrf.mxu0
      %v4065 = vadd.f32 %v3826, %v4064
      %v4066 = vpop.f32.mrf.mxu0
      %4067 = vmatprep.mubr.f32.mxu0 0.0
      %4068 = vmatmul.mubr.f32.gmra.mxu0 %v3889
      %v4069 = vpop.f32.mrf.mxu0
      %v4070 = vadd.f32 %v3826, %v4069
      %v4071 = vpop.f32.mrf.mxu0
      %4072 = vmatprep.mubr.f32.mxu0 0.0
      %4073 = vmatmul.mubr.f32.gmra.mxu0 %v3892
      %v4074 = vpop.f32.mrf.mxu0
      %v4075 = vadd.f32 %v3826, %v4074
      %v4076 = vpop.f32.mrf.mxu0
      %4077 = vmatprep.mubr.f32.mxu0 0.0
      %4078 = vmatmul.mubr.f32.gmra.mxu0 %v3895
      %v4079 = vpop.f32.mrf.mxu0
      %v4080 = vadd.f32 %v3826, %v4079
      %v4081 = vpop.f32.mrf.mxu0
      %4082 = vmatprep.mubr.f32.mxu0 0.0
      %4083 = vmatmul.mubr.f32.gmra.mxu0 %v3898
      %v4084 = vpop.f32.mrf.mxu0
      %v4085 = vadd.f32 %v3826, %v4084
      %v4086 = vpop.f32.mrf.mxu0
      %4087 = vmatprep.mubr.f32.mxu0 0.0
      %4088 = vmatmul.mubr.f32.gmra.mxu0 %v3901
      %v4089 = vpop.f32.mrf.mxu0
      %v4090 = vadd.f32 %v3826, %v4089
      %v4091 = vpop.f32.mrf.mxu0
      %4092 = vdwg.mxu0
      %v4093 = vxor.u32 %v3970, 2147483648
      %v4094 = vxor.u32 %v3975, 2147483648
      %v4095 = vxor.u32 %v3980, 2147483648
      %v4096 = vxor.u32 %v3985, 2147483648
      %v4097 = vxor.u32 %v3990, 2147483648
      %v4098 = vxor.u32 %v3995, 2147483648
      %v4099 = vxor.u32 %v4000, 2147483648
      %v4100 = vxor.u32 %v4005, 2147483648
      %v4101 = vxor.u32 %v4010, 2147483648
      %v4102 = vxor.u32 %v4015, 2147483648
      %v4103 = vxor.u32 %v4020, 2147483648
      %v4104 = vxor.u32 %v4025, 2147483648
      %v4105 = vxor.u32 %v4030, 2147483648
      %v4106 = vxor.u32 %v4035, 2147483648
      %v4107 = vxor.u32 %v4040, 2147483648
      %v4108 = vxor.u32 %v4045, 2147483648
      %v4109 = vxor.u32 %v4050, 2147483648
      %v4110 = vxor.u32 %v4055, 2147483648
      %v4111 = vxor.u32 %v4060, 2147483648
      %v4112 = vxor.u32 %v4065, 2147483648
      %v4113 = vxor.u32 %v4070, 2147483648
      %v4114 = vxor.u32 %v4075, 2147483648
      %v4115 = vxor.u32 %v4080, 2147483648
      %v4116 = vxor.u32 %v4085, 2147483648
      %v4117 = vxor.u32 %v4090, 2147483648
      %v4118 = vmul.f32 %v4093, 1.442695
      %v4119 = vpow.pop %v4118
      %v4120 = vmul.f32 %v4094, 1.442695
      %v4121 = vpow.pop %v4120
      %v4122 = vmul.f32 %v4095, 1.442695
      %v4123 = vpow.pop %v4122
      %v4124 = vmul.f32 %v4096, 1.442695
      %v4125 = vpow.pop %v4124
      %v4126 = vmul.f32 %v4097, 1.442695
      %v4127 = vpow.pop %v4126
      %v4128 = vmul.f32 %v4098, 1.442695
      %v4129 = vpow.pop %v4128
      %v4130 = vmul.f32 %v4099, 1.442695
      %v4131 = vpow.pop %v4130
      %v4132 = vmul.f32 %v4100, 1.442695
      %v4133 = vpow.pop %v4132
      %v4134 = vmul.f32 %v4101, 1.442695
      %v4135 = vpow.pop %v4134
      %v4136 = vmul.f32 %v4102, 1.442695
      %v4137 = vpow.pop %v4136
      %v4138 = vmul.f32 %v4103, 1.442695
      %v4139 = vpow.pop %v4138
      %v4140 = vmul.f32 %v4104, 1.442695
      %v4141 = vpow.pop %v4140
      %v4142 = vmul.f32 %v4105, 1.442695
      %v4143 = vpow.pop %v4142
      %v4144 = vmul.f32 %v4106, 1.442695
      %v4145 = vpow.pop %v4144
      %v4146 = vmul.f32 %v4107, 1.442695
      %v4147 = vpow.pop %v4146
      %v4148 = vmul.f32 %v4108, 1.442695
      %v4149 = vpow.pop %v4148
      %v4150 = vmul.f32 %v4109, 1.442695
      %v4151 = vpow.pop %v4150
      %v4152 = vmul.f32 %v4110, 1.442695
      %v4153 = vpow.pop %v4152
      %v4154 = vmul.f32 %v4111, 1.442695
      %v4155 = vpow.pop %v4154
      %v4156 = vmul.f32 %v4112, 1.442695
      %v4157 = vpow.pop %v4156
      %v4158 = vmul.f32 %v4113, 1.442695
      %v4159 = vpow.pop %v4158
      %v4160 = vmul.f32 %v4114, 1.442695
      %v4161 = vpow.pop %v4160
      %v4162 = vmul.f32 %v4115, 1.442695
      %v4163 = vpow.pop %v4162
      %v4164 = vmul.f32 %v4116, 1.442695
      %v4165 = vpow.pop %v4164
      %v4166 = vmul.f32 %v4117, 1.442695
      %v4167 = vpow.pop %v4166
      %v4168 = vadd.f32 %v4119, 1.0
      %v4169 = vadd.f32 %v4121, 1.0
      %v4170 = vadd.f32 %v4123, 1.0
      %v4171 = vadd.f32 %v4125, 1.0
      %v4172 = vadd.f32 %v4127, 1.0
      %v4173 = vadd.f32 %v4129, 1.0
      %v4174 = vadd.f32 %v4131, 1.0
      %v4175 = vadd.f32 %v4133, 1.0
      %v4176 = vadd.f32 %v4135, 1.0
      %v4177 = vadd.f32 %v4137, 1.0
      %v4178 = vadd.f32 %v4139, 1.0
      %v4179 = vadd.f32 %v4141, 1.0
      %v4180 = vadd.f32 %v4143, 1.0
      %v4181 = vadd.f32 %v4145, 1.0
      %v4182 = vadd.f32 %v4147, 1.0
      %v4183 = vadd.f32 %v4149, 1.0
      %v4184 = vadd.f32 %v4151, 1.0
      %v4185 = vadd.f32 %v4153, 1.0
      %v4186 = vadd.f32 %v4155, 1.0
      %v4187 = vadd.f32 %v4157, 1.0
      %v4188 = vadd.f32 %v4159, 1.0
      %v4189 = vadd.f32 %v4161, 1.0
      %v4190 = vadd.f32 %v4163, 1.0
      %v4191 = vadd.f32 %v4165, 1.0
      %v4192 = vadd.f32 %v4167, 1.0
      %v4193 = vrcp.pop %v4168
      %v4194 = vmul.f32 1.0, %v4193
      %v4195 = vrcp.pop %v4169
      %v4196 = vmul.f32 1.0, %v4195
      %v4197 = vrcp.pop %v4170
      %v4198 = vmul.f32 1.0, %v4197
      %v4199 = vrcp.pop %v4171
      %v4200 = vmul.f32 1.0, %v4199
      %v4201 = vrcp.pop %v4172
      %v4202 = vmul.f32 1.0, %v4201
      %v4203 = vrcp.pop %v4173
      %v4204 = vmul.f32 1.0, %v4203
      %v4205 = vrcp.pop %v4174
      %v4206 = vmul.f32 1.0, %v4205
      %v4207 = vrcp.pop %v4175
      %v4208 = vmul.f32 1.0, %v4207
      %v4209 = vrcp.pop %v4176
      %v4210 = vmul.f32 1.0, %v4209
      %v4211 = vrcp.pop %v4177
      %v4212 = vmul.f32 1.0, %v4211
      %v4213 = vrcp.pop %v4178
      %v4214 = vmul.f32 1.0, %v4213
      %v4215 = vrcp.pop %v4179
      %v4216 = vmul.f32 1.0, %v4215
      %v4217 = vrcp.pop %v4180
      %v4218 = vmul.f32 1.0, %v4217
      %v4219 = vrcp.pop %v4181
      %v4220 = vmul.f32 1.0, %v4219
      %v4221 = vrcp.pop %v4182
      %v4222 = vmul.f32 1.0, %v4221
      %v4223 = vrcp.pop %v4183
      %v4224 = vmul.f32 1.0, %v4223
      %v4225 = vrcp.pop %v4184
      %v4226 = vmul.f32 1.0, %v4225
      %v4227 = vrcp.pop %v4185
      %v4228 = vmul.f32 1.0, %v4227
      %v4229 = vrcp.pop %v4186
      %v4230 = vmul.f32 1.0, %v4229
      %v4231 = vrcp.pop %v4187
      %v4232 = vmul.f32 1.0, %v4231
      %v4233 = vrcp.pop %v4188
      %v4234 = vmul.f32 1.0, %v4233
      %v4235 = vrcp.pop %v4189
      %v4236 = vmul.f32 1.0, %v4235
      %v4237 = vrcp.pop %v4190
      %v4238 = vmul.f32 1.0, %v4237
      %v4239 = vrcp.pop %v4191
      %v4240 = vmul.f32 1.0, %v4239
      %v4241 = vrcp.pop %v4192
      %v4242 = vmul.f32 1.0, %v4241
      %v4243 = vmul.f32 %v3970, %v4194
      %v4244 = vmul.f32 %v3975, %v4196
      %v4245 = vmul.f32 %v3980, %v4198
      %v4246 = vmul.f32 %v3985, %v4200
      %v4247 = vmul.f32 %v3990, %v4202
      %v4248 = vmul.f32 %v3995, %v4204
      %v4249 = vmul.f32 %v4000, %v4206
      %v4250 = vmul.f32 %v4005, %v4208
      %v4251 = vmul.f32 %v4010, %v4210
      %v4252 = vmul.f32 %v4015, %v4212
      %v4253 = vmul.f32 %v4020, %v4214
      %v4254 = vmul.f32 %v4025, %v4216
      %v4255 = vmul.f32 %v4030, %v4218
      %v4256 = vmul.f32 %v4035, %v4220
      %v4257 = vmul.f32 %v4040, %v4222
      %v4258 = vmul.f32 %v4045, %v4224
      %v4259 = vmul.f32 %v4050, %v4226
      %v4260 = vmul.f32 %v4055, %v4228
      %v4261 = vmul.f32 %v4060, %v4230
      %v4262 = vmul.f32 %v4065, %v4232
      %v4263 = vmul.f32 %v4070, %v4234
      %v4264 = vmul.f32 %v4075, %v4236
      %v4265 = vmul.f32 %v4080, %v4238
      %v4266 = vmul.f32 %v4085, %v4240
      %v4267 = vmul.f32 %v4090, %v4242
      %v4268 = vld [vmem:[%s9] sm:$0xff]
      %v4269 = vld [vmem:[%s9 + $0x8] sm:$0xff]
      %v4270 = vld [vmem:[%s448] sm:$0xff]
      %v4271 = vld [vmem:[%s448 + $0x8] sm:$0xff]
      %v4272 = vld [vmem:[%s448 + $0x10] sm:$0xff]
      %v4273 = vld [vmem:[%s448 + $0x18] sm:$0xff]
      %v4274 = vld [vmem:[%s448 + $0x20] sm:$0xff]
      %v4275 = vld [vmem:[%s448 + $0x28] sm:$0xff]
      %v4276 = vld [vmem:[%s448 + $0x30] sm:$0xff]
      %v4277 = vld [vmem:[%s448 + $0x38] sm:$0xff]
      %v4278 = vld [vmem:[%s448 + $0x40] sm:$0xff]
      %v4279 = vld [vmem:[%s448 + $0x48] sm:$0xff]
      %v4280 = vld [vmem:[%s448 + $0x50] sm:$0xff]
      %v4281 = vld [vmem:[%s448 + $0x58] sm:$0xff]
      %v4282 = vld [vmem:[%s448 + $0x60] sm:$0xff]
      %v4283 = vld [vmem:[%s448 + $0x68] sm:$0xff]
      %v4284 = vld [vmem:[%s448 + $0x70] sm:$0xff]
      %v4285 = vld [vmem:[%s448 + $0x78] sm:$0xff]
      %v4286 = vld [vmem:[%s448 + $0x80] sm:$0xff]
      %v4287 = vld [vmem:[%s448 + $0x88] sm:$0xff]
      %v4288 = vld [vmem:[%s448 + $0x90] sm:$0xff]
      %v4289 = vld [vmem:[%s448 + $0x98] sm:$0xff]
      %v4290 = vld [vmem:[%s448 + $0xa0] sm:$0xff]
      %v4291 = vld [vmem:[%s448 + $0xa8] sm:$0xff]
      %v4292 = vld [vmem:[%s448 + $0xb0] sm:$0xff]
      %v4293 = vld [vmem:[%s448 + $0xb8] sm:$0xff]
      %v4294 = vld [vmem:[%s448 + $0xc0] sm:$0xf]
      %v4295 = vld [vmem:[%s10] sm:$0xff]
      %v4296 = vld [vmem:[%s10 + $0x8] sm:$0xff]
      %v4298 = vsel %vm479, %v4270, 0
      %v4301 = vsel %vm479, %v4271, 0
      %v4304 = vsel %vm479, %v4272, 0
      %v4307 = vsel %vm479, %v4273, 0
      %v4310 = vsel %vm479, %v4274, 0
      %v4313 = vsel %vm479, %v4275, 0
      %v4316 = vsel %vm479, %v4276, 0
      %v4319 = vsel %vm479, %v4277, 0
      %v4322 = vsel %vm479, %v4278, 0
      %v4325 = vsel %vm479, %v4279, 0
      %v4328 = vsel %vm479, %v4280, 0
      %v4331 = vsel %vm479, %v4281, 0
      %v4334 = vsel %vm479, %v4282, 0
      %v4337 = vsel %vm479, %v4283, 0
      %v4340 = vsel %vm479, %v4284, 0
      %v4343 = vsel %vm479, %v4285, 0
      %v4346 = vsel %vm479, %v4286, 0
      %v4349 = vsel %vm479, %v4287, 0
      %v4352 = vsel %vm479, %v4288, 0
      %v4355 = vsel %vm479, %v4289, 0
      %v4358 = vsel %vm479, %v4290, 0
      %v4361 = vsel %vm479, %v4291, 0
      %v4364 = vsel %vm479, %v4292, 0
      %v4367 = vsel %vm479, %v4293, 0
      %v4370 = vsel %vm479, %v4294, 0
      %4372 = vmatprep.subr.mxu0 0.0
      %4373 = vmatpush1.msra.mxu0 0.0
      %4374 = vmatprep.subr.mxu0 0.0
      %4375 = vmatpush1.msra.mxu0 0.0
      %4376 = vmatprep.subr.mxu0 0.0
      %4377 = vmatpush1.msra.mxu0 0.0
      %4378 = vmatprep.subr.mxu0 0.0
      %4379 = vmatpush1.msra.mxu0 0.0
      %4380 = vmatprep.subr.mxu0 0.0
      %4381 = vmatpush1.msra.mxu0 0.0
      %4382 = vmatprep.subr.mxu0 0.0
      %4383 = vmatpush1.msra.mxu0 0.0
      %4384 = vmatprep.subr.mxu0 0.0
      %4385 = vmatpush1.msra.mxu0 0.0
      %4386 = vmatprep.subr.mxu0 0.0
      %4387 = vmatpush1.msra.mxu0 0.0
      %4388 = vmatprep.subr.mxu0 0.0
      %4389 = vmatpush1.msra.mxu0 0.0
      %4390 = vmatprep.subr.mxu0 0.0
      %4391 = vmatpush1.msra.mxu0 0.0
      %4392 = vmatprep.subr.mxu0 0.0
      %4393 = vmatpush1.msra.mxu0 0.0
      %4394 = vmatprep.subr.mxu0 0.0
      %4395 = vmatpush1.msra.mxu0 0.0
      %4396 = vmatprep.subr.mxu0 0.0
      %4397 = vmatpush1.msra.mxu0 0.0
      %4398 = vmatprep.subr.mxu0 0.0
      %4399 = vmatpush1.msra.mxu0 0.0
      %4400 = vmatprep.subr.mxu0 0.0
      %4401 = vmatpush1.msra.mxu0 %v4296
      %4402 = vmatprep.subr.mxu0 0.0
      %4403 = vmatpush1.msra.mxu0 %v4295
      %4404 = vmatprep.subr.mxu0 0.0
      %4405 = vmatpush2.msra.mxu0 0.0
      %4406 = vmatprep.subr.mxu0 0.0
      %4407 = vmatpush2.msra.mxu0 0.0
      %4408 = vmatprep.subr.mxu0 0.0
      %4409 = vmatpush2.msra.mxu0 0.0
      %4410 = vmatprep.subr.mxu0 0.0
      %4411 = vmatpush2.msra.mxu0 0.0
      %4412 = vmatprep.subr.mxu0 0.0
      %4413 = vmatpush2.msra.mxu0 0.0
      %4414 = vmatprep.subr.mxu0 0.0
      %4415 = vmatpush2.msra.mxu0 0.0
      %4416 = vmatprep.subr.mxu0 0.0
      %4417 = vmatpush2.msra.mxu0 0.0
      %4418 = vmatprep.subr.mxu0 0.0
      %4419 = vmatpush2.msra.mxu0 0.0
      %4420 = vmatprep.subr.mxu0 0.0
      %4421 = vmatpush2.msra.mxu0 0.0
      %4422 = vmatprep.subr.mxu0 0.0
      %4423 = vmatpush2.msra.mxu0 0.0
      %4424 = vmatprep.subr.mxu0 0.0
      %4425 = vmatpush2.msra.mxu0 0.0
      %4426 = vmatprep.subr.mxu0 0.0
      %4427 = vmatpush2.msra.mxu0 0.0
      %4428 = vmatprep.subr.mxu0 0.0
      %4429 = vmatpush2.msra.mxu0 0.0
      %4430 = vmatprep.subr.mxu0 0.0
      %4431 = vmatpush2.msra.mxu0 0.0
      %4432 = vmatprep.subr.mxu0 0.0
      %4433 = vmatpush2.msra.mxu0 0.0
      %4434 = vmatprep.subr.mxu0 0.0
      %4435 = vmatpush2.msra.mxu0 0.0
      %4436 = vmatprep.mubr.f32.mxu0 0.0
      %4437 = vmatmul.mubr.f32.gmra.mxu0 %v4298
      %v4438 = vpop.f32.mrf.mxu0
      %v4439 = vadd.f32 0.0, %v4438
      %v4440 = vpop.f32.mrf.mxu0
      %4441 = vmatprep.mubr.f32.mxu0 0.0
      %4442 = vmatmul.mubr.f32.gmra.mxu0 %v4301
      %v4443 = vpop.f32.mrf.mxu0
      %v4444 = vadd.f32 0.0, %v4443
      %v4445 = vpop.f32.mrf.mxu0
      %4446 = vmatprep.mubr.f32.mxu0 0.0
      %4447 = vmatmul.mubr.f32.gmra.mxu0 %v4304
      %v4448 = vpop.f32.mrf.mxu0
      %v4449 = vadd.f32 0.0, %v4448
      %v4450 = vpop.f32.mrf.mxu0
      %4451 = vmatprep.mubr.f32.mxu0 0.0
      %4452 = vmatmul.mubr.f32.gmra.mxu0 %v4307
      %v4453 = vpop.f32.mrf.mxu0
      %v4454 = vadd.f32 0.0, %v4453
      %v4455 = vpop.f32.mrf.mxu0
      %4456 = vmatprep.mubr.f32.mxu0 0.0
      %4457 = vmatmul.mubr.f32.gmra.mxu0 %v4310
      %v4458 = vpop.f32.mrf.mxu0
      %v4459 = vadd.f32 0.0, %v4458
      %v4460 = vpop.f32.mrf.mxu0
      %4461 = vmatprep.mubr.f32.mxu0 0.0
      %4462 = vmatmul.mubr.f32.gmra.mxu0 %v4313
      %v4463 = vpop.f32.mrf.mxu0
      %v4464 = vadd.f32 0.0, %v4463
      %v4465 = vpop.f32.mrf.mxu0
      %4466 = vmatprep.mubr.f32.mxu0 0.0
      %4467 = vmatmul.mubr.f32.gmra.mxu0 %v4316
      %v4468 = vpop.f32.mrf.mxu0
      %v4469 = vadd.f32 0.0, %v4468
      %v4470 = vpop.f32.mrf.mxu0
      %4471 = vmatprep.mubr.f32.mxu0 0.0
      %4472 = vmatmul.mubr.f32.gmra.mxu0 %v4319
      %v4473 = vpop.f32.mrf.mxu0
      %v4474 = vadd.f32 0.0, %v4473
      %v4475 = vpop.f32.mrf.mxu0
      %4476 = vmatprep.mubr.f32.mxu0 0.0
      %4477 = vmatmul.mubr.f32.gmra.mxu0 %v4322
      %v4478 = vpop.f32.mrf.mxu0
      %v4479 = vadd.f32 0.0, %v4478
      %v4480 = vpop.f32.mrf.mxu0
      %4481 = vmatprep.mubr.f32.mxu0 0.0
      %4482 = vmatmul.mubr.f32.gmra.mxu0 %v4325
      %v4483 = vpop.f32.mrf.mxu0
      %v4484 = vadd.f32 0.0, %v4483
      %v4485 = vpop.f32.mrf.mxu0
      %4486 = vmatprep.mubr.f32.mxu0 0.0
      %4487 = vmatmul.mubr.f32.gmra.mxu0 %v4328
      %v4488 = vpop.f32.mrf.mxu0
      %v4489 = vadd.f32 0.0, %v4488
      %v4490 = vpop.f32.mrf.mxu0
      %4491 = vmatprep.mubr.f32.mxu0 0.0
      %4492 = vmatmul.mubr.f32.gmra.mxu0 %v4331
      %v4493 = vpop.f32.mrf.mxu0
      %v4494 = vadd.f32 0.0, %v4493
      %v4495 = vpop.f32.mrf.mxu0
      %4496 = vmatprep.mubr.f32.mxu0 0.0
      %4497 = vmatmul.mubr.f32.gmra.mxu0 %v4334
      %v4498 = vpop.f32.mrf.mxu0
      %v4499 = vadd.f32 0.0, %v4498
      %v4500 = vpop.f32.mrf.mxu0
      %4501 = vmatprep.mubr.f32.mxu0 0.0
      %4502 = vmatmul.mubr.f32.gmra.mxu0 %v4337
      %v4503 = vpop.f32.mrf.mxu0
      %v4504 = vadd.f32 0.0, %v4503
      %v4505 = vpop.f32.mrf.mxu0
      %4506 = vmatprep.mubr.f32.mxu0 0.0
      %4507 = vmatmul.mubr.f32.gmra.mxu0 %v4340
      %v4508 = vpop.f32.mrf.mxu0
      %v4509 = vadd.f32 0.0, %v4508
      %v4510 = vpop.f32.mrf.mxu0
      %4511 = vmatprep.mubr.f32.mxu0 0.0
      %4512 = vmatmul.mubr.f32.gmra.mxu0 %v4343
      %v4513 = vpop.f32.mrf.mxu0
      %v4514 = vadd.f32 0.0, %v4513
      %v4515 = vpop.f32.mrf.mxu0
      %4516 = vmatprep.mubr.f32.mxu0 0.0
      %4517 = vmatmul.mubr.f32.gmra.mxu0 %v4346
      %v4518 = vpop.f32.mrf.mxu0
      %v4519 = vadd.f32 0.0, %v4518
      %v4520 = vpop.f32.mrf.mxu0
      %4521 = vmatprep.mubr.f32.mxu0 0.0
      %4522 = vmatmul.mubr.f32.gmra.mxu0 %v4349
      %v4523 = vpop.f32.mrf.mxu0
      %v4524 = vadd.f32 0.0, %v4523
      %v4525 = vpop.f32.mrf.mxu0
      %4526 = vmatprep.mubr.f32.mxu0 0.0
      %4527 = vmatmul.mubr.f32.gmra.mxu0 %v4352
      %v4528 = vpop.f32.mrf.mxu0
      %v4529 = vadd.f32 0.0, %v4528
      %v4530 = vpop.f32.mrf.mxu0
      %4531 = vmatprep.mubr.f32.mxu0 0.0
      %4532 = vmatmul.mubr.f32.gmra.mxu0 %v4355
      %v4533 = vpop.f32.mrf.mxu0
      %v4534 = vadd.f32 0.0, %v4533
      %v4535 = vpop.f32.mrf.mxu0
      %4536 = vmatprep.mubr.f32.mxu0 0.0
      %4537 = vmatmul.mubr.f32.gmra.mxu0 %v4358
      %v4538 = vpop.f32.mrf.mxu0
      %v4539 = vadd.f32 0.0, %v4538
      %v4540 = vpop.f32.mrf.mxu0
      %4541 = vmatprep.mubr.f32.mxu0 0.0
      %4542 = vmatmul.mubr.f32.gmra.mxu0 %v4361
      %v4543 = vpop.f32.mrf.mxu0
      %v4544 = vadd.f32 0.0, %v4543
      %v4545 = vpop.f32.mrf.mxu0
      %4546 = vmatprep.mubr.f32.mxu0 0.0
      %4547 = vmatmul.mubr.f32.gmra.mxu0 %v4364
      %v4548 = vpop.f32.mrf.mxu0
      %v4549 = vadd.f32 0.0, %v4548
      %v4550 = vpop.f32.mrf.mxu0
      %4551 = vmatprep.mubr.f32.mxu0 0.0
      %4552 = vmatmul.mubr.f32.gmra.mxu0 %v4367
      %v4553 = vpop.f32.mrf.mxu0
      %v4554 = vadd.f32 0.0, %v4553
      %v4555 = vpop.f32.mrf.mxu0
      %4556 = vmatprep.mubr.f32.mxu0 0.0
      %4557 = vmatmul.mubr.f32.gmra.mxu0 %v4370
      %v4558 = vpop.f32.mrf.mxu0
      %v4559 = vadd.f32 0.0, %v4558
      %v4560 = vpop.f32.mrf.mxu0
      %4561 = vdwg.mxu0
      %v4563 = vsel %vm479, %v4243, 0
      %v4566 = vsel %vm479, %v4244, 0
      %v4569 = vsel %vm479, %v4245, 0
      %v4572 = vsel %vm479, %v4246, 0
      %v4575 = vsel %vm479, %v4247, 0
      %v4578 = vsel %vm479, %v4248, 0
      %v4581 = vsel %vm479, %v4249, 0
      %v4584 = vsel %vm479, %v4250, 0
      %v4587 = vsel %vm479, %v4251, 0
      %v4590 = vsel %vm479, %v4252, 0
      %v4593 = vsel %vm479, %v4253, 0
      %v4596 = vsel %vm479, %v4254, 0
      %v4599 = vsel %vm479, %v4255, 0
      %v4602 = vsel %vm479, %v4256, 0
      %v4605 = vsel %vm479, %v4257, 0
      %v4608 = vsel %vm479, %v4258, 0
      %v4611 = vsel %vm479, %v4259, 0
      %v4614 = vsel %vm479, %v4260, 0
      %v4617 = vsel %vm479, %v4261, 0
      %v4620 = vsel %vm479, %v4262, 0
      %v4623 = vsel %vm479, %v4263, 0
      %v4626 = vsel %vm479, %v4264, 0
      %v4629 = vsel %vm479, %v4265, 0
      %v4632 = vsel %vm479, %v4266, 0
      %v4635 = vsel %vm479, %v4267, 0
      %4637 = vmatprep.subr.mxu0 0.0
      %4638 = vmatpush1.msra.mxu0 0.0
      %4639 = vmatprep.subr.mxu0 0.0
      %4640 = vmatpush1.msra.mxu0 0.0
      %4641 = vmatprep.subr.mxu0 0.0
      %4642 = vmatpush1.msra.mxu0 0.0
      %4643 = vmatprep.subr.mxu0 0.0
      %4644 = vmatpush1.msra.mxu0 0.0
      %4645 = vmatprep.subr.mxu0 0.0
      %4646 = vmatpush1.msra.mxu0 0.0
      %4647 = vmatprep.subr.mxu0 0.0
      %4648 = vmatpush1.msra.mxu0 0.0
      %4649 = vmatprep.subr.mxu0 0.0
      %4650 = vmatpush1.msra.mxu0 0.0
      %4651 = vmatprep.subr.mxu0 0.0
      %4652 = vmatpush1.msra.mxu0 0.0
      %4653 = vmatprep.subr.mxu0 0.0
      %4654 = vmatpush1.msra.mxu0 0.0
      %4655 = vmatprep.subr.mxu0 0.0
      %4656 = vmatpush1.msra.mxu0 0.0
      %4657 = vmatprep.subr.mxu0 0.0
      %4658 = vmatpush1.msra.mxu0 0.0
      %4659 = vmatprep.subr.mxu0 0.0
      %4660 = vmatpush1.msra.mxu0 0.0
      %4661 = vmatprep.subr.mxu0 0.0
      %4662 = vmatpush1.msra.mxu0 0.0
      %4663 = vmatprep.subr.mxu0 0.0
      %4664 = vmatpush1.msra.mxu0 0.0
      %4665 = vmatprep.subr.mxu0 0.0
      %4666 = vmatpush1.msra.mxu0 %v4269
      %4667 = vmatprep.subr.mxu0 0.0
      %4668 = vmatpush1.msra.mxu0 %v4268
      %4669 = vmatprep.subr.mxu0 0.0
      %4670 = vmatpush2.msra.mxu0 0.0
      %4671 = vmatprep.subr.mxu0 0.0
      %4672 = vmatpush2.msra.mxu0 0.0
      %4673 = vmatprep.subr.mxu0 0.0
      %4674 = vmatpush2.msra.mxu0 0.0
      %4675 = vmatprep.subr.mxu0 0.0
      %4676 = vmatpush2.msra.mxu0 0.0
      %4677 = vmatprep.subr.mxu0 0.0
      %4678 = vmatpush2.msra.mxu0 0.0
      %4679 = vmatprep.subr.mxu0 0.0
      %4680 = vmatpush2.msra.mxu0 0.0
      %4681 = vmatprep.subr.mxu0 0.0
      %4682 = vmatpush2.msra.mxu0 0.0
      %4683 = vmatprep.subr.mxu0 0.0
      %4684 = vmatpush2.msra.mxu0 0.0
      %4685 = vmatprep.subr.mxu0 0.0
      %4686 = vmatpush2.msra.mxu0 0.0
      %4687 = vmatprep.subr.mxu0 0.0
      %4688 = vmatpush2.msra.mxu0 0.0
      %4689 = vmatprep.subr.mxu0 0.0
      %4690 = vmatpush2.msra.mxu0 0.0
      %4691 = vmatprep.subr.mxu0 0.0
      %4692 = vmatpush2.msra.mxu0 0.0
      %4693 = vmatprep.subr.mxu0 0.0
      %4694 = vmatpush2.msra.mxu0 0.0
      %4695 = vmatprep.subr.mxu0 0.0
      %4696 = vmatpush2.msra.mxu0 0.0
      %4697 = vmatprep.subr.mxu0 0.0
      %4698 = vmatpush2.msra.mxu0 0.0
      %4699 = vmatprep.subr.mxu0 0.0
      %4700 = vmatpush2.msra.mxu0 0.0
      %4701 = vmatprep.mubr.f32.mxu0 0.0
      %4702 = vmatmul.mubr.f32.gmra.mxu0 %v4563
      %v4703 = vpop.f32.mrf.mxu0
      %v4704 = vadd.f32 %v4439, %v4703
      %v4705 = vpop.f32.mrf.mxu0
      %4706 = vmatprep.mubr.f32.mxu0 0.0
      %4707 = vmatmul.mubr.f32.gmra.mxu0 %v4566
      %v4708 = vpop.f32.mrf.mxu0
      %v4709 = vadd.f32 %v4444, %v4708
      %v4710 = vpop.f32.mrf.mxu0
      %4711 = vmatprep.mubr.f32.mxu0 0.0
      %4712 = vmatmul.mubr.f32.gmra.mxu0 %v4569
      %v4713 = vpop.f32.mrf.mxu0
      %v4714 = vadd.f32 %v4449, %v4713
      %v4715 = vpop.f32.mrf.mxu0
      %4716 = vmatprep.mubr.f32.mxu0 0.0
      %4717 = vmatmul.mubr.f32.gmra.mxu0 %v4572
      %v4718 = vpop.f32.mrf.mxu0
      %v4719 = vadd.f32 %v4454, %v4718
      %v4720 = vpop.f32.mrf.mxu0
      %4721 = vmatprep.mubr.f32.mxu0 0.0
      %4722 = vmatmul.mubr.f32.gmra.mxu0 %v4575
      %v4723 = vpop.f32.mrf.mxu0
      %v4724 = vadd.f32 %v4459, %v4723
      %v4725 = vpop.f32.mrf.mxu0
      %4726 = vmatprep.mubr.f32.mxu0 0.0
      %4727 = vmatmul.mubr.f32.gmra.mxu0 %v4578
      %v4728 = vpop.f32.mrf.mxu0
      %v4729 = vadd.f32 %v4464, %v4728
      %v4730 = vpop.f32.mrf.mxu0
      %4731 = vmatprep.mubr.f32.mxu0 0.0
      %4732 = vmatmul.mubr.f32.gmra.mxu0 %v4581
      %v4733 = vpop.f32.mrf.mxu0
      %v4734 = vadd.f32 %v4469, %v4733
      %v4735 = vpop.f32.mrf.mxu0
      %4736 = vmatprep.mubr.f32.mxu0 0.0
      %4737 = vmatmul.mubr.f32.gmra.mxu0 %v4584
      %v4738 = vpop.f32.mrf.mxu0
      %v4739 = vadd.f32 %v4474, %v4738
      %v4740 = vpop.f32.mrf.mxu0
      %4741 = vmatprep.mubr.f32.mxu0 0.0
      %4742 = vmatmul.mubr.f32.gmra.mxu0 %v4587
      %v4743 = vpop.f32.mrf.mxu0
      %v4744 = vadd.f32 %v4479, %v4743
      %v4745 = vpop.f32.mrf.mxu0
      %4746 = vmatprep.mubr.f32.mxu0 0.0
      %4747 = vmatmul.mubr.f32.gmra.mxu0 %v4590
      %v4748 = vpop.f32.mrf.mxu0
      %v4749 = vadd.f32 %v4484, %v4748
      %v4750 = vpop.f32.mrf.mxu0
      %4751 = vmatprep.mubr.f32.mxu0 0.0
      %4752 = vmatmul.mubr.f32.gmra.mxu0 %v4593
      %v4753 = vpop.f32.mrf.mxu0
      %v4754 = vadd.f32 %v4489, %v4753
      %v4755 = vpop.f32.mrf.mxu0
      %4756 = vmatprep.mubr.f32.mxu0 0.0
      %4757 = vmatmul.mubr.f32.gmra.mxu0 %v4596
      %v4758 = vpop.f32.mrf.mxu0
      %v4759 = vadd.f32 %v4494, %v4758
      %v4760 = vpop.f32.mrf.mxu0
      %4761 = vmatprep.mubr.f32.mxu0 0.0
      %4762 = vmatmul.mubr.f32.gmra.mxu0 %v4599
      %v4763 = vpop.f32.mrf.mxu0
      %v4764 = vadd.f32 %v4499, %v4763
      %v4765 = vpop.f32.mrf.mxu0
      %4766 = vmatprep.mubr.f32.mxu0 0.0
      %4767 = vmatmul.mubr.f32.gmra.mxu0 %v4602
      %v4768 = vpop.f32.mrf.mxu0
      %v4769 = vadd.f32 %v4504, %v4768
      %v4770 = vpop.f32.mrf.mxu0
      %4771 = vmatprep.mubr.f32.mxu0 0.0
      %4772 = vmatmul.mubr.f32.gmra.mxu0 %v4605
      %v4773 = vpop.f32.mrf.mxu0
      %v4774 = vadd.f32 %v4509, %v4773
      %v4775 = vpop.f32.mrf.mxu0
      %4776 = vmatprep.mubr.f32.mxu0 0.0
      %4777 = vmatmul.mubr.f32.gmra.mxu0 %v4608
      %v4778 = vpop.f32.mrf.mxu0
      %v4779 = vadd.f32 %v4514, %v4778
      %v4780 = vpop.f32.mrf.mxu0
      %4781 = vmatprep.mubr.f32.mxu0 0.0
      %4782 = vmatmul.mubr.f32.gmra.mxu0 %v4611
      %v4783 = vpop.f32.mrf.mxu0
      %v4784 = vadd.f32 %v4519, %v4783
      %v4785 = vpop.f32.mrf.mxu0
      %4786 = vmatprep.mubr.f32.mxu0 0.0
      %4787 = vmatmul.mubr.f32.gmra.mxu0 %v4614
      %v4788 = vpop.f32.mrf.mxu0
      %v4789 = vadd.f32 %v4524, %v4788
      %v4790 = vpop.f32.mrf.mxu0
      %4791 = vmatprep.mubr.f32.mxu0 0.0
      %4792 = vmatmul.mubr.f32.gmra.mxu0 %v4617
      %v4793 = vpop.f32.mrf.mxu0
      %v4794 = vadd.f32 %v4529, %v4793
      %v4795 = vpop.f32.mrf.mxu0
      %4796 = vmatprep.mubr.f32.mxu0 0.0
      %4797 = vmatmul.mubr.f32.gmra.mxu0 %v4620
      %v4798 = vpop.f32.mrf.mxu0
      %v4799 = vadd.f32 %v4534, %v4798
      %v4800 = vpop.f32.mrf.mxu0
      %4801 = vmatprep.mubr.f32.mxu0 0.0
      %4802 = vmatmul.mubr.f32.gmra.mxu0 %v4623
      %v4803 = vpop.f32.mrf.mxu0
      %v4804 = vadd.f32 %v4539, %v4803
      %v4805 = vpop.f32.mrf.mxu0
      %4806 = vmatprep.mubr.f32.mxu0 0.0
      %4807 = vmatmul.mubr.f32.gmra.mxu0 %v4626
      %v4808 = vpop.f32.mrf.mxu0
      %v4809 = vadd.f32 %v4544, %v4808
      %v4810 = vpop.f32.mrf.mxu0
      %4811 = vmatprep.mubr.f32.mxu0 0.0
      %4812 = vmatmul.mubr.f32.gmra.mxu0 %v4629
      %v4813 = vpop.f32.mrf.mxu0
      %v4814 = vadd.f32 %v4549, %v4813
      %v4815 = vpop.f32.mrf.mxu0
      %4816 = vmatprep.mubr.f32.mxu0 0.0
      %4817 = vmatmul.mubr.f32.gmra.mxu0 %v4632
      %v4818 = vpop.f32.mrf.mxu0
      %v4819 = vadd.f32 %v4554, %v4818
      %v4820 = vpop.f32.mrf.mxu0
      %4821 = vmatprep.mubr.f32.mxu0 0.0
      %4822 = vmatmul.mubr.f32.gmra.mxu0 %v4635
      %v4823 = vpop.f32.mrf.mxu0
      %v4824 = vadd.f32 %v4559, %v4823
      %v4825 = vpop.f32.mrf.mxu0
      %4826 = vdwg.mxu0
      %v4827 = vld [vmem:[%s11] sm:$0x1]
      %v4829 = vlaneseq
      %v4830 = vshrl.u32 %v4829, 7
      %v4831 = vsub.s32 0, %v4830
      %v4832 = vrot.slane %v4827, %v4831
      %v4834 = vadd.f32 %v4704, %v4832
      %v4835 = vadd.f32 %v4709, %v4832
      %v4836 = vadd.f32 %v4714, %v4832
      %v4837 = vadd.f32 %v4719, %v4832
      %v4838 = vadd.f32 %v4724, %v4832
      %v4839 = vadd.f32 %v4729, %v4832
      %v4840 = vadd.f32 %v4734, %v4832
      %v4841 = vadd.f32 %v4739, %v4832
      %v4842 = vadd.f32 %v4744, %v4832
      %v4843 = vadd.f32 %v4749, %v4832
      %v4844 = vadd.f32 %v4754, %v4832
      %v4845 = vadd.f32 %v4759, %v4832
      %v4846 = vadd.f32 %v4764, %v4832
      %v4847 = vadd.f32 %v4769, %v4832
      %v4848 = vadd.f32 %v4774, %v4832
      %v4849 = vadd.f32 %v4779, %v4832
      %v4850 = vadd.f32 %v4784, %v4832
      %v4851 = vadd.f32 %v4789, %v4832
      %v4852 = vadd.f32 %v4794, %v4832
      %v4853 = vadd.f32 %v4799, %v4832
      %v4854 = vadd.f32 %v4804, %v4832
      %v4855 = vadd.f32 %v4809, %v4832
      %v4856 = vadd.f32 %v4814, %v4832
      %v4857 = vadd.f32 %v4819, %v4832
      %v4858 = vadd.f32 %v4824, %v4832
      %v4859 = vxor.u32 %v4834, 2147483648
      %v4860 = vxor.u32 %v4835, 2147483648
      %v4861 = vxor.u32 %v4836, 2147483648
      %v4862 = vxor.u32 %v4837, 2147483648
      %v4863 = vxor.u32 %v4838, 2147483648
      %v4864 = vxor.u32 %v4839, 2147483648
      %v4865 = vxor.u32 %v4840, 2147483648
      %v4866 = vxor.u32 %v4841, 2147483648
      %v4867 = vxor.u32 %v4842, 2147483648
      %v4868 = vxor.u32 %v4843, 2147483648
      %v4869 = vxor.u32 %v4844, 2147483648
      %v4870 = vxor.u32 %v4845, 2147483648
      %v4871 = vxor.u32 %v4846, 2147483648
      %v4872 = vxor.u32 %v4847, 2147483648
      %v4873 = vxor.u32 %v4848, 2147483648
      %v4874 = vxor.u32 %v4849, 2147483648
      %v4875 = vxor.u32 %v4850, 2147483648
      %v4876 = vxor.u32 %v4851, 2147483648
      %v4877 = vxor.u32 %v4852, 2147483648
      %v4878 = vxor.u32 %v4853, 2147483648
      %v4879 = vxor.u32 %v4854, 2147483648
      %v4880 = vxor.u32 %v4855, 2147483648
      %v4881 = vxor.u32 %v4856, 2147483648
      %v4882 = vxor.u32 %v4857, 2147483648
      %v4883 = vxor.u32 %v4858, 2147483648
      %v4884 = vmul.f32 %v4859, 1.442695
      %v4885 = vpow.pop %v4884
      %v4886 = vmul.f32 %v4860, 1.442695
      %v4887 = vpow.pop %v4886
      %v4888 = vmul.f32 %v4861, 1.442695
      %v4889 = vpow.pop %v4888
      %v4890 = vmul.f32 %v4862, 1.442695
      %v4891 = vpow.pop %v4890
      %v4892 = vmul.f32 %v4863, 1.442695
      %v4893 = vpow.pop %v4892
      %v4894 = vmul.f32 %v4864, 1.442695
      %v4895 = vpow.pop %v4894
      %v4896 = vmul.f32 %v4865, 1.442695
      %v4897 = vpow.pop %v4896
      %v4898 = vmul.f32 %v4866, 1.442695
      %v4899 = vpow.pop %v4898
      %v4900 = vmul.f32 %v4867, 1.442695
      %v4901 = vpow.pop %v4900
      %v4902 = vmul.f32 %v4868, 1.442695
      %v4903 = vpow.pop %v4902
      %v4904 = vmul.f32 %v4869, 1.442695
      %v4905 = vpow.pop %v4904
      %v4906 = vmul.f32 %v4870, 1.442695
      %v4907 = vpow.pop %v4906
      %v4908 = vmul.f32 %v4871, 1.442695
      %v4909 = vpow.pop %v4908
      %v4910 = vmul.f32 %v4872, 1.442695
      %v4911 = vpow.pop %v4910
      %v4912 = vmul.f32 %v4873, 1.442695
      %v4913 = vpow.pop %v4912
      %v4914 = vmul.f32 %v4874, 1.442695
      %v4915 = vpow.pop %v4914
      %v4916 = vmul.f32 %v4875, 1.442695
      %v4917 = vpow.pop %v4916
      %v4918 = vmul.f32 %v4876, 1.442695
      %v4919 = vpow.pop %v4918
      %v4920 = vmul.f32 %v4877, 1.442695
      %v4921 = vpow.pop %v4920
      %v4922 = vmul.f32 %v4878, 1.442695
      %v4923 = vpow.pop %v4922
      %v4924 = vmul.f32 %v4879, 1.442695
      %v4925 = vpow.pop %v4924
      %v4926 = vmul.f32 %v4880, 1.442695
      %v4927 = vpow.pop %v4926
      %v4928 = vmul.f32 %v4881, 1.442695
      %v4929 = vpow.pop %v4928
      %v4930 = vmul.f32 %v4882, 1.442695
      %v4931 = vpow.pop %v4930
      %v4932 = vmul.f32 %v4883, 1.442695
      %v4933 = vpow.pop %v4932
      %v4934 = vadd.f32 %v4885, 1.0
      %v4935 = vadd.f32 %v4887, 1.0
      %v4936 = vadd.f32 %v4889, 1.0
      %v4937 = vadd.f32 %v4891, 1.0
      %v4938 = vadd.f32 %v4893, 1.0
      %v4939 = vadd.f32 %v4895, 1.0
      %v4940 = vadd.f32 %v4897, 1.0
      %v4941 = vadd.f32 %v4899, 1.0
      %v4942 = vadd.f32 %v4901, 1.0
      %v4943 = vadd.f32 %v4903, 1.0
      %v4944 = vadd.f32 %v4905, 1.0
      %v4945 = vadd.f32 %v4907, 1.0
      %v4946 = vadd.f32 %v4909, 1.0
      %v4947 = vadd.f32 %v4911, 1.0
      %v4948 = vadd.f32 %v4913, 1.0
      %v4949 = vadd.f32 %v4915, 1.0
      %v4950 = vadd.f32 %v4917, 1.0
      %v4951 = vadd.f32 %v4919, 1.0
      %v4952 = vadd.f32 %v4921, 1.0
      %v4953 = vadd.f32 %v4923, 1.0
      %v4954 = vadd.f32 %v4925, 1.0
      %v4955 = vadd.f32 %v4927, 1.0
      %v4956 = vadd.f32 %v4929, 1.0
      %v4957 = vadd.f32 %v4931, 1.0
      %v4958 = vadd.f32 %v4933, 1.0
      %v4959 = vrcp.pop %v4934
      %v4960 = vmul.f32 1.0, %v4959
      %v4961 = vrcp.pop %v4935
      %v4962 = vmul.f32 1.0, %v4961
      %v4963 = vrcp.pop %v4936
      %v4964 = vmul.f32 1.0, %v4963
      %v4965 = vrcp.pop %v4937
      %v4966 = vmul.f32 1.0, %v4965
      %v4967 = vrcp.pop %v4938
      %v4968 = vmul.f32 1.0, %v4967
      %v4969 = vrcp.pop %v4939
      %v4970 = vmul.f32 1.0, %v4969
      %v4971 = vrcp.pop %v4940
      %v4972 = vmul.f32 1.0, %v4971
      %v4973 = vrcp.pop %v4941
      %v4974 = vmul.f32 1.0, %v4973
      %v4975 = vrcp.pop %v4942
      %v4976 = vmul.f32 1.0, %v4975
      %v4977 = vrcp.pop %v4943
      %v4978 = vmul.f32 1.0, %v4977
      %v4979 = vrcp.pop %v4944
      %v4980 = vmul.f32 1.0, %v4979
      %v4981 = vrcp.pop %v4945
      %v4982 = vmul.f32 1.0, %v4981
      %v4983 = vrcp.pop %v4946
      %v4984 = vmul.f32 1.0, %v4983
      %v4985 = vrcp.pop %v4947
      %v4986 = vmul.f32 1.0, %v4985
      %v4987 = vrcp.pop %v4948
      %v4988 = vmul.f32 1.0, %v4987
      %v4989 = vrcp.pop %v4949
      %v4990 = vmul.f32 1.0, %v4989
      %v4991 = vrcp.pop %v4950
      %v4992 = vmul.f32 1.0, %v4991
      %v4993 = vrcp.pop %v4951
      %v4994 = vmul.f32 1.0, %v4993
      %v4995 = vrcp.pop %v4952
      %v4996 = vmul.f32 1.0, %v4995
      %v4997 = vrcp.pop %v4953
      %v4998 = vmul.f32 1.0, %v4997
      %v4999 = vrcp.pop %v4954
      %v5000 = vmul.f32 1.0, %v4999
      %v5001 = vrcp.pop %v4955
      %v5002 = vmul.f32 1.0, %v5001
      %v5003 = vrcp.pop %v4956
      %v5004 = vmul.f32 1.0, %v5003
      %v5005 = vrcp.pop %v4957
      %v5006 = vmul.f32 1.0, %v5005
      %v5007 = vrcp.pop %v4958
      %v5008 = vmul.f32 1.0, %v5007
      %v5009 = vmul.f32 %v4834, %v4960
      %v5010 = vmul.f32 %v4835, %v4962
      %v5011 = vmul.f32 %v4836, %v4964
      %v5012 = vmul.f32 %v4837, %v4966
      %v5013 = vmul.f32 %v4838, %v4968
      %v5014 = vmul.f32 %v4839, %v4970
      %v5015 = vmul.f32 %v4840, %v4972
      %v5016 = vmul.f32 %v4841, %v4974
      %v5017 = vmul.f32 %v4842, %v4976
      %v5018 = vmul.f32 %v4843, %v4978
      %v5019 = vmul.f32 %v4844, %v4980
      %v5020 = vmul.f32 %v4845, %v4982
      %v5021 = vmul.f32 %v4846, %v4984
      %v5022 = vmul.f32 %v4847, %v4986
      %v5023 = vmul.f32 %v4848, %v4988
      %v5024 = vmul.f32 %v4849, %v4990
      %v5025 = vmul.f32 %v4850, %v4992
      %v5026 = vmul.f32 %v4851, %v4994
      %v5027 = vmul.f32 %v4852, %v4996
      %v5028 = vmul.f32 %v4853, %v4998
      %v5029 = vmul.f32 %v4854, %v5000
      %v5030 = vmul.f32 %v4855, %v5002
      %v5031 = vmul.f32 %v4856, %v5004
      %v5032 = vmul.f32 %v4857, %v5006
      %v5033 = vmul.f32 %v4858, %v5008
      %5034 = vxpose.xlu0.b32.start [1/16] %v5009, 128
      %5035 = vxpose.xlu0.b32.cont [2/16] %v5010, 128
      %5036 = vxpose.xlu0.b32.cont [3/16] %v5011, 128
      %5037 = vxpose.xlu0.b32.cont [4/16] %v5012, 128
      %5038 = vxpose.xlu0.b32.cont [5/16] %v5013, 128
      %5039 = vxpose.xlu0.b32.cont [6/16] %v5014, 128
      %5040 = vxpose.xlu0.b32.cont [7/16] %v5015, 128
      %5041 = vxpose.xlu0.b32.cont [8/16] %v5016, 128
      %5042 = vxpose.xlu0.b32.cont [9/16] %v5017, 128
      %5043 = vxpose.xlu0.b32.cont [10/16] %v5018, 128
      %5044 = vxpose.xlu0.b32.cont [11/16] %v5019, 128
      %5045 = vxpose.xlu0.b32.cont [12/16] %v5020, 128
      %5046 = vxpose.xlu0.b32.cont [13/16] %v5021, 128
      %5047 = vxpose.xlu0.b32.cont [14/16] %v5022, 128
      %5048 = vxpose.xlu0.b32.cont [15/16] %v5023, 128
      %5049 = vxpose.xlu0.b32.end [16/16] %v5024, 128
      %v5050 = vpop.trf.xlu0
      %v5051 = vpop.trf.xlu0
      %v5052 = vpop.trf.xlu0
      %v5053 = vpop.trf.xlu0
      %v5054 = vpop.trf.xlu0
      %v5055 = vpop.trf.xlu0
      %v5056 = vpop.trf.xlu0
      %v5057 = vpop.trf.xlu0
      %v5058 = vpop.trf.xlu0
      %v5059 = vpop.trf.xlu0
      %v5060 = vpop.trf.xlu0
      %v5061 = vpop.trf.xlu0
      %v5062 = vpop.trf.xlu0
      %v5063 = vpop.trf.xlu0
      %v5064 = vpop.trf.xlu0
      %v5065 = vpop.trf.xlu0
      %5066 = vxpose.xlu0.b32.start [1/16] %v5025, 128
      %5067 = vxpose.xlu0.b32.cont [2/16] %v5026, 128
      %5068 = vxpose.xlu0.b32.cont [3/16] %v5027, 128
      %5069 = vxpose.xlu0.b32.cont [4/16] %v5028, 128
      %5070 = vxpose.xlu0.b32.cont [5/16] %v5029, 128
      %5071 = vxpose.xlu0.b32.cont [6/16] %v5030, 128
      %5072 = vxpose.xlu0.b32.cont [7/16] %v5031, 128
      %5073 = vxpose.xlu0.b32.cont [8/16] %v5032, 128
      %5074 = vxpose.xlu0.b32.cont [9/16] %v5033, 128
      %5075 = vxpose.xlu0.b32.cont [10/16] 0.0, 128
      %5076 = vxpose.xlu0.b32.cont [11/16] 0.0, 128
      %5077 = vxpose.xlu0.b32.cont [12/16] 0.0, 128
      %5078 = vxpose.xlu0.b32.cont [13/16] 0.0, 128
      %5079 = vxpose.xlu0.b32.cont [14/16] 0.0, 128
      %5080 = vxpose.xlu0.b32.cont [15/16] 0.0, 128
      %5081 = vxpose.xlu0.b32.end [16/16] 0.0, 128
      %v5082 = vpop.trf.xlu0
      %v5083 = vpop.trf.xlu0
      %v5084 = vpop.trf.xlu0
      %v5085 = vpop.trf.xlu0
      %v5086 = vpop.trf.xlu0
      %v5087 = vpop.trf.xlu0
      %v5088 = vpop.trf.xlu0
      %v5089 = vpop.trf.xlu0
      %v5090 = vpop.trf.xlu0
      %v5091 = vpop.trf.xlu0
      %v5092 = vpop.trf.xlu0
      %v5093 = vpop.trf.xlu0
      %v5094 = vpop.trf.xlu0
      %v5095 = vpop.trf.xlu0
      %v5096 = vpop.trf.xlu0
      %v5097 = vpop.trf.xlu0
      %5098 = vst [vmem:[%s453] sm:$0xff] %v5050
      %vm5099 = vcmask 556032
      %5100 = vst.msk [vmem:[%s453 + $0x8] sm:$0xff] %vm5099, %v5082
      %5101 = vst [vmem:[%s453 + $0x10] sm:$0xff] %v5051
      %5102 = vst.msk [vmem:[%s453 + $0x18] sm:$0xff] %vm5099, %v5083
      %5103 = vst [vmem:[%s453 + $0x20] sm:$0xff] %v5052
      %5104 = vst.msk [vmem:[%s453 + $0x28] sm:$0xff] %vm5099, %v5084
      %5105 = vst [vmem:[%s453 + $0x30] sm:$0xff] %v5053
      %5106 = vst.msk [vmem:[%s453 + $0x38] sm:$0xff] %vm5099, %v5085
      %p5107 = scmp.lt.s32.totalorder %s23, 1
      %s5108 = scalar_select %p5107, %s23, 1
      %s5109 = smul.addr %s5108, 8
      %s5110 = smul.addr %s5109, 8
      %s5111 = scalar_lea.vmem %s12, %s5110
      // Predicated region
      $region69: #{csrmbc_pallas.5} parent=67 // pred_check
        %p5112 = pneg %p308
      $region70: #{csrmbc_pallas.5} parent=67 // pred_check_branch
        %5114 = sbr.rel (%p5112) target = $region72
      $region71: #{csrmbc_pallas.5} parent=67 // pred_region
        _
      $region72: #{csrmbc_pallas.5} parent=67 // pred_fallthru
        _
    $region68: #{csrmbc_pallas.5} parent=5 // pred_fallthru
      _
    %p5115 = scmp.le.s32.totalorder 2, %s18
    // Predicated region
    $region73: #{csrmbc_pallas.5} parent=5 // pred_check
      %p5116 = pneg %p5115
    $region74: #{csrmbc_pallas.5} parent=5 // pred_check_branch
      %5118 = sbr.rel (%p5116) target = $region76
    $region75: #{csrmbc_pallas.5} parent=5 // pred_region
      %s5119 = ssub.s32 %s18, 2
      // Predicated region
      $region77: #{csrmbc_pallas.5} parent=75 // pred_check
        %p5120 = pneg %p314
      $region78: #{csrmbc_pallas.5} parent=75 // pred_check_branch
        %5122 = sbr.rel (%p5120) target = $region80
      $region79: #{csrmbc_pallas.5} parent=75 // pred_region
        %p5123 = scmp.lt.s32.totalorder %s24, 1
        %s5124 = scalar_select %p5123, %s24, 1
        %s5125 = smul.addr %s5124, 8
        %s5126 = smul.addr %s5125, 8
        %s5127 = scalar_lea.vmem %s12, %s5126
      $region80: #{csrmbc_pallas.5} parent=75 // pred_fallthru
        _
    $region76: #{csrmbc_pallas.5} parent=5 // pred_fallthru
      _
  $region6: #{csrmbc_pallas.5} parent=0 // loop_footer
    %s22 = sadd.s32 1, %s18
  $region7: #{csrmbc_pallas.5} parent=0 // loop_footer_branch
    %17 = sbr.rel target = $region3
  $region8: #{csrmbc_pallas.5} parent=0 // loop_exit
    _

</llo_original>
